<compile_context>
chip_gen: v5e
topology: v5e:2x2
jax: 0.10.0
libtpu: 0.0.40
codegen_flags: <defaults>
</compile_context>

<pallas_src>
import jax
import jax.numpy as jnp
import numpy as np
from jax import lax
from jax.experimental import pallas as pl
from jax.experimental.pallas import tpu as pltpu


# ----------------------------------------------------------------------------
# Fused kernel: conv1+ReLU -> conv2+ReLU -> BatchNorm(batch stats) -> MaxPool2x2
#   x_ref     : (B, H, W, Cin)        NHWC input
#   w1_ref    : (9*Cin, Cout)         conv1 weights, tap-major rows (t*Cin+ci)
#   b1_ref    : (1, Cout)
#   w2_ref    : (9*Cout, Cout)        conv2 weights
#   b2_ref    : (1, Cout)
#   g_ref     : (1, Cout)             BN gamma
#   bt_ref    : (1, Cout)             BN beta
#   o_ref     : (B, H//2, W//2, Cout)
#   pad1_ref  : VMEM (B, H+2, W+2, Cin)          zero-padded conv1 input
#   pad2_ref  : VMEM (B, H+2, W+2, Cout)         zero-padded conv2 input
#   patch_ref : VMEM (B, H, W, 9*max(Cin,Cout))  shared im2col patch buffer
# ----------------------------------------------------------------------------
def conv_block_kernel(x_ref, w1_ref, b1_ref, w2_ref, b2_ref, g_ref, bt_ref,
                      o_ref, pad1_ref, pad2_ref, patch_ref):
    B, H, W, _ = x_ref.shape
    Cout = o_ref.shape[-1]
    HW = H * W
    eps = 1e-5

    def conv3x3_relu(pad_ref, src_nhwc, w_ref, b_ref):
        cin = src_nhwc.shape[-1]
        k = 9 * cin
        # In-kernel zero padding (no HBM round trip for the padded tensor).
        pad_ref[...] = jnp.zeros_like(pad_ref)
        pad_ref[:, 1:H + 1, 1:W + 1, :] = src_nhwc
        # im2col: nine shifted taps written tap-major into the shared buffer.
        for kh in range(3):
            for kw in range(3):
                t = kh * 3 + kw
                patch_ref[:, :, :, t * cin:(t + 1) * cin] = \
                    pad_ref[:, kh:kh + H, kw:kw + W, :]
        patches = patch_ref[:, :, :, :k].reshape(B * HW, k)
        # One MXU matmul with K = 9*cin (instead of nine tiny K=cin dots),
        # bias + ReLU fused on the f32 accumulator.
        acc = jnp.dot(patches, w_ref[...], preferred_element_type=jnp.float32)
        return jnp.maximum(acc + b_ref[...], 0.0)            # (B*HW, Cout)

    y1 = conv3x3_relu(pad1_ref, x_ref[...], w1_ref, b1_ref)
    y2 = conv3x3_relu(pad2_ref, y1.reshape(B, H, W, Cout), w2_ref, b2_ref)

    # BatchNorm2d, training-mode batch statistics (biased variance).  Two-pass
    # centered formulation for numerical safety; runs directly on the flat
    # (B*HW, Cout) matmul output (no extra relayouts).
    mean = jnp.mean(y2, axis=0, keepdims=True)                      # (1, Cout)
    cen = y2 - mean
    var = jnp.mean(cen * cen, axis=0, keepdims=True)                # (1, Cout)
    yn = cen * (g_ref[...] * lax.rsqrt(var + eps)) + bt_ref[...]
    yn = yn.reshape(B, H, W, Cout)

    # MaxPool 2x2 stride 2, vectorized over the whole batch (single wide store).
    p1 = jnp.max(yn.reshape(B, H, W // 2, 2, Cout), axis=3)         # (B,H,W/2,C)
    p2 = jnp.max(p1.reshape(B, H // 2, 2, W // 2, Cout), axis=2)    # (B,H/2,W/2,C)
    o_ref[...] = p2


def _full_spec(shape):
    n = len(shape)
    return pl.BlockSpec(shape, lambda i: (0,) * n)


# ----------------------------------------------------------------------------
# ConvBlock forward: NCHW in / NCHW out (matches the PyTorch module)
# ----------------------------------------------------------------------------
@jax.jit
def conv_block_forward(x_nchw, params):
    B, Cin, H, W = x_nchw.shape
    Cout = params["w1"].shape[-1]
    assert H % 2 == 0 and W % 2 == 0, "MaxPool2d(2,2) needs even spatial dims"
    Cmax = max(Cin, Cout)

    x = jnp.transpose(x_nchw, (0, 2, 3, 1))                 # NCHW -> NHWC
    w1 = params["w1"].reshape(9 * Cin, Cout)                # (kh,kw,ci) tap-major
    w2 = params["w2"].reshape(9 * Cout, Cout)

    out_nhwc = pl.pallas_call(
        conv_block_kernel,
        out_shape=jax.ShapeDtypeStruct((B, H // 2, W // 2, Cout), jnp.float32),
        grid=(1,),
        in_specs=[
            _full_spec((B, H, W, Cin)),
            _full_spec((9 * Cin, Cout)),
            _full_spec((1, Cout)),
            _full_spec((9 * Cout, Cout)),
            _full_spec((1, Cout)),
            _full_spec((1, Cout)),
            _full_spec((1, Cout)),
        ],
        out_specs=_full_spec((B, H // 2, W // 2, Cout)),
        scratch_shapes=[
            pltpu.VMEM((B, H + 2, W + 2, Cin), jnp.float32),
            pltpu.VMEM((B, H + 2, W + 2, Cout), jnp.float32),
            pltpu.VMEM((B, H, W, 9 * Cmax), jnp.float32),
        ],
        compiler_params=pltpu.CompilerParams(
            dimension_semantics=("arbitrary",)),
    )(x, w1,
      params["b1"].reshape(1, Cout), w2, params["b2"].reshape(1, Cout),
      params["gamma"].reshape(1, Cout), params["beta"].reshape(1, Cout))

    return jnp.transpose(out_nhwc, (0, 3, 1, 2))            # NHWC -> NCHW


# ----------------------------------------------------------------------------
# Pure-JAX reference for correctness checking
# ----------------------------------------------------------------------------
def reference_forward(x_nchw, params):
    dn = ("NCHW", "HWIO", "NCHW")

    def conv(y, w, b):
        y = lax.conv_general_dilated(y, w, (1, 1), ((1, 1), (1, 1)),
                                     dimension_numbers=dn)
        return jnp.maximum(y + b[None, :, None, None], 0.0)

    y = conv(x_nchw, params["w1"], params["b1"])
    y = conv(y, params["w2"], params["b2"])
    mean = jnp.mean(y, axis=(0, 2, 3), keepdims=True)
    var = jnp.var(y, axis=(0, 2, 3), keepdims=True)          # biased, like BN training
    y = (y - mean) * lax.rsqrt(var + 1e-5)
    y = y * params["gamma"][None, :, None, None] + params["beta"][None, :, None, None]
    B, C, H, W = y.shape
    return jnp.max(y.reshape(B, C, H // 2, 2, W // 2, 2), axis=(3, 5))


if __name__ == "__main__":
    B, Cin, Cout, H, W = 2, 4, 8, 16, 16
    key = jax.random.PRNGKey(0)
    k1, k2, k3, k4, k5 = jax.random.split(key, 5)

    params = {
        "w1": jax.random.normal(k1, (3, 3, Cin, Cout), jnp.float32) * 0.1,   # HWIO
        "b1": jax.random.normal(k2, (Cout,), jnp.float32) * 0.1,
        "w2": jax.random.normal(k3, (3, 3, Cout, Cout), jnp.float32) * 0.1,  # HWIO
        "b2": jax.random.normal(k4, (Cout,), jnp.float32) * 0.1,
        "gamma": jnp.ones((Cout,), jnp.float32),   # BatchNorm2d init: weight=1
        "beta": jnp.zeros((Cout,), jnp.float32),   # BatchNorm2d init: bias=0
    }

    x = jax.random.normal(k5, (B, Cin, H, W), jnp.float32)

    out = jax.block_until_ready(conv_block_forward(x, params))
    ref = jax.block_until_ready(reference_forward(x, params))

    assert out.shape == (B, Cout, H // 2, W // 2), out.shape
    np.testing.assert_allclose(np.asarray(out), np.asarray(ref),
                               rtol=1e-4, atol=1e-4)
    print("KERNEL_OK")
</pallas_src>

<mosaic_0001>
module attributes {stable_mosaic.version = 11 : i64} {
  func.func @conv_block_kernel(%arg0: i32, %arg1: memref<2x16x16x4xf32, #tpu.memory_space<vmem>>, %arg2: memref<36x8xf32, #tpu.memory_space<vmem>>, %arg3: memref<1x8xf32, #tpu.memory_space<vmem>>, %arg4: memref<72x8xf32, #tpu.memory_space<vmem>>, %arg5: memref<1x8xf32, #tpu.memory_space<vmem>>, %arg6: memref<1x8xf32, #tpu.memory_space<vmem>>, %arg7: memref<1x8xf32, #tpu.memory_space<vmem>>, %arg8: memref<2x8x8x8xf32, #tpu.memory_space<vmem>>, %arg9: memref<2x18x18x4xf32, #tpu.memory_space<vmem>>, %arg10: memref<2x18x18x8xf32, #tpu.memory_space<vmem>>, %arg11: memref<2x16x16x72xf32, #tpu.memory_space<vmem>>) attributes {dimension_semantics = [#tpu.dimension_semantics<arbitrary>], iteration_bounds = array<i64: 1>, scalar_prefetch = 0 : i64, scratch_operands = 3 : i64, tpu.core_type = #tpu.core_type<tc>, window_params = [{pipeline_mode = #tpu.pipeline_mode<synchronous>, transform_indices = @transform_0, window_bounds = array<i64: 2, 16, 16, 4>}, {pipeline_mode = #tpu.pipeline_mode<synchronous>, transform_indices = @transform_1, window_bounds = array<i64: 36, 8>}, {pipeline_mode = #tpu.pipeline_mode<synchronous>, transform_indices = @transform_2, window_bounds = array<i64: 1, 8>}, {pipeline_mode = #tpu.pipeline_mode<synchronous>, transform_indices = @transform_3, window_bounds = array<i64: 72, 8>}, {pipeline_mode = #tpu.pipeline_mode<synchronous>, transform_indices = @transform_4, window_bounds = array<i64: 1, 8>}, {pipeline_mode = #tpu.pipeline_mode<synchronous>, transform_indices = @transform_5, window_bounds = array<i64: 1, 8>}, {pipeline_mode = #tpu.pipeline_mode<synchronous>, transform_indices = @transform_6, window_bounds = array<i64: 1, 8>}, {pipeline_mode = #tpu.pipeline_mode<synchronous>, transform_indices = @transform_7, window_bounds = array<i64: 2, 8, 8, 8>}]} {
    %c0 = arith.constant 0 : index
    %c0_0 = arith.constant 0 : index
    %c0_1 = arith.constant 0 : index
    %c0_2 = arith.constant 0 : index
    %0 = vector.load %arg1[%c0, %c0_0, %c0_1, %c0_2] : memref<2x16x16x4xf32, #tpu.memory_space<vmem>>, vector<2x16x16x4xf32>
    %cst = arith.constant 0.000000e+00 : f32
    %1 = vector.broadcast %cst : f32 to vector<2x18x18x4xf32>
    %c0_3 = arith.constant 0 : index
    %c0_4 = arith.constant 0 : index
    %c0_5 = arith.constant 0 : index
    %c0_6 = arith.constant 0 : index
    %2 = vector.load %arg9[%c0_3, %c0_4, %c0_5, %c0_6] : memref<2x18x18x4xf32, #tpu.memory_space<vmem>>, vector<2x18x18x4xf32>
    tpu.vector_store %arg9[%c0_3, %c0_4, %c0_5, %c0_6], %1 {strides = array<i32>} : memref<2x18x18x4xf32, #tpu.memory_space<vmem>>, vector<2x18x18x4xf32>,
    %c0_7 = arith.constant 0 : index
    %c1 = arith.constant 1 : index
    %c1_8 = arith.constant 1 : index
    %c0_9 = arith.constant 0 : index
    %3 = vector.load %arg9[%c0_7, %c1, %c1_8, %c0_9] : memref<2x18x18x4xf32, #tpu.memory_space<vmem>>, vector<2x16x16x4xf32>
    tpu.vector_store %arg9[%c0_7, %c1, %c1_8, %c0_9], %0 {strides = array<i32>} : memref<2x18x18x4xf32, #tpu.memory_space<vmem>>, vector<2x16x16x4xf32>,
    %c0_10 = arith.constant 0 : index
    %c0_11 = arith.constant 0 : index
    %c0_12 = arith.constant 0 : index
    %c0_13 = arith.constant 0 : index
    %4 = vector.load %arg9[%c0_10, %c0_11, %c0_12, %c0_13] : memref<2x18x18x4xf32, #tpu.memory_space<vmem>>, vector<2x16x16x4xf32>
    %c0_14 = arith.constant 0 : index
    %c0_15 = arith.constant 0 : index
    %c0_16 = arith.constant 0 : index
    %c0_17 = arith.constant 0 : index
    %5 = vector.load %arg11[%c0_14, %c0_15, %c0_16, %c0_17] : memref<2x16x16x72xf32, #tpu.memory_space<vmem>>, vector<2x16x16x4xf32>
    tpu.vector_store %arg11[%c0_14, %c0_15, %c0_16, %c0_17], %4 {strides = array<i32>} : memref<2x16x16x72xf32, #tpu.memory_space<vmem>>, vector<2x16x16x4xf32>,
    %c0_18 = arith.constant 0 : index
    %c0_19 = arith.constant 0 : index
    %c1_20 = arith.constant 1 : index
    %c0_21 = arith.constant 0 : index
    %6 = vector.load %arg9[%c0_18, %c0_19, %c1_20, %c0_21] : memref<2x18x18x4xf32, #tpu.memory_space<vmem>>, vector<2x16x16x4xf32>
    %c0_22 = arith.constant 0 : index
    %c0_23 = arith.constant 0 : index
    %c0_24 = arith.constant 0 : index
    %c4 = arith.constant 4 : index
    %7 = vector.load %arg11[%c0_22, %c0_23, %c0_24, %c4] : memref<2x16x16x72xf32, #tpu.memory_space<vmem>>, vector<2x16x16x4xf32>
    tpu.vector_store %arg11[%c0_22, %c0_23, %c0_24, %c4], %6 {strides = array<i32>} : memref<2x16x16x72xf32, #tpu.memory_space<vmem>>, vector<2x16x16x4xf32>,
    %c0_25 = arith.constant 0 : index
    %c0_26 = arith.constant 0 : index
    %c2 = arith.constant 2 : index
    %c0_27 = arith.constant 0 : index
    %8 = vector.load %arg9[%c0_25, %c0_26, %c2, %c0_27] : memref<2x18x18x4xf32, #tpu.memory_space<vmem>>, vector<2x16x16x4xf32>
    %c0_28 = arith.constant 0 : index
    %c0_29 = arith.constant 0 : index
    %c0_30 = arith.constant 0 : index
    %c8 = arith.constant 8 : index
    %9 = vector.load %arg11[%c0_28, %c0_29, %c0_30, %c8] : memref<2x16x16x72xf32, #tpu.memory_space<vmem>>, vector<2x16x16x4xf32>
    tpu.vector_store %arg11[%c0_28, %c0_29, %c0_30, %c8], %8 {strides = array<i32>} : memref<2x16x16x72xf32, #tpu.memory_space<vmem>>, vector<2x16x16x4xf32>,
    %c0_31 = arith.constant 0 : index
    %c1_32 = arith.constant 1 : index
    %c0_33 = arith.constant 0 : index
    %c0_34 = arith.constant 0 : index
    %10 = vector.load %arg9[%c0_31, %c1_32, %c0_33, %c0_34] : memref<2x18x18x4xf32, #tpu.memory_space<vmem>>, vector<2x16x16x4xf32>
    %c0_35 = arith.constant 0 : index
    %c0_36 = arith.constant 0 : index
    %c0_37 = arith.constant 0 : index
    %c12 = arith.constant 12 : index
    %11 = vector.load %arg11[%c0_35, %c0_36, %c0_37, %c12] : memref<2x16x16x72xf32, #tpu.memory_space<vmem>>, vector<2x16x16x4xf32>
    tpu.vector_store %arg11[%c0_35, %c0_36, %c0_37, %c12], %10 {strides = array<i32>} : memref<2x16x16x72xf32, #tpu.memory_space<vmem>>, vector<2x16x16x4xf32>,
    %c0_38 = arith.constant 0 : index
    %c1_39 = arith.constant 1 : index
    %c1_40 = arith.constant 1 : index
    %c0_41 = arith.constant 0 : index
    %12 = vector.load %arg9[%c0_38, %c1_39, %c1_40, %c0_41] : memref<2x18x18x4xf32, #tpu.memory_space<vmem>>, vector<2x16x16x4xf32>
    %c0_42 = arith.constant 0 : index
    %c0_43 = arith.constant 0 : index
    %c0_44 = arith.constant 0 : index
    %c16 = arith.constant 16 : index
    %13 = vector.load %arg11[%c0_42, %c0_43, %c0_44, %c16] : memref<2x16x16x72xf32, #tpu.memory_space<vmem>>, vector<2x16x16x4xf32>
    tpu.vector_store %arg11[%c0_42, %c0_43, %c0_44, %c16], %12 {strides = array<i32>} : memref<2x16x16x72xf32, #tpu.memory_space<vmem>>, vector<2x16x16x4xf32>,
    %c0_45 = arith.constant 0 : index
    %c1_46 = arith.constant 1 : index
    %c2_47 = arith.constant 2 : index
    %c0_48 = arith.constant 0 : index
    %14 = vector.load %arg9[%c0_45, %c1_46, %c2_47, %c0_48] : memref<2x18x18x4xf32, #tpu.memory_space<vmem>>, vector<2x16x16x4xf32>
    %c0_49 = arith.constant 0 : index
    %c0_50 = arith.constant 0 : index
    %c0_51 = arith.constant 0 : index
    %c20 = arith.constant 20 : index
    %15 = vector.load %arg11[%c0_49, %c0_50, %c0_51, %c20] : memref<2x16x16x72xf32, #tpu.memory_space<vmem>>, vector<2x16x16x4xf32>
    tpu.vector_store %arg11[%c0_49, %c0_50, %c0_51, %c20], %14 {strides = array<i32>} : memref<2x16x16x72xf32, #tpu.memory_space<vmem>>, vector<2x16x16x4xf32>,
    %c0_52 = arith.constant 0 : index
    %c2_53 = arith.constant 2 : index
    %c0_54 = arith.constant 0 : index
    %c0_55 = arith.constant 0 : index
    %16 = vector.load %arg9[%c0_52, %c2_53, %c0_54, %c0_55] : memref<2x18x18x4xf32, #tpu.memory_space<vmem>>, vector<2x16x16x4xf32>
    %c0_56 = arith.constant 0 : index
    %c0_57 = arith.constant 0 : index
    %c0_58 = arith.constant 0 : index
    %c24 = arith.constant 24 : index
    %17 = vector.load %arg11[%c0_56, %c0_57, %c0_58, %c24] : memref<2x16x16x72xf32, #tpu.memory_space<vmem>>, vector<2x16x16x4xf32>
    tpu.vector_store %arg11[%c0_56, %c0_57, %c0_58, %c24], %16 {strides = array<i32>} : memref<2x16x16x72xf32, #tpu.memory_space<vmem>>, vector<2x16x16x4xf32>,
    %c0_59 = arith.constant 0 : index
    %c2_60 = arith.constant 2 : index
    %c1_61 = arith.constant 1 : index
    %c0_62 = arith.constant 0 : index
    %18 = vector.load %arg9[%c0_59, %c2_60, %c1_61, %c0_62] : memref<2x18x18x4xf32, #tpu.memory_space<vmem>>, vector<2x16x16x4xf32>
    %c0_63 = arith.constant 0 : index
    %c0_64 = arith.constant 0 : index
    %c0_65 = arith.constant 0 : index
    %c28 = arith.constant 28 : index
    %19 = vector.load %arg11[%c0_63, %c0_64, %c0_65, %c28] : memref<2x16x16x72xf32, #tpu.memory_space<vmem>>, vector<2x16x16x4xf32>
    tpu.vector_store %arg11[%c0_63, %c0_64, %c0_65, %c28], %18 {strides = array<i32>} : memref<2x16x16x72xf32, #tpu.memory_space<vmem>>, vector<2x16x16x4xf32>,
    %c0_66 = arith.constant 0 : index
    %c2_67 = arith.constant 2 : index
    %c2_68 = arith.constant 2 : index
    %c0_69 = arith.constant 0 : index
    %20 = vector.load %arg9[%c0_66, %c2_67, %c2_68, %c0_69] : memref<2x18x18x4xf32, #tpu.memory_space<vmem>>, vector<2x16x16x4xf32>
    %c0_70 = arith.constant 0 : index
    %c0_71 = arith.constant 0 : index
    %c0_72 = arith.constant 0 : index
    %c32 = arith.constant 32 : index
    %21 = vector.load %arg11[%c0_70, %c0_71, %c0_72, %c32] : memref<2x16x16x72xf32, #tpu.memory_space<vmem>>, vector<2x16x16x4xf32>
    tpu.vector_store %arg11[%c0_70, %c0_71, %c0_72, %c32], %20 {strides = array<i32>} : memref<2x16x16x72xf32, #tpu.memory_space<vmem>>, vector<2x16x16x4xf32>,
    %c0_73 = arith.constant 0 : index
    %c0_74 = arith.constant 0 : index
    %c0_75 = arith.constant 0 : index
    %c0_76 = arith.constant 0 : index
    %22 = vector.load %arg11[%c0_73, %c0_74, %c0_75, %c0_76] : memref<2x16x16x72xf32, #tpu.memory_space<vmem>>, vector<2x16x16x36xf32>
    %23 = vector.shape_cast %22 : vector<2x16x16x36xf32> to vector<512x36xf32>
    %c0_77 = arith.constant 0 : index
    %c0_78 = arith.constant 0 : index
    %24 = vector.load %arg2[%c0_77, %c0_78] : memref<36x8xf32, #tpu.memory_space<vmem>>, vector<36x8xf32>
    %cst_79 = arith.constant dense<0.000000e+00> : vector<512x8xf32>
    %25 = tpu.matmul %23, %24, %cst_79 {dimension_numbers = #tpu.dot_dimension_numbers<[1], [0], [0], [1], [0, 0, 1, 1], [], []>} : vector<512x36xf32>, vector<36x8xf32>, vector<512x8xf32> -> vector<512x8xf32>
    %c0_80 = arith.constant 0 : index
    %c0_81 = arith.constant 0 : index
    %26 = vector.load %arg3[%c0_80, %c0_81] : memref<1x8xf32, #tpu.memory_space<vmem>>, vector<1x8xf32>
    %27 = vector.broadcast %26 : vector<1x8xf32> to vector<512x8xf32>
    %28 = arith.addf %25, %27 : vector<512x8xf32>
    %cst_82 = arith.constant 0.000000e+00 : f32
    %29 = vector.broadcast %cst_82 : f32 to vector<512x8xf32>
    %30 = arith.maximumf %28, %29 : vector<512x8xf32>
    %31 = vector.shape_cast %30 : vector<512x8xf32> to vector<2x16x16x8xf32>
    %cst_83 = arith.constant 0.000000e+00 : f32
    %32 = vector.broadcast %cst_83 : f32 to vector<2x18x18x8xf32>
    %c0_84 = arith.constant 0 : index
    %c0_85 = arith.constant 0 : index
    %c0_86 = arith.constant 0 : index
    %c0_87 = arith.constant 0 : index
    %33 = vector.load %arg10[%c0_84, %c0_85, %c0_86, %c0_87] : memref<2x18x18x8xf32, #tpu.memory_space<vmem>>, vector<2x18x18x8xf32>
    tpu.vector_store %arg10[%c0_84, %c0_85, %c0_86, %c0_87], %32 {strides = array<i32>} : memref<2x18x18x8xf32, #tpu.memory_space<vmem>>, vector<2x18x18x8xf32>,
    %c0_88 = arith.constant 0 : index
    %c1_89 = arith.constant 1 : index
    %c1_90 = arith.constant 1 : index
    %c0_91 = arith.constant 0 : index
    %34 = vector.load %arg10[%c0_88, %c1_89, %c1_90, %c0_91] : memref<2x18x18x8xf32, #tpu.memory_space<vmem>>, vector<2x16x16x8xf32>
    tpu.vector_store %arg10[%c0_88, %c1_89, %c1_90, %c0_91], %31 {strides = array<i32>} : memref<2x18x18x8xf32, #tpu.memory_space<vmem>>, vector<2x16x16x8xf32>,
    %c0_92 = arith.constant 0 : index
    %c0_93 = arith.constant 0 : index
    %c0_94 = arith.constant 0 : index
    %c0_95 = arith.constant 0 : index
    %35 = vector.load %arg10[%c0_92, %c0_93, %c0_94, %c0_95] : memref<2x18x18x8xf32, #tpu.memory_space<vmem>>, vector<2x16x16x8xf32>
    %c0_96 = arith.constant 0 : index
    %c0_97 = arith.constant 0 : index
    %c0_98 = arith.constant 0 : index
    %c0_99 = arith.constant 0 : index
    %36 = vector.load %arg11[%c0_96, %c0_97, %c0_98, %c0_99] : memref<2x16x16x72xf32, #tpu.memory_space<vmem>>, vector<2x16x16x8xf32>
    tpu.vector_store %arg11[%c0_96, %c0_97, %c0_98, %c0_99], %35 {strides = array<i32>} : memref<2x16x16x72xf32, #tpu.memory_space<vmem>>, vector<2x16x16x8xf32>,
    %c0_100 = arith.constant 0 : index
    %c0_101 = arith.constant 0 : index
    %c1_102 = arith.constant 1 : index
    %c0_103 = arith.constant 0 : index
    %37 = vector.load %arg10[%c0_100, %c0_101, %c1_102, %c0_103] : memref<2x18x18x8xf32, #tpu.memory_space<vmem>>, vector<2x16x16x8xf32>
    %c0_104 = arith.constant 0 : index
    %c0_105 = arith.constant 0 : index
    %c0_106 = arith.constant 0 : index
    %c8_107 = arith.constant 8 : index
    %38 = vector.load %arg11[%c0_104, %c0_105, %c0_106, %c8_107] : memref<2x16x16x72xf32, #tpu.memory_space<vmem>>, vector<2x16x16x8xf32>
    tpu.vector_store %arg11[%c0_104, %c0_105, %c0_106, %c8_107], %37 {strides = array<i32>} : memref<2x16x16x72xf32, #tpu.memory_space<vmem>>, vector<2x16x16x8xf32>,
    %c0_108 = arith.constant 0 : index
    %c0_109 = arith.constant 0 : index
    %c2_110 = arith.constant 2 : index
    %c0_111 = arith.constant 0 : index
    %39 = vector.load %arg10[%c0_108, %c0_109, %c2_110, %c0_111] : memref<2x18x18x8xf32, #tpu.memory_space<vmem>>, vector<2x16x16x8xf32>
    %c0_112 = arith.constant 0 : index
    %c0_113 = arith.constant 0 : index
    %c0_114 = arith.constant 0 : index
    %c16_115 = arith.constant 16 : index
    %40 = vector.load %arg11[%c0_112, %c0_113, %c0_114, %c16_115] : memref<2x16x16x72xf32, #tpu.memory_space<vmem>>, vector<2x16x16x8xf32>
    tpu.vector_store %arg11[%c0_112, %c0_113, %c0_114, %c16_115], %39 {strides = array<i32>} : memref<2x16x16x72xf32, #tpu.memory_space<vmem>>, vector<2x16x16x8xf32>,
    %c0_116 = arith.constant 0 : index
    %c1_117 = arith.constant 1 : index
    %c0_118 = arith.constant 0 : index
    %c0_119 = arith.constant 0 : index
    %41 = vector.load %arg10[%c0_116, %c1_117, %c0_118, %c0_119] : memref<2x18x18x8xf32, #tpu.memory_space<vmem>>, vector<2x16x16x8xf32>
    %c0_120 = arith.constant 0 : index
    %c0_121 = arith.constant 0 : index
    %c0_122 = arith.constant 0 : index
    %c24_123 = arith.constant 24 : index
    %42 = vector.load %arg11[%c0_120, %c0_121, %c0_122, %c24_123] : memref<2x16x16x72xf32, #tpu.memory_space<vmem>>, vector<2x16x16x8xf32>
    tpu.vector_store %arg11[%c0_120, %c0_121, %c0_122, %c24_123], %41 {strides = array<i32>} : memref<2x16x16x72xf32, #tpu.memory_space<vmem>>, vector<2x16x16x8xf32>,
    %c0_124 = arith.constant 0 : index
    %c1_125 = arith.constant 1 : index
    %c1_126 = arith.constant 1 : index
    %c0_127 = arith.constant 0 : index
    %43 = vector.load %arg10[%c0_124, %c1_125, %c1_126, %c0_127] : memref<2x18x18x8xf32, #tpu.memory_space<vmem>>, vector<2x16x16x8xf32>
    %c0_128 = arith.constant 0 : index
    %c0_129 = arith.constant 0 : index
    %c0_130 = arith.constant 0 : index
    %c32_131 = arith.constant 32 : index
    %44 = vector.load %arg11[%c0_128, %c0_129, %c0_130, %c32_131] : memref<2x16x16x72xf32, #tpu.memory_space<vmem>>, vector<2x16x16x8xf32>
    tpu.vector_store %arg11[%c0_128, %c0_129, %c0_130, %c32_131], %43 {strides = array<i32>} : memref<2x16x16x72xf32, #tpu.memory_space<vmem>>, vector<2x16x16x8xf32>,
    %c0_132 = arith.constant 0 : index
    %c1_133 = arith.constant 1 : index
    %c2_134 = arith.constant 2 : index
    %c0_135 = arith.constant 0 : index
    %45 = vector.load %arg10[%c0_132, %c1_133, %c2_134, %c0_135] : memref<2x18x18x8xf32, #tpu.memory_space<vmem>>, vector<2x16x16x8xf32>
    %c0_136 = arith.constant 0 : index
    %c0_137 = arith.constant 0 : index
    %c0_138 = arith.constant 0 : index
    %c40 = arith.constant 40 : index
    %46 = vector.load %arg11[%c0_136, %c0_137, %c0_138, %c40] : memref<2x16x16x72xf32, #tpu.memory_space<vmem>>, vector<2x16x16x8xf32>
    tpu.vector_store %arg11[%c0_136, %c0_137, %c0_138, %c40], %45 {strides = array<i32>} : memref<2x16x16x72xf32, #tpu.memory_space<vmem>>, vector<2x16x16x8xf32>,
    %c0_139 = arith.constant 0 : index
    %c2_140 = arith.constant 2 : index
    %c0_141 = arith.constant 0 : index
    %c0_142 = arith.constant 0 : index
    %47 = vector.load %arg10[%c0_139, %c2_140, %c0_141, %c0_142] : memref<2x18x18x8xf32, #tpu.memory_space<vmem>>, vector<2x16x16x8xf32>
    %c0_143 = arith.constant 0 : index
    %c0_144 = arith.constant 0 : index
    %c0_145 = arith.constant 0 : index
    %c48 = arith.constant 48 : index
    %48 = vector.load %arg11[%c0_143, %c0_144, %c0_145, %c48] : memref<2x16x16x72xf32, #tpu.memory_space<vmem>>, vector<2x16x16x8xf32>
    tpu.vector_store %arg11[%c0_143, %c0_144, %c0_145, %c48], %47 {strides = array<i32>} : memref<2x16x16x72xf32, #tpu.memory_space<vmem>>, vector<2x16x16x8xf32>,
    %c0_146 = arith.constant 0 : index
    %c2_147 = arith.constant 2 : index
    %c1_148 = arith.constant 1 : index
    %c0_149 = arith.constant 0 : index
    %49 = vector.load %arg10[%c0_146, %c2_147, %c1_148, %c0_149] : memref<2x18x18x8xf32, #tpu.memory_space<vmem>>, vector<2x16x16x8xf32>
    %c0_150 = arith.constant 0 : index
    %c0_151 = arith.constant 0 : index
    %c0_152 = arith.constant 0 : index
    %c56 = arith.constant 56 : index
    %50 = vector.load %arg11[%c0_150, %c0_151, %c0_152, %c56] : memref<2x16x16x72xf32, #tpu.memory_space<vmem>>, vector<2x16x16x8xf32>
    tpu.vector_store %arg11[%c0_150, %c0_151, %c0_152, %c56], %49 {strides = array<i32>} : memref<2x16x16x72xf32, #tpu.memory_space<vmem>>, vector<2x16x16x8xf32>,
    %c0_153 = arith.constant 0 : index
    %c2_154 = arith.constant 2 : index
    %c2_155 = arith.constant 2 : index
    %c0_156 = arith.constant 0 : index
    %51 = vector.load %arg10[%c0_153, %c2_154, %c2_155, %c0_156] : memref<2x18x18x8xf32, #tpu.memory_space<vmem>>, vector<2x16x16x8xf32>
    %c0_157 = arith.constant 0 : index
    %c0_158 = arith.constant 0 : index
    %c0_159 = arith.constant 0 : index
    %c64 = arith.constant 64 : index
    %52 = vector.load %arg11[%c0_157, %c0_158, %c0_159, %c64] : memref<2x16x16x72xf32, #tpu.memory_space<vmem>>, vector<2x16x16x8xf32>
    tpu.vector_store %arg11[%c0_157, %c0_158, %c0_159, %c64], %51 {strides = array<i32>} : memref<2x16x16x72xf32, #tpu.memory_space<vmem>>, vector<2x16x16x8xf32>,
    %c0_160 = arith.constant 0 : index
    %c0_161 = arith.constant 0 : index
    %c0_162 = arith.constant 0 : index
    %c0_163 = arith.constant 0 : index
    %53 = vector.load %arg11[%c0_160, %c0_161, %c0_162, %c0_163] : memref<2x16x16x72xf32, #tpu.memory_space<vmem>>, vector<2x16x16x72xf32>
    %54 = vector.shape_cast %53 : vector<2x16x16x72xf32> to vector<512x72xf32>
    %c0_164 = arith.constant 0 : index
    %c0_165 = arith.constant 0 : index
    %55 = vector.load %arg4[%c0_164, %c0_165] : memref<72x8xf32, #tpu.memory_space<vmem>>, vector<72x8xf32>
    %cst_166 = arith.constant dense<0.000000e+00> : vector<512x8xf32>
    %56 = tpu.matmul %54, %55, %cst_166 {dimension_numbers = #tpu.dot_dimension_numbers<[1], [0], [0], [1], [0, 0, 1, 1], [], []>} : vector<512x72xf32>, vector<72x8xf32>, vector<512x8xf32> -> vector<512x8xf32>
    %c0_167 = arith.constant 0 : index
    %c0_168 = arith.constant 0 : index
    %57 = vector.load %arg5[%c0_167, %c0_168] : memref<1x8xf32, #tpu.memory_space<vmem>>, vector<1x8xf32>
    %58 = vector.broadcast %57 : vector<1x8xf32> to vector<512x8xf32>
    %59 = arith.addf %56, %58 : vector<512x8xf32>
    %cst_169 = arith.constant 0.000000e+00 : f32
    %60 = vector.broadcast %cst_169 : f32 to vector<512x8xf32>
    %61 = arith.maximumf %59, %60 : vector<512x8xf32>
    %cst_170 = arith.constant dense<0.000000e+00> : vector<8xf32>
    %62 = vector.multi_reduction <add>, %61, %cst_170 [0] : vector<512x8xf32> to vector<8xf32>
    %63 = vector.shape_cast %62 : vector<8xf32> to vector<1x8xf32>
    %cst_171 = arith.constant 5.120000e+02 : f32
    %64 = vector.broadcast %cst_171 : f32 to vector<1x8xf32>
    %65 = arith.divf %63, %64 : vector<1x8xf32>
    %66 = vector.broadcast %65 : vector<1x8xf32> to vector<512x8xf32>
    %67 = arith.subf %61, %66 : vector<512x8xf32>
    %68 = arith.mulf %67, %67 : vector<512x8xf32>
    %cst_172 = arith.constant dense<0.000000e+00> : vector<8xf32>
    %69 = vector.multi_reduction <add>, %68, %cst_172 [0] : vector<512x8xf32> to vector<8xf32>
    %70 = vector.shape_cast %69 : vector<8xf32> to vector<1x8xf32>
    %cst_173 = arith.constant 5.120000e+02 : f32
    %71 = vector.broadcast %cst_173 : f32 to vector<1x8xf32>
    %72 = arith.divf %70, %71 : vector<1x8xf32>
    %c0_174 = arith.constant 0 : index
    %c0_175 = arith.constant 0 : index
    %73 = vector.load %arg6[%c0_174, %c0_175] : memref<1x8xf32, #tpu.memory_space<vmem>>, vector<1x8xf32>
    %cst_176 = arith.constant 9.99999974E-6 : f32
    %74 = vector.broadcast %cst_176 : f32 to vector<1x8xf32>
    %75 = arith.addf %72, %74 : vector<1x8xf32>
    %76 = math.rsqrt %75 : vector<1x8xf32>
    %77 = arith.mulf %73, %76 : vector<1x8xf32>
    %78 = vector.broadcast %77 : vector<1x8xf32> to vector<512x8xf32>
    %79 = arith.mulf %67, %78 : vector<512x8xf32>
    %c0_177 = arith.constant 0 : index
    %c0_178 = arith.constant 0 : index
    %80 = vector.load %arg7[%c0_177, %c0_178] : memref<1x8xf32, #tpu.memory_space<vmem>>, vector<1x8xf32>
    %81 = vector.broadcast %80 : vector<1x8xf32> to vector<512x8xf32>
    %82 = arith.addf %79, %81 : vector<512x8xf32>
    %83 = vector.shape_cast %82 : vector<512x8xf32> to vector<2x16x16x8xf32>
    %84 = vector.shape_cast %83 : vector<2x16x16x8xf32> to vector<2x16x8x2x8xf32>
    %cst_179 = arith.constant dense<0xFF800000> : vector<2x16x8x8xf32>
    %85 = vector.multi_reduction <maximumf>, %84, %cst_179 [3] : vector<2x16x8x2x8xf32> to vector<2x16x8x8xf32>
    %86 = vector.shape_cast %85 : vector<2x16x8x8xf32> to vector<2x8x2x8x8xf32>
    %cst_180 = arith.constant dense<0xFF800000> : vector<2x8x8x8xf32>
    %87 = vector.multi_reduction <maximumf>, %86, %cst_180 [2] : vector<2x8x2x8x8xf32> to vector<2x8x8x8xf32>
    %c0_181 = arith.constant 0 : index
    %c0_182 = arith.constant 0 : index
    %c0_183 = arith.constant 0 : index
    %c0_184 = arith.constant 0 : index
    %88 = vector.load %arg8[%c0_181, %c0_182, %c0_183, %c0_184] : memref<2x8x8x8xf32, #tpu.memory_space<vmem>>, vector<2x8x8x8xf32>
    tpu.vector_store %arg8[%c0_181, %c0_182, %c0_183, %c0_184], %87 {strides = array<i32>} : memref<2x8x8x8xf32, #tpu.memory_space<vmem>>, vector<2x8x8x8xf32>,
    return
  }
  func.func @transform_0(%arg0: i32) -> (i32, i32, i32, i32) {
    %c0_i32 = arith.constant 0 : i32
    %c0_i32_0 = arith.constant 0 : i32
    %c0_i32_1 = arith.constant 0 : i32
    %c0_i32_2 = arith.constant 0 : i32
    %c0_i32_3 = arith.constant 0 : i32
    return %c0_i32, %c0_i32_0, %c0_i32_1, %c0_i32_2 : i32, i32, i32, i32
  }
  func.func @transform_1(%arg0: i32) -> (i32, i32) {
    %c0_i32 = arith.constant 0 : i32
    %c0_i32_0 = arith.constant 0 : i32
    %c0_i32_1 = arith.constant 0 : i32
    return %c0_i32, %c0_i32_0 : i32, i32
  }
  func.func @transform_2(%arg0: i32) -> (i32, i32) {
    %c0_i32 = arith.constant 0 : i32
    %c0_i32_0 = arith.constant 0 : i32
    %c0_i32_1 = arith.constant 0 : i32
    return %c0_i32, %c0_i32_0 : i32, i32
  }
  func.func @transform_3(%arg0: i32) -> (i32, i32) {
    %c0_i32 = arith.constant 0 : i32
    %c0_i32_0 = arith.constant 0 : i32
    %c0_i32_1 = arith.constant 0 : i32
    return %c0_i32, %c0_i32_0 : i32, i32
  }
  func.func @transform_4(%arg0: i32) -> (i32, i32) {
    %c0_i32 = arith.constant 0 : i32
    %c0_i32_0 = arith.constant 0 : i32
    %c0_i32_1 = arith.constant 0 : i32
    return %c0_i32, %c0_i32_0 : i32, i32
  }
  func.func @transform_5(%arg0: i32) -> (i32, i32) {
    %c0_i32 = arith.constant 0 : i32
    %c0_i32_0 = arith.constant 0 : i32
    %c0_i32_1 = arith.constant 0 : i32
    return %c0_i32, %c0_i32_0 : i32, i32
  }
  func.func @transform_6(%arg0: i32) -> (i32, i32) {
    %c0_i32 = arith.constant 0 : i32
    %c0_i32_0 = arith.constant 0 : i32
    %c0_i32_1 = arith.constant 0 : i32
    return %c0_i32, %c0_i32_0 : i32, i32
  }
  func.func @transform_7(%arg0: i32) -> (i32, i32, i32, i32) {
    %c0_i32 = arith.constant 0 : i32
    %c0_i32_0 = arith.constant 0 : i32
    %c0_i32_1 = arith.constant 0 : i32
    %c0_i32_2 = arith.constant 0 : i32
    %c0_i32_3 = arith.constant 0 : i32
    return %c0_i32, %c0_i32_0, %c0_i32_1, %c0_i32_2 : i32, i32, i32, i32
  }
}

</mosaic_0001>

<llo_original>
// kernel: conv_block_forward.1
$region0: #{conv_block_forward.1}
  #allocation0 [shape = 'u32[]', space=smem, size = 0x4, offset = 0x4, fixed_abs, tag = 'smem constant byte address 0x4 - core index']
  #allocation1 [shape = 'u32[72,128]{1,0:T(1,128)}', space=vmem, size = 0x9000, scoped, tag = 'internal scratch']
  #allocation2 [shape = 'f32[2,18,18,4]{3,2,1,0:T(8,128)}', space=vmem, size = 0x6c000, scoped, tag = 'scratch operand']
  #allocation3 [shape = 'f32[2,18,18,8]{3,2,1,0:T(8,128)}', space=vmem, size = 0x6c000, scoped, tag = 'scratch operand']
  #allocation4 [shape = 'f32[2,16,16,72]{3,2,1,0:T(8,128)}', space=vmem, size = 0x40000, scoped, tag = 'scratch operand']
  %s0 = inlined_call_operand.vmem [shape: f32[2,16,16,4], index: 0, kind: input, shape index: {}]
  %s1 = inlined_call_operand.vmem [shape: f32[36,8], index: 1, kind: input, shape index: {}]
  %s2 = inlined_call_operand.vmem [shape: f32[1,8], index: 2, kind: input, shape index: {}]
  %s3 = inlined_call_operand.vmem [shape: f32[72,8], index: 3, kind: input, shape index: {}]
  %s4 = inlined_call_operand.vmem [shape: f32[1,8], index: 4, kind: input, shape index: {}]
  %s5 = inlined_call_operand.vmem [shape: f32[1,8], index: 5, kind: input, shape index: {}]
  %s6 = inlined_call_operand.vmem [shape: f32[1,8], index: 6, kind: input, shape index: {}]
  %s7 = inlined_call_operand.vmem [shape: f32[2,8,8,8], index: 7, kind: output, shape index: {}]
  %s8 = sld [smem:[#allocation0]]
  $region38: #{conv_block_forward.1} parent=0
    _
  %s10 = ssub.s32 1, %s8
  %s11 = scalar_select 0, %s10, %s8
  // Predicated region
  $region2: #{conv_block_forward.1} parent=0 // pred_check
    _
  $region3: #{conv_block_forward.1} parent=0 // pred_check_branch
    %13 = sbr.rel (0) target = $region5
  $region4: #{conv_block_forward.1} parent=0 // pred_region
    _
  $region5: #{conv_block_forward.1} parent=0 // pred_fallthru
    _
  // Predicated region
  $region6: #{conv_block_forward.1} parent=0 // pred_check
    _
  $region7: #{conv_block_forward.1} parent=0 // pred_check_branch
    %15 = sbr.rel (0) target = $region9
  $region8: #{conv_block_forward.1} parent=0 // pred_region
    _
  $region9: #{conv_block_forward.1} parent=0 // pred_fallthru
    _
  // Predicated region
  $region10: #{conv_block_forward.1} parent=0 // pred_check
    _
  $region11: #{conv_block_forward.1} parent=0 // pred_check_branch
    %17 = sbr.rel (0) target = $region13
  $region12: #{conv_block_forward.1} parent=0 // pred_region
    _
  $region13: #{conv_block_forward.1} parent=0 // pred_fallthru
    _
  // Predicated region
  $region14: #{conv_block_forward.1} parent=0 // pred_check
    _
  $region15: #{conv_block_forward.1} parent=0 // pred_check_branch
    %19 = sbr.rel (0) target = $region17
  $region16: #{conv_block_forward.1} parent=0 // pred_region
    _
  $region17: #{conv_block_forward.1} parent=0 // pred_fallthru
    _
  // Predicated region
  $region18: #{conv_block_forward.1} parent=0 // pred_check
    _
  $region19: #{conv_block_forward.1} parent=0 // pred_check_branch
    %21 = sbr.rel (0) target = $region21
  $region20: #{conv_block_forward.1} parent=0 // pred_region
    _
  $region21: #{conv_block_forward.1} parent=0 // pred_fallthru
    _
  // Predicated region
  $region22: #{conv_block_forward.1} parent=0 // pred_check
    _
  $region23: #{conv_block_forward.1} parent=0 // pred_check_branch
    %23 = sbr.rel (0) target = $region25
  $region24: #{conv_block_forward.1} parent=0 // pred_region
    _
  $region25: #{conv_block_forward.1} parent=0 // pred_fallthru
    _
  // Predicated region
  $region26: #{conv_block_forward.1} parent=0 // pred_check
    _
  $region27: #{conv_block_forward.1} parent=0 // pred_check_branch
    %25 = sbr.rel (0) target = $region29
  $region28: #{conv_block_forward.1} parent=0 // pred_region
    _
  $region29: #{conv_block_forward.1} parent=0 // pred_fallthru
    _
  %v26 = vld [vmem:[%s0] sm:$0xff]
  %v27 = vld [vmem:[%s0 + $0x8] sm:$0xff]
  %v28 = vld [vmem:[%s0 + $0x10] sm:$0xff]
  %v29 = vld [vmem:[%s0 + $0x18] sm:$0xff]
  %v30 = vld [vmem:[%s0 + $0x20] sm:$0xff]
  %v31 = vld [vmem:[%s0 + $0x28] sm:$0xff]
  %v32 = vld [vmem:[%s0 + $0x30] sm:$0xff]
  %v33 = vld [vmem:[%s0 + $0x38] sm:$0xff]
  %v34 = vld [vmem:[%s0 + $0x40] sm:$0xff]
  %v35 = vld [vmem:[%s0 + $0x48] sm:$0xff]
  %v36 = vld [vmem:[%s0 + $0x50] sm:$0xff]
  %v37 = vld [vmem:[%s0 + $0x58] sm:$0xff]
  %v38 = vld [vmem:[%s0 + $0x60] sm:$0xff]
  %v39 = vld [vmem:[%s0 + $0x68] sm:$0xff]
  %v40 = vld [vmem:[%s0 + $0x70] sm:$0xff]
  %v41 = vld [vmem:[%s0 + $0x78] sm:$0xff]
  %v42 = vld [vmem:[%s0 + $0x80] sm:$0xff]
  %v43 = vld [vmem:[%s0 + $0x88] sm:$0xff]
  %v44 = vld [vmem:[%s0 + $0x90] sm:$0xff]
  %v45 = vld [vmem:[%s0 + $0x98] sm:$0xff]
  %v46 = vld [vmem:[%s0 + $0xa0] sm:$0xff]
  %v47 = vld [vmem:[%s0 + $0xa8] sm:$0xff]
  %v48 = vld [vmem:[%s0 + $0xb0] sm:$0xff]
  %v49 = vld [vmem:[%s0 + $0xb8] sm:$0xff]
  %v50 = vld [vmem:[%s0 + $0xc0] sm:$0xff]
  %v51 = vld [vmem:[%s0 + $0xc8] sm:$0xff]
  %v52 = vld [vmem:[%s0 + $0xd0] sm:$0xff]
  %v53 = vld [vmem:[%s0 + $0xd8] sm:$0xff]
  %v54 = vld [vmem:[%s0 + $0xe0] sm:$0xff]
  %v55 = vld [vmem:[%s0 + $0xe8] sm:$0xff]
  %v56 = vld [vmem:[%s0 + $0xf0] sm:$0xff]
  %v57 = vld [vmem:[%s0 + $0xf8] sm:$0xff]
  %v58 = vld [vmem:[%s0 + $0x100] sm:$0xff]
  %v59 = vld [vmem:[%s0 + $0x108] sm:$0xff]
  %v60 = vld [vmem:[%s0 + $0x110] sm:$0xff]
  %v61 = vld [vmem:[%s0 + $0x118] sm:$0xff]
  %v62 = vld [vmem:[%s0 + $0x120] sm:$0xff]
  %v63 = vld [vmem:[%s0 + $0x128] sm:$0xff]
  %v64 = vld [vmem:[%s0 + $0x130] sm:$0xff]
  %v65 = vld [vmem:[%s0 + $0x138] sm:$0xff]
  %v66 = vld [vmem:[%s0 + $0x140] sm:$0xff]
  %v67 = vld [vmem:[%s0 + $0x148] sm:$0xff]
  %v68 = vld [vmem:[%s0 + $0x150] sm:$0xff]
  %v69 = vld [vmem:[%s0 + $0x158] sm:$0xff]
  %v70 = vld [vmem:[%s0 + $0x160] sm:$0xff]
  %v71 = vld [vmem:[%s0 + $0x168] sm:$0xff]
  %v72 = vld [vmem:[%s0 + $0x170] sm:$0xff]
  %v73 = vld [vmem:[%s0 + $0x178] sm:$0xff]
  %v74 = vld [vmem:[%s0 + $0x180] sm:$0xff]
  %v75 = vld [vmem:[%s0 + $0x188] sm:$0xff]
  %v76 = vld [vmem:[%s0 + $0x190] sm:$0xff]
  %v77 = vld [vmem:[%s0 + $0x198] sm:$0xff]
  %v78 = vld [vmem:[%s0 + $0x1a0] sm:$0xff]
  %v79 = vld [vmem:[%s0 + $0x1a8] sm:$0xff]
  %v80 = vld [vmem:[%s0 + $0x1b0] sm:$0xff]
  %v81 = vld [vmem:[%s0 + $0x1b8] sm:$0xff]
  %v82 = vld [vmem:[%s0 + $0x1c0] sm:$0xff]
  %v83 = vld [vmem:[%s0 + $0x1c8] sm:$0xff]
  %v84 = vld [vmem:[%s0 + $0x1d0] sm:$0xff]
  %v85 = vld [vmem:[%s0 + $0x1d8] sm:$0xff]
  %v86 = vld [vmem:[%s0 + $0x1e0] sm:$0xff]
  %v87 = vld [vmem:[%s0 + $0x1e8] sm:$0xff]
  %v88 = vld [vmem:[%s0 + $0x1f0] sm:$0xff]
  %v89 = vld [vmem:[%s0 + $0x1f8] sm:$0xff]
  %vm90 = vcmask 31744
  %91 = vst.msk [vmem:[#allocation2] sm:$0xff] %vm90, 0.0
  %92 = vst.msk [vmem:[#allocation2 + $0x8] sm:$0xff] %vm90, 0.0
  %vm93 = vcmask 25600
  %94 = vst.msk [vmem:[#allocation2 + $0x10] sm:$0x3] %vm93, 0.0
  %95 = vst.msk [vmem:[#allocation2 + $0x18] sm:$0xff] %vm90, 0.0
  %96 = vst.msk [vmem:[#allocation2 + $0x20] sm:$0xff] %vm90, 0.0
  %97 = vst.msk [vmem:[#allocation2 + $0x28] sm:$0x3] %vm93, 0.0
  %98 = vst.msk [vmem:[#allocation2 + $0x30] sm:$0xff] %vm90, 0.0
  %99 = vst.msk [vmem:[#allocation2 + $0x38] sm:$0xff] %vm90, 0.0
  %100 = vst.msk [vmem:[#allocation2 + $0x40] sm:$0x3] %vm93, 0.0
  %101 = vst.msk [vmem:[#allocation2 + $0x48] sm:$0xff] %vm90, 0.0
  %102 = vst.msk [vmem:[#allocation2 + $0x50] sm:$0xff] %vm90, 0.0
  %103 = vst.msk [vmem:[#allocation2 + $0x58] sm:$0x3] %vm93, 0.0
  %104 = vst.msk [vmem:[#allocation2 + $0x60] sm:$0xff] %vm90, 0.0
  %105 = vst.msk [vmem:[#allocation2 + $0x68] sm:$0xff] %vm90, 0.0
  %106 = vst.msk [vmem:[#allocation2 + $0x70] sm:$0x3] %vm93, 0.0
  %107 = vst.msk [vmem:[#allocation2 + $0x78] sm:$0xff] %vm90, 0.0
  %108 = vst.msk [vmem:[#allocation2 + $0x80] sm:$0xff] %vm90, 0.0
  %109 = vst.msk [vmem:[#allocation2 + $0x88] sm:$0x3] %vm93, 0.0
  %110 = vst.msk [vmem:[#allocation2 + $0x90] sm:$0xff] %vm90, 0.0
  %111 = vst.msk [vmem:[#allocation2 + $0x98] sm:$0xff] %vm90, 0.0
  %112 = vst.msk [vmem:[#allocation2 + $0xa0] sm:$0x3] %vm93, 0.0
  %113 = vst.msk [vmem:[#allocation2 + $0xa8] sm:$0xff] %vm90, 0.0
  %114 = vst.msk [vmem:[#allocation2 + $0xb0] sm:$0xff] %vm90, 0.0
  %115 = vst.msk [vmem:[#allocation2 + $0xb8] sm:$0x3] %vm93, 0.0
  %116 = vst.msk [vmem:[#allocation2 + $0xc0] sm:$0xff] %vm90, 0.0
  %117 = vst.msk [vmem:[#allocation2 + $0xc8] sm:$0xff] %vm90, 0.0
  %118 = vst.msk [vmem:[#allocation2 + $0xd0] sm:$0x3] %vm93, 0.0
  %119 = vst.msk [vmem:[#allocation2 + $0xd8] sm:$0xff] %vm90, 0.0
  %120 = vst.msk [vmem:[#allocation2 + $0xe0] sm:$0xff] %vm90, 0.0
  %121 = vst.msk [vmem:[#allocation2 + $0xe8] sm:$0x3] %vm93, 0.0
  %122 = vst.msk [vmem:[#allocation2 + $0xf0] sm:$0xff] %vm90, 0.0
  %123 = vst.msk [vmem:[#allocation2 + $0xf8] sm:$0xff] %vm90, 0.0
  %124 = vst.msk [vmem:[#allocation2 + $0x100] sm:$0x3] %vm93, 0.0
  %125 = vst.msk [vmem:[#allocation2 + $0x108] sm:$0xff] %vm90, 0.0
  %126 = vst.msk [vmem:[#allocation2 + $0x110] sm:$0xff] %vm90, 0.0
  %127 = vst.msk [vmem:[#allocation2 + $0x118] sm:$0x3] %vm93, 0.0
  %128 = vst.msk [vmem:[#allocation2 + $0x120] sm:$0xff] %vm90, 0.0
  %129 = vst.msk [vmem:[#allocation2 + $0x128] sm:$0xff] %vm90, 0.0
  %130 = vst.msk [vmem:[#allocation2 + $0x130] sm:$0x3] %vm93, 0.0
  %131 = vst.msk [vmem:[#allocation2 + $0x138] sm:$0xff] %vm90, 0.0
  %132 = vst.msk [vmem:[#allocation2 + $0x140] sm:$0xff] %vm90, 0.0
  %133 = vst.msk [vmem:[#allocation2 + $0x148] sm:$0x3] %vm93, 0.0
  %134 = vst.msk [vmem:[#allocation2 + $0x150] sm:$0xff] %vm90, 0.0
  %135 = vst.msk [vmem:[#allocation2 + $0x158] sm:$0xff] %vm90, 0.0
  %136 = vst.msk [vmem:[#allocation2 + $0x160] sm:$0x3] %vm93, 0.0
  %137 = vst.msk [vmem:[#allocation2 + $0x168] sm:$0xff] %vm90, 0.0
  %138 = vst.msk [vmem:[#allocation2 + $0x170] sm:$0xff] %vm90, 0.0
  %139 = vst.msk [vmem:[#allocation2 + $0x178] sm:$0x3] %vm93, 0.0
  %140 = vst.msk [vmem:[#allocation2 + $0x180] sm:$0xff] %vm90, 0.0
  %141 = vst.msk [vmem:[#allocation2 + $0x188] sm:$0xff] %vm90, 0.0
  %142 = vst.msk [vmem:[#allocation2 + $0x190] sm:$0x3] %vm93, 0.0
  %143 = vst.msk [vmem:[#allocation2 + $0x198] sm:$0xff] %vm90, 0.0
  %144 = vst.msk [vmem:[#allocation2 + $0x1a0] sm:$0xff] %vm90, 0.0
  %145 = vst.msk [vmem:[#allocation2 + $0x1a8] sm:$0x3] %vm93, 0.0
  %146 = vst.msk [vmem:[#allocation2 + $0x1b0] sm:$0xff] %vm90, 0.0
  %147 = vst.msk [vmem:[#allocation2 + $0x1b8] sm:$0xff] %vm90, 0.0
  %148 = vst.msk [vmem:[#allocation2 + $0x1c0] sm:$0x3] %vm93, 0.0
  %149 = vst.msk [vmem:[#allocation2 + $0x1c8] sm:$0xff] %vm90, 0.0
  %150 = vst.msk [vmem:[#allocation2 + $0x1d0] sm:$0xff] %vm90, 0.0
  %151 = vst.msk [vmem:[#allocation2 + $0x1d8] sm:$0x3] %vm93, 0.0
  %152 = vst.msk [vmem:[#allocation2 + $0x1e0] sm:$0xff] %vm90, 0.0
  %153 = vst.msk [vmem:[#allocation2 + $0x1e8] sm:$0xff] %vm90, 0.0
  %154 = vst.msk [vmem:[#allocation2 + $0x1f0] sm:$0x3] %vm93, 0.0
  %155 = vst.msk [vmem:[#allocation2 + $0x1f8] sm:$0xff] %vm90, 0.0
  %156 = vst.msk [vmem:[#allocation2 + $0x200] sm:$0xff] %vm90, 0.0
  %157 = vst.msk [vmem:[#allocation2 + $0x208] sm:$0x3] %vm93, 0.0
  %158 = vst.msk [vmem:[#allocation2 + $0x210] sm:$0xff] %vm90, 0.0
  %159 = vst.msk [vmem:[#allocation2 + $0x218] sm:$0xff] %vm90, 0.0
  %160 = vst.msk [vmem:[#allocation2 + $0x220] sm:$0x3] %vm93, 0.0
  %161 = vst.msk [vmem:[#allocation2 + $0x228] sm:$0xff] %vm90, 0.0
  %162 = vst.msk [vmem:[#allocation2 + $0x230] sm:$0xff] %vm90, 0.0
  %163 = vst.msk [vmem:[#allocation2 + $0x238] sm:$0x3] %vm93, 0.0
  %164 = vst.msk [vmem:[#allocation2 + $0x240] sm:$0xff] %vm90, 0.0
  %165 = vst.msk [vmem:[#allocation2 + $0x248] sm:$0xff] %vm90, 0.0
  %166 = vst.msk [vmem:[#allocation2 + $0x250] sm:$0x3] %vm93, 0.0
  %167 = vst.msk [vmem:[#allocation2 + $0x258] sm:$0xff] %vm90, 0.0
  %168 = vst.msk [vmem:[#allocation2 + $0x260] sm:$0xff] %vm90, 0.0
  %169 = vst.msk [vmem:[#allocation2 + $0x268] sm:$0x3] %vm93, 0.0
  %170 = vst.msk [vmem:[#allocation2 + $0x270] sm:$0xff] %vm90, 0.0
  %171 = vst.msk [vmem:[#allocation2 + $0x278] sm:$0xff] %vm90, 0.0
  %172 = vst.msk [vmem:[#allocation2 + $0x280] sm:$0x3] %vm93, 0.0
  %173 = vst.msk [vmem:[#allocation2 + $0x288] sm:$0xff] %vm90, 0.0
  %174 = vst.msk [vmem:[#allocation2 + $0x290] sm:$0xff] %vm90, 0.0
  %175 = vst.msk [vmem:[#allocation2 + $0x298] sm:$0x3] %vm93, 0.0
  %176 = vst.msk [vmem:[#allocation2 + $0x2a0] sm:$0xff] %vm90, 0.0
  %177 = vst.msk [vmem:[#allocation2 + $0x2a8] sm:$0xff] %vm90, 0.0
  %178 = vst.msk [vmem:[#allocation2 + $0x2b0] sm:$0x3] %vm93, 0.0
  %179 = vst.msk [vmem:[#allocation2 + $0x2b8] sm:$0xff] %vm90, 0.0
  %180 = vst.msk [vmem:[#allocation2 + $0x2c0] sm:$0xff] %vm90, 0.0
  %181 = vst.msk [vmem:[#allocation2 + $0x2c8] sm:$0x3] %vm93, 0.0
  %182 = vst.msk [vmem:[#allocation2 + $0x2d0] sm:$0xff] %vm90, 0.0
  %183 = vst.msk [vmem:[#allocation2 + $0x2d8] sm:$0xff] %vm90, 0.0
  %184 = vst.msk [vmem:[#allocation2 + $0x2e0] sm:$0x3] %vm93, 0.0
  %185 = vst.msk [vmem:[#allocation2 + $0x2e8] sm:$0xff] %vm90, 0.0
  %186 = vst.msk [vmem:[#allocation2 + $0x2f0] sm:$0xff] %vm90, 0.0
  %187 = vst.msk [vmem:[#allocation2 + $0x2f8] sm:$0x3] %vm93, 0.0
  %188 = vst.msk [vmem:[#allocation2 + $0x300] sm:$0xff] %vm90, 0.0
  %189 = vst.msk [vmem:[#allocation2 + $0x308] sm:$0xff] %vm90, 0.0
  %190 = vst.msk [vmem:[#allocation2 + $0x310] sm:$0x3] %vm93, 0.0
  %191 = vst.msk [vmem:[#allocation2 + $0x318] sm:$0xff] %vm90, 0.0
  %192 = vst.msk [vmem:[#allocation2 + $0x320] sm:$0xff] %vm90, 0.0
  %193 = vst.msk [vmem:[#allocation2 + $0x328] sm:$0x3] %vm93, 0.0
  %194 = vst.msk [vmem:[#allocation2 + $0x330] sm:$0xff] %vm90, 0.0
  %195 = vst.msk [vmem:[#allocation2 + $0x338] sm:$0xff] %vm90, 0.0
  %196 = vst.msk [vmem:[#allocation2 + $0x340] sm:$0x3] %vm93, 0.0
  %197 = vst.msk [vmem:[#allocation2 + $0x348] sm:$0xff] %vm90, 0.0
  %198 = vst.msk [vmem:[#allocation2 + $0x350] sm:$0xff] %vm90, 0.0
  %199 = vst.msk [vmem:[#allocation2 + $0x358] sm:$0x3] %vm93, 0.0
  %s200 = scalar_lea.vmem [#allocation2], 24
  %201 = vst.msk [vmem:[%s200 + $0x1] sm:$0xff] %vm90, %v26
  %202 = vst.msk [vmem:[%s200 + $0x9] sm:$0xff] %vm90, %v27
  %203 = vst.msk [vmem:[%s200 + $0x19] sm:$0xff] %vm90, %v28
  %204 = vst.msk [vmem:[%s200 + $0x21] sm:$0xff] %vm90, %v29
  %205 = vst.msk [vmem:[%s200 + $0x31] sm:$0xff] %vm90, %v30
  %206 = vst.msk [vmem:[%s200 + $0x39] sm:$0xff] %vm90, %v31
  %207 = vst.msk [vmem:[%s200 + $0x49] sm:$0xff] %vm90, %v32
  %208 = vst.msk [vmem:[%s200 + $0x51] sm:$0xff] %vm90, %v33
  %209 = vst.msk [vmem:[%s200 + $0x61] sm:$0xff] %vm90, %v34
  %210 = vst.msk [vmem:[%s200 + $0x69] sm:$0xff] %vm90, %v35
  %211 = vst.msk [vmem:[%s200 + $0x79] sm:$0xff] %vm90, %v36
  %212 = vst.msk [vmem:[%s200 + $0x81] sm:$0xff] %vm90, %v37
  %213 = vst.msk [vmem:[%s200 + $0x91] sm:$0xff] %vm90, %v38
  %214 = vst.msk [vmem:[%s200 + $0x99] sm:$0xff] %vm90, %v39
  %215 = vst.msk [vmem:[%s200 + $0xa9] sm:$0xff] %vm90, %v40
  %216 = vst.msk [vmem:[%s200 + $0xb1] sm:$0xff] %vm90, %v41
  %217 = vst.msk [vmem:[%s200 + $0xc1] sm:$0xff] %vm90, %v42
  %218 = vst.msk [vmem:[%s200 + $0xc9] sm:$0xff] %vm90, %v43
  %219 = vst.msk [vmem:[%s200 + $0xd9] sm:$0xff] %vm90, %v44
  %220 = vst.msk [vmem:[%s200 + $0xe1] sm:$0xff] %vm90, %v45
  %221 = vst.msk [vmem:[%s200 + $0xf1] sm:$0xff] %vm90, %v46
  %222 = vst.msk [vmem:[%s200 + $0xf9] sm:$0xff] %vm90, %v47
  %223 = vst.msk [vmem:[%s200 + $0x109] sm:$0xff] %vm90, %v48
  %224 = vst.msk [vmem:[%s200 + $0x111] sm:$0xff] %vm90, %v49
  %225 = vst.msk [vmem:[%s200 + $0x121] sm:$0xff] %vm90, %v50
  %226 = vst.msk [vmem:[%s200 + $0x129] sm:$0xff] %vm90, %v51
  %227 = vst.msk [vmem:[%s200 + $0x139] sm:$0xff] %vm90, %v52
  %228 = vst.msk [vmem:[%s200 + $0x141] sm:$0xff] %vm90, %v53
  %229 = vst.msk [vmem:[%s200 + $0x151] sm:$0xff] %vm90, %v54
  %230 = vst.msk [vmem:[%s200 + $0x159] sm:$0xff] %vm90, %v55
  %231 = vst.msk [vmem:[%s200 + $0x169] sm:$0xff] %vm90, %v56
  %232 = vst.msk [vmem:[%s200 + $0x171] sm:$0xff] %vm90, %v57
  %233 = vst.msk [vmem:[%s200 + $0x1b1] sm:$0xff] %vm90, %v58
  %234 = vst.msk [vmem:[%s200 + $0x1b9] sm:$0xff] %vm90, %v59
  %235 = vst.msk [vmem:[%s200 + $0x1c9] sm:$0xff] %vm90, %v60
  %236 = vst.msk [vmem:[%s200 + $0x1d1] sm:$0xff] %vm90, %v61
  %237 = vst.msk [vmem:[%s200 + $0x1e1] sm:$0xff] %vm90, %v62
  %238 = vst.msk [vmem:[%s200 + $0x1e9] sm:$0xff] %vm90, %v63
  %239 = vst.msk [vmem:[%s200 + $0x1f9] sm:$0xff] %vm90, %v64
  %240 = vst.msk [vmem:[%s200 + $0x201] sm:$0xff] %vm90, %v65
  %241 = vst.msk [vmem:[%s200 + $0x211] sm:$0xff] %vm90, %v66
  %242 = vst.msk [vmem:[%s200 + $0x219] sm:$0xff] %vm90, %v67
  %243 = vst.msk [vmem:[%s200 + $0x229] sm:$0xff] %vm90, %v68
  %244 = vst.msk [vmem:[%s200 + $0x231] sm:$0xff] %vm90, %v69
  %245 = vst.msk [vmem:[%s200 + $0x241] sm:$0xff] %vm90, %v70
  %246 = vst.msk [vmem:[%s200 + $0x249] sm:$0xff] %vm90, %v71
  %247 = vst.msk [vmem:[%s200 + $0x259] sm:$0xff] %vm90, %v72
  %248 = vst.msk [vmem:[%s200 + $0x261] sm:$0xff] %vm90, %v73
  %249 = vst.msk [vmem:[%s200 + $0x271] sm:$0xff] %vm90, %v74
  %250 = vst.msk [vmem:[%s200 + $0x279] sm:$0xff] %vm90, %v75
  %251 = vst.msk [vmem:[%s200 + $0x289] sm:$0xff] %vm90, %v76
  %252 = vst.msk [vmem:[%s200 + $0x291] sm:$0xff] %vm90, %v77
  %253 = vst.msk [vmem:[%s200 + $0x2a1] sm:$0xff] %vm90, %v78
  %254 = vst.msk [vmem:[%s200 + $0x2a9] sm:$0xff] %vm90, %v79
  %255 = vst.msk [vmem:[%s200 + $0x2b9] sm:$0xff] %vm90, %v80
  %256 = vst.msk [vmem:[%s200 + $0x2c1] sm:$0xff] %vm90, %v81
  %257 = vst.msk [vmem:[%s200 + $0x2d1] sm:$0xff] %vm90, %v82
  %258 = vst.msk [vmem:[%s200 + $0x2d9] sm:$0xff] %vm90, %v83
  %259 = vst.msk [vmem:[%s200 + $0x2e9] sm:$0xff] %vm90, %v84
  %260 = vst.msk [vmem:[%s200 + $0x2f1] sm:$0xff] %vm90, %v85
  %261 = vst.msk [vmem:[%s200 + $0x301] sm:$0xff] %vm90, %v86
  %262 = vst.msk [vmem:[%s200 + $0x309] sm:$0xff] %vm90, %v87
  %263 = vst.msk [vmem:[%s200 + $0x319] sm:$0xff] %vm90, %v88
  %264 = vst.msk [vmem:[%s200 + $0x321] sm:$0xff] %vm90, %v89
  %v265 = vld [vmem:[#allocation2] sm:$0xff]
  %v266 = vld [vmem:[#allocation2 + $0x8] sm:$0xff]
  %v267 = vld [vmem:[#allocation2 + $0x18] sm:$0xff]
  %v268 = vld [vmem:[#allocation2 + $0x20] sm:$0xff]
  %v269 = vld [vmem:[#allocation2 + $0x30] sm:$0xff]
  %v270 = vld [vmem:[#allocation2 + $0x38] sm:$0xff]
  %v271 = vld [vmem:[#allocation2 + $0x48] sm:$0xff]
  %v272 = vld [vmem:[#allocation2 + $0x50] sm:$0xff]
  %v273 = vld [vmem:[#allocation2 + $0x60] sm:$0xff]
  %v274 = vld [vmem:[#allocation2 + $0x68] sm:$0xff]
  %v275 = vld [vmem:[#allocation2 + $0x78] sm:$0xff]
  %v276 = vld [vmem:[#allocation2 + $0x80] sm:$0xff]
  %v277 = vld [vmem:[#allocation2 + $0x90] sm:$0xff]
  %v278 = vld [vmem:[#allocation2 + $0x98] sm:$0xff]
  %v279 = vld [vmem:[#allocation2 + $0xa8] sm:$0xff]
  %v280 = vld [vmem:[#allocation2 + $0xb0] sm:$0xff]
  %v281 = vld [vmem:[#allocation2 + $0xc0] sm:$0xff]
  %v282 = vld [vmem:[#allocation2 + $0xc8] sm:$0xff]
  %v283 = vld [vmem:[#allocation2 + $0xd8] sm:$0xff]
  %v284 = vld [vmem:[#allocation2 + $0xe0] sm:$0xff]
  %v285 = vld [vmem:[#allocation2 + $0xf0] sm:$0xff]
  %v286 = vld [vmem:[#allocation2 + $0xf8] sm:$0xff]
  %v287 = vld [vmem:[#allocation2 + $0x108] sm:$0xff]
  %v288 = vld [vmem:[#allocation2 + $0x110] sm:$0xff]
  %v289 = vld [vmem:[#allocation2 + $0x120] sm:$0xff]
  %v290 = vld [vmem:[#allocation2 + $0x128] sm:$0xff]
  %v291 = vld [vmem:[#allocation2 + $0x138] sm:$0xff]
  %v292 = vld [vmem:[#allocation2 + $0x140] sm:$0xff]
  %v293 = vld [vmem:[#allocation2 + $0x150] sm:$0xff]
  %v294 = vld [vmem:[#allocation2 + $0x158] sm:$0xff]
  %v295 = vld [vmem:[#allocation2 + $0x168] sm:$0xff]
  %v296 = vld [vmem:[#allocation2 + $0x170] sm:$0xff]
  %v297 = vld [vmem:[#allocation2 + $0x1b0] sm:$0xff]
  %v298 = vld [vmem:[#allocation2 + $0x1b8] sm:$0xff]
  %v299 = vld [vmem:[#allocation2 + $0x1c8] sm:$0xff]
  %v300 = vld [vmem:[#allocation2 + $0x1d0] sm:$0xff]
  %v301 = vld [vmem:[#allocation2 + $0x1e0] sm:$0xff]
  %v302 = vld [vmem:[#allocation2 + $0x1e8] sm:$0xff]
  %v303 = vld [vmem:[#allocation2 + $0x1f8] sm:$0xff]
  %v304 = vld [vmem:[#allocation2 + $0x200] sm:$0xff]
  %v305 = vld [vmem:[#allocation2 + $0x210] sm:$0xff]
  %v306 = vld [vmem:[#allocation2 + $0x218] sm:$0xff]
  %v307 = vld [vmem:[#allocation2 + $0x228] sm:$0xff]
  %v308 = vld [vmem:[#allocation2 + $0x230] sm:$0xff]
  %v309 = vld [vmem:[#allocation2 + $0x240] sm:$0xff]
  %v310 = vld [vmem:[#allocation2 + $0x248] sm:$0xff]
  %v311 = vld [vmem:[#allocation2 + $0x258] sm:$0xff]
  %v312 = vld [vmem:[#allocation2 + $0x260] sm:$0xff]
  %v313 = vld [vmem:[#allocation2 + $0x270] sm:$0xff]
  %v314 = vld [vmem:[#allocation2 + $0x278] sm:$0xff]
  %v315 = vld [vmem:[#allocation2 + $0x288] sm:$0xff]
  %v316 = vld [vmem:[#allocation2 + $0x290] sm:$0xff]
  %v317 = vld [vmem:[#allocation2 + $0x2a0] sm:$0xff]
  %v318 = vld [vmem:[#allocation2 + $0x2a8] sm:$0xff]
  %v319 = vld [vmem:[#allocation2 + $0x2b8] sm:$0xff]
  %v320 = vld [vmem:[#allocation2 + $0x2c0] sm:$0xff]
  %v321 = vld [vmem:[#allocation2 + $0x2d0] sm:$0xff]
  %v322 = vld [vmem:[#allocation2 + $0x2d8] sm:$0xff]
  %v323 = vld [vmem:[#allocation2 + $0x2e8] sm:$0xff]
  %v324 = vld [vmem:[#allocation2 + $0x2f0] sm:$0xff]
  %v325 = vld [vmem:[#allocation2 + $0x300] sm:$0xff]
  %v326 = vld [vmem:[#allocation2 + $0x308] sm:$0xff]
  %v327 = vld [vmem:[#allocation2 + $0x318] sm:$0xff]
  %v328 = vld [vmem:[#allocation2 + $0x320] sm:$0xff]
  %329 = vst.msk [vmem:[#allocation4] sm:$0xff] %vm90, %v265
  %330 = vst.msk [vmem:[#allocation4 + $0x8] sm:$0xff] %vm90, %v266
  %331 = vst.msk [vmem:[#allocation4 + $0x10] sm:$0xff] %vm90, %v267
  %332 = vst.msk [vmem:[#allocation4 + $0x18] sm:$0xff] %vm90, %v268
  %333 = vst.msk [vmem:[#allocation4 + $0x20] sm:$0xff] %vm90, %v269
  %334 = vst.msk [vmem:[#allocation4 + $0x28] sm:$0xff] %vm90, %v270
  %335 = vst.msk [vmem:[#allocation4 + $0x30] sm:$0xff] %vm90, %v271
  %336 = vst.msk [vmem:[#allocation4 + $0x38] sm:$0xff] %vm90, %v272
  %337 = vst.msk [vmem:[#allocation4 + $0x40] sm:$0xff] %vm90, %v273
  %338 = vst.msk [vmem:[#allocation4 + $0x48] sm:$0xff] %vm90, %v274
  %339 = vst.msk [vmem:[#allocation4 + $0x50] sm:$0xff] %vm90, %v275
  %340 = vst.msk [vmem:[#allocation4 + $0x58] sm:$0xff] %vm90, %v276
  %341 = vst.msk [vmem:[#allocation4 + $0x60] sm:$0xff] %vm90, %v277
  %342 = vst.msk [vmem:[#allocation4 + $0x68] sm:$0xff] %vm90, %v278
  %343 = vst.msk [vmem:[#allocation4 + $0x70] sm:$0xff] %vm90, %v279
  %344 = vst.msk [vmem:[#allocation4 + $0x78] sm:$0xff] %vm90, %v280
  %345 = vst.msk [vmem:[#allocation4 + $0x80] sm:$0xff] %vm90, %v281
  %346 = vst.msk [vmem:[#allocation4 + $0x88] sm:$0xff] %vm90, %v282
  %347 = vst.msk [vmem:[#allocation4 + $0x90] sm:$0xff] %vm90, %v283
  %348 = vst.msk [vmem:[#allocation4 + $0x98] sm:$0xff] %vm90, %v284
  %349 = vst.msk [vmem:[#allocation4 + $0xa0] sm:$0xff] %vm90, %v285
  %350 = vst.msk [vmem:[#allocation4 + $0xa8] sm:$0xff] %vm90, %v286
  %351 = vst.msk [vmem:[#allocation4 + $0xb0] sm:$0xff] %vm90, %v287
  %352 = vst.msk [vmem:[#allocation4 + $0xb8] sm:$0xff] %vm90, %v288
  %353 = vst.msk [vmem:[#allocation4 + $0xc0] sm:$0xff] %vm90, %v289
  %354 = vst.msk [vmem:[#allocation4 + $0xc8] sm:$0xff] %vm90, %v290
  %355 = vst.msk [vmem:[#allocation4 + $0xd0] sm:$0xff] %vm90, %v291
  %356 = vst.msk [vmem:[#allocation4 + $0xd8] sm:$0xff] %vm90, %v292
  %357 = vst.msk [vmem:[#allocation4 + $0xe0] sm:$0xff] %vm90, %v293
  %358 = vst.msk [vmem:[#allocation4 + $0xe8] sm:$0xff] %vm90, %v294
  %359 = vst.msk [vmem:[#allocation4 + $0xf0] sm:$0xff] %vm90, %v295
  %360 = vst.msk [vmem:[#allocation4 + $0xf8] sm:$0xff] %vm90, %v296
  %361 = vst.msk [vmem:[#allocation4 + $0x100] sm:$0xff] %vm90, %v297
  %362 = vst.msk [vmem:[#allocation4 + $0x108] sm:$0xff] %vm90, %v298
  %363 = vst.msk [vmem:[#allocation4 + $0x110] sm:$0xff] %vm90, %v299
  %364 = vst.msk [vmem:[#allocation4 + $0x118] sm:$0xff] %vm90, %v300
  %365 = vst.msk [vmem:[#allocation4 + $0x120] sm:$0xff] %vm90, %v301
  %366 = vst.msk [vmem:[#allocation4 + $0x128] sm:$0xff] %vm90, %v302
  %367 = vst.msk [vmem:[#allocation4 + $0x130] sm:$0xff] %vm90, %v303
  %368 = vst.msk [vmem:[#allocation4 + $0x138] sm:$0xff] %vm90, %v304
  %369 = vst.msk [vmem:[#allocation4 + $0x140] sm:$0xff] %vm90, %v305
  %370 = vst.msk [vmem:[#allocation4 + $0x148] sm:$0xff] %vm90, %v306
  %371 = vst.msk [vmem:[#allocation4 + $0x150] sm:$0xff] %vm90, %v307
  %372 = vst.msk [vmem:[#allocation4 + $0x158] sm:$0xff] %vm90, %v308
  %373 = vst.msk [vmem:[#allocation4 + $0x160] sm:$0xff] %vm90, %v309
  %374 = vst.msk [vmem:[#allocation4 + $0x168] sm:$0xff] %vm90, %v310
  %375 = vst.msk [vmem:[#allocation4 + $0x170] sm:$0xff] %vm90, %v311
  %376 = vst.msk [vmem:[#allocation4 + $0x178] sm:$0xff] %vm90, %v312
  %377 = vst.msk [vmem:[#allocation4 + $0x180] sm:$0xff] %vm90, %v313
  %378 = vst.msk [vmem:[#allocation4 + $0x188] sm:$0xff] %vm90, %v314
  %379 = vst.msk [vmem:[#allocation4 + $0x190] sm:$0xff] %vm90, %v315
  %380 = vst.msk [vmem:[#allocation4 + $0x198] sm:$0xff] %vm90, %v316
  %381 = vst.msk [vmem:[#allocation4 + $0x1a0] sm:$0xff] %vm90, %v317
  %382 = vst.msk [vmem:[#allocation4 + $0x1a8] sm:$0xff] %vm90, %v318
  %383 = vst.msk [vmem:[#allocation4 + $0x1b0] sm:$0xff] %vm90, %v319
  %384 = vst.msk [vmem:[#allocation4 + $0x1b8] sm:$0xff] %vm90, %v320
  %385 = vst.msk [vmem:[#allocation4 + $0x1c0] sm:$0xff] %vm90, %v321
  %386 = vst.msk [vmem:[#allocation4 + $0x1c8] sm:$0xff] %vm90, %v322
  %387 = vst.msk [vmem:[#allocation4 + $0x1d0] sm:$0xff] %vm90, %v323
  %388 = vst.msk [vmem:[#allocation4 + $0x1d8] sm:$0xff] %vm90, %v324
  %389 = vst.msk [vmem:[#allocation4 + $0x1e0] sm:$0xff] %vm90, %v325
  %390 = vst.msk [vmem:[#allocation4 + $0x1e8] sm:$0xff] %vm90, %v326
  %391 = vst.msk [vmem:[#allocation4 + $0x1f0] sm:$0xff] %vm90, %v327
  %392 = vst.msk [vmem:[#allocation4 + $0x1f8] sm:$0xff] %vm90, %v328
  %v393 = vld [vmem:[#allocation2 + $0x1] sm:$0xff]
  %v394 = vld [vmem:[#allocation2 + $0x9] sm:$0xff]
  %v395 = vld [vmem:[#allocation2 + $0x19] sm:$0xff]
  %v396 = vld [vmem:[#allocation2 + $0x21] sm:$0xff]
  %v397 = vld [vmem:[#allocation2 + $0x31] sm:$0xff]
  %v398 = vld [vmem:[#allocation2 + $0x39] sm:$0xff]
  %v399 = vld [vmem:[#allocation2 + $0x49] sm:$0xff]
  %v400 = vld [vmem:[#allocation2 + $0x51] sm:$0xff]
  %v401 = vld [vmem:[#allocation2 + $0x61] sm:$0xff]
  %v402 = vld [vmem:[#allocation2 + $0x69] sm:$0xff]
  %v403 = vld [vmem:[#allocation2 + $0x79] sm:$0xff]
  %v404 = vld [vmem:[#allocation2 + $0x81] sm:$0xff]
  %v405 = vld [vmem:[#allocation2 + $0x91] sm:$0xff]
  %v406 = vld [vmem:[#allocation2 + $0x99] sm:$0xff]
  %v407 = vld [vmem:[#allocation2 + $0xa9] sm:$0xff]
  %v408 = vld [vmem:[#allocation2 + $0xb1] sm:$0xff]
  %v409 = vld [vmem:[#allocation2 + $0xc1] sm:$0xff]
  %v410 = vld [vmem:[#allocation2 + $0xc9] sm:$0xff]
  %v411 = vld [vmem:[#allocation2 + $0xd9] sm:$0xff]
  %v412 = vld [vmem:[#allocation2 + $0xe1] sm:$0xff]
  %v413 = vld [vmem:[#allocation2 + $0xf1] sm:$0xff]
  %v414 = vld [vmem:[#allocation2 + $0xf9] sm:$0xff]
  %v415 = vld [vmem:[#allocation2 + $0x109] sm:$0xff]
  %v416 = vld [vmem:[#allocation2 + $0x111] sm:$0xff]
  %v417 = vld [vmem:[#allocation2 + $0x121] sm:$0xff]
  %v418 = vld [vmem:[#allocation2 + $0x129] sm:$0xff]
  %v419 = vld [vmem:[#allocation2 + $0x139] sm:$0xff]
  %v420 = vld [vmem:[#allocation2 + $0x141] sm:$0xff]
  %v421 = vld [vmem:[#allocation2 + $0x151] sm:$0xff]
  %v422 = vld [vmem:[#allocation2 + $0x159] sm:$0xff]
  %v423 = vld [vmem:[#allocation2 + $0x169] sm:$0xff]
  %v424 = vld [vmem:[#allocation2 + $0x171] sm:$0xff]
  %v425 = vld [vmem:[#allocation2 + $0x1b1] sm:$0xff]
  %v426 = vld [vmem:[#allocation2 + $0x1b9] sm:$0xff]
  %v427 = vld [vmem:[#allocation2 + $0x1c9] sm:$0xff]
  %v428 = vld [vmem:[#allocation2 + $0x1d1] sm:$0xff]
  %v429 = vld [vmem:[#allocation2 + $0x1e1] sm:$0xff]
  %v430 = vld [vmem:[#allocation2 + $0x1e9] sm:$0xff]
  %v431 = vld [vmem:[#allocation2 + $0x1f9] sm:$0xff]
  %v432 = vld [vmem:[#allocation2 + $0x201] sm:$0xff]
  %v433 = vld [vmem:[#allocation2 + $0x211] sm:$0xff]
  %v434 = vld [vmem:[#allocation2 + $0x219] sm:$0xff]
  %v435 = vld [vmem:[#allocation2 + $0x229] sm:$0xff]
  %v436 = vld [vmem:[#allocation2 + $0x231] sm:$0xff]
  %v437 = vld [vmem:[#allocation2 + $0x241] sm:$0xff]
  %v438 = vld [vmem:[#allocation2 + $0x249] sm:$0xff]
  %v439 = vld [vmem:[#allocation2 + $0x259] sm:$0xff]
  %v440 = vld [vmem:[#allocation2 + $0x261] sm:$0xff]
  %v441 = vld [vmem:[#allocation2 + $0x271] sm:$0xff]
  %v442 = vld [vmem:[#allocation2 + $0x279] sm:$0xff]
  %v443 = vld [vmem:[#allocation2 + $0x289] sm:$0xff]
  %v444 = vld [vmem:[#allocation2 + $0x291] sm:$0xff]
  %v445 = vld [vmem:[#allocation2 + $0x2a1] sm:$0xff]
  %v446 = vld [vmem:[#allocation2 + $0x2a9] sm:$0xff]
  %v447 = vld [vmem:[#allocation2 + $0x2b9] sm:$0xff]
  %v448 = vld [vmem:[#allocation2 + $0x2c1] sm:$0xff]
  %v449 = vld [vmem:[#allocation2 + $0x2d1] sm:$0xff]
  %v450 = vld [vmem:[#allocation2 + $0x2d9] sm:$0xff]
  %v451 = vld [vmem:[#allocation2 + $0x2e9] sm:$0xff]
  %v452 = vld [vmem:[#allocation2 + $0x2f1] sm:$0xff]
  %v453 = vld [vmem:[#allocation2 + $0x301] sm:$0xff]
  %v454 = vld [vmem:[#allocation2 + $0x309] sm:$0xff]
  %v455 = vld [vmem:[#allocation2 + $0x319] sm:$0xff]
  %v456 = vld [vmem:[#allocation2 + $0x321] sm:$0xff]
  %521 = vrot.lane.b32.xlu0 %v393, 4
  %v522 = vpop.permute.xlu0 %521
  %523 = vrot.lane.b32.xlu0 %v394, 4
  %v524 = vpop.permute.xlu0 %523
  %525 = vrot.lane.b32.xlu0 %v395, 4
  %v526 = vpop.permute.xlu0 %525
  %527 = vrot.lane.b32.xlu0 %v396, 4
  %v528 = vpop.permute.xlu0 %527
  %529 = vrot.lane.b32.xlu0 %v397, 4
  %v530 = vpop.permute.xlu0 %529
  %531 = vrot.lane.b32.xlu0 %v398, 4
  %v532 = vpop.permute.xlu0 %531
  %533 = vrot.lane.b32.xlu0 %v399, 4
  %v534 = vpop.permute.xlu0 %533
  %535 = vrot.lane.b32.xlu0 %v400, 4
  %v536 = vpop.permute.xlu0 %535
  %537 = vrot.lane.b32.xlu0 %v401, 4
  %v538 = vpop.permute.xlu0 %537
  %539 = vrot.lane.b32.xlu0 %v402, 4
  %v540 = vpop.permute.xlu0 %539
  %541 = vrot.lane.b32.xlu0 %v403, 4
  %v542 = vpop.permute.xlu0 %541
  %543 = vrot.lane.b32.xlu0 %v404, 4
  %v544 = vpop.permute.xlu0 %543
  %545 = vrot.lane.b32.xlu0 %v405, 4
  %v546 = vpop.permute.xlu0 %545
  %547 = vrot.lane.b32.xlu0 %v406, 4
  %v548 = vpop.permute.xlu0 %547
  %549 = vrot.lane.b32.xlu0 %v407, 4
  %v550 = vpop.permute.xlu0 %549
  %551 = vrot.lane.b32.xlu0 %v408, 4
  %v552 = vpop.permute.xlu0 %551
  %553 = vrot.lane.b32.xlu0 %v409, 4
  %v554 = vpop.permute.xlu0 %553
  %555 = vrot.lane.b32.xlu0 %v410, 4
  %v556 = vpop.permute.xlu0 %555
  %557 = vrot.lane.b32.xlu0 %v411, 4
  %v558 = vpop.permute.xlu0 %557
  %559 = vrot.lane.b32.xlu0 %v412, 4
  %v560 = vpop.permute.xlu0 %559
  %561 = vrot.lane.b32.xlu0 %v413, 4
  %v562 = vpop.permute.xlu0 %561
  %563 = vrot.lane.b32.xlu0 %v414, 4
  %v564 = vpop.permute.xlu0 %563
  %565 = vrot.lane.b32.xlu0 %v415, 4
  %v566 = vpop.permute.xlu0 %565
  %567 = vrot.lane.b32.xlu0 %v416, 4
  %v568 = vpop.permute.xlu0 %567
  %569 = vrot.lane.b32.xlu0 %v417, 4
  %v570 = vpop.permute.xlu0 %569
  %571 = vrot.lane.b32.xlu0 %v418, 4
  %v572 = vpop.permute.xlu0 %571
  %573 = vrot.lane.b32.xlu0 %v419, 4
  %v574 = vpop.permute.xlu0 %573
  %575 = vrot.lane.b32.xlu0 %v420, 4
  %v576 = vpop.permute.xlu0 %575
  %577 = vrot.lane.b32.xlu0 %v421, 4
  %v578 = vpop.permute.xlu0 %577
  %579 = vrot.lane.b32.xlu0 %v422, 4
  %v580 = vpop.permute.xlu0 %579
  %581 = vrot.lane.b32.xlu0 %v423, 4
  %v582 = vpop.permute.xlu0 %581
  %583 = vrot.lane.b32.xlu0 %v424, 4
  %v584 = vpop.permute.xlu0 %583
  %585 = vrot.lane.b32.xlu0 %v425, 4
  %v586 = vpop.permute.xlu0 %585
  %587 = vrot.lane.b32.xlu0 %v426, 4
  %v588 = vpop.permute.xlu0 %587
  %589 = vrot.lane.b32.xlu0 %v427, 4
  %v590 = vpop.permute.xlu0 %589
  %591 = vrot.lane.b32.xlu0 %v428, 4
  %v592 = vpop.permute.xlu0 %591
  %593 = vrot.lane.b32.xlu0 %v429, 4
  %v594 = vpop.permute.xlu0 %593
  %595 = vrot.lane.b32.xlu0 %v430, 4
  %v596 = vpop.permute.xlu0 %595
  %597 = vrot.lane.b32.xlu0 %v431, 4
  %v598 = vpop.permute.xlu0 %597
  %599 = vrot.lane.b32.xlu0 %v432, 4
  %v600 = vpop.permute.xlu0 %599
  %601 = vrot.lane.b32.xlu0 %v433, 4
  %v602 = vpop.permute.xlu0 %601
  %603 = vrot.lane.b32.xlu0 %v434, 4
  %v604 = vpop.permute.xlu0 %603
  %605 = vrot.lane.b32.xlu0 %v435, 4
  %v606 = vpop.permute.xlu0 %605
  %607 = vrot.lane.b32.xlu0 %v436, 4
  %v608 = vpop.permute.xlu0 %607
  %609 = vrot.lane.b32.xlu0 %v437, 4
  %v610 = vpop.permute.xlu0 %609
  %611 = vrot.lane.b32.xlu0 %v438, 4
  %v612 = vpop.permute.xlu0 %611
  %613 = vrot.lane.b32.xlu0 %v439, 4
  %v614 = vpop.permute.xlu0 %613
  %615 = vrot.lane.b32.xlu0 %v440, 4
  %v616 = vpop.permute.xlu0 %615
  %617 = vrot.lane.b32.xlu0 %v441, 4
  %v618 = vpop.permute.xlu0 %617
  %619 = vrot.lane.b32.xlu0 %v442, 4
  %v620 = vpop.permute.xlu0 %619
  %621 = vrot.lane.b32.xlu0 %v443, 4
  %v622 = vpop.permute.xlu0 %621
  %623 = vrot.lane.b32.xlu0 %v444, 4
  %v624 = vpop.permute.xlu0 %623
  %625 = vrot.lane.b32.xlu0 %v445, 4
  %v626 = vpop.permute.xlu0 %625
  %627 = vrot.lane.b32.xlu0 %v446, 4
  %v628 = vpop.permute.xlu0 %627
  %629 = vrot.lane.b32.xlu0 %v447, 4
  %v630 = vpop.permute.xlu0 %629
  %631 = vrot.lane.b32.xlu0 %v448, 4
  %v632 = vpop.permute.xlu0 %631
  %633 = vrot.lane.b32.xlu0 %v449, 4
  %v634 = vpop.permute.xlu0 %633
  %635 = vrot.lane.b32.xlu0 %v450, 4
  %v636 = vpop.permute.xlu0 %635
  %637 = vrot.lane.b32.xlu0 %v451, 4
  %v638 = vpop.permute.xlu0 %637
  %639 = vrot.lane.b32.xlu0 %v452, 4
  %v640 = vpop.permute.xlu0 %639
  %641 = vrot.lane.b32.xlu0 %v453, 4
  %v642 = vpop.permute.xlu0 %641
  %643 = vrot.lane.b32.xlu0 %v454, 4
  %v644 = vpop.permute.xlu0 %643
  %645 = vrot.lane.b32.xlu0 %v455, 4
  %v646 = vpop.permute.xlu0 %645
  %647 = vrot.lane.b32.xlu0 %v456, 4
  %v648 = vpop.permute.xlu0 %647
  %vm713 = vcmask 64544
  %714 = vst.msk [vmem:[#allocation4] sm:$0xff] %vm713, %v522
  %715 = vst.msk [vmem:[#allocation4 + $0x8] sm:$0xff] %vm713, %v524
  %716 = vst.msk [vmem:[#allocation4 + $0x10] sm:$0xff] %vm713, %v526
  %717 = vst.msk [vmem:[#allocation4 + $0x18] sm:$0xff] %vm713, %v528
  %718 = vst.msk [vmem:[#allocation4 + $0x20] sm:$0xff] %vm713, %v530
  %719 = vst.msk [vmem:[#allocation4 + $0x28] sm:$0xff] %vm713, %v532
  %720 = vst.msk [vmem:[#allocation4 + $0x30] sm:$0xff] %vm713, %v534
  %721 = vst.msk [vmem:[#allocation4 + $0x38] sm:$0xff] %vm713, %v536
  %722 = vst.msk [vmem:[#allocation4 + $0x40] sm:$0xff] %vm713, %v538
  %723 = vst.msk [vmem:[#allocation4 + $0x48] sm:$0xff] %vm713, %v540
  %724 = vst.msk [vmem:[#allocation4 + $0x50] sm:$0xff] %vm713, %v542
  %725 = vst.msk [vmem:[#allocation4 + $0x58] sm:$0xff] %vm713, %v544
  %726 = vst.msk [vmem:[#allocation4 + $0x60] sm:$0xff] %vm713, %v546
  %727 = vst.msk [vmem:[#allocation4 + $0x68] sm:$0xff] %vm713, %v548
  %728 = vst.msk [vmem:[#allocation4 + $0x70] sm:$0xff] %vm713, %v550
  %729 = vst.msk [vmem:[#allocation4 + $0x78] sm:$0xff] %vm713, %v552
  %730 = vst.msk [vmem:[#allocation4 + $0x80] sm:$0xff] %vm713, %v554
  %731 = vst.msk [vmem:[#allocation4 + $0x88] sm:$0xff] %vm713, %v556
  %732 = vst.msk [vmem:[#allocation4 + $0x90] sm:$0xff] %vm713, %v558
  %733 = vst.msk [vmem:[#allocation4 + $0x98] sm:$0xff] %vm713, %v560
  %734 = vst.msk [vmem:[#allocation4 + $0xa0] sm:$0xff] %vm713, %v562
  %735 = vst.msk [vmem:[#allocation4 + $0xa8] sm:$0xff] %vm713, %v564
  %736 = vst.msk [vmem:[#allocation4 + $0xb0] sm:$0xff] %vm713, %v566
  %737 = vst.msk [vmem:[#allocation4 + $0xb8] sm:$0xff] %vm713, %v568
  %738 = vst.msk [vmem:[#allocation4 + $0xc0] sm:$0xff] %vm713, %v570
  %739 = vst.msk [vmem:[#allocation4 + $0xc8] sm:$0xff] %vm713, %v572
  %740 = vst.msk [vmem:[#allocation4 + $0xd0] sm:$0xff] %vm713, %v574
  %741 = vst.msk [vmem:[#allocation4 + $0xd8] sm:$0xff] %vm713, %v576
  %742 = vst.msk [vmem:[#allocation4 + $0xe0] sm:$0xff] %vm713, %v578
  %743 = vst.msk [vmem:[#allocation4 + $0xe8] sm:$0xff] %vm713, %v580
  %744 = vst.msk [vmem:[#allocation4 + $0xf0] sm:$0xff] %vm713, %v582
  %745 = vst.msk [vmem:[#allocation4 + $0xf8] sm:$0xff] %vm713, %v584
  %746 = vst.msk [vmem:[#allocation4 + $0x100] sm:$0xff] %vm713, %v586
  %747 = vst.msk [vmem:[#allocation4 + $0x108] sm:$0xff] %vm713, %v588
  %748 = vst.msk [vmem:[#allocation4 + $0x110] sm:$0xff] %vm713, %v590
  %749 = vst.msk [vmem:[#allocation4 + $0x118] sm:$0xff] %vm713, %v592
  %750 = vst.msk [vmem:[#allocation4 + $0x120] sm:$0xff] %vm713, %v594
  %751 = vst.msk [vmem:[#allocation4 + $0x128] sm:$0xff] %vm713, %v596
  %752 = vst.msk [vmem:[#allocation4 + $0x130] sm:$0xff] %vm713, %v598
  %753 = vst.msk [vmem:[#allocation4 + $0x138] sm:$0xff] %vm713, %v600
  %754 = vst.msk [vmem:[#allocation4 + $0x140] sm:$0xff] %vm713, %v602
  %755 = vst.msk [vmem:[#allocation4 + $0x148] sm:$0xff] %vm713, %v604
  %756 = vst.msk [vmem:[#allocation4 + $0x150] sm:$0xff] %vm713, %v606
  %757 = vst.msk [vmem:[#allocation4 + $0x158] sm:$0xff] %vm713, %v608
  %758 = vst.msk [vmem:[#allocation4 + $0x160] sm:$0xff] %vm713, %v610
  %759 = vst.msk [vmem:[#allocation4 + $0x168] sm:$0xff] %vm713, %v612
  %760 = vst.msk [vmem:[#allocation4 + $0x170] sm:$0xff] %vm713, %v614
  %761 = vst.msk [vmem:[#allocation4 + $0x178] sm:$0xff] %vm713, %v616
  %762 = vst.msk [vmem:[#allocation4 + $0x180] sm:$0xff] %vm713, %v618
  %763 = vst.msk [vmem:[#allocation4 + $0x188] sm:$0xff] %vm713, %v620
  %764 = vst.msk [vmem:[#allocation4 + $0x190] sm:$0xff] %vm713, %v622
  %765 = vst.msk [vmem:[#allocation4 + $0x198] sm:$0xff] %vm713, %v624
  %766 = vst.msk [vmem:[#allocation4 + $0x1a0] sm:$0xff] %vm713, %v626
  %767 = vst.msk [vmem:[#allocation4 + $0x1a8] sm:$0xff] %vm713, %v628
  %768 = vst.msk [vmem:[#allocation4 + $0x1b0] sm:$0xff] %vm713, %v630
  %769 = vst.msk [vmem:[#allocation4 + $0x1b8] sm:$0xff] %vm713, %v632
  %770 = vst.msk [vmem:[#allocation4 + $0x1c0] sm:$0xff] %vm713, %v634
  %771 = vst.msk [vmem:[#allocation4 + $0x1c8] sm:$0xff] %vm713, %v636
  %772 = vst.msk [vmem:[#allocation4 + $0x1d0] sm:$0xff] %vm713, %v638
  %773 = vst.msk [vmem:[#allocation4 + $0x1d8] sm:$0xff] %vm713, %v640
  %774 = vst.msk [vmem:[#allocation4 + $0x1e0] sm:$0xff] %vm713, %v642
  %775 = vst.msk [vmem:[#allocation4 + $0x1e8] sm:$0xff] %vm713, %v644
  %776 = vst.msk [vmem:[#allocation4 + $0x1f0] sm:$0xff] %vm713, %v646
  %777 = vst.msk [vmem:[#allocation4 + $0x1f8] sm:$0xff] %vm713, %v648
  %v778 = vld [vmem:[#allocation2 + $0x2] sm:$0xff]
  %v779 = vld [vmem:[#allocation2 + $0xa] sm:$0xff]
  %v780 = vld [vmem:[#allocation2 + $0x1a] sm:$0xff]
  %v781 = vld [vmem:[#allocation2 + $0x22] sm:$0xff]
  %v782 = vld [vmem:[#allocation2 + $0x32] sm:$0xff]
  %v783 = vld [vmem:[#allocation2 + $0x3a] sm:$0xff]
  %v784 = vld [vmem:[#allocation2 + $0x4a] sm:$0xff]
  %v785 = vld [vmem:[#allocation2 + $0x52] sm:$0xff]
  %v786 = vld [vmem:[#allocation2 + $0x62] sm:$0xff]
  %v787 = vld [vmem:[#allocation2 + $0x6a] sm:$0xff]
  %v788 = vld [vmem:[#allocation2 + $0x7a] sm:$0xff]
  %v789 = vld [vmem:[#allocation2 + $0x82] sm:$0xff]
  %v790 = vld [vmem:[#allocation2 + $0x92] sm:$0xff]
  %v791 = vld [vmem:[#allocation2 + $0x9a] sm:$0xff]
  %v792 = vld [vmem:[#allocation2 + $0xaa] sm:$0xff]
  %v793 = vld [vmem:[#allocation2 + $0xb2] sm:$0xff]
  %v794 = vld [vmem:[#allocation2 + $0xc2] sm:$0xff]
  %v795 = vld [vmem:[#allocation2 + $0xca] sm:$0xff]
  %v796 = vld [vmem:[#allocation2 + $0xda] sm:$0xff]
  %v797 = vld [vmem:[#allocation2 + $0xe2] sm:$0xff]
  %v798 = vld [vmem:[#allocation2 + $0xf2] sm:$0xff]
  %v799 = vld [vmem:[#allocation2 + $0xfa] sm:$0xff]
  %v800 = vld [vmem:[#allocation2 + $0x10a] sm:$0xff]
  %v801 = vld [vmem:[#allocation2 + $0x112] sm:$0xff]
  %v802 = vld [vmem:[#allocation2 + $0x122] sm:$0xff]
  %v803 = vld [vmem:[#allocation2 + $0x12a] sm:$0xff]
  %v804 = vld [vmem:[#allocation2 + $0x13a] sm:$0xff]
  %v805 = vld [vmem:[#allocation2 + $0x142] sm:$0xff]
  %v806 = vld [vmem:[#allocation2 + $0x152] sm:$0xff]
  %v807 = vld [vmem:[#allocation2 + $0x15a] sm:$0xff]
  %v808 = vld [vmem:[#allocation2 + $0x16a] sm:$0xff]
  %v809 = vld [vmem:[#allocation2 + $0x172] sm:$0xff]
  %v810 = vld [vmem:[#allocation2 + $0x1b2] sm:$0xff]
  %v811 = vld [vmem:[#allocation2 + $0x1ba] sm:$0xff]
  %v812 = vld [vmem:[#allocation2 + $0x1ca] sm:$0xff]
  %v813 = vld [vmem:[#allocation2 + $0x1d2] sm:$0xff]
  %v814 = vld [vmem:[#allocation2 + $0x1e2] sm:$0xff]
  %v815 = vld [vmem:[#allocation2 + $0x1ea] sm:$0xff]
  %v816 = vld [vmem:[#allocation2 + $0x1fa] sm:$0xff]
  %v817 = vld [vmem:[#allocation2 + $0x202] sm:$0xff]
  %v818 = vld [vmem:[#allocation2 + $0x212] sm:$0xff]
  %v819 = vld [vmem:[#allocation2 + $0x21a] sm:$0xff]
  %v820 = vld [vmem:[#allocation2 + $0x22a] sm:$0xff]
  %v821 = vld [vmem:[#allocation2 + $0x232] sm:$0xff]
  %v822 = vld [vmem:[#allocation2 + $0x242] sm:$0xff]
  %v823 = vld [vmem:[#allocation2 + $0x24a] sm:$0xff]
  %v824 = vld [vmem:[#allocation2 + $0x25a] sm:$0xff]
  %v825 = vld [vmem:[#allocation2 + $0x262] sm:$0xff]
  %v826 = vld [vmem:[#allocation2 + $0x272] sm:$0xff]
  %v827 = vld [vmem:[#allocation2 + $0x27a] sm:$0xff]
  %v828 = vld [vmem:[#allocation2 + $0x28a] sm:$0xff]
  %v829 = vld [vmem:[#allocation2 + $0x292] sm:$0xff]
  %v830 = vld [vmem:[#allocation2 + $0x2a2] sm:$0xff]
  %v831 = vld [vmem:[#allocation2 + $0x2aa] sm:$0xff]
  %v832 = vld [vmem:[#allocation2 + $0x2ba] sm:$0xff]
  %v833 = vld [vmem:[#allocation2 + $0x2c2] sm:$0xff]
  %v834 = vld [vmem:[#allocation2 + $0x2d2] sm:$0xff]
  %v835 = vld [vmem:[#allocation2 + $0x2da] sm:$0xff]
  %v836 = vld [vmem:[#allocation2 + $0x2ea] sm:$0xff]
  %v837 = vld [vmem:[#allocation2 + $0x2f2] sm:$0xff]
  %v838 = vld [vmem:[#allocation2 + $0x302] sm:$0xff]
  %v839 = vld [vmem:[#allocation2 + $0x30a] sm:$0xff]
  %v840 = vld [vmem:[#allocation2 + $0x31a] sm:$0xff]
  %v841 = vld [vmem:[#allocation2 + $0x322] sm:$0xff]
  %906 = vrot.lane.b32.xlu0 %v778, 8
  %v907 = vpop.permute.xlu0 %906
  %908 = vrot.lane.b32.xlu0 %v779, 8
  %v909 = vpop.permute.xlu0 %908
  %910 = vrot.lane.b32.xlu0 %v780, 8
  %v911 = vpop.permute.xlu0 %910
  %912 = vrot.lane.b32.xlu0 %v781, 8
  %v913 = vpop.permute.xlu0 %912
  %914 = vrot.lane.b32.xlu0 %v782, 8
  %v915 = vpop.permute.xlu0 %914
  %916 = vrot.lane.b32.xlu0 %v783, 8
  %v917 = vpop.permute.xlu0 %916
  %918 = vrot.lane.b32.xlu0 %v784, 8
  %v919 = vpop.permute.xlu0 %918
  %920 = vrot.lane.b32.xlu0 %v785, 8
  %v921 = vpop.permute.xlu0 %920
  %922 = vrot.lane.b32.xlu0 %v786, 8
  %v923 = vpop.permute.xlu0 %922
  %924 = vrot.lane.b32.xlu0 %v787, 8
  %v925 = vpop.permute.xlu0 %924
  %926 = vrot.lane.b32.xlu0 %v788, 8
  %v927 = vpop.permute.xlu0 %926
  %928 = vrot.lane.b32.xlu0 %v789, 8
  %v929 = vpop.permute.xlu0 %928
  %930 = vrot.lane.b32.xlu0 %v790, 8
  %v931 = vpop.permute.xlu0 %930
  %932 = vrot.lane.b32.xlu0 %v791, 8
  %v933 = vpop.permute.xlu0 %932
  %934 = vrot.lane.b32.xlu0 %v792, 8
  %v935 = vpop.permute.xlu0 %934
  %936 = vrot.lane.b32.xlu0 %v793, 8
  %v937 = vpop.permute.xlu0 %936
  %938 = vrot.lane.b32.xlu0 %v794, 8
  %v939 = vpop.permute.xlu0 %938
  %940 = vrot.lane.b32.xlu0 %v795, 8
  %v941 = vpop.permute.xlu0 %940
  %942 = vrot.lane.b32.xlu0 %v796, 8
  %v943 = vpop.permute.xlu0 %942
  %944 = vrot.lane.b32.xlu0 %v797, 8
  %v945 = vpop.permute.xlu0 %944
  %946 = vrot.lane.b32.xlu0 %v798, 8
  %v947 = vpop.permute.xlu0 %946
  %948 = vrot.lane.b32.xlu0 %v799, 8
  %v949 = vpop.permute.xlu0 %948
  %950 = vrot.lane.b32.xlu0 %v800, 8
  %v951 = vpop.permute.xlu0 %950
  %952 = vrot.lane.b32.xlu0 %v801, 8
  %v953 = vpop.permute.xlu0 %952
  %954 = vrot.lane.b32.xlu0 %v802, 8
  %v955 = vpop.permute.xlu0 %954
  %956 = vrot.lane.b32.xlu0 %v803, 8
  %v957 = vpop.permute.xlu0 %956
  %958 = vrot.lane.b32.xlu0 %v804, 8
  %v959 = vpop.permute.xlu0 %958
  %960 = vrot.lane.b32.xlu0 %v805, 8
  %v961 = vpop.permute.xlu0 %960
  %962 = vrot.lane.b32.xlu0 %v806, 8
  %v963 = vpop.permute.xlu0 %962
  %964 = vrot.lane.b32.xlu0 %v807, 8
  %v965 = vpop.permute.xlu0 %964
  %966 = vrot.lane.b32.xlu0 %v808, 8
  %v967 = vpop.permute.xlu0 %966
  %968 = vrot.lane.b32.xlu0 %v809, 8
  %v969 = vpop.permute.xlu0 %968
  %970 = vrot.lane.b32.xlu0 %v810, 8
  %v971 = vpop.permute.xlu0 %970
  %972 = vrot.lane.b32.xlu0 %v811, 8
  %v973 = vpop.permute.xlu0 %972
  %974 = vrot.lane.b32.xlu0 %v812, 8
  %v975 = vpop.permute.xlu0 %974
  %976 = vrot.lane.b32.xlu0 %v813, 8
  %v977 = vpop.permute.xlu0 %976
  %978 = vrot.lane.b32.xlu0 %v814, 8
  %v979 = vpop.permute.xlu0 %978
  %980 = vrot.lane.b32.xlu0 %v815, 8
  %v981 = vpop.permute.xlu0 %980
  %982 = vrot.lane.b32.xlu0 %v816, 8
  %v983 = vpop.permute.xlu0 %982
  %984 = vrot.lane.b32.xlu0 %v817, 8
  %v985 = vpop.permute.xlu0 %984
  %986 = vrot.lane.b32.xlu0 %v818, 8
  %v987 = vpop.permute.xlu0 %986
  %988 = vrot.lane.b32.xlu0 %v819, 8
  %v989 = vpop.permute.xlu0 %988
  %990 = vrot.lane.b32.xlu0 %v820, 8
  %v991 = vpop.permute.xlu0 %990
  %992 = vrot.lane.b32.xlu0 %v821, 8
  %v993 = vpop.permute.xlu0 %992
  %994 = vrot.lane.b32.xlu0 %v822, 8
  %v995 = vpop.permute.xlu0 %994
  %996 = vrot.lane.b32.xlu0 %v823, 8
  %v997 = vpop.permute.xlu0 %996
  %998 = vrot.lane.b32.xlu0 %v824, 8
  %v999 = vpop.permute.xlu0 %998
  %1000 = vrot.lane.b32.xlu0 %v825, 8
  %v1001 = vpop.permute.xlu0 %1000
  %1002 = vrot.lane.b32.xlu0 %v826, 8
  %v1003 = vpop.permute.xlu0 %1002
  %1004 = vrot.lane.b32.xlu0 %v827, 8
  %v1005 = vpop.permute.xlu0 %1004
  %1006 = vrot.lane.b32.xlu0 %v828, 8
  %v1007 = vpop.permute.xlu0 %1006
  %1008 = vrot.lane.b32.xlu0 %v829, 8
  %v1009 = vpop.permute.xlu0 %1008
  %1010 = vrot.lane.b32.xlu0 %v830, 8
  %v1011 = vpop.permute.xlu0 %1010
  %1012 = vrot.lane.b32.xlu0 %v831, 8
  %v1013 = vpop.permute.xlu0 %1012
  %1014 = vrot.lane.b32.xlu0 %v832, 8
  %v1015 = vpop.permute.xlu0 %1014
  %1016 = vrot.lane.b32.xlu0 %v833, 8
  %v1017 = vpop.permute.xlu0 %1016
  %1018 = vrot.lane.b32.xlu0 %v834, 8
  %v1019 = vpop.permute.xlu0 %1018
  %1020 = vrot.lane.b32.xlu0 %v835, 8
  %v1021 = vpop.permute.xlu0 %1020
  %1022 = vrot.lane.b32.xlu0 %v836, 8
  %v1023 = vpop.permute.xlu0 %1022
  %1024 = vrot.lane.b32.xlu0 %v837, 8
  %v1025 = vpop.permute.xlu0 %1024
  %1026 = vrot.lane.b32.xlu0 %v838, 8
  %v1027 = vpop.permute.xlu0 %1026
  %1028 = vrot.lane.b32.xlu0 %v839, 8
  %v1029 = vpop.permute.xlu0 %1028
  %1030 = vrot.lane.b32.xlu0 %v840, 8
  %v1031 = vpop.permute.xlu0 %1030
  %1032 = vrot.lane.b32.xlu0 %v841, 8
  %v1033 = vpop.permute.xlu0 %1032
  %vm1098 = vcmask 97344
  %1099 = vst.msk [vmem:[#allocation4] sm:$0xff] %vm1098, %v907
  %1100 = vst.msk [vmem:[#allocation4 + $0x8] sm:$0xff] %vm1098, %v909
  %1101 = vst.msk [vmem:[#allocation4 + $0x10] sm:$0xff] %vm1098, %v911
  %1102 = vst.msk [vmem:[#allocation4 + $0x18] sm:$0xff] %vm1098, %v913
  %1103 = vst.msk [vmem:[#allocation4 + $0x20] sm:$0xff] %vm1098, %v915
  %1104 = vst.msk [vmem:[#allocation4 + $0x28] sm:$0xff] %vm1098, %v917
  %1105 = vst.msk [vmem:[#allocation4 + $0x30] sm:$0xff] %vm1098, %v919
  %1106 = vst.msk [vmem:[#allocation4 + $0x38] sm:$0xff] %vm1098, %v921
  %1107 = vst.msk [vmem:[#allocation4 + $0x40] sm:$0xff] %vm1098, %v923
  %1108 = vst.msk [vmem:[#allocation4 + $0x48] sm:$0xff] %vm1098, %v925
  %1109 = vst.msk [vmem:[#allocation4 + $0x50] sm:$0xff] %vm1098, %v927
  %1110 = vst.msk [vmem:[#allocation4 + $0x58] sm:$0xff] %vm1098, %v929
  %1111 = vst.msk [vmem:[#allocation4 + $0x60] sm:$0xff] %vm1098, %v931
  %1112 = vst.msk [vmem:[#allocation4 + $0x68] sm:$0xff] %vm1098, %v933
  %1113 = vst.msk [vmem:[#allocation4 + $0x70] sm:$0xff] %vm1098, %v935
  %1114 = vst.msk [vmem:[#allocation4 + $0x78] sm:$0xff] %vm1098, %v937
  %1115 = vst.msk [vmem:[#allocation4 + $0x80] sm:$0xff] %vm1098, %v939
  %1116 = vst.msk [vmem:[#allocation4 + $0x88] sm:$0xff] %vm1098, %v941
  %1117 = vst.msk [vmem:[#allocation4 + $0x90] sm:$0xff] %vm1098, %v943
  %1118 = vst.msk [vmem:[#allocation4 + $0x98] sm:$0xff] %vm1098, %v945
  %1119 = vst.msk [vmem:[#allocation4 + $0xa0] sm:$0xff] %vm1098, %v947
  %1120 = vst.msk [vmem:[#allocation4 + $0xa8] sm:$0xff] %vm1098, %v949
  %1121 = vst.msk [vmem:[#allocation4 + $0xb0] sm:$0xff] %vm1098, %v951
  %1122 = vst.msk [vmem:[#allocation4 + $0xb8] sm:$0xff] %vm1098, %v953
  %1123 = vst.msk [vmem:[#allocation4 + $0xc0] sm:$0xff] %vm1098, %v955
  %1124 = vst.msk [vmem:[#allocation4 + $0xc8] sm:$0xff] %vm1098, %v957
  %1125 = vst.msk [vmem:[#allocation4 + $0xd0] sm:$0xff] %vm1098, %v959
  %1126 = vst.msk [vmem:[#allocation4 + $0xd8] sm:$0xff] %vm1098, %v961
  %1127 = vst.msk [vmem:[#allocation4 + $0xe0] sm:$0xff] %vm1098, %v963
  %1128 = vst.msk [vmem:[#allocation4 + $0xe8] sm:$0xff] %vm1098, %v965
  %1129 = vst.msk [vmem:[#allocation4 + $0xf0] sm:$0xff] %vm1098, %v967
  %1130 = vst.msk [vmem:[#allocation4 + $0xf8] sm:$0xff] %vm1098, %v969
  %1131 = vst.msk [vmem:[#allocation4 + $0x100] sm:$0xff] %vm1098, %v971
  %1132 = vst.msk [vmem:[#allocation4 + $0x108] sm:$0xff] %vm1098, %v973
  %1133 = vst.msk [vmem:[#allocation4 + $0x110] sm:$0xff] %vm1098, %v975
  %1134 = vst.msk [vmem:[#allocation4 + $0x118] sm:$0xff] %vm1098, %v977
  %1135 = vst.msk [vmem:[#allocation4 + $0x120] sm:$0xff] %vm1098, %v979
  %1136 = vst.msk [vmem:[#allocation4 + $0x128] sm:$0xff] %vm1098, %v981
  %1137 = vst.msk [vmem:[#allocation4 + $0x130] sm:$0xff] %vm1098, %v983
  %1138 = vst.msk [vmem:[#allocation4 + $0x138] sm:$0xff] %vm1098, %v985
  %1139 = vst.msk [vmem:[#allocation4 + $0x140] sm:$0xff] %vm1098, %v987
  %1140 = vst.msk [vmem:[#allocation4 + $0x148] sm:$0xff] %vm1098, %v989
  %1141 = vst.msk [vmem:[#allocation4 + $0x150] sm:$0xff] %vm1098, %v991
  %1142 = vst.msk [vmem:[#allocation4 + $0x158] sm:$0xff] %vm1098, %v993
  %1143 = vst.msk [vmem:[#allocation4 + $0x160] sm:$0xff] %vm1098, %v995
  %1144 = vst.msk [vmem:[#allocation4 + $0x168] sm:$0xff] %vm1098, %v997
  %1145 = vst.msk [vmem:[#allocation4 + $0x170] sm:$0xff] %vm1098, %v999
  %1146 = vst.msk [vmem:[#allocation4 + $0x178] sm:$0xff] %vm1098, %v1001
  %1147 = vst.msk [vmem:[#allocation4 + $0x180] sm:$0xff] %vm1098, %v1003
  %1148 = vst.msk [vmem:[#allocation4 + $0x188] sm:$0xff] %vm1098, %v1005
  %1149 = vst.msk [vmem:[#allocation4 + $0x190] sm:$0xff] %vm1098, %v1007
  %1150 = vst.msk [vmem:[#allocation4 + $0x198] sm:$0xff] %vm1098, %v1009
  %1151 = vst.msk [vmem:[#allocation4 + $0x1a0] sm:$0xff] %vm1098, %v1011
  %1152 = vst.msk [vmem:[#allocation4 + $0x1a8] sm:$0xff] %vm1098, %v1013
  %1153 = vst.msk [vmem:[#allocation4 + $0x1b0] sm:$0xff] %vm1098, %v1015
  %1154 = vst.msk [vmem:[#allocation4 + $0x1b8] sm:$0xff] %vm1098, %v1017
  %1155 = vst.msk [vmem:[#allocation4 + $0x1c0] sm:$0xff] %vm1098, %v1019
  %1156 = vst.msk [vmem:[#allocation4 + $0x1c8] sm:$0xff] %vm1098, %v1021
  %1157 = vst.msk [vmem:[#allocation4 + $0x1d0] sm:$0xff] %vm1098, %v1023
  %1158 = vst.msk [vmem:[#allocation4 + $0x1d8] sm:$0xff] %vm1098, %v1025
  %1159 = vst.msk [vmem:[#allocation4 + $0x1e0] sm:$0xff] %vm1098, %v1027
  %1160 = vst.msk [vmem:[#allocation4 + $0x1e8] sm:$0xff] %vm1098, %v1029
  %1161 = vst.msk [vmem:[#allocation4 + $0x1f0] sm:$0xff] %vm1098, %v1031
  %1162 = vst.msk [vmem:[#allocation4 + $0x1f8] sm:$0xff] %vm1098, %v1033
  %v1163 = vld [vmem:[%s200] sm:$0xff]
  %v1164 = vld [vmem:[%s200 + $0x8] sm:$0xff]
  %v1165 = vld [vmem:[%s200 + $0x18] sm:$0xff]
  %v1166 = vld [vmem:[%s200 + $0x20] sm:$0xff]
  %v1167 = vld [vmem:[%s200 + $0x30] sm:$0xff]
  %v1168 = vld [vmem:[%s200 + $0x38] sm:$0xff]
  %v1169 = vld [vmem:[%s200 + $0x48] sm:$0xff]
  %v1170 = vld [vmem:[%s200 + $0x50] sm:$0xff]
  %v1171 = vld [vmem:[%s200 + $0x60] sm:$0xff]
  %v1172 = vld [vmem:[%s200 + $0x68] sm:$0xff]
  %v1173 = vld [vmem:[%s200 + $0x78] sm:$0xff]
  %v1174 = vld [vmem:[%s200 + $0x80] sm:$0xff]
  %v1175 = vld [vmem:[%s200 + $0x90] sm:$0xff]
  %v1176 = vld [vmem:[%s200 + $0x98] sm:$0xff]
  %v1177 = vld [vmem:[%s200 + $0xa8] sm:$0xff]
  %v1178 = vld [vmem:[%s200 + $0xb0] sm:$0xff]
  %v1179 = vld [vmem:[%s200 + $0xc0] sm:$0xff]
  %v1180 = vld [vmem:[%s200 + $0xc8] sm:$0xff]
  %v1181 = vld [vmem:[%s200 + $0xd8] sm:$0xff]
  %v1182 = vld [vmem:[%s200 + $0xe0] sm:$0xff]
  %v1183 = vld [vmem:[%s200 + $0xf0] sm:$0xff]
  %v1184 = vld [vmem:[%s200 + $0xf8] sm:$0xff]
  %v1185 = vld [vmem:[%s200 + $0x108] sm:$0xff]
  %v1186 = vld [vmem:[%s200 + $0x110] sm:$0xff]
  %v1187 = vld [vmem:[%s200 + $0x120] sm:$0xff]
  %v1188 = vld [vmem:[%s200 + $0x128] sm:$0xff]
  %v1189 = vld [vmem:[%s200 + $0x138] sm:$0xff]
  %v1190 = vld [vmem:[%s200 + $0x140] sm:$0xff]
  %v1191 = vld [vmem:[%s200 + $0x150] sm:$0xff]
  %v1192 = vld [vmem:[%s200 + $0x158] sm:$0xff]
  %v1193 = vld [vmem:[%s200 + $0x168] sm:$0xff]
  %v1194 = vld [vmem:[%s200 + $0x170] sm:$0xff]
  %v1195 = vld [vmem:[%s200 + $0x1b0] sm:$0xff]
  %v1196 = vld [vmem:[%s200 + $0x1b8] sm:$0xff]
  %v1197 = vld [vmem:[%s200 + $0x1c8] sm:$0xff]
  %v1198 = vld [vmem:[%s200 + $0x1d0] sm:$0xff]
  %v1199 = vld [vmem:[%s200 + $0x1e0] sm:$0xff]
  %v1200 = vld [vmem:[%s200 + $0x1e8] sm:$0xff]
  %v1201 = vld [vmem:[%s200 + $0x1f8] sm:$0xff]
  %v1202 = vld [vmem:[%s200 + $0x200] sm:$0xff]
  %v1203 = vld [vmem:[%s200 + $0x210] sm:$0xff]
  %v1204 = vld [vmem:[%s200 + $0x218] sm:$0xff]
  %v1205 = vld [vmem:[%s200 + $0x228] sm:$0xff]
  %v1206 = vld [vmem:[%s200 + $0x230] sm:$0xff]
  %v1207 = vld [vmem:[%s200 + $0x240] sm:$0xff]
  %v1208 = vld [vmem:[%s200 + $0x248] sm:$0xff]
  %v1209 = vld [vmem:[%s200 + $0x258] sm:$0xff]
  %v1210 = vld [vmem:[%s200 + $0x260] sm:$0xff]
  %v1211 = vld [vmem:[%s200 + $0x270] sm:$0xff]
  %v1212 = vld [vmem:[%s200 + $0x278] sm:$0xff]
  %v1213 = vld [vmem:[%s200 + $0x288] sm:$0xff]
  %v1214 = vld [vmem:[%s200 + $0x290] sm:$0xff]
  %v1215 = vld [vmem:[%s200 + $0x2a0] sm:$0xff]
  %v1216 = vld [vmem:[%s200 + $0x2a8] sm:$0xff]
  %v1217 = vld [vmem:[%s200 + $0x2b8] sm:$0xff]
  %v1218 = vld [vmem:[%s200 + $0x2c0] sm:$0xff]
  %v1219 = vld [vmem:[%s200 + $0x2d0] sm:$0xff]
  %v1220 = vld [vmem:[%s200 + $0x2d8] sm:$0xff]
  %v1221 = vld [vmem:[%s200 + $0x2e8] sm:$0xff]
  %v1222 = vld [vmem:[%s200 + $0x2f0] sm:$0xff]
  %v1223 = vld [vmem:[%s200 + $0x300] sm:$0xff]
  %v1224 = vld [vmem:[%s200 + $0x308] sm:$0xff]
  %v1225 = vld [vmem:[%s200 + $0x318] sm:$0xff]
  %v1226 = vld [vmem:[%s200 + $0x320] sm:$0xff]
  %1291 = vrot.lane.b32.xlu0 %v1163, 12
  %v1292 = vpop.permute.xlu0 %1291
  %1293 = vrot.lane.b32.xlu0 %v1164, 12
  %v1294 = vpop.permute.xlu0 %1293
  %1295 = vrot.lane.b32.xlu0 %v1165, 12
  %v1296 = vpop.permute.xlu0 %1295
  %1297 = vrot.lane.b32.xlu0 %v1166, 12
  %v1298 = vpop.permute.xlu0 %1297
  %1299 = vrot.lane.b32.xlu0 %v1167, 12
  %v1300 = vpop.permute.xlu0 %1299
  %1301 = vrot.lane.b32.xlu0 %v1168, 12
  %v1302 = vpop.permute.xlu0 %1301
  %1303 = vrot.lane.b32.xlu0 %v1169, 12
  %v1304 = vpop.permute.xlu0 %1303
  %1305 = vrot.lane.b32.xlu0 %v1170, 12
  %v1306 = vpop.permute.xlu0 %1305
  %1307 = vrot.lane.b32.xlu0 %v1171, 12
  %v1308 = vpop.permute.xlu0 %1307
  %1309 = vrot.lane.b32.xlu0 %v1172, 12
  %v1310 = vpop.permute.xlu0 %1309
  %1311 = vrot.lane.b32.xlu0 %v1173, 12
  %v1312 = vpop.permute.xlu0 %1311
  %1313 = vrot.lane.b32.xlu0 %v1174, 12
  %v1314 = vpop.permute.xlu0 %1313
  %1315 = vrot.lane.b32.xlu0 %v1175, 12
  %v1316 = vpop.permute.xlu0 %1315
  %1317 = vrot.lane.b32.xlu0 %v1176, 12
  %v1318 = vpop.permute.xlu0 %1317
  %1319 = vrot.lane.b32.xlu0 %v1177, 12
  %v1320 = vpop.permute.xlu0 %1319
  %1321 = vrot.lane.b32.xlu0 %v1178, 12
  %v1322 = vpop.permute.xlu0 %1321
  %1323 = vrot.lane.b32.xlu0 %v1179, 12
  %v1324 = vpop.permute.xlu0 %1323
  %1325 = vrot.lane.b32.xlu0 %v1180, 12
  %v1326 = vpop.permute.xlu0 %1325
  %1327 = vrot.lane.b32.xlu0 %v1181, 12
  %v1328 = vpop.permute.xlu0 %1327
  %1329 = vrot.lane.b32.xlu0 %v1182, 12
  %v1330 = vpop.permute.xlu0 %1329
  %1331 = vrot.lane.b32.xlu0 %v1183, 12
  %v1332 = vpop.permute.xlu0 %1331
  %1333 = vrot.lane.b32.xlu0 %v1184, 12
  %v1334 = vpop.permute.xlu0 %1333
  %1335 = vrot.lane.b32.xlu0 %v1185, 12
  %v1336 = vpop.permute.xlu0 %1335
  %1337 = vrot.lane.b32.xlu0 %v1186, 12
  %v1338 = vpop.permute.xlu0 %1337
  %1339 = vrot.lane.b32.xlu0 %v1187, 12
  %v1340 = vpop.permute.xlu0 %1339
  %1341 = vrot.lane.b32.xlu0 %v1188, 12
  %v1342 = vpop.permute.xlu0 %1341
  %1343 = vrot.lane.b32.xlu0 %v1189, 12
  %v1344 = vpop.permute.xlu0 %1343
  %1345 = vrot.lane.b32.xlu0 %v1190, 12
  %v1346 = vpop.permute.xlu0 %1345
  %1347 = vrot.lane.b32.xlu0 %v1191, 12
  %v1348 = vpop.permute.xlu0 %1347
  %1349 = vrot.lane.b32.xlu0 %v1192, 12
  %v1350 = vpop.permute.xlu0 %1349
  %1351 = vrot.lane.b32.xlu0 %v1193, 12
  %v1352 = vpop.permute.xlu0 %1351
  %1353 = vrot.lane.b32.xlu0 %v1194, 12
  %v1354 = vpop.permute.xlu0 %1353
  %1355 = vrot.lane.b32.xlu0 %v1195, 12
  %v1356 = vpop.permute.xlu0 %1355
  %1357 = vrot.lane.b32.xlu0 %v1196, 12
  %v1358 = vpop.permute.xlu0 %1357
  %1359 = vrot.lane.b32.xlu0 %v1197, 12
  %v1360 = vpop.permute.xlu0 %1359
  %1361 = vrot.lane.b32.xlu0 %v1198, 12
  %v1362 = vpop.permute.xlu0 %1361
  %1363 = vrot.lane.b32.xlu0 %v1199, 12
  %v1364 = vpop.permute.xlu0 %1363
  %1365 = vrot.lane.b32.xlu0 %v1200, 12
  %v1366 = vpop.permute.xlu0 %1365
  %1367 = vrot.lane.b32.xlu0 %v1201, 12
  %v1368 = vpop.permute.xlu0 %1367
  %1369 = vrot.lane.b32.xlu0 %v1202, 12
  %v1370 = vpop.permute.xlu0 %1369
  %1371 = vrot.lane.b32.xlu0 %v1203, 12
  %v1372 = vpop.permute.xlu0 %1371
  %1373 = vrot.lane.b32.xlu0 %v1204, 12
  %v1374 = vpop.permute.xlu0 %1373
  %1375 = vrot.lane.b32.xlu0 %v1205, 12
  %v1376 = vpop.permute.xlu0 %1375
  %1377 = vrot.lane.b32.xlu0 %v1206, 12
  %v1378 = vpop.permute.xlu0 %1377
  %1379 = vrot.lane.b32.xlu0 %v1207, 12
  %v1380 = vpop.permute.xlu0 %1379
  %1381 = vrot.lane.b32.xlu0 %v1208, 12
  %v1382 = vpop.permute.xlu0 %1381
  %1383 = vrot.lane.b32.xlu0 %v1209, 12
  %v1384 = vpop.permute.xlu0 %1383
  %1385 = vrot.lane.b32.xlu0 %v1210, 12
  %v1386 = vpop.permute.xlu0 %1385
  %1387 = vrot.lane.b32.xlu0 %v1211, 12
  %v1388 = vpop.permute.xlu0 %1387
  %1389 = vrot.lane.b32.xlu0 %v1212, 12
  %v1390 = vpop.permute.xlu0 %1389
  %1391 = vrot.lane.b32.xlu0 %v1213, 12
  %v1392 = vpop.permute.xlu0 %1391
  %1393 = vrot.lane.b32.xlu0 %v1214, 12
  %v1394 = vpop.permute.xlu0 %1393
  %1395 = vrot.lane.b32.xlu0 %v1215, 12
  %v1396 = vpop.permute.xlu0 %1395
  %1397 = vrot.lane.b32.xlu0 %v1216, 12
  %v1398 = vpop.permute.xlu0 %1397
  %1399 = vrot.lane.b32.xlu0 %v1217, 12
  %v1400 = vpop.permute.xlu0 %1399
  %1401 = vrot.lane.b32.xlu0 %v1218, 12
  %v1402 = vpop.permute.xlu0 %1401
  %1403 = vrot.lane.b32.xlu0 %v1219, 12
  %v1404 = vpop.permute.xlu0 %1403
  %1405 = vrot.lane.b32.xlu0 %v1220, 12
  %v1406 = vpop.permute.xlu0 %1405
  %1407 = vrot.lane.b32.xlu0 %v1221, 12
  %v1408 = vpop.permute.xlu0 %1407
  %1409 = vrot.lane.b32.xlu0 %v1222, 12
  %v1410 = vpop.permute.xlu0 %1409
  %1411 = vrot.lane.b32.xlu0 %v1223, 12
  %v1412 = vpop.permute.xlu0 %1411
  %1413 = vrot.lane.b32.xlu0 %v1224, 12
  %v1414 = vpop.permute.xlu0 %1413
  %1415 = vrot.lane.b32.xlu0 %v1225, 12
  %v1416 = vpop.permute.xlu0 %1415
  %1417 = vrot.lane.b32.xlu0 %v1226, 12
  %v1418 = vpop.permute.xlu0 %1417
  %vm1483 = vcmask 130144
  %1484 = vst.msk [vmem:[#allocation4] sm:$0xff] %vm1483, %v1292
  %1485 = vst.msk [vmem:[#allocation4 + $0x8] sm:$0xff] %vm1483, %v1294
  %1486 = vst.msk [vmem:[#allocation4 + $0x10] sm:$0xff] %vm1483, %v1296
  %1487 = vst.msk [vmem:[#allocation4 + $0x18] sm:$0xff] %vm1483, %v1298
  %1488 = vst.msk [vmem:[#allocation4 + $0x20] sm:$0xff] %vm1483, %v1300
  %1489 = vst.msk [vmem:[#allocation4 + $0x28] sm:$0xff] %vm1483, %v1302
  %1490 = vst.msk [vmem:[#allocation4 + $0x30] sm:$0xff] %vm1483, %v1304
  %1491 = vst.msk [vmem:[#allocation4 + $0x38] sm:$0xff] %vm1483, %v1306
  %1492 = vst.msk [vmem:[#allocation4 + $0x40] sm:$0xff] %vm1483, %v1308
  %1493 = vst.msk [vmem:[#allocation4 + $0x48] sm:$0xff] %vm1483, %v1310
  %1494 = vst.msk [vmem:[#allocation4 + $0x50] sm:$0xff] %vm1483, %v1312
  %1495 = vst.msk [vmem:[#allocation4 + $0x58] sm:$0xff] %vm1483, %v1314
  %1496 = vst.msk [vmem:[#allocation4 + $0x60] sm:$0xff] %vm1483, %v1316
  %1497 = vst.msk [vmem:[#allocation4 + $0x68] sm:$0xff] %vm1483, %v1318
  %1498 = vst.msk [vmem:[#allocation4 + $0x70] sm:$0xff] %vm1483, %v1320
  %1499 = vst.msk [vmem:[#allocation4 + $0x78] sm:$0xff] %vm1483, %v1322
  %1500 = vst.msk [vmem:[#allocation4 + $0x80] sm:$0xff] %vm1483, %v1324
  %1501 = vst.msk [vmem:[#allocation4 + $0x88] sm:$0xff] %vm1483, %v1326
  %1502 = vst.msk [vmem:[#allocation4 + $0x90] sm:$0xff] %vm1483, %v1328
  %1503 = vst.msk [vmem:[#allocation4 + $0x98] sm:$0xff] %vm1483, %v1330
  %1504 = vst.msk [vmem:[#allocation4 + $0xa0] sm:$0xff] %vm1483, %v1332
  %1505 = vst.msk [vmem:[#allocation4 + $0xa8] sm:$0xff] %vm1483, %v1334
  %1506 = vst.msk [vmem:[#allocation4 + $0xb0] sm:$0xff] %vm1483, %v1336
  %1507 = vst.msk [vmem:[#allocation4 + $0xb8] sm:$0xff] %vm1483, %v1338
  %1508 = vst.msk [vmem:[#allocation4 + $0xc0] sm:$0xff] %vm1483, %v1340
  %1509 = vst.msk [vmem:[#allocation4 + $0xc8] sm:$0xff] %vm1483, %v1342
  %1510 = vst.msk [vmem:[#allocation4 + $0xd0] sm:$0xff] %vm1483, %v1344
  %1511 = vst.msk [vmem:[#allocation4 + $0xd8] sm:$0xff] %vm1483, %v1346
  %1512 = vst.msk [vmem:[#allocation4 + $0xe0] sm:$0xff] %vm1483, %v1348
  %1513 = vst.msk [vmem:[#allocation4 + $0xe8] sm:$0xff] %vm1483, %v1350
  %1514 = vst.msk [vmem:[#allocation4 + $0xf0] sm:$0xff] %vm1483, %v1352
  %1515 = vst.msk [vmem:[#allocation4 + $0xf8] sm:$0xff] %vm1483, %v1354
  %1516 = vst.msk [vmem:[#allocation4 + $0x100] sm:$0xff] %vm1483, %v1356
  %1517 = vst.msk [vmem:[#allocation4 + $0x108] sm:$0xff] %vm1483, %v1358
  %1518 = vst.msk [vmem:[#allocation4 + $0x110] sm:$0xff] %vm1483, %v1360
  %1519 = vst.msk [vmem:[#allocation4 + $0x118] sm:$0xff] %vm1483, %v1362
  %1520 = vst.msk [vmem:[#allocation4 + $0x120] sm:$0xff] %vm1483, %v1364
  %1521 = vst.msk [vmem:[#allocation4 + $0x128] sm:$0xff] %vm1483, %v1366
  %1522 = vst.msk [vmem:[#allocation4 + $0x130] sm:$0xff] %vm1483, %v1368
  %1523 = vst.msk [vmem:[#allocation4 + $0x138] sm:$0xff] %vm1483, %v1370
  %1524 = vst.msk [vmem:[#allocation4 + $0x140] sm:$0xff] %vm1483, %v1372
  %1525 = vst.msk [vmem:[#allocation4 + $0x148] sm:$0xff] %vm1483, %v1374
  %1526 = vst.msk [vmem:[#allocation4 + $0x150] sm:$0xff] %vm1483, %v1376
  %1527 = vst.msk [vmem:[#allocation4 + $0x158] sm:$0xff] %vm1483, %v1378
  %1528 = vst.msk [vmem:[#allocation4 + $0x160] sm:$0xff] %vm1483, %v1380
  %1529 = vst.msk [vmem:[#allocation4 + $0x168] sm:$0xff] %vm1483, %v1382
  %1530 = vst.msk [vmem:[#allocation4 + $0x170] sm:$0xff] %vm1483, %v1384
  %1531 = vst.msk [vmem:[#allocation4 + $0x178] sm:$0xff] %vm1483, %v1386
  %1532 = vst.msk [vmem:[#allocation4 + $0x180] sm:$0xff] %vm1483, %v1388
  %1533 = vst.msk [vmem:[#allocation4 + $0x188] sm:$0xff] %vm1483, %v1390
  %1534 = vst.msk [vmem:[#allocation4 + $0x190] sm:$0xff] %vm1483, %v1392
  %1535 = vst.msk [vmem:[#allocation4 + $0x198] sm:$0xff] %vm1483, %v1394
  %1536 = vst.msk [vmem:[#allocation4 + $0x1a0] sm:$0xff] %vm1483, %v1396
  %1537 = vst.msk [vmem:[#allocation4 + $0x1a8] sm:$0xff] %vm1483, %v1398
  %1538 = vst.msk [vmem:[#allocation4 + $0x1b0] sm:$0xff] %vm1483, %v1400
  %1539 = vst.msk [vmem:[#allocation4 + $0x1b8] sm:$0xff] %vm1483, %v1402
  %1540 = vst.msk [vmem:[#allocation4 + $0x1c0] sm:$0xff] %vm1483, %v1404
  %1541 = vst.msk [vmem:[#allocation4 + $0x1c8] sm:$0xff] %vm1483, %v1406
  %1542 = vst.msk [vmem:[#allocation4 + $0x1d0] sm:$0xff] %vm1483, %v1408
  %1543 = vst.msk [vmem:[#allocation4 + $0x1d8] sm:$0xff] %vm1483, %v1410
  %1544 = vst.msk [vmem:[#allocation4 + $0x1e0] sm:$0xff] %vm1483, %v1412
  %1545 = vst.msk [vmem:[#allocation4 + $0x1e8] sm:$0xff] %vm1483, %v1414
  %1546 = vst.msk [vmem:[#allocation4 + $0x1f0] sm:$0xff] %vm1483, %v1416
  %1547 = vst.msk [vmem:[#allocation4 + $0x1f8] sm:$0xff] %vm1483, %v1418
  %v1548 = vld [vmem:[%s200 + $0x1] sm:$0xff]
  %v1549 = vld [vmem:[%s200 + $0x9] sm:$0xff]
  %v1550 = vld [vmem:[%s200 + $0x19] sm:$0xff]
  %v1551 = vld [vmem:[%s200 + $0x21] sm:$0xff]
  %v1552 = vld [vmem:[%s200 + $0x31] sm:$0xff]
  %v1553 = vld [vmem:[%s200 + $0x39] sm:$0xff]
  %v1554 = vld [vmem:[%s200 + $0x49] sm:$0xff]
  %v1555 = vld [vmem:[%s200 + $0x51] sm:$0xff]
  %v1556 = vld [vmem:[%s200 + $0x61] sm:$0xff]
  %v1557 = vld [vmem:[%s200 + $0x69] sm:$0xff]
  %v1558 = vld [vmem:[%s200 + $0x79] sm:$0xff]
  %v1559 = vld [vmem:[%s200 + $0x81] sm:$0xff]
  %v1560 = vld [vmem:[%s200 + $0x91] sm:$0xff]
  %v1561 = vld [vmem:[%s200 + $0x99] sm:$0xff]
  %v1562 = vld [vmem:[%s200 + $0xa9] sm:$0xff]
  %v1563 = vld [vmem:[%s200 + $0xb1] sm:$0xff]
  %v1564 = vld [vmem:[%s200 + $0xc1] sm:$0xff]
  %v1565 = vld [vmem:[%s200 + $0xc9] sm:$0xff]
  %v1566 = vld [vmem:[%s200 + $0xd9] sm:$0xff]
  %v1567 = vld [vmem:[%s200 + $0xe1] sm:$0xff]
  %v1568 = vld [vmem:[%s200 + $0xf1] sm:$0xff]
  %v1569 = vld [vmem:[%s200 + $0xf9] sm:$0xff]
  %v1570 = vld [vmem:[%s200 + $0x109] sm:$0xff]
  %v1571 = vld [vmem:[%s200 + $0x111] sm:$0xff]
  %v1572 = vld [vmem:[%s200 + $0x121] sm:$0xff]
  %v1573 = vld [vmem:[%s200 + $0x129] sm:$0xff]
  %v1574 = vld [vmem:[%s200 + $0x139] sm:$0xff]
  %v1575 = vld [vmem:[%s200 + $0x141] sm:$0xff]
  %v1576 = vld [vmem:[%s200 + $0x151] sm:$0xff]
  %v1577 = vld [vmem:[%s200 + $0x159] sm:$0xff]
  %v1578 = vld [vmem:[%s200 + $0x169] sm:$0xff]
  %v1579 = vld [vmem:[%s200 + $0x171] sm:$0xff]
  %v1580 = vld [vmem:[%s200 + $0x1b1] sm:$0xff]
  %v1581 = vld [vmem:[%s200 + $0x1b9] sm:$0xff]
  %v1582 = vld [vmem:[%s200 + $0x1c9] sm:$0xff]
  %v1583 = vld [vmem:[%s200 + $0x1d1] sm:$0xff]
  %v1584 = vld [vmem:[%s200 + $0x1e1] sm:$0xff]
  %v1585 = vld [vmem:[%s200 + $0x1e9] sm:$0xff]
  %v1586 = vld [vmem:[%s200 + $0x1f9] sm:$0xff]
  %v1587 = vld [vmem:[%s200 + $0x201] sm:$0xff]
  %v1588 = vld [vmem:[%s200 + $0x211] sm:$0xff]
  %v1589 = vld [vmem:[%s200 + $0x219] sm:$0xff]
  %v1590 = vld [vmem:[%s200 + $0x229] sm:$0xff]
  %v1591 = vld [vmem:[%s200 + $0x231] sm:$0xff]
  %v1592 = vld [vmem:[%s200 + $0x241] sm:$0xff]
  %v1593 = vld [vmem:[%s200 + $0x249] sm:$0xff]
  %v1594 = vld [vmem:[%s200 + $0x259] sm:$0xff]
  %v1595 = vld [vmem:[%s200 + $0x261] sm:$0xff]
  %v1596 = vld [vmem:[%s200 + $0x271] sm:$0xff]
  %v1597 = vld [vmem:[%s200 + $0x279] sm:$0xff]
  %v1598 = vld [vmem:[%s200 + $0x289] sm:$0xff]
  %v1599 = vld [vmem:[%s200 + $0x291] sm:$0xff]
  %v1600 = vld [vmem:[%s200 + $0x2a1] sm:$0xff]
  %v1601 = vld [vmem:[%s200 + $0x2a9] sm:$0xff]
  %v1602 = vld [vmem:[%s200 + $0x2b9] sm:$0xff]
  %v1603 = vld [vmem:[%s200 + $0x2c1] sm:$0xff]
  %v1604 = vld [vmem:[%s200 + $0x2d1] sm:$0xff]
  %v1605 = vld [vmem:[%s200 + $0x2d9] sm:$0xff]
  %v1606 = vld [vmem:[%s200 + $0x2e9] sm:$0xff]
  %v1607 = vld [vmem:[%s200 + $0x2f1] sm:$0xff]
  %v1608 = vld [vmem:[%s200 + $0x301] sm:$0xff]
  %v1609 = vld [vmem:[%s200 + $0x309] sm:$0xff]
  %v1610 = vld [vmem:[%s200 + $0x319] sm:$0xff]
  %v1611 = vld [vmem:[%s200 + $0x321] sm:$0xff]
  %1676 = vrot.lane.b32.xlu0 %v1548, 16
  %v1677 = vpop.permute.xlu0 %1676
  %1678 = vrot.lane.b32.xlu0 %v1549, 16
  %v1679 = vpop.permute.xlu0 %1678
  %1680 = vrot.lane.b32.xlu0 %v1550, 16
  %v1681 = vpop.permute.xlu0 %1680
  %1682 = vrot.lane.b32.xlu0 %v1551, 16
  %v1683 = vpop.permute.xlu0 %1682
  %1684 = vrot.lane.b32.xlu0 %v1552, 16
  %v1685 = vpop.permute.xlu0 %1684
  %1686 = vrot.lane.b32.xlu0 %v1553, 16
  %v1687 = vpop.permute.xlu0 %1686
  %1688 = vrot.lane.b32.xlu0 %v1554, 16
  %v1689 = vpop.permute.xlu0 %1688
  %1690 = vrot.lane.b32.xlu0 %v1555, 16
  %v1691 = vpop.permute.xlu0 %1690
  %1692 = vrot.lane.b32.xlu0 %v1556, 16
  %v1693 = vpop.permute.xlu0 %1692
  %1694 = vrot.lane.b32.xlu0 %v1557, 16
  %v1695 = vpop.permute.xlu0 %1694
  %1696 = vrot.lane.b32.xlu0 %v1558, 16
  %v1697 = vpop.permute.xlu0 %1696
  %1698 = vrot.lane.b32.xlu0 %v1559, 16
  %v1699 = vpop.permute.xlu0 %1698
  %1700 = vrot.lane.b32.xlu0 %v1560, 16
  %v1701 = vpop.permute.xlu0 %1700
  %1702 = vrot.lane.b32.xlu0 %v1561, 16
  %v1703 = vpop.permute.xlu0 %1702
  %1704 = vrot.lane.b32.xlu0 %v1562, 16
  %v1705 = vpop.permute.xlu0 %1704
  %1706 = vrot.lane.b32.xlu0 %v1563, 16
  %v1707 = vpop.permute.xlu0 %1706
  %1708 = vrot.lane.b32.xlu0 %v1564, 16
  %v1709 = vpop.permute.xlu0 %1708
  %1710 = vrot.lane.b32.xlu0 %v1565, 16
  %v1711 = vpop.permute.xlu0 %1710
  %1712 = vrot.lane.b32.xlu0 %v1566, 16
  %v1713 = vpop.permute.xlu0 %1712
  %1714 = vrot.lane.b32.xlu0 %v1567, 16
  %v1715 = vpop.permute.xlu0 %1714
  %1716 = vrot.lane.b32.xlu0 %v1568, 16
  %v1717 = vpop.permute.xlu0 %1716
  %1718 = vrot.lane.b32.xlu0 %v1569, 16
  %v1719 = vpop.permute.xlu0 %1718
  %1720 = vrot.lane.b32.xlu0 %v1570, 16
  %v1721 = vpop.permute.xlu0 %1720
  %1722 = vrot.lane.b32.xlu0 %v1571, 16
  %v1723 = vpop.permute.xlu0 %1722
  %1724 = vrot.lane.b32.xlu0 %v1572, 16
  %v1725 = vpop.permute.xlu0 %1724
  %1726 = vrot.lane.b32.xlu0 %v1573, 16
  %v1727 = vpop.permute.xlu0 %1726
  %1728 = vrot.lane.b32.xlu0 %v1574, 16
  %v1729 = vpop.permute.xlu0 %1728
  %1730 = vrot.lane.b32.xlu0 %v1575, 16
  %v1731 = vpop.permute.xlu0 %1730
  %1732 = vrot.lane.b32.xlu0 %v1576, 16
  %v1733 = vpop.permute.xlu0 %1732
  %1734 = vrot.lane.b32.xlu0 %v1577, 16
  %v1735 = vpop.permute.xlu0 %1734
  %1736 = vrot.lane.b32.xlu0 %v1578, 16
  %v1737 = vpop.permute.xlu0 %1736
  %1738 = vrot.lane.b32.xlu0 %v1579, 16
  %v1739 = vpop.permute.xlu0 %1738
  %1740 = vrot.lane.b32.xlu0 %v1580, 16
  %v1741 = vpop.permute.xlu0 %1740
  %1742 = vrot.lane.b32.xlu0 %v1581, 16
  %v1743 = vpop.permute.xlu0 %1742
  %1744 = vrot.lane.b32.xlu0 %v1582, 16
  %v1745 = vpop.permute.xlu0 %1744
  %1746 = vrot.lane.b32.xlu0 %v1583, 16
  %v1747 = vpop.permute.xlu0 %1746
  %1748 = vrot.lane.b32.xlu0 %v1584, 16
  %v1749 = vpop.permute.xlu0 %1748
  %1750 = vrot.lane.b32.xlu0 %v1585, 16
  %v1751 = vpop.permute.xlu0 %1750
  %1752 = vrot.lane.b32.xlu0 %v1586, 16
  %v1753 = vpop.permute.xlu0 %1752
  %1754 = vrot.lane.b32.xlu0 %v1587, 16
  %v1755 = vpop.permute.xlu0 %1754
  %1756 = vrot.lane.b32.xlu0 %v1588, 16
  %v1757 = vpop.permute.xlu0 %1756
  %1758 = vrot.lane.b32.xlu0 %v1589, 16
  %v1759 = vpop.permute.xlu0 %1758
  %1760 = vrot.lane.b32.xlu0 %v1590, 16
  %v1761 = vpop.permute.xlu0 %1760
  %1762 = vrot.lane.b32.xlu0 %v1591, 16
  %v1763 = vpop.permute.xlu0 %1762
  %1764 = vrot.lane.b32.xlu0 %v1592, 16
  %v1765 = vpop.permute.xlu0 %1764
  %1766 = vrot.lane.b32.xlu0 %v1593, 16
  %v1767 = vpop.permute.xlu0 %1766
  %1768 = vrot.lane.b32.xlu0 %v1594, 16
  %v1769 = vpop.permute.xlu0 %1768
  %1770 = vrot.lane.b32.xlu0 %v1595, 16
  %v1771 = vpop.permute.xlu0 %1770
  %1772 = vrot.lane.b32.xlu0 %v1596, 16
  %v1773 = vpop.permute.xlu0 %1772
  %1774 = vrot.lane.b32.xlu0 %v1597, 16
  %v1775 = vpop.permute.xlu0 %1774
  %1776 = vrot.lane.b32.xlu0 %v1598, 16
  %v1777 = vpop.permute.xlu0 %1776
  %1778 = vrot.lane.b32.xlu0 %v1599, 16
  %v1779 = vpop.permute.xlu0 %1778
  %1780 = vrot.lane.b32.xlu0 %v1600, 16
  %v1781 = vpop.permute.xlu0 %1780
  %1782 = vrot.lane.b32.xlu0 %v1601, 16
  %v1783 = vpop.permute.xlu0 %1782
  %1784 = vrot.lane.b32.xlu0 %v1602, 16
  %v1785 = vpop.permute.xlu0 %1784
  %1786 = vrot.lane.b32.xlu0 %v1603, 16
  %v1787 = vpop.permute.xlu0 %1786
  %1788 = vrot.lane.b32.xlu0 %v1604, 16
  %v1789 = vpop.permute.xlu0 %1788
  %1790 = vrot.lane.b32.xlu0 %v1605, 16
  %v1791 = vpop.permute.xlu0 %1790
  %1792 = vrot.lane.b32.xlu0 %v1606, 16
  %v1793 = vpop.permute.xlu0 %1792
  %1794 = vrot.lane.b32.xlu0 %v1607, 16
  %v1795 = vpop.permute.xlu0 %1794
  %1796 = vrot.lane.b32.xlu0 %v1608, 16
  %v1797 = vpop.permute.xlu0 %1796
  %1798 = vrot.lane.b32.xlu0 %v1609, 16
  %v1799 = vpop.permute.xlu0 %1798
  %1800 = vrot.lane.b32.xlu0 %v1610, 16
  %v1801 = vpop.permute.xlu0 %1800
  %1802 = vrot.lane.b32.xlu0 %v1611, 16
  %v1803 = vpop.permute.xlu0 %1802
  %vm1868 = vcmask 162944
  %1869 = vst.msk [vmem:[#allocation4] sm:$0xff] %vm1868, %v1677
  %1870 = vst.msk [vmem:[#allocation4 + $0x8] sm:$0xff] %vm1868, %v1679
  %1871 = vst.msk [vmem:[#allocation4 + $0x10] sm:$0xff] %vm1868, %v1681
  %1872 = vst.msk [vmem:[#allocation4 + $0x18] sm:$0xff] %vm1868, %v1683
  %1873 = vst.msk [vmem:[#allocation4 + $0x20] sm:$0xff] %vm1868, %v1685
  %1874 = vst.msk [vmem:[#allocation4 + $0x28] sm:$0xff] %vm1868, %v1687
  %1875 = vst.msk [vmem:[#allocation4 + $0x30] sm:$0xff] %vm1868, %v1689
  %1876 = vst.msk [vmem:[#allocation4 + $0x38] sm:$0xff] %vm1868, %v1691
  %1877 = vst.msk [vmem:[#allocation4 + $0x40] sm:$0xff] %vm1868, %v1693
  %1878 = vst.msk [vmem:[#allocation4 + $0x48] sm:$0xff] %vm1868, %v1695
  %1879 = vst.msk [vmem:[#allocation4 + $0x50] sm:$0xff] %vm1868, %v1697
  %1880 = vst.msk [vmem:[#allocation4 + $0x58] sm:$0xff] %vm1868, %v1699
  %1881 = vst.msk [vmem:[#allocation4 + $0x60] sm:$0xff] %vm1868, %v1701
  %1882 = vst.msk [vmem:[#allocation4 + $0x68] sm:$0xff] %vm1868, %v1703
  %1883 = vst.msk [vmem:[#allocation4 + $0x70] sm:$0xff] %vm1868, %v1705
  %1884 = vst.msk [vmem:[#allocation4 + $0x78] sm:$0xff] %vm1868, %v1707
  %1885 = vst.msk [vmem:[#allocation4 + $0x80] sm:$0xff] %vm1868, %v1709
  %1886 = vst.msk [vmem:[#allocation4 + $0x88] sm:$0xff] %vm1868, %v1711
  %1887 = vst.msk [vmem:[#allocation4 + $0x90] sm:$0xff] %vm1868, %v1713
  %1888 = vst.msk [vmem:[#allocation4 + $0x98] sm:$0xff] %vm1868, %v1715
  %1889 = vst.msk [vmem:[#allocation4 + $0xa0] sm:$0xff] %vm1868, %v1717
  %1890 = vst.msk [vmem:[#allocation4 + $0xa8] sm:$0xff] %vm1868, %v1719
  %1891 = vst.msk [vmem:[#allocation4 + $0xb0] sm:$0xff] %vm1868, %v1721
  %1892 = vst.msk [vmem:[#allocation4 + $0xb8] sm:$0xff] %vm1868, %v1723
  %1893 = vst.msk [vmem:[#allocation4 + $0xc0] sm:$0xff] %vm1868, %v1725
  %1894 = vst.msk [vmem:[#allocation4 + $0xc8] sm:$0xff] %vm1868, %v1727
  %1895 = vst.msk [vmem:[#allocation4 + $0xd0] sm:$0xff] %vm1868, %v1729
  %1896 = vst.msk [vmem:[#allocation4 + $0xd8] sm:$0xff] %vm1868, %v1731
  %1897 = vst.msk [vmem:[#allocation4 + $0xe0] sm:$0xff] %vm1868, %v1733
  %1898 = vst.msk [vmem:[#allocation4 + $0xe8] sm:$0xff] %vm1868, %v1735
  %1899 = vst.msk [vmem:[#allocation4 + $0xf0] sm:$0xff] %vm1868, %v1737
  %1900 = vst.msk [vmem:[#allocation4 + $0xf8] sm:$0xff] %vm1868, %v1739
  %1901 = vst.msk [vmem:[#allocation4 + $0x100] sm:$0xff] %vm1868, %v1741
  %1902 = vst.msk [vmem:[#allocation4 + $0x108] sm:$0xff] %vm1868, %v1743
  %1903 = vst.msk [vmem:[#allocation4 + $0x110] sm:$0xff] %vm1868, %v1745
  %1904 = vst.msk [vmem:[#allocation4 + $0x118] sm:$0xff] %vm1868, %v1747
  %1905 = vst.msk [vmem:[#allocation4 + $0x120] sm:$0xff] %vm1868, %v1749
  %1906 = vst.msk [vmem:[#allocation4 + $0x128] sm:$0xff] %vm1868, %v1751
  %1907 = vst.msk [vmem:[#allocation4 + $0x130] sm:$0xff] %vm1868, %v1753
  %1908 = vst.msk [vmem:[#allocation4 + $0x138] sm:$0xff] %vm1868, %v1755
  %1909 = vst.msk [vmem:[#allocation4 + $0x140] sm:$0xff] %vm1868, %v1757
  %1910 = vst.msk [vmem:[#allocation4 + $0x148] sm:$0xff] %vm1868, %v1759
  %1911 = vst.msk [vmem:[#allocation4 + $0x150] sm:$0xff] %vm1868, %v1761
  %1912 = vst.msk [vmem:[#allocation4 + $0x158] sm:$0xff] %vm1868, %v1763
  %1913 = vst.msk [vmem:[#allocation4 + $0x160] sm:$0xff] %vm1868, %v1765
  %1914 = vst.msk [vmem:[#allocation4 + $0x168] sm:$0xff] %vm1868, %v1767
  %1915 = vst.msk [vmem:[#allocation4 + $0x170] sm:$0xff] %vm1868, %v1769
  %1916 = vst.msk [vmem:[#allocation4 + $0x178] sm:$0xff] %vm1868, %v1771
  %1917 = vst.msk [vmem:[#allocation4 + $0x180] sm:$0xff] %vm1868, %v1773
  %1918 = vst.msk [vmem:[#allocation4 + $0x188] sm:$0xff] %vm1868, %v1775
  %1919 = vst.msk [vmem:[#allocation4 + $0x190] sm:$0xff] %vm1868, %v1777
  %1920 = vst.msk [vmem:[#allocation4 + $0x198] sm:$0xff] %vm1868, %v1779
  %1921 = vst.msk [vmem:[#allocation4 + $0x1a0] sm:$0xff] %vm1868, %v1781
  %1922 = vst.msk [vmem:[#allocation4 + $0x1a8] sm:$0xff] %vm1868, %v1783
  %1923 = vst.msk [vmem:[#allocation4 + $0x1b0] sm:$0xff] %vm1868, %v1785
  %1924 = vst.msk [vmem:[#allocation4 + $0x1b8] sm:$0xff] %vm1868, %v1787
  %1925 = vst.msk [vmem:[#allocation4 + $0x1c0] sm:$0xff] %vm1868, %v1789
  %1926 = vst.msk [vmem:[#allocation4 + $0x1c8] sm:$0xff] %vm1868, %v1791
  %1927 = vst.msk [vmem:[#allocation4 + $0x1d0] sm:$0xff] %vm1868, %v1793
  %1928 = vst.msk [vmem:[#allocation4 + $0x1d8] sm:$0xff] %vm1868, %v1795
  %1929 = vst.msk [vmem:[#allocation4 + $0x1e0] sm:$0xff] %vm1868, %v1797
  %1930 = vst.msk [vmem:[#allocation4 + $0x1e8] sm:$0xff] %vm1868, %v1799
  %1931 = vst.msk [vmem:[#allocation4 + $0x1f0] sm:$0xff] %vm1868, %v1801
  %1932 = vst.msk [vmem:[#allocation4 + $0x1f8] sm:$0xff] %vm1868, %v1803
  %v1933 = vld [vmem:[%s200 + $0x2] sm:$0xff]
  %v1934 = vld [vmem:[%s200 + $0xa] sm:$0xff]
  %v1935 = vld [vmem:[%s200 + $0x1a] sm:$0xff]
  %v1936 = vld [vmem:[%s200 + $0x22] sm:$0xff]
  %v1937 = vld [vmem:[%s200 + $0x32] sm:$0xff]
  %v1938 = vld [vmem:[%s200 + $0x3a] sm:$0xff]
  %v1939 = vld [vmem:[%s200 + $0x4a] sm:$0xff]
  %v1940 = vld [vmem:[%s200 + $0x52] sm:$0xff]
  %v1941 = vld [vmem:[%s200 + $0x62] sm:$0xff]
  %v1942 = vld [vmem:[%s200 + $0x6a] sm:$0xff]
  %v1943 = vld [vmem:[%s200 + $0x7a] sm:$0xff]
  %v1944 = vld [vmem:[%s200 + $0x82] sm:$0xff]
  %v1945 = vld [vmem:[%s200 + $0x92] sm:$0xff]
  %v1946 = vld [vmem:[%s200 + $0x9a] sm:$0xff]
  %v1947 = vld [vmem:[%s200 + $0xaa] sm:$0xff]
  %v1948 = vld [vmem:[%s200 + $0xb2] sm:$0xff]
  %v1949 = vld [vmem:[%s200 + $0xc2] sm:$0xff]
  %v1950 = vld [vmem:[%s200 + $0xca] sm:$0xff]
  %v1951 = vld [vmem:[%s200 + $0xda] sm:$0xff]
  %v1952 = vld [vmem:[%s200 + $0xe2] sm:$0xff]
  %v1953 = vld [vmem:[%s200 + $0xf2] sm:$0xff]
  %v1954 = vld [vmem:[%s200 + $0xfa] sm:$0xff]
  %v1955 = vld [vmem:[%s200 + $0x10a] sm:$0xff]
  %v1956 = vld [vmem:[%s200 + $0x112] sm:$0xff]
  %v1957 = vld [vmem:[%s200 + $0x122] sm:$0xff]
  %v1958 = vld [vmem:[%s200 + $0x12a] sm:$0xff]
  %v1959 = vld [vmem:[%s200 + $0x13a] sm:$0xff]
  %v1960 = vld [vmem:[%s200 + $0x142] sm:$0xff]
  %v1961 = vld [vmem:[%s200 + $0x152] sm:$0xff]
  %v1962 = vld [vmem:[%s200 + $0x15a] sm:$0xff]
  %v1963 = vld [vmem:[%s200 + $0x16a] sm:$0xff]
  %v1964 = vld [vmem:[%s200 + $0x172] sm:$0xff]
  %v1965 = vld [vmem:[%s200 + $0x1b2] sm:$0xff]
  %v1966 = vld [vmem:[%s200 + $0x1ba] sm:$0xff]
  %v1967 = vld [vmem:[%s200 + $0x1ca] sm:$0xff]
  %v1968 = vld [vmem:[%s200 + $0x1d2] sm:$0xff]
  %v1969 = vld [vmem:[%s200 + $0x1e2] sm:$0xff]
  %v1970 = vld [vmem:[%s200 + $0x1ea] sm:$0xff]
  %v1971 = vld [vmem:[%s200 + $0x1fa] sm:$0xff]
  %v1972 = vld [vmem:[%s200 + $0x202] sm:$0xff]
  %v1973 = vld [vmem:[%s200 + $0x212] sm:$0xff]
  %v1974 = vld [vmem:[%s200 + $0x21a] sm:$0xff]
  %v1975 = vld [vmem:[%s200 + $0x22a] sm:$0xff]
  %v1976 = vld [vmem:[%s200 + $0x232] sm:$0xff]
  %v1977 = vld [vmem:[%s200 + $0x242] sm:$0xff]
  %v1978 = vld [vmem:[%s200 + $0x24a] sm:$0xff]
  %v1979 = vld [vmem:[%s200 + $0x25a] sm:$0xff]
  %v1980 = vld [vmem:[%s200 + $0x262] sm:$0xff]
  %v1981 = vld [vmem:[%s200 + $0x272] sm:$0xff]
  %v1982 = vld [vmem:[%s200 + $0x27a] sm:$0xff]
  %v1983 = vld [vmem:[%s200 + $0x28a] sm:$0xff]
  %v1984 = vld [vmem:[%s200 + $0x292] sm:$0xff]
  %v1985 = vld [vmem:[%s200 + $0x2a2] sm:$0xff]
  %v1986 = vld [vmem:[%s200 + $0x2aa] sm:$0xff]
  %v1987 = vld [vmem:[%s200 + $0x2ba] sm:$0xff]
  %v1988 = vld [vmem:[%s200 + $0x2c2] sm:$0xff]
  %v1989 = vld [vmem:[%s200 + $0x2d2] sm:$0xff]
  %v1990 = vld [vmem:[%s200 + $0x2da] sm:$0xff]
  %v1991 = vld [vmem:[%s200 + $0x2ea] sm:$0xff]
  %v1992 = vld [vmem:[%s200 + $0x2f2] sm:$0xff]
  %v1993 = vld [vmem:[%s200 + $0x302] sm:$0xff]
  %v1994 = vld [vmem:[%s200 + $0x30a] sm:$0xff]
  %v1995 = vld [vmem:[%s200 + $0x31a] sm:$0xff]
  %v1996 = vld [vmem:[%s200 + $0x322] sm:$0xff]
  %2061 = vrot.lane.b32.xlu0 %v1933, 20
  %v2062 = vpop.permute.xlu0 %2061
  %2063 = vrot.lane.b32.xlu0 %v1934, 20
  %v2064 = vpop.permute.xlu0 %2063
  %2065 = vrot.lane.b32.xlu0 %v1935, 20
  %v2066 = vpop.permute.xlu0 %2065
  %2067 = vrot.lane.b32.xlu0 %v1936, 20
  %v2068 = vpop.permute.xlu0 %2067
  %2069 = vrot.lane.b32.xlu0 %v1937, 20
  %v2070 = vpop.permute.xlu0 %2069
  %2071 = vrot.lane.b32.xlu0 %v1938, 20
  %v2072 = vpop.permute.xlu0 %2071
  %2073 = vrot.lane.b32.xlu0 %v1939, 20
  %v2074 = vpop.permute.xlu0 %2073
  %2075 = vrot.lane.b32.xlu0 %v1940, 20
  %v2076 = vpop.permute.xlu0 %2075
  %2077 = vrot.lane.b32.xlu0 %v1941, 20
  %v2078 = vpop.permute.xlu0 %2077
  %2079 = vrot.lane.b32.xlu0 %v1942, 20
  %v2080 = vpop.permute.xlu0 %2079
  %2081 = vrot.lane.b32.xlu0 %v1943, 20
  %v2082 = vpop.permute.xlu0 %2081
  %2083 = vrot.lane.b32.xlu0 %v1944, 20
  %v2084 = vpop.permute.xlu0 %2083
  %2085 = vrot.lane.b32.xlu0 %v1945, 20
  %v2086 = vpop.permute.xlu0 %2085
  %2087 = vrot.lane.b32.xlu0 %v1946, 20
  %v2088 = vpop.permute.xlu0 %2087
  %2089 = vrot.lane.b32.xlu0 %v1947, 20
  %v2090 = vpop.permute.xlu0 %2089
  %2091 = vrot.lane.b32.xlu0 %v1948, 20
  %v2092 = vpop.permute.xlu0 %2091
  %2093 = vrot.lane.b32.xlu0 %v1949, 20
  %v2094 = vpop.permute.xlu0 %2093
  %2095 = vrot.lane.b32.xlu0 %v1950, 20
  %v2096 = vpop.permute.xlu0 %2095
  %2097 = vrot.lane.b32.xlu0 %v1951, 20
  %v2098 = vpop.permute.xlu0 %2097
  %2099 = vrot.lane.b32.xlu0 %v1952, 20
  %v2100 = vpop.permute.xlu0 %2099
  %2101 = vrot.lane.b32.xlu0 %v1953, 20
  %v2102 = vpop.permute.xlu0 %2101
  %2103 = vrot.lane.b32.xlu0 %v1954, 20
  %v2104 = vpop.permute.xlu0 %2103
  %2105 = vrot.lane.b32.xlu0 %v1955, 20
  %v2106 = vpop.permute.xlu0 %2105
  %2107 = vrot.lane.b32.xlu0 %v1956, 20
  %v2108 = vpop.permute.xlu0 %2107
  %2109 = vrot.lane.b32.xlu0 %v1957, 20
  %v2110 = vpop.permute.xlu0 %2109
  %2111 = vrot.lane.b32.xlu0 %v1958, 20
  %v2112 = vpop.permute.xlu0 %2111
  %2113 = vrot.lane.b32.xlu0 %v1959, 20
  %v2114 = vpop.permute.xlu0 %2113
  %2115 = vrot.lane.b32.xlu0 %v1960, 20
  %v2116 = vpop.permute.xlu0 %2115
  %2117 = vrot.lane.b32.xlu0 %v1961, 20
  %v2118 = vpop.permute.xlu0 %2117
  %2119 = vrot.lane.b32.xlu0 %v1962, 20
  %v2120 = vpop.permute.xlu0 %2119
  %2121 = vrot.lane.b32.xlu0 %v1963, 20
  %v2122 = vpop.permute.xlu0 %2121
  %2123 = vrot.lane.b32.xlu0 %v1964, 20
  %v2124 = vpop.permute.xlu0 %2123
  %2125 = vrot.lane.b32.xlu0 %v1965, 20
  %v2126 = vpop.permute.xlu0 %2125
  %2127 = vrot.lane.b32.xlu0 %v1966, 20
  %v2128 = vpop.permute.xlu0 %2127
  %2129 = vrot.lane.b32.xlu0 %v1967, 20
  %v2130 = vpop.permute.xlu0 %2129
  %2131 = vrot.lane.b32.xlu0 %v1968, 20
  %v2132 = vpop.permute.xlu0 %2131
  %2133 = vrot.lane.b32.xlu0 %v1969, 20
  %v2134 = vpop.permute.xlu0 %2133
  %2135 = vrot.lane.b32.xlu0 %v1970, 20
  %v2136 = vpop.permute.xlu0 %2135
  %2137 = vrot.lane.b32.xlu0 %v1971, 20
  %v2138 = vpop.permute.xlu0 %2137
  %2139 = vrot.lane.b32.xlu0 %v1972, 20
  %v2140 = vpop.permute.xlu0 %2139
  %2141 = vrot.lane.b32.xlu0 %v1973, 20
  %v2142 = vpop.permute.xlu0 %2141
  %2143 = vrot.lane.b32.xlu0 %v1974, 20
  %v2144 = vpop.permute.xlu0 %2143
  %2145 = vrot.lane.b32.xlu0 %v1975, 20
  %v2146 = vpop.permute.xlu0 %2145
  %2147 = vrot.lane.b32.xlu0 %v1976, 20
  %v2148 = vpop.permute.xlu0 %2147
  %2149 = vrot.lane.b32.xlu0 %v1977, 20
  %v2150 = vpop.permute.xlu0 %2149
  %2151 = vrot.lane.b32.xlu0 %v1978, 20
  %v2152 = vpop.permute.xlu0 %2151
  %2153 = vrot.lane.b32.xlu0 %v1979, 20
  %v2154 = vpop.permute.xlu0 %2153
  %2155 = vrot.lane.b32.xlu0 %v1980, 20
  %v2156 = vpop.permute.xlu0 %2155
  %2157 = vrot.lane.b32.xlu0 %v1981, 20
  %v2158 = vpop.permute.xlu0 %2157
  %2159 = vrot.lane.b32.xlu0 %v1982, 20
  %v2160 = vpop.permute.xlu0 %2159
  %2161 = vrot.lane.b32.xlu0 %v1983, 20
  %v2162 = vpop.permute.xlu0 %2161
  %2163 = vrot.lane.b32.xlu0 %v1984, 20
  %v2164 = vpop.permute.xlu0 %2163
  %2165 = vrot.lane.b32.xlu0 %v1985, 20
  %v2166 = vpop.permute.xlu0 %2165
  %2167 = vrot.lane.b32.xlu0 %v1986, 20
  %v2168 = vpop.permute.xlu0 %2167
  %2169 = vrot.lane.b32.xlu0 %v1987, 20
  %v2170 = vpop.permute.xlu0 %2169
  %2171 = vrot.lane.b32.xlu0 %v1988, 20
  %v2172 = vpop.permute.xlu0 %2171
  %2173 = vrot.lane.b32.xlu0 %v1989, 20
  %v2174 = vpop.permute.xlu0 %2173
  %2175 = vrot.lane.b32.xlu0 %v1990, 20
  %v2176 = vpop.permute.xlu0 %2175
  %2177 = vrot.lane.b32.xlu0 %v1991, 20
  %v2178 = vpop.permute.xlu0 %2177
  %2179 = vrot.lane.b32.xlu0 %v1992, 20
  %v2180 = vpop.permute.xlu0 %2179
  %2181 = vrot.lane.b32.xlu0 %v1993, 20
  %v2182 = vpop.permute.xlu0 %2181
  %2183 = vrot.lane.b32.xlu0 %v1994, 20
  %v2184 = vpop.permute.xlu0 %2183
  %2185 = vrot.lane.b32.xlu0 %v1995, 20
  %v2186 = vpop.permute.xlu0 %2185
  %2187 = vrot.lane.b32.xlu0 %v1996, 20
  %v2188 = vpop.permute.xlu0 %2187
  %vm2253 = vcmask 195744
  %2254 = vst.msk [vmem:[#allocation4] sm:$0xff] %vm2253, %v2062
  %2255 = vst.msk [vmem:[#allocation4 + $0x8] sm:$0xff] %vm2253, %v2064
  %2256 = vst.msk [vmem:[#allocation4 + $0x10] sm:$0xff] %vm2253, %v2066
  %2257 = vst.msk [vmem:[#allocation4 + $0x18] sm:$0xff] %vm2253, %v2068
  %2258 = vst.msk [vmem:[#allocation4 + $0x20] sm:$0xff] %vm2253, %v2070
  %2259 = vst.msk [vmem:[#allocation4 + $0x28] sm:$0xff] %vm2253, %v2072
  %2260 = vst.msk [vmem:[#allocation4 + $0x30] sm:$0xff] %vm2253, %v2074
  %2261 = vst.msk [vmem:[#allocation4 + $0x38] sm:$0xff] %vm2253, %v2076
  %2262 = vst.msk [vmem:[#allocation4 + $0x40] sm:$0xff] %vm2253, %v2078
  %2263 = vst.msk [vmem:[#allocation4 + $0x48] sm:$0xff] %vm2253, %v2080
  %2264 = vst.msk [vmem:[#allocation4 + $0x50] sm:$0xff] %vm2253, %v2082
  %2265 = vst.msk [vmem:[#allocation4 + $0x58] sm:$0xff] %vm2253, %v2084
  %2266 = vst.msk [vmem:[#allocation4 + $0x60] sm:$0xff] %vm2253, %v2086
  %2267 = vst.msk [vmem:[#allocation4 + $0x68] sm:$0xff] %vm2253, %v2088
  %2268 = vst.msk [vmem:[#allocation4 + $0x70] sm:$0xff] %vm2253, %v2090
  %2269 = vst.msk [vmem:[#allocation4 + $0x78] sm:$0xff] %vm2253, %v2092
  %2270 = vst.msk [vmem:[#allocation4 + $0x80] sm:$0xff] %vm2253, %v2094
  %2271 = vst.msk [vmem:[#allocation4 + $0x88] sm:$0xff] %vm2253, %v2096
  %2272 = vst.msk [vmem:[#allocation4 + $0x90] sm:$0xff] %vm2253, %v2098
  %2273 = vst.msk [vmem:[#allocation4 + $0x98] sm:$0xff] %vm2253, %v2100
  %2274 = vst.msk [vmem:[#allocation4 + $0xa0] sm:$0xff] %vm2253, %v2102
  %2275 = vst.msk [vmem:[#allocation4 + $0xa8] sm:$0xff] %vm2253, %v2104
  %2276 = vst.msk [vmem:[#allocation4 + $0xb0] sm:$0xff] %vm2253, %v2106
  %2277 = vst.msk [vmem:[#allocation4 + $0xb8] sm:$0xff] %vm2253, %v2108
  %2278 = vst.msk [vmem:[#allocation4 + $0xc0] sm:$0xff] %vm2253, %v2110
  %2279 = vst.msk [vmem:[#allocation4 + $0xc8] sm:$0xff] %vm2253, %v2112
  %2280 = vst.msk [vmem:[#allocation4 + $0xd0] sm:$0xff] %vm2253, %v2114
  %2281 = vst.msk [vmem:[#allocation4 + $0xd8] sm:$0xff] %vm2253, %v2116
  %2282 = vst.msk [vmem:[#allocation4 + $0xe0] sm:$0xff] %vm2253, %v2118
  %2283 = vst.msk [vmem:[#allocation4 + $0xe8] sm:$0xff] %vm2253, %v2120
  %2284 = vst.msk [vmem:[#allocation4 + $0xf0] sm:$0xff] %vm2253, %v2122
  %2285 = vst.msk [vmem:[#allocation4 + $0xf8] sm:$0xff] %vm2253, %v2124
  %2286 = vst.msk [vmem:[#allocation4 + $0x100] sm:$0xff] %vm2253, %v2126
  %2287 = vst.msk [vmem:[#allocation4 + $0x108] sm:$0xff] %vm2253, %v2128
  %2288 = vst.msk [vmem:[#allocation4 + $0x110] sm:$0xff] %vm2253, %v2130
  %2289 = vst.msk [vmem:[#allocation4 + $0x118] sm:$0xff] %vm2253, %v2132
  %2290 = vst.msk [vmem:[#allocation4 + $0x120] sm:$0xff] %vm2253, %v2134
  %2291 = vst.msk [vmem:[#allocation4 + $0x128] sm:$0xff] %vm2253, %v2136
  %2292 = vst.msk [vmem:[#allocation4 + $0x130] sm:$0xff] %vm2253, %v2138
  %2293 = vst.msk [vmem:[#allocation4 + $0x138] sm:$0xff] %vm2253, %v2140
  %2294 = vst.msk [vmem:[#allocation4 + $0x140] sm:$0xff] %vm2253, %v2142
  %2295 = vst.msk [vmem:[#allocation4 + $0x148] sm:$0xff] %vm2253, %v2144
  %2296 = vst.msk [vmem:[#allocation4 + $0x150] sm:$0xff] %vm2253, %v2146
  %2297 = vst.msk [vmem:[#allocation4 + $0x158] sm:$0xff] %vm2253, %v2148
  %2298 = vst.msk [vmem:[#allocation4 + $0x160] sm:$0xff] %vm2253, %v2150
  %2299 = vst.msk [vmem:[#allocation4 + $0x168] sm:$0xff] %vm2253, %v2152
  %2300 = vst.msk [vmem:[#allocation4 + $0x170] sm:$0xff] %vm2253, %v2154
  %2301 = vst.msk [vmem:[#allocation4 + $0x178] sm:$0xff] %vm2253, %v2156
  %2302 = vst.msk [vmem:[#allocation4 + $0x180] sm:$0xff] %vm2253, %v2158
  %2303 = vst.msk [vmem:[#allocation4 + $0x188] sm:$0xff] %vm2253, %v2160
  %2304 = vst.msk [vmem:[#allocation4 + $0x190] sm:$0xff] %vm2253, %v2162
  %2305 = vst.msk [vmem:[#allocation4 + $0x198] sm:$0xff] %vm2253, %v2164
  %2306 = vst.msk [vmem:[#allocation4 + $0x1a0] sm:$0xff] %vm2253, %v2166
  %2307 = vst.msk [vmem:[#allocation4 + $0x1a8] sm:$0xff] %vm2253, %v2168
  %2308 = vst.msk [vmem:[#allocation4 + $0x1b0] sm:$0xff] %vm2253, %v2170
  %2309 = vst.msk [vmem:[#allocation4 + $0x1b8] sm:$0xff] %vm2253, %v2172
  %2310 = vst.msk [vmem:[#allocation4 + $0x1c0] sm:$0xff] %vm2253, %v2174
  %2311 = vst.msk [vmem:[#allocation4 + $0x1c8] sm:$0xff] %vm2253, %v2176
  %2312 = vst.msk [vmem:[#allocation4 + $0x1d0] sm:$0xff] %vm2253, %v2178
  %2313 = vst.msk [vmem:[#allocation4 + $0x1d8] sm:$0xff] %vm2253, %v2180
  %2314 = vst.msk [vmem:[#allocation4 + $0x1e0] sm:$0xff] %vm2253, %v2182
  %2315 = vst.msk [vmem:[#allocation4 + $0x1e8] sm:$0xff] %vm2253, %v2184
  %2316 = vst.msk [vmem:[#allocation4 + $0x1f0] sm:$0xff] %vm2253, %v2186
  %2317 = vst.msk [vmem:[#allocation4 + $0x1f8] sm:$0xff] %vm2253, %v2188
  %s2318 = scalar_lea.vmem [#allocation2], 48
  %v2319 = vld [vmem:[%s2318] sm:$0xff]
  %v2320 = vld [vmem:[%s2318 + $0x8] sm:$0xff]
  %v2321 = vld [vmem:[%s2318 + $0x18] sm:$0xff]
  %v2322 = vld [vmem:[%s2318 + $0x20] sm:$0xff]
  %v2323 = vld [vmem:[%s2318 + $0x30] sm:$0xff]
  %v2324 = vld [vmem:[%s2318 + $0x38] sm:$0xff]
  %v2325 = vld [vmem:[%s2318 + $0x48] sm:$0xff]
  %v2326 = vld [vmem:[%s2318 + $0x50] sm:$0xff]
  %v2327 = vld [vmem:[%s2318 + $0x60] sm:$0xff]
  %v2328 = vld [vmem:[%s2318 + $0x68] sm:$0xff]
  %v2329 = vld [vmem:[%s2318 + $0x78] sm:$0xff]
  %v2330 = vld [vmem:[%s2318 + $0x80] sm:$0xff]
  %v2331 = vld [vmem:[%s2318 + $0x90] sm:$0xff]
  %v2332 = vld [vmem:[%s2318 + $0x98] sm:$0xff]
  %v2333 = vld [vmem:[%s2318 + $0xa8] sm:$0xff]
  %v2334 = vld [vmem:[%s2318 + $0xb0] sm:$0xff]
  %v2335 = vld [vmem:[%s2318 + $0xc0] sm:$0xff]
  %v2336 = vld [vmem:[%s2318 + $0xc8] sm:$0xff]
  %v2337 = vld [vmem:[%s2318 + $0xd8] sm:$0xff]
  %v2338 = vld [vmem:[%s2318 + $0xe0] sm:$0xff]
  %v2339 = vld [vmem:[%s2318 + $0xf0] sm:$0xff]
  %v2340 = vld [vmem:[%s2318 + $0xf8] sm:$0xff]
  %v2341 = vld [vmem:[%s2318 + $0x108] sm:$0xff]
  %v2342 = vld [vmem:[%s2318 + $0x110] sm:$0xff]
  %v2343 = vld [vmem:[%s2318 + $0x120] sm:$0xff]
  %v2344 = vld [vmem:[%s2318 + $0x128] sm:$0xff]
  %v2345 = vld [vmem:[%s2318 + $0x138] sm:$0xff]
  %v2346 = vld [vmem:[%s2318 + $0x140] sm:$0xff]
  %v2347 = vld [vmem:[%s2318 + $0x150] sm:$0xff]
  %v2348 = vld [vmem:[%s2318 + $0x158] sm:$0xff]
  %v2349 = vld [vmem:[%s2318 + $0x168] sm:$0xff]
  %v2350 = vld [vmem:[%s2318 + $0x170] sm:$0xff]
  %v2351 = vld [vmem:[%s2318 + $0x1b0] sm:$0xff]
  %v2352 = vld [vmem:[%s2318 + $0x1b8] sm:$0xff]
  %v2353 = vld [vmem:[%s2318 + $0x1c8] sm:$0xff]
  %v2354 = vld [vmem:[%s2318 + $0x1d0] sm:$0xff]
  %v2355 = vld [vmem:[%s2318 + $0x1e0] sm:$0xff]
  %v2356 = vld [vmem:[%s2318 + $0x1e8] sm:$0xff]
  %v2357 = vld [vmem:[%s2318 + $0x1f8] sm:$0xff]
  %v2358 = vld [vmem:[%s2318 + $0x200] sm:$0xff]
  %v2359 = vld [vmem:[%s2318 + $0x210] sm:$0xff]
  %v2360 = vld [vmem:[%s2318 + $0x218] sm:$0xff]
  %v2361 = vld [vmem:[%s2318 + $0x228] sm:$0xff]
  %v2362 = vld [vmem:[%s2318 + $0x230] sm:$0xff]
  %v2363 = vld [vmem:[%s2318 + $0x240] sm:$0xff]
  %v2364 = vld [vmem:[%s2318 + $0x248] sm:$0xff]
  %v2365 = vld [vmem:[%s2318 + $0x258] sm:$0xff]
  %v2366 = vld [vmem:[%s2318 + $0x260] sm:$0xff]
  %v2367 = vld [vmem:[%s2318 + $0x270] sm:$0xff]
  %v2368 = vld [vmem:[%s2318 + $0x278] sm:$0xff]
  %v2369 = vld [vmem:[%s2318 + $0x288] sm:$0xff]
  %v2370 = vld [vmem:[%s2318 + $0x290] sm:$0xff]
  %v2371 = vld [vmem:[%s2318 + $0x2a0] sm:$0xff]
  %v2372 = vld [vmem:[%s2318 + $0x2a8] sm:$0xff]
  %v2373 = vld [vmem:[%s2318 + $0x2b8] sm:$0xff]
  %v2374 = vld [vmem:[%s2318 + $0x2c0] sm:$0xff]
  %v2375 = vld [vmem:[%s2318 + $0x2d0] sm:$0xff]
  %v2376 = vld [vmem:[%s2318 + $0x2d8] sm:$0xff]
  %v2377 = vld [vmem:[%s2318 + $0x2e8] sm:$0xff]
  %v2378 = vld [vmem:[%s2318 + $0x2f0] sm:$0xff]
  %v2379 = vld [vmem:[%s2318 + $0x300] sm:$0xff]
  %v2380 = vld [vmem:[%s2318 + $0x308] sm:$0xff]
  %v2381 = vld [vmem:[%s2318 + $0x318] sm:$0xff]
  %v2382 = vld [vmem:[%s2318 + $0x320] sm:$0xff]
  %2447 = vrot.lane.b32.xlu0 %v2319, 24
  %v2448 = vpop.permute.xlu0 %2447
  %2449 = vrot.lane.b32.xlu0 %v2320, 24
  %v2450 = vpop.permute.xlu0 %2449
  %2451 = vrot.lane.b32.xlu0 %v2321, 24
  %v2452 = vpop.permute.xlu0 %2451
  %2453 = vrot.lane.b32.xlu0 %v2322, 24
  %v2454 = vpop.permute.xlu0 %2453
  %2455 = vrot.lane.b32.xlu0 %v2323, 24
  %v2456 = vpop.permute.xlu0 %2455
  %2457 = vrot.lane.b32.xlu0 %v2324, 24
  %v2458 = vpop.permute.xlu0 %2457
  %2459 = vrot.lane.b32.xlu0 %v2325, 24
  %v2460 = vpop.permute.xlu0 %2459
  %2461 = vrot.lane.b32.xlu0 %v2326, 24
  %v2462 = vpop.permute.xlu0 %2461
  %2463 = vrot.lane.b32.xlu0 %v2327, 24
  %v2464 = vpop.permute.xlu0 %2463
  %2465 = vrot.lane.b32.xlu0 %v2328, 24
  %v2466 = vpop.permute.xlu0 %2465
  %2467 = vrot.lane.b32.xlu0 %v2329, 24
  %v2468 = vpop.permute.xlu0 %2467
  %2469 = vrot.lane.b32.xlu0 %v2330, 24
  %v2470 = vpop.permute.xlu0 %2469
  %2471 = vrot.lane.b32.xlu0 %v2331, 24
  %v2472 = vpop.permute.xlu0 %2471
  %2473 = vrot.lane.b32.xlu0 %v2332, 24
  %v2474 = vpop.permute.xlu0 %2473
  %2475 = vrot.lane.b32.xlu0 %v2333, 24
  %v2476 = vpop.permute.xlu0 %2475
  %2477 = vrot.lane.b32.xlu0 %v2334, 24
  %v2478 = vpop.permute.xlu0 %2477
  %2479 = vrot.lane.b32.xlu0 %v2335, 24
  %v2480 = vpop.permute.xlu0 %2479
  %2481 = vrot.lane.b32.xlu0 %v2336, 24
  %v2482 = vpop.permute.xlu0 %2481
  %2483 = vrot.lane.b32.xlu0 %v2337, 24
  %v2484 = vpop.permute.xlu0 %2483
  %2485 = vrot.lane.b32.xlu0 %v2338, 24
  %v2486 = vpop.permute.xlu0 %2485
  %2487 = vrot.lane.b32.xlu0 %v2339, 24
  %v2488 = vpop.permute.xlu0 %2487
  %2489 = vrot.lane.b32.xlu0 %v2340, 24
  %v2490 = vpop.permute.xlu0 %2489
  %2491 = vrot.lane.b32.xlu0 %v2341, 24
  %v2492 = vpop.permute.xlu0 %2491
  %2493 = vrot.lane.b32.xlu0 %v2342, 24
  %v2494 = vpop.permute.xlu0 %2493
  %2495 = vrot.lane.b32.xlu0 %v2343, 24
  %v2496 = vpop.permute.xlu0 %2495
  %2497 = vrot.lane.b32.xlu0 %v2344, 24
  %v2498 = vpop.permute.xlu0 %2497
  %2499 = vrot.lane.b32.xlu0 %v2345, 24
  %v2500 = vpop.permute.xlu0 %2499
  %2501 = vrot.lane.b32.xlu0 %v2346, 24
  %v2502 = vpop.permute.xlu0 %2501
  %2503 = vrot.lane.b32.xlu0 %v2347, 24
  %v2504 = vpop.permute.xlu0 %2503
  %2505 = vrot.lane.b32.xlu0 %v2348, 24
  %v2506 = vpop.permute.xlu0 %2505
  %2507 = vrot.lane.b32.xlu0 %v2349, 24
  %v2508 = vpop.permute.xlu0 %2507
  %2509 = vrot.lane.b32.xlu0 %v2350, 24
  %v2510 = vpop.permute.xlu0 %2509
  %2511 = vrot.lane.b32.xlu0 %v2351, 24
  %v2512 = vpop.permute.xlu0 %2511
  %2513 = vrot.lane.b32.xlu0 %v2352, 24
  %v2514 = vpop.permute.xlu0 %2513
  %2515 = vrot.lane.b32.xlu0 %v2353, 24
  %v2516 = vpop.permute.xlu0 %2515
  %2517 = vrot.lane.b32.xlu0 %v2354, 24
  %v2518 = vpop.permute.xlu0 %2517
  %2519 = vrot.lane.b32.xlu0 %v2355, 24
  %v2520 = vpop.permute.xlu0 %2519
  %2521 = vrot.lane.b32.xlu0 %v2356, 24
  %v2522 = vpop.permute.xlu0 %2521
  %2523 = vrot.lane.b32.xlu0 %v2357, 24
  %v2524 = vpop.permute.xlu0 %2523
  %2525 = vrot.lane.b32.xlu0 %v2358, 24
  %v2526 = vpop.permute.xlu0 %2525
  %2527 = vrot.lane.b32.xlu0 %v2359, 24
  %v2528 = vpop.permute.xlu0 %2527
  %2529 = vrot.lane.b32.xlu0 %v2360, 24
  %v2530 = vpop.permute.xlu0 %2529
  %2531 = vrot.lane.b32.xlu0 %v2361, 24
  %v2532 = vpop.permute.xlu0 %2531
  %2533 = vrot.lane.b32.xlu0 %v2362, 24
  %v2534 = vpop.permute.xlu0 %2533
  %2535 = vrot.lane.b32.xlu0 %v2363, 24
  %v2536 = vpop.permute.xlu0 %2535
  %2537 = vrot.lane.b32.xlu0 %v2364, 24
  %v2538 = vpop.permute.xlu0 %2537
  %2539 = vrot.lane.b32.xlu0 %v2365, 24
  %v2540 = vpop.permute.xlu0 %2539
  %2541 = vrot.lane.b32.xlu0 %v2366, 24
  %v2542 = vpop.permute.xlu0 %2541
  %2543 = vrot.lane.b32.xlu0 %v2367, 24
  %v2544 = vpop.permute.xlu0 %2543
  %2545 = vrot.lane.b32.xlu0 %v2368, 24
  %v2546 = vpop.permute.xlu0 %2545
  %2547 = vrot.lane.b32.xlu0 %v2369, 24
  %v2548 = vpop.permute.xlu0 %2547
  %2549 = vrot.lane.b32.xlu0 %v2370, 24
  %v2550 = vpop.permute.xlu0 %2549
  %2551 = vrot.lane.b32.xlu0 %v2371, 24
  %v2552 = vpop.permute.xlu0 %2551
  %2553 = vrot.lane.b32.xlu0 %v2372, 24
  %v2554 = vpop.permute.xlu0 %2553
  %2555 = vrot.lane.b32.xlu0 %v2373, 24
  %v2556 = vpop.permute.xlu0 %2555
  %2557 = vrot.lane.b32.xlu0 %v2374, 24
  %v2558 = vpop.permute.xlu0 %2557
  %2559 = vrot.lane.b32.xlu0 %v2375, 24
  %v2560 = vpop.permute.xlu0 %2559
  %2561 = vrot.lane.b32.xlu0 %v2376, 24
  %v2562 = vpop.permute.xlu0 %2561
  %2563 = vrot.lane.b32.xlu0 %v2377, 24
  %v2564 = vpop.permute.xlu0 %2563
  %2565 = vrot.lane.b32.xlu0 %v2378, 24
  %v2566 = vpop.permute.xlu0 %2565
  %2567 = vrot.lane.b32.xlu0 %v2379, 24
  %v2568 = vpop.permute.xlu0 %2567
  %2569 = vrot.lane.b32.xlu0 %v2380, 24
  %v2570 = vpop.permute.xlu0 %2569
  %2571 = vrot.lane.b32.xlu0 %v2381, 24
  %v2572 = vpop.permute.xlu0 %2571
  %2573 = vrot.lane.b32.xlu0 %v2382, 24
  %v2574 = vpop.permute.xlu0 %2573
  %vm2639 = vcmask 228544
  %2640 = vst.msk [vmem:[#allocation4] sm:$0xff] %vm2639, %v2448
  %2641 = vst.msk [vmem:[#allocation4 + $0x8] sm:$0xff] %vm2639, %v2450
  %2642 = vst.msk [vmem:[#allocation4 + $0x10] sm:$0xff] %vm2639, %v2452
  %2643 = vst.msk [vmem:[#allocation4 + $0x18] sm:$0xff] %vm2639, %v2454
  %2644 = vst.msk [vmem:[#allocation4 + $0x20] sm:$0xff] %vm2639, %v2456
  %2645 = vst.msk [vmem:[#allocation4 + $0x28] sm:$0xff] %vm2639, %v2458
  %2646 = vst.msk [vmem:[#allocation4 + $0x30] sm:$0xff] %vm2639, %v2460
  %2647 = vst.msk [vmem:[#allocation4 + $0x38] sm:$0xff] %vm2639, %v2462
  %2648 = vst.msk [vmem:[#allocation4 + $0x40] sm:$0xff] %vm2639, %v2464
  %2649 = vst.msk [vmem:[#allocation4 + $0x48] sm:$0xff] %vm2639, %v2466
  %2650 = vst.msk [vmem:[#allocation4 + $0x50] sm:$0xff] %vm2639, %v2468
  %2651 = vst.msk [vmem:[#allocation4 + $0x58] sm:$0xff] %vm2639, %v2470
  %2652 = vst.msk [vmem:[#allocation4 + $0x60] sm:$0xff] %vm2639, %v2472
  %2653 = vst.msk [vmem:[#allocation4 + $0x68] sm:$0xff] %vm2639, %v2474
  %2654 = vst.msk [vmem:[#allocation4 + $0x70] sm:$0xff] %vm2639, %v2476
  %2655 = vst.msk [vmem:[#allocation4 + $0x78] sm:$0xff] %vm2639, %v2478
  %2656 = vst.msk [vmem:[#allocation4 + $0x80] sm:$0xff] %vm2639, %v2480
  %2657 = vst.msk [vmem:[#allocation4 + $0x88] sm:$0xff] %vm2639, %v2482
  %2658 = vst.msk [vmem:[#allocation4 + $0x90] sm:$0xff] %vm2639, %v2484
  %2659 = vst.msk [vmem:[#allocation4 + $0x98] sm:$0xff] %vm2639, %v2486
  %2660 = vst.msk [vmem:[#allocation4 + $0xa0] sm:$0xff] %vm2639, %v2488
  %2661 = vst.msk [vmem:[#allocation4 + $0xa8] sm:$0xff] %vm2639, %v2490
  %2662 = vst.msk [vmem:[#allocation4 + $0xb0] sm:$0xff] %vm2639, %v2492
  %2663 = vst.msk [vmem:[#allocation4 + $0xb8] sm:$0xff] %vm2639, %v2494
  %2664 = vst.msk [vmem:[#allocation4 + $0xc0] sm:$0xff] %vm2639, %v2496
  %2665 = vst.msk [vmem:[#allocation4 + $0xc8] sm:$0xff] %vm2639, %v2498
  %2666 = vst.msk [vmem:[#allocation4 + $0xd0] sm:$0xff] %vm2639, %v2500
  %2667 = vst.msk [vmem:[#allocation4 + $0xd8] sm:$0xff] %vm2639, %v2502
  %2668 = vst.msk [vmem:[#allocation4 + $0xe0] sm:$0xff] %vm2639, %v2504
  %2669 = vst.msk [vmem:[#allocation4 + $0xe8] sm:$0xff] %vm2639, %v2506
  %2670 = vst.msk [vmem:[#allocation4 + $0xf0] sm:$0xff] %vm2639, %v2508
  %2671 = vst.msk [vmem:[#allocation4 + $0xf8] sm:$0xff] %vm2639, %v2510
  %2672 = vst.msk [vmem:[#allocation4 + $0x100] sm:$0xff] %vm2639, %v2512
  %2673 = vst.msk [vmem:[#allocation4 + $0x108] sm:$0xff] %vm2639, %v2514
  %2674 = vst.msk [vmem:[#allocation4 + $0x110] sm:$0xff] %vm2639, %v2516
  %2675 = vst.msk [vmem:[#allocation4 + $0x118] sm:$0xff] %vm2639, %v2518
  %2676 = vst.msk [vmem:[#allocation4 + $0x120] sm:$0xff] %vm2639, %v2520
  %2677 = vst.msk [vmem:[#allocation4 + $0x128] sm:$0xff] %vm2639, %v2522
  %2678 = vst.msk [vmem:[#allocation4 + $0x130] sm:$0xff] %vm2639, %v2524
  %2679 = vst.msk [vmem:[#allocation4 + $0x138] sm:$0xff] %vm2639, %v2526
  %2680 = vst.msk [vmem:[#allocation4 + $0x140] sm:$0xff] %vm2639, %v2528
  %2681 = vst.msk [vmem:[#allocation4 + $0x148] sm:$0xff] %vm2639, %v2530
  %2682 = vst.msk [vmem:[#allocation4 + $0x150] sm:$0xff] %vm2639, %v2532
  %2683 = vst.msk [vmem:[#allocation4 + $0x158] sm:$0xff] %vm2639, %v2534
  %2684 = vst.msk [vmem:[#allocation4 + $0x160] sm:$0xff] %vm2639, %v2536
  %2685 = vst.msk [vmem:[#allocation4 + $0x168] sm:$0xff] %vm2639, %v2538
  %2686 = vst.msk [vmem:[#allocation4 + $0x170] sm:$0xff] %vm2639, %v2540
  %2687 = vst.msk [vmem:[#allocation4 + $0x178] sm:$0xff] %vm2639, %v2542
  %2688 = vst.msk [vmem:[#allocation4 + $0x180] sm:$0xff] %vm2639, %v2544
  %2689 = vst.msk [vmem:[#allocation4 + $0x188] sm:$0xff] %vm2639, %v2546
  %2690 = vst.msk [vmem:[#allocation4 + $0x190] sm:$0xff] %vm2639, %v2548
  %2691 = vst.msk [vmem:[#allocation4 + $0x198] sm:$0xff] %vm2639, %v2550
  %2692 = vst.msk [vmem:[#allocation4 + $0x1a0] sm:$0xff] %vm2639, %v2552
  %2693 = vst.msk [vmem:[#allocation4 + $0x1a8] sm:$0xff] %vm2639, %v2554
  %2694 = vst.msk [vmem:[#allocation4 + $0x1b0] sm:$0xff] %vm2639, %v2556
  %2695 = vst.msk [vmem:[#allocation4 + $0x1b8] sm:$0xff] %vm2639, %v2558
  %2696 = vst.msk [vmem:[#allocation4 + $0x1c0] sm:$0xff] %vm2639, %v2560
  %2697 = vst.msk [vmem:[#allocation4 + $0x1c8] sm:$0xff] %vm2639, %v2562
  %2698 = vst.msk [vmem:[#allocation4 + $0x1d0] sm:$0xff] %vm2639, %v2564
  %2699 = vst.msk [vmem:[#allocation4 + $0x1d8] sm:$0xff] %vm2639, %v2566
  %2700 = vst.msk [vmem:[#allocation4 + $0x1e0] sm:$0xff] %vm2639, %v2568
  %2701 = vst.msk [vmem:[#allocation4 + $0x1e8] sm:$0xff] %vm2639, %v2570
  %2702 = vst.msk [vmem:[#allocation4 + $0x1f0] sm:$0xff] %vm2639, %v2572
  %2703 = vst.msk [vmem:[#allocation4 + $0x1f8] sm:$0xff] %vm2639, %v2574
  %v2704 = vld [vmem:[%s2318 + $0x1] sm:$0xff]
  %v2705 = vld [vmem:[%s2318 + $0x9] sm:$0xff]
  %v2706 = vld [vmem:[%s2318 + $0x19] sm:$0xff]
  %v2707 = vld [vmem:[%s2318 + $0x21] sm:$0xff]
  %v2708 = vld [vmem:[%s2318 + $0x31] sm:$0xff]
  %v2709 = vld [vmem:[%s2318 + $0x39] sm:$0xff]
  %v2710 = vld [vmem:[%s2318 + $0x49] sm:$0xff]
  %v2711 = vld [vmem:[%s2318 + $0x51] sm:$0xff]
  %v2712 = vld [vmem:[%s2318 + $0x61] sm:$0xff]
  %v2713 = vld [vmem:[%s2318 + $0x69] sm:$0xff]
  %v2714 = vld [vmem:[%s2318 + $0x79] sm:$0xff]
  %v2715 = vld [vmem:[%s2318 + $0x81] sm:$0xff]
  %v2716 = vld [vmem:[%s2318 + $0x91] sm:$0xff]
  %v2717 = vld [vmem:[%s2318 + $0x99] sm:$0xff]
  %v2718 = vld [vmem:[%s2318 + $0xa9] sm:$0xff]
  %v2719 = vld [vmem:[%s2318 + $0xb1] sm:$0xff]
  %v2720 = vld [vmem:[%s2318 + $0xc1] sm:$0xff]
  %v2721 = vld [vmem:[%s2318 + $0xc9] sm:$0xff]
  %v2722 = vld [vmem:[%s2318 + $0xd9] sm:$0xff]
  %v2723 = vld [vmem:[%s2318 + $0xe1] sm:$0xff]
  %v2724 = vld [vmem:[%s2318 + $0xf1] sm:$0xff]
  %v2725 = vld [vmem:[%s2318 + $0xf9] sm:$0xff]
  %v2726 = vld [vmem:[%s2318 + $0x109] sm:$0xff]
  %v2727 = vld [vmem:[%s2318 + $0x111] sm:$0xff]
  %v2728 = vld [vmem:[%s2318 + $0x121] sm:$0xff]
  %v2729 = vld [vmem:[%s2318 + $0x129] sm:$0xff]
  %v2730 = vld [vmem:[%s2318 + $0x139] sm:$0xff]
  %v2731 = vld [vmem:[%s2318 + $0x141] sm:$0xff]
  %v2732 = vld [vmem:[%s2318 + $0x151] sm:$0xff]
  %v2733 = vld [vmem:[%s2318 + $0x159] sm:$0xff]
  %v2734 = vld [vmem:[%s2318 + $0x169] sm:$0xff]
  %v2735 = vld [vmem:[%s2318 + $0x171] sm:$0xff]
  %v2736 = vld [vmem:[%s2318 + $0x1b1] sm:$0xff]
  %v2737 = vld [vmem:[%s2318 + $0x1b9] sm:$0xff]
  %v2738 = vld [vmem:[%s2318 + $0x1c9] sm:$0xff]
  %v2739 = vld [vmem:[%s2318 + $0x1d1] sm:$0xff]
  %v2740 = vld [vmem:[%s2318 + $0x1e1] sm:$0xff]
  %v2741 = vld [vmem:[%s2318 + $0x1e9] sm:$0xff]
  %v2742 = vld [vmem:[%s2318 + $0x1f9] sm:$0xff]
  %v2743 = vld [vmem:[%s2318 + $0x201] sm:$0xff]
  %v2744 = vld [vmem:[%s2318 + $0x211] sm:$0xff]
  %v2745 = vld [vmem:[%s2318 + $0x219] sm:$0xff]
  %v2746 = vld [vmem:[%s2318 + $0x229] sm:$0xff]
  %v2747 = vld [vmem:[%s2318 + $0x231] sm:$0xff]
  %v2748 = vld [vmem:[%s2318 + $0x241] sm:$0xff]
  %v2749 = vld [vmem:[%s2318 + $0x249] sm:$0xff]
  %v2750 = vld [vmem:[%s2318 + $0x259] sm:$0xff]
  %v2751 = vld [vmem:[%s2318 + $0x261] sm:$0xff]
  %v2752 = vld [vmem:[%s2318 + $0x271] sm:$0xff]
  %v2753 = vld [vmem:[%s2318 + $0x279] sm:$0xff]
  %v2754 = vld [vmem:[%s2318 + $0x289] sm:$0xff]
  %v2755 = vld [vmem:[%s2318 + $0x291] sm:$0xff]
  %v2756 = vld [vmem:[%s2318 + $0x2a1] sm:$0xff]
  %v2757 = vld [vmem:[%s2318 + $0x2a9] sm:$0xff]
  %v2758 = vld [vmem:[%s2318 + $0x2b9] sm:$0xff]
  %v2759 = vld [vmem:[%s2318 + $0x2c1] sm:$0xff]
  %v2760 = vld [vmem:[%s2318 + $0x2d1] sm:$0xff]
  %v2761 = vld [vmem:[%s2318 + $0x2d9] sm:$0xff]
  %v2762 = vld [vmem:[%s2318 + $0x2e9] sm:$0xff]
  %v2763 = vld [vmem:[%s2318 + $0x2f1] sm:$0xff]
  %v2764 = vld [vmem:[%s2318 + $0x301] sm:$0xff]
  %v2765 = vld [vmem:[%s2318 + $0x309] sm:$0xff]
  %v2766 = vld [vmem:[%s2318 + $0x319] sm:$0xff]
  %v2767 = vld [vmem:[%s2318 + $0x321] sm:$0xff]
  %2832 = vrot.lane.b32.xlu0 %v2704, 28
  %v2833 = vpop.permute.xlu0 %2832
  %2834 = vrot.lane.b32.xlu0 %v2705, 28
  %v2835 = vpop.permute.xlu0 %2834
  %2836 = vrot.lane.b32.xlu0 %v2706, 28
  %v2837 = vpop.permute.xlu0 %2836
  %2838 = vrot.lane.b32.xlu0 %v2707, 28
  %v2839 = vpop.permute.xlu0 %2838
  %2840 = vrot.lane.b32.xlu0 %v2708, 28
  %v2841 = vpop.permute.xlu0 %2840
  %2842 = vrot.lane.b32.xlu0 %v2709, 28
  %v2843 = vpop.permute.xlu0 %2842
  %2844 = vrot.lane.b32.xlu0 %v2710, 28
  %v2845 = vpop.permute.xlu0 %2844
  %2846 = vrot.lane.b32.xlu0 %v2711, 28
  %v2847 = vpop.permute.xlu0 %2846
  %2848 = vrot.lane.b32.xlu0 %v2712, 28
  %v2849 = vpop.permute.xlu0 %2848
  %2850 = vrot.lane.b32.xlu0 %v2713, 28
  %v2851 = vpop.permute.xlu0 %2850
  %2852 = vrot.lane.b32.xlu0 %v2714, 28
  %v2853 = vpop.permute.xlu0 %2852
  %2854 = vrot.lane.b32.xlu0 %v2715, 28
  %v2855 = vpop.permute.xlu0 %2854
  %2856 = vrot.lane.b32.xlu0 %v2716, 28
  %v2857 = vpop.permute.xlu0 %2856
  %2858 = vrot.lane.b32.xlu0 %v2717, 28
  %v2859 = vpop.permute.xlu0 %2858
  %2860 = vrot.lane.b32.xlu0 %v2718, 28
  %v2861 = vpop.permute.xlu0 %2860
  %2862 = vrot.lane.b32.xlu0 %v2719, 28
  %v2863 = vpop.permute.xlu0 %2862
  %2864 = vrot.lane.b32.xlu0 %v2720, 28
  %v2865 = vpop.permute.xlu0 %2864
  %2866 = vrot.lane.b32.xlu0 %v2721, 28
  %v2867 = vpop.permute.xlu0 %2866
  %2868 = vrot.lane.b32.xlu0 %v2722, 28
  %v2869 = vpop.permute.xlu0 %2868
  %2870 = vrot.lane.b32.xlu0 %v2723, 28
  %v2871 = vpop.permute.xlu0 %2870
  %2872 = vrot.lane.b32.xlu0 %v2724, 28
  %v2873 = vpop.permute.xlu0 %2872
  %2874 = vrot.lane.b32.xlu0 %v2725, 28
  %v2875 = vpop.permute.xlu0 %2874
  %2876 = vrot.lane.b32.xlu0 %v2726, 28
  %v2877 = vpop.permute.xlu0 %2876
  %2878 = vrot.lane.b32.xlu0 %v2727, 28
  %v2879 = vpop.permute.xlu0 %2878
  %2880 = vrot.lane.b32.xlu0 %v2728, 28
  %v2881 = vpop.permute.xlu0 %2880
  %2882 = vrot.lane.b32.xlu0 %v2729, 28
  %v2883 = vpop.permute.xlu0 %2882
  %2884 = vrot.lane.b32.xlu0 %v2730, 28
  %v2885 = vpop.permute.xlu0 %2884
  %2886 = vrot.lane.b32.xlu0 %v2731, 28
  %v2887 = vpop.permute.xlu0 %2886
  %2888 = vrot.lane.b32.xlu0 %v2732, 28
  %v2889 = vpop.permute.xlu0 %2888
  %2890 = vrot.lane.b32.xlu0 %v2733, 28
  %v2891 = vpop.permute.xlu0 %2890
  %2892 = vrot.lane.b32.xlu0 %v2734, 28
  %v2893 = vpop.permute.xlu0 %2892
  %2894 = vrot.lane.b32.xlu0 %v2735, 28
  %v2895 = vpop.permute.xlu0 %2894
  %2896 = vrot.lane.b32.xlu0 %v2736, 28
  %v2897 = vpop.permute.xlu0 %2896
  %2898 = vrot.lane.b32.xlu0 %v2737, 28
  %v2899 = vpop.permute.xlu0 %2898
  %2900 = vrot.lane.b32.xlu0 %v2738, 28
  %v2901 = vpop.permute.xlu0 %2900
  %2902 = vrot.lane.b32.xlu0 %v2739, 28
  %v2903 = vpop.permute.xlu0 %2902
  %2904 = vrot.lane.b32.xlu0 %v2740, 28
  %v2905 = vpop.permute.xlu0 %2904
  %2906 = vrot.lane.b32.xlu0 %v2741, 28
  %v2907 = vpop.permute.xlu0 %2906
  %2908 = vrot.lane.b32.xlu0 %v2742, 28
  %v2909 = vpop.permute.xlu0 %2908
  %2910 = vrot.lane.b32.xlu0 %v2743, 28
  %v2911 = vpop.permute.xlu0 %2910
  %2912 = vrot.lane.b32.xlu0 %v2744, 28
  %v2913 = vpop.permute.xlu0 %2912
  %2914 = vrot.lane.b32.xlu0 %v2745, 28
  %v2915 = vpop.permute.xlu0 %2914
  %2916 = vrot.lane.b32.xlu0 %v2746, 28
  %v2917 = vpop.permute.xlu0 %2916
  %2918 = vrot.lane.b32.xlu0 %v2747, 28
  %v2919 = vpop.permute.xlu0 %2918
  %2920 = vrot.lane.b32.xlu0 %v2748, 28
  %v2921 = vpop.permute.xlu0 %2920
  %2922 = vrot.lane.b32.xlu0 %v2749, 28
  %v2923 = vpop.permute.xlu0 %2922
  %2924 = vrot.lane.b32.xlu0 %v2750, 28
  %v2925 = vpop.permute.xlu0 %2924
  %2926 = vrot.lane.b32.xlu0 %v2751, 28
  %v2927 = vpop.permute.xlu0 %2926
  %2928 = vrot.lane.b32.xlu0 %v2752, 28
  %v2929 = vpop.permute.xlu0 %2928
  %2930 = vrot.lane.b32.xlu0 %v2753, 28
  %v2931 = vpop.permute.xlu0 %2930
  %2932 = vrot.lane.b32.xlu0 %v2754, 28
  %v2933 = vpop.permute.xlu0 %2932
  %2934 = vrot.lane.b32.xlu0 %v2755, 28
  %v2935 = vpop.permute.xlu0 %2934
  %2936 = vrot.lane.b32.xlu0 %v2756, 28
  %v2937 = vpop.permute.xlu0 %2936
  %2938 = vrot.lane.b32.xlu0 %v2757, 28
  %v2939 = vpop.permute.xlu0 %2938
  %2940 = vrot.lane.b32.xlu0 %v2758, 28
  %v2941 = vpop.permute.xlu0 %2940
  %2942 = vrot.lane.b32.xlu0 %v2759, 28
  %v2943 = vpop.permute.xlu0 %2942
  %2944 = vrot.lane.b32.xlu0 %v2760, 28
  %v2945 = vpop.permute.xlu0 %2944
  %2946 = vrot.lane.b32.xlu0 %v2761, 28
  %v2947 = vpop.permute.xlu0 %2946
  %2948 = vrot.lane.b32.xlu0 %v2762, 28
  %v2949 = vpop.permute.xlu0 %2948
  %2950 = vrot.lane.b32.xlu0 %v2763, 28
  %v2951 = vpop.permute.xlu0 %2950
  %2952 = vrot.lane.b32.xlu0 %v2764, 28
  %v2953 = vpop.permute.xlu0 %2952
  %2954 = vrot.lane.b32.xlu0 %v2765, 28
  %v2955 = vpop.permute.xlu0 %2954
  %2956 = vrot.lane.b32.xlu0 %v2766, 28
  %v2957 = vpop.permute.xlu0 %2956
  %2958 = vrot.lane.b32.xlu0 %v2767, 28
  %v2959 = vpop.permute.xlu0 %2958
  %vm3024 = vcmask 261344
  %3025 = vst.msk [vmem:[#allocation4] sm:$0xff] %vm3024, %v2833
  %3026 = vst.msk [vmem:[#allocation4 + $0x8] sm:$0xff] %vm3024, %v2835
  %3027 = vst.msk [vmem:[#allocation4 + $0x10] sm:$0xff] %vm3024, %v2837
  %3028 = vst.msk [vmem:[#allocation4 + $0x18] sm:$0xff] %vm3024, %v2839
  %3029 = vst.msk [vmem:[#allocation4 + $0x20] sm:$0xff] %vm3024, %v2841
  %3030 = vst.msk [vmem:[#allocation4 + $0x28] sm:$0xff] %vm3024, %v2843
  %3031 = vst.msk [vmem:[#allocation4 + $0x30] sm:$0xff] %vm3024, %v2845
  %3032 = vst.msk [vmem:[#allocation4 + $0x38] sm:$0xff] %vm3024, %v2847
  %3033 = vst.msk [vmem:[#allocation4 + $0x40] sm:$0xff] %vm3024, %v2849
  %3034 = vst.msk [vmem:[#allocation4 + $0x48] sm:$0xff] %vm3024, %v2851
  %3035 = vst.msk [vmem:[#allocation4 + $0x50] sm:$0xff] %vm3024, %v2853
  %3036 = vst.msk [vmem:[#allocation4 + $0x58] sm:$0xff] %vm3024, %v2855
  %3037 = vst.msk [vmem:[#allocation4 + $0x60] sm:$0xff] %vm3024, %v2857
  %3038 = vst.msk [vmem:[#allocation4 + $0x68] sm:$0xff] %vm3024, %v2859
  %3039 = vst.msk [vmem:[#allocation4 + $0x70] sm:$0xff] %vm3024, %v2861
  %3040 = vst.msk [vmem:[#allocation4 + $0x78] sm:$0xff] %vm3024, %v2863
  %3041 = vst.msk [vmem:[#allocation4 + $0x80] sm:$0xff] %vm3024, %v2865
  %3042 = vst.msk [vmem:[#allocation4 + $0x88] sm:$0xff] %vm3024, %v2867
  %3043 = vst.msk [vmem:[#allocation4 + $0x90] sm:$0xff] %vm3024, %v2869
  %3044 = vst.msk [vmem:[#allocation4 + $0x98] sm:$0xff] %vm3024, %v2871
  %3045 = vst.msk [vmem:[#allocation4 + $0xa0] sm:$0xff] %vm3024, %v2873
  %3046 = vst.msk [vmem:[#allocation4 + $0xa8] sm:$0xff] %vm3024, %v2875
  %3047 = vst.msk [vmem:[#allocation4 + $0xb0] sm:$0xff] %vm3024, %v2877
  %3048 = vst.msk [vmem:[#allocation4 + $0xb8] sm:$0xff] %vm3024, %v2879
  %3049 = vst.msk [vmem:[#allocation4 + $0xc0] sm:$0xff] %vm3024, %v2881
  %3050 = vst.msk [vmem:[#allocation4 + $0xc8] sm:$0xff] %vm3024, %v2883
  %3051 = vst.msk [vmem:[#allocation4 + $0xd0] sm:$0xff] %vm3024, %v2885
  %3052 = vst.msk [vmem:[#allocation4 + $0xd8] sm:$0xff] %vm3024, %v2887
  %3053 = vst.msk [vmem:[#allocation4 + $0xe0] sm:$0xff] %vm3024, %v2889
  %3054 = vst.msk [vmem:[#allocation4 + $0xe8] sm:$0xff] %vm3024, %v2891
  %3055 = vst.msk [vmem:[#allocation4 + $0xf0] sm:$0xff] %vm3024, %v2893
  %3056 = vst.msk [vmem:[#allocation4 + $0xf8] sm:$0xff] %vm3024, %v2895
  %3057 = vst.msk [vmem:[#allocation4 + $0x100] sm:$0xff] %vm3024, %v2897
  %3058 = vst.msk [vmem:[#allocation4 + $0x108] sm:$0xff] %vm3024, %v2899
  %3059 = vst.msk [vmem:[#allocation4 + $0x110] sm:$0xff] %vm3024, %v2901
  %3060 = vst.msk [vmem:[#allocation4 + $0x118] sm:$0xff] %vm3024, %v2903
  %3061 = vst.msk [vmem:[#allocation4 + $0x120] sm:$0xff] %vm3024, %v2905
  %3062 = vst.msk [vmem:[#allocation4 + $0x128] sm:$0xff] %vm3024, %v2907
  %3063 = vst.msk [vmem:[#allocation4 + $0x130] sm:$0xff] %vm3024, %v2909
  %3064 = vst.msk [vmem:[#allocation4 + $0x138] sm:$0xff] %vm3024, %v2911
  %3065 = vst.msk [vmem:[#allocation4 + $0x140] sm:$0xff] %vm3024, %v2913
  %3066 = vst.msk [vmem:[#allocation4 + $0x148] sm:$0xff] %vm3024, %v2915
  %3067 = vst.msk [vmem:[#allocation4 + $0x150] sm:$0xff] %vm3024, %v2917
  %3068 = vst.msk [vmem:[#allocation4 + $0x158] sm:$0xff] %vm3024, %v2919
  %3069 = vst.msk [vmem:[#allocation4 + $0x160] sm:$0xff] %vm3024, %v2921
  %3070 = vst.msk [vmem:[#allocation4 + $0x168] sm:$0xff] %vm3024, %v2923
  %3071 = vst.msk [vmem:[#allocation4 + $0x170] sm:$0xff] %vm3024, %v2925
  %3072 = vst.msk [vmem:[#allocation4 + $0x178] sm:$0xff] %vm3024, %v2927
  %3073 = vst.msk [vmem:[#allocation4 + $0x180] sm:$0xff] %vm3024, %v2929
  %3074 = vst.msk [vmem:[#allocation4 + $0x188] sm:$0xff] %vm3024, %v2931
  %3075 = vst.msk [vmem:[#allocation4 + $0x190] sm:$0xff] %vm3024, %v2933
  %3076 = vst.msk [vmem:[#allocation4 + $0x198] sm:$0xff] %vm3024, %v2935
  %3077 = vst.msk [vmem:[#allocation4 + $0x1a0] sm:$0xff] %vm3024, %v2937
  %3078 = vst.msk [vmem:[#allocation4 + $0x1a8] sm:$0xff] %vm3024, %v2939
  %3079 = vst.msk [vmem:[#allocation4 + $0x1b0] sm:$0xff] %vm3024, %v2941
  %3080 = vst.msk [vmem:[#allocation4 + $0x1b8] sm:$0xff] %vm3024, %v2943
  %3081 = vst.msk [vmem:[#allocation4 + $0x1c0] sm:$0xff] %vm3024, %v2945
  %3082 = vst.msk [vmem:[#allocation4 + $0x1c8] sm:$0xff] %vm3024, %v2947
  %3083 = vst.msk [vmem:[#allocation4 + $0x1d0] sm:$0xff] %vm3024, %v2949
  %3084 = vst.msk [vmem:[#allocation4 + $0x1d8] sm:$0xff] %vm3024, %v2951
  %3085 = vst.msk [vmem:[#allocation4 + $0x1e0] sm:$0xff] %vm3024, %v2953
  %3086 = vst.msk [vmem:[#allocation4 + $0x1e8] sm:$0xff] %vm3024, %v2955
  %3087 = vst.msk [vmem:[#allocation4 + $0x1f0] sm:$0xff] %vm3024, %v2957
  %3088 = vst.msk [vmem:[#allocation4 + $0x1f8] sm:$0xff] %vm3024, %v2959
  %v3089 = vld [vmem:[%s2318 + $0x2] sm:$0xff]
  %v3090 = vld [vmem:[%s2318 + $0xa] sm:$0xff]
  %v3091 = vld [vmem:[%s2318 + $0x1a] sm:$0xff]
  %v3092 = vld [vmem:[%s2318 + $0x22] sm:$0xff]
  %v3093 = vld [vmem:[%s2318 + $0x32] sm:$0xff]
  %v3094 = vld [vmem:[%s2318 + $0x3a] sm:$0xff]
  %v3095 = vld [vmem:[%s2318 + $0x4a] sm:$0xff]
  %v3096 = vld [vmem:[%s2318 + $0x52] sm:$0xff]
  %v3097 = vld [vmem:[%s2318 + $0x62] sm:$0xff]
  %v3098 = vld [vmem:[%s2318 + $0x6a] sm:$0xff]
  %v3099 = vld [vmem:[%s2318 + $0x7a] sm:$0xff]
  %v3100 = vld [vmem:[%s2318 + $0x82] sm:$0xff]
  %v3101 = vld [vmem:[%s2318 + $0x92] sm:$0xff]
  %v3102 = vld [vmem:[%s2318 + $0x9a] sm:$0xff]
  %v3103 = vld [vmem:[%s2318 + $0xaa] sm:$0xff]
  %v3104 = vld [vmem:[%s2318 + $0xb2] sm:$0xff]
  %v3105 = vld [vmem:[%s2318 + $0xc2] sm:$0xff]
  %v3106 = vld [vmem:[%s2318 + $0xca] sm:$0xff]
  %v3107 = vld [vmem:[%s2318 + $0xda] sm:$0xff]
  %v3108 = vld [vmem:[%s2318 + $0xe2] sm:$0xff]
  %v3109 = vld [vmem:[%s2318 + $0xf2] sm:$0xff]
  %v3110 = vld [vmem:[%s2318 + $0xfa] sm:$0xff]
  %v3111 = vld [vmem:[%s2318 + $0x10a] sm:$0xff]
  %v3112 = vld [vmem:[%s2318 + $0x112] sm:$0xff]
  %v3113 = vld [vmem:[%s2318 + $0x122] sm:$0xff]
  %v3114 = vld [vmem:[%s2318 + $0x12a] sm:$0xff]
  %v3115 = vld [vmem:[%s2318 + $0x13a] sm:$0xff]
  %v3116 = vld [vmem:[%s2318 + $0x142] sm:$0xff]
  %v3117 = vld [vmem:[%s2318 + $0x152] sm:$0xff]
  %v3118 = vld [vmem:[%s2318 + $0x15a] sm:$0xff]
  %v3119 = vld [vmem:[%s2318 + $0x16a] sm:$0xff]
  %v3120 = vld [vmem:[%s2318 + $0x172] sm:$0xff]
  %v3121 = vld [vmem:[%s2318 + $0x1b2] sm:$0xff]
  %v3122 = vld [vmem:[%s2318 + $0x1ba] sm:$0xff]
  %v3123 = vld [vmem:[%s2318 + $0x1ca] sm:$0xff]
  %v3124 = vld [vmem:[%s2318 + $0x1d2] sm:$0xff]
  %v3125 = vld [vmem:[%s2318 + $0x1e2] sm:$0xff]
  %v3126 = vld [vmem:[%s2318 + $0x1ea] sm:$0xff]
  %v3127 = vld [vmem:[%s2318 + $0x1fa] sm:$0xff]
  %v3128 = vld [vmem:[%s2318 + $0x202] sm:$0xff]
  %v3129 = vld [vmem:[%s2318 + $0x212] sm:$0xff]
  %v3130 = vld [vmem:[%s2318 + $0x21a] sm:$0xff]
  %v3131 = vld [vmem:[%s2318 + $0x22a] sm:$0xff]
  %v3132 = vld [vmem:[%s2318 + $0x232] sm:$0xff]
  %v3133 = vld [vmem:[%s2318 + $0x242] sm:$0xff]
  %v3134 = vld [vmem:[%s2318 + $0x24a] sm:$0xff]
  %v3135 = vld [vmem:[%s2318 + $0x25a] sm:$0xff]
  %v3136 = vld [vmem:[%s2318 + $0x262] sm:$0xff]
  %v3137 = vld [vmem:[%s2318 + $0x272] sm:$0xff]
  %v3138 = vld [vmem:[%s2318 + $0x27a] sm:$0xff]
  %v3139 = vld [vmem:[%s2318 + $0x28a] sm:$0xff]
  %v3140 = vld [vmem:[%s2318 + $0x292] sm:$0xff]
  %v3141 = vld [vmem:[%s2318 + $0x2a2] sm:$0xff]
  %v3142 = vld [vmem:[%s2318 + $0x2aa] sm:$0xff]
  %v3143 = vld [vmem:[%s2318 + $0x2ba] sm:$0xff]
  %v3144 = vld [vmem:[%s2318 + $0x2c2] sm:$0xff]
  %v3145 = vld [vmem:[%s2318 + $0x2d2] sm:$0xff]
  %v3146 = vld [vmem:[%s2318 + $0x2da] sm:$0xff]
  %v3147 = vld [vmem:[%s2318 + $0x2ea] sm:$0xff]
  %v3148 = vld [vmem:[%s2318 + $0x2f2] sm:$0xff]
  %v3149 = vld [vmem:[%s2318 + $0x302] sm:$0xff]
  %v3150 = vld [vmem:[%s2318 + $0x30a] sm:$0xff]
  %v3151 = vld [vmem:[%s2318 + $0x31a] sm:$0xff]
  %v3152 = vld [vmem:[%s2318 + $0x322] sm:$0xff]
  %3217 = vrot.lane.b32.xlu0 %v3089, 32
  %v3218 = vpop.permute.xlu0 %3217
  %3219 = vrot.lane.b32.xlu0 %v3090, 32
  %v3220 = vpop.permute.xlu0 %3219
  %3221 = vrot.lane.b32.xlu0 %v3091, 32
  %v3222 = vpop.permute.xlu0 %3221
  %3223 = vrot.lane.b32.xlu0 %v3092, 32
  %v3224 = vpop.permute.xlu0 %3223
  %3225 = vrot.lane.b32.xlu0 %v3093, 32
  %v3226 = vpop.permute.xlu0 %3225
  %3227 = vrot.lane.b32.xlu0 %v3094, 32
  %v3228 = vpop.permute.xlu0 %3227
  %3229 = vrot.lane.b32.xlu0 %v3095, 32
  %v3230 = vpop.permute.xlu0 %3229
  %3231 = vrot.lane.b32.xlu0 %v3096, 32
  %v3232 = vpop.permute.xlu0 %3231
  %3233 = vrot.lane.b32.xlu0 %v3097, 32
  %v3234 = vpop.permute.xlu0 %3233
  %3235 = vrot.lane.b32.xlu0 %v3098, 32
  %v3236 = vpop.permute.xlu0 %3235
  %3237 = vrot.lane.b32.xlu0 %v3099, 32
  %v3238 = vpop.permute.xlu0 %3237
  %3239 = vrot.lane.b32.xlu0 %v3100, 32
  %v3240 = vpop.permute.xlu0 %3239
  %3241 = vrot.lane.b32.xlu0 %v3101, 32
  %v3242 = vpop.permute.xlu0 %3241
  %3243 = vrot.lane.b32.xlu0 %v3102, 32
  %v3244 = vpop.permute.xlu0 %3243
  %3245 = vrot.lane.b32.xlu0 %v3103, 32
  %v3246 = vpop.permute.xlu0 %3245
  %3247 = vrot.lane.b32.xlu0 %v3104, 32
  %v3248 = vpop.permute.xlu0 %3247
  %3249 = vrot.lane.b32.xlu0 %v3105, 32
  %v3250 = vpop.permute.xlu0 %3249
  %3251 = vrot.lane.b32.xlu0 %v3106, 32
  %v3252 = vpop.permute.xlu0 %3251
  %3253 = vrot.lane.b32.xlu0 %v3107, 32
  %v3254 = vpop.permute.xlu0 %3253
  %3255 = vrot.lane.b32.xlu0 %v3108, 32
  %v3256 = vpop.permute.xlu0 %3255
  %3257 = vrot.lane.b32.xlu0 %v3109, 32
  %v3258 = vpop.permute.xlu0 %3257
  %3259 = vrot.lane.b32.xlu0 %v3110, 32
  %v3260 = vpop.permute.xlu0 %3259
  %3261 = vrot.lane.b32.xlu0 %v3111, 32
  %v3262 = vpop.permute.xlu0 %3261
  %3263 = vrot.lane.b32.xlu0 %v3112, 32
  %v3264 = vpop.permute.xlu0 %3263
  %3265 = vrot.lane.b32.xlu0 %v3113, 32
  %v3266 = vpop.permute.xlu0 %3265
  %3267 = vrot.lane.b32.xlu0 %v3114, 32
  %v3268 = vpop.permute.xlu0 %3267
  %3269 = vrot.lane.b32.xlu0 %v3115, 32
  %v3270 = vpop.permute.xlu0 %3269
  %3271 = vrot.lane.b32.xlu0 %v3116, 32
  %v3272 = vpop.permute.xlu0 %3271
  %3273 = vrot.lane.b32.xlu0 %v3117, 32
  %v3274 = vpop.permute.xlu0 %3273
  %3275 = vrot.lane.b32.xlu0 %v3118, 32
  %v3276 = vpop.permute.xlu0 %3275
  %3277 = vrot.lane.b32.xlu0 %v3119, 32
  %v3278 = vpop.permute.xlu0 %3277
  %3279 = vrot.lane.b32.xlu0 %v3120, 32
  %v3280 = vpop.permute.xlu0 %3279
  %3281 = vrot.lane.b32.xlu0 %v3121, 32
  %v3282 = vpop.permute.xlu0 %3281
  %3283 = vrot.lane.b32.xlu0 %v3122, 32
  %v3284 = vpop.permute.xlu0 %3283
  %3285 = vrot.lane.b32.xlu0 %v3123, 32
  %v3286 = vpop.permute.xlu0 %3285
  %3287 = vrot.lane.b32.xlu0 %v3124, 32
  %v3288 = vpop.permute.xlu0 %3287
  %3289 = vrot.lane.b32.xlu0 %v3125, 32
  %v3290 = vpop.permute.xlu0 %3289
  %3291 = vrot.lane.b32.xlu0 %v3126, 32
  %v3292 = vpop.permute.xlu0 %3291
  %3293 = vrot.lane.b32.xlu0 %v3127, 32
  %v3294 = vpop.permute.xlu0 %3293
  %3295 = vrot.lane.b32.xlu0 %v3128, 32
  %v3296 = vpop.permute.xlu0 %3295
  %3297 = vrot.lane.b32.xlu0 %v3129, 32
  %v3298 = vpop.permute.xlu0 %3297
  %3299 = vrot.lane.b32.xlu0 %v3130, 32
  %v3300 = vpop.permute.xlu0 %3299
  %3301 = vrot.lane.b32.xlu0 %v3131, 32
  %v3302 = vpop.permute.xlu0 %3301
  %3303 = vrot.lane.b32.xlu0 %v3132, 32
  %v3304 = vpop.permute.xlu0 %3303
  %3305 = vrot.lane.b32.xlu0 %v3133, 32
  %v3306 = vpop.permute.xlu0 %3305
  %3307 = vrot.lane.b32.xlu0 %v3134, 32
  %v3308 = vpop.permute.xlu0 %3307
  %3309 = vrot.lane.b32.xlu0 %v3135, 32
  %v3310 = vpop.permute.xlu0 %3309
  %3311 = vrot.lane.b32.xlu0 %v3136, 32
  %v3312 = vpop.permute.xlu0 %3311
  %3313 = vrot.lane.b32.xlu0 %v3137, 32
  %v3314 = vpop.permute.xlu0 %3313
  %3315 = vrot.lane.b32.xlu0 %v3138, 32
  %v3316 = vpop.permute.xlu0 %3315
  %3317 = vrot.lane.b32.xlu0 %v3139, 32
  %v3318 = vpop.permute.xlu0 %3317
  %3319 = vrot.lane.b32.xlu0 %v3140, 32
  %v3320 = vpop.permute.xlu0 %3319
  %3321 = vrot.lane.b32.xlu0 %v3141, 32
  %v3322 = vpop.permute.xlu0 %3321
  %3323 = vrot.lane.b32.xlu0 %v3142, 32
  %v3324 = vpop.permute.xlu0 %3323
  %3325 = vrot.lane.b32.xlu0 %v3143, 32
  %v3326 = vpop.permute.xlu0 %3325
  %3327 = vrot.lane.b32.xlu0 %v3144, 32
  %v3328 = vpop.permute.xlu0 %3327
  %3329 = vrot.lane.b32.xlu0 %v3145, 32
  %v3330 = vpop.permute.xlu0 %3329
  %3331 = vrot.lane.b32.xlu0 %v3146, 32
  %v3332 = vpop.permute.xlu0 %3331
  %3333 = vrot.lane.b32.xlu0 %v3147, 32
  %v3334 = vpop.permute.xlu0 %3333
  %3335 = vrot.lane.b32.xlu0 %v3148, 32
  %v3336 = vpop.permute.xlu0 %3335
  %3337 = vrot.lane.b32.xlu0 %v3149, 32
  %v3338 = vpop.permute.xlu0 %3337
  %3339 = vrot.lane.b32.xlu0 %v3150, 32
  %v3340 = vpop.permute.xlu0 %3339
  %3341 = vrot.lane.b32.xlu0 %v3151, 32
  %v3342 = vpop.permute.xlu0 %3341
  %3343 = vrot.lane.b32.xlu0 %v3152, 32
  %v3344 = vpop.permute.xlu0 %3343
  %vm3409 = vcmask 294144
  %3410 = vst.msk [vmem:[#allocation4] sm:$0xff] %vm3409, %v3218
  %3411 = vst.msk [vmem:[#allocation4 + $0x8] sm:$0xff] %vm3409, %v3220
  %3412 = vst.msk [vmem:[#allocation4 + $0x10] sm:$0xff] %vm3409, %v3222
  %3413 = vst.msk [vmem:[#allocation4 + $0x18] sm:$0xff] %vm3409, %v3224
  %3414 = vst.msk [vmem:[#allocation4 + $0x20] sm:$0xff] %vm3409, %v3226
  %3415 = vst.msk [vmem:[#allocation4 + $0x28] sm:$0xff] %vm3409, %v3228
  %3416 = vst.msk [vmem:[#allocation4 + $0x30] sm:$0xff] %vm3409, %v3230
  %3417 = vst.msk [vmem:[#allocation4 + $0x38] sm:$0xff] %vm3409, %v3232
  %3418 = vst.msk [vmem:[#allocation4 + $0x40] sm:$0xff] %vm3409, %v3234
  %3419 = vst.msk [vmem:[#allocation4 + $0x48] sm:$0xff] %vm3409, %v3236
  %3420 = vst.msk [vmem:[#allocation4 + $0x50] sm:$0xff] %vm3409, %v3238
  %3421 = vst.msk [vmem:[#allocation4 + $0x58] sm:$0xff] %vm3409, %v3240
  %3422 = vst.msk [vmem:[#allocation4 + $0x60] sm:$0xff] %vm3409, %v3242
  %3423 = vst.msk [vmem:[#allocation4 + $0x68] sm:$0xff] %vm3409, %v3244
  %3424 = vst.msk [vmem:[#allocation4 + $0x70] sm:$0xff] %vm3409, %v3246
  %3425 = vst.msk [vmem:[#allocation4 + $0x78] sm:$0xff] %vm3409, %v3248
  %3426 = vst.msk [vmem:[#allocation4 + $0x80] sm:$0xff] %vm3409, %v3250
  %3427 = vst.msk [vmem:[#allocation4 + $0x88] sm:$0xff] %vm3409, %v3252
  %3428 = vst.msk [vmem:[#allocation4 + $0x90] sm:$0xff] %vm3409, %v3254
  %3429 = vst.msk [vmem:[#allocation4 + $0x98] sm:$0xff] %vm3409, %v3256
  %3430 = vst.msk [vmem:[#allocation4 + $0xa0] sm:$0xff] %vm3409, %v3258
  %3431 = vst.msk [vmem:[#allocation4 + $0xa8] sm:$0xff] %vm3409, %v3260
  %3432 = vst.msk [vmem:[#allocation4 + $0xb0] sm:$0xff] %vm3409, %v3262
  %3433 = vst.msk [vmem:[#allocation4 + $0xb8] sm:$0xff] %vm3409, %v3264
  %3434 = vst.msk [vmem:[#allocation4 + $0xc0] sm:$0xff] %vm3409, %v3266
  %3435 = vst.msk [vmem:[#allocation4 + $0xc8] sm:$0xff] %vm3409, %v3268
  %3436 = vst.msk [vmem:[#allocation4 + $0xd0] sm:$0xff] %vm3409, %v3270
  %3437 = vst.msk [vmem:[#allocation4 + $0xd8] sm:$0xff] %vm3409, %v3272
  %3438 = vst.msk [vmem:[#allocation4 + $0xe0] sm:$0xff] %vm3409, %v3274
  %3439 = vst.msk [vmem:[#allocation4 + $0xe8] sm:$0xff] %vm3409, %v3276
  %3440 = vst.msk [vmem:[#allocation4 + $0xf0] sm:$0xff] %vm3409, %v3278
  %3441 = vst.msk [vmem:[#allocation4 + $0xf8] sm:$0xff] %vm3409, %v3280
  %3442 = vst.msk [vmem:[#allocation4 + $0x100] sm:$0xff] %vm3409, %v3282
  %3443 = vst.msk [vmem:[#allocation4 + $0x108] sm:$0xff] %vm3409, %v3284
  %3444 = vst.msk [vmem:[#allocation4 + $0x110] sm:$0xff] %vm3409, %v3286
  %3445 = vst.msk [vmem:[#allocation4 + $0x118] sm:$0xff] %vm3409, %v3288
  %3446 = vst.msk [vmem:[#allocation4 + $0x120] sm:$0xff] %vm3409, %v3290
  %3447 = vst.msk [vmem:[#allocation4 + $0x128] sm:$0xff] %vm3409, %v3292
  %3448 = vst.msk [vmem:[#allocation4 + $0x130] sm:$0xff] %vm3409, %v3294
  %3449 = vst.msk [vmem:[#allocation4 + $0x138] sm:$0xff] %vm3409, %v3296
  %3450 = vst.msk [vmem:[#allocation4 + $0x140] sm:$0xff] %vm3409, %v3298
  %3451 = vst.msk [vmem:[#allocation4 + $0x148] sm:$0xff] %vm3409, %v3300
  %3452 = vst.msk [vmem:[#allocation4 + $0x150] sm:$0xff] %vm3409, %v3302
  %3453 = vst.msk [vmem:[#allocation4 + $0x158] sm:$0xff] %vm3409, %v3304
  %3454 = vst.msk [vmem:[#allocation4 + $0x160] sm:$0xff] %vm3409, %v3306
  %3455 = vst.msk [vmem:[#allocation4 + $0x168] sm:$0xff] %vm3409, %v3308
  %3456 = vst.msk [vmem:[#allocation4 + $0x170] sm:$0xff] %vm3409, %v3310
  %3457 = vst.msk [vmem:[#allocation4 + $0x178] sm:$0xff] %vm3409, %v3312
  %3458 = vst.msk [vmem:[#allocation4 + $0x180] sm:$0xff] %vm3409, %v3314
  %3459 = vst.msk [vmem:[#allocation4 + $0x188] sm:$0xff] %vm3409, %v3316
  %3460 = vst.msk [vmem:[#allocation4 + $0x190] sm:$0xff] %vm3409, %v3318
  %3461 = vst.msk [vmem:[#allocation4 + $0x198] sm:$0xff] %vm3409, %v3320
  %3462 = vst.msk [vmem:[#allocation4 + $0x1a0] sm:$0xff] %vm3409, %v3322
  %3463 = vst.msk [vmem:[#allocation4 + $0x1a8] sm:$0xff] %vm3409, %v3324
  %3464 = vst.msk [vmem:[#allocation4 + $0x1b0] sm:$0xff] %vm3409, %v3326
  %3465 = vst.msk [vmem:[#allocation4 + $0x1b8] sm:$0xff] %vm3409, %v3328
  %3466 = vst.msk [vmem:[#allocation4 + $0x1c0] sm:$0xff] %vm3409, %v3330
  %3467 = vst.msk [vmem:[#allocation4 + $0x1c8] sm:$0xff] %vm3409, %v3332
  %3468 = vst.msk [vmem:[#allocation4 + $0x1d0] sm:$0xff] %vm3409, %v3334
  %3469 = vst.msk [vmem:[#allocation4 + $0x1d8] sm:$0xff] %vm3409, %v3336
  %3470 = vst.msk [vmem:[#allocation4 + $0x1e0] sm:$0xff] %vm3409, %v3338
  %3471 = vst.msk [vmem:[#allocation4 + $0x1e8] sm:$0xff] %vm3409, %v3340
  %3472 = vst.msk [vmem:[#allocation4 + $0x1f0] sm:$0xff] %vm3409, %v3342
  %3473 = vst.msk [vmem:[#allocation4 + $0x1f8] sm:$0xff] %vm3409, %v3344
  %v3474 = vld [vmem:[#allocation4] sm:$0xff]
  %v3475 = vld [vmem:[#allocation4 + $0x8] sm:$0xff]
  %v3476 = vld [vmem:[#allocation4 + $0x10] sm:$0xff]
  %v3477 = vld [vmem:[#allocation4 + $0x18] sm:$0xff]
  %v3478 = vld [vmem:[#allocation4 + $0x20] sm:$0xff]
  %v3479 = vld [vmem:[#allocation4 + $0x28] sm:$0xff]
  %v3480 = vld [vmem:[#allocation4 + $0x30] sm:$0xff]
  %v3481 = vld [vmem:[#allocation4 + $0x38] sm:$0xff]
  %v3482 = vld [vmem:[#allocation4 + $0x40] sm:$0xff]
  %v3483 = vld [vmem:[#allocation4 + $0x48] sm:$0xff]
  %v3484 = vld [vmem:[#allocation4 + $0x50] sm:$0xff]
  %v3485 = vld [vmem:[#allocation4 + $0x58] sm:$0xff]
  %v3486 = vld [vmem:[#allocation4 + $0x60] sm:$0xff]
  %v3487 = vld [vmem:[#allocation4 + $0x68] sm:$0xff]
  %v3488 = vld [vmem:[#allocation4 + $0x70] sm:$0xff]
  %v3489 = vld [vmem:[#allocation4 + $0x78] sm:$0xff]
  %v3490 = vld [vmem:[#allocation4 + $0x80] sm:$0xff]
  %v3491 = vld [vmem:[#allocation4 + $0x88] sm:$0xff]
  %v3492 = vld [vmem:[#allocation4 + $0x90] sm:$0xff]
  %v3493 = vld [vmem:[#allocation4 + $0x98] sm:$0xff]
  %v3494 = vld [vmem:[#allocation4 + $0xa0] sm:$0xff]
  %v3495 = vld [vmem:[#allocation4 + $0xa8] sm:$0xff]
  %v3496 = vld [vmem:[#allocation4 + $0xb0] sm:$0xff]
  %v3497 = vld [vmem:[#allocation4 + $0xb8] sm:$0xff]
  %v3498 = vld [vmem:[#allocation4 + $0xc0] sm:$0xff]
  %v3499 = vld [vmem:[#allocation4 + $0xc8] sm:$0xff]
  %v3500 = vld [vmem:[#allocation4 + $0xd0] sm:$0xff]
  %v3501 = vld [vmem:[#allocation4 + $0xd8] sm:$0xff]
  %v3502 = vld [vmem:[#allocation4 + $0xe0] sm:$0xff]
  %v3503 = vld [vmem:[#allocation4 + $0xe8] sm:$0xff]
  %v3504 = vld [vmem:[#allocation4 + $0xf0] sm:$0xff]
  %v3505 = vld [vmem:[#allocation4 + $0xf8] sm:$0xff]
  %v3506 = vld [vmem:[#allocation4 + $0x100] sm:$0xff]
  %v3507 = vld [vmem:[#allocation4 + $0x108] sm:$0xff]
  %v3508 = vld [vmem:[#allocation4 + $0x110] sm:$0xff]
  %v3509 = vld [vmem:[#allocation4 + $0x118] sm:$0xff]
  %v3510 = vld [vmem:[#allocation4 + $0x120] sm:$0xff]
  %v3511 = vld [vmem:[#allocation4 + $0x128] sm:$0xff]
  %v3512 = vld [vmem:[#allocation4 + $0x130] sm:$0xff]
  %v3513 = vld [vmem:[#allocation4 + $0x138] sm:$0xff]
  %v3514 = vld [vmem:[#allocation4 + $0x140] sm:$0xff]
  %v3515 = vld [vmem:[#allocation4 + $0x148] sm:$0xff]
  %v3516 = vld [vmem:[#allocation4 + $0x150] sm:$0xff]
  %v3517 = vld [vmem:[#allocation4 + $0x158] sm:$0xff]
  %v3518 = vld [vmem:[#allocation4 + $0x160] sm:$0xff]
  %v3519 = vld [vmem:[#allocation4 + $0x168] sm:$0xff]
  %v3520 = vld [vmem:[#allocation4 + $0x170] sm:$0xff]
  %v3521 = vld [vmem:[#allocation4 + $0x178] sm:$0xff]
  %v3522 = vld [vmem:[#allocation4 + $0x180] sm:$0xff]
  %v3523 = vld [vmem:[#allocation4 + $0x188] sm:$0xff]
  %v3524 = vld [vmem:[#allocation4 + $0x190] sm:$0xff]
  %v3525 = vld [vmem:[#allocation4 + $0x198] sm:$0xff]
  %v3526 = vld [vmem:[#allocation4 + $0x1a0] sm:$0xff]
  %v3527 = vld [vmem:[#allocation4 + $0x1a8] sm:$0xff]
  %v3528 = vld [vmem:[#allocation4 + $0x1b0] sm:$0xff]
  %v3529 = vld [vmem:[#allocation4 + $0x1b8] sm:$0xff]
  %v3530 = vld [vmem:[#allocation4 + $0x1c0] sm:$0xff]
  %v3531 = vld [vmem:[#allocation4 + $0x1c8] sm:$0xff]
  %v3532 = vld [vmem:[#allocation4 + $0x1d0] sm:$0xff]
  %v3533 = vld [vmem:[#allocation4 + $0x1d8] sm:$0xff]
  %v3534 = vld [vmem:[#allocation4 + $0x1e0] sm:$0xff]
  %v3535 = vld [vmem:[#allocation4 + $0x1e8] sm:$0xff]
  %v3536 = vld [vmem:[#allocation4 + $0x1f0] sm:$0xff]
  %v3537 = vld [vmem:[#allocation4 + $0x1f8] sm:$0xff]
  %v3538 = vld [vmem:[%s1] sm:$0xff]
  %v3539 = vld [vmem:[%s1 + $0x8] sm:$0xff]
  %v3540 = vld [vmem:[%s1 + $0x10] sm:$0xff]
  %v3541 = vld [vmem:[%s1 + $0x18] sm:$0xff]
  %v3542 = vld [vmem:[%s1 + $0x20] sm:$0xf]
  %v3543 = vld [vmem:[%s2] sm:$0x1]
  %v3545 = vperm.slane %v3543, 0
  %vm3547 = vcmask 293888
  %v3549 = vsel %vm3547, %v3474, 0
  %v3552 = vsel %vm3547, %v3475, 0
  %v3555 = vsel %vm3547, %v3476, 0
  %v3558 = vsel %vm3547, %v3477, 0
  %v3561 = vsel %vm3547, %v3478, 0
  %v3564 = vsel %vm3547, %v3479, 0
  %v3567 = vsel %vm3547, %v3480, 0
  %v3570 = vsel %vm3547, %v3481, 0
  %v3573 = vsel %vm3547, %v3482, 0
  %v3576 = vsel %vm3547, %v3483, 0
  %v3579 = vsel %vm3547, %v3484, 0
  %v3582 = vsel %vm3547, %v3485, 0
  %v3585 = vsel %vm3547, %v3486, 0
  %v3588 = vsel %vm3547, %v3487, 0
  %v3591 = vsel %vm3547, %v3488, 0
  %v3594 = vsel %vm3547, %v3489, 0
  %v3597 = vsel %vm3547, %v3490, 0
  %v3600 = vsel %vm3547, %v3491, 0
  %v3603 = vsel %vm3547, %v3492, 0
  %v3606 = vsel %vm3547, %v3493, 0
  %v3609 = vsel %vm3547, %v3494, 0
  %v3612 = vsel %vm3547, %v3495, 0
  %v3615 = vsel %vm3547, %v3496, 0
  %v3618 = vsel %vm3547, %v3497, 0
  %v3621 = vsel %vm3547, %v3498, 0
  %v3624 = vsel %vm3547, %v3499, 0
  %v3627 = vsel %vm3547, %v3500, 0
  %v3630 = vsel %vm3547, %v3501, 0
  %v3633 = vsel %vm3547, %v3502, 0
  %v3636 = vsel %vm3547, %v3503, 0
  %v3639 = vsel %vm3547, %v3504, 0
  %v3642 = vsel %vm3547, %v3505, 0
  %v3645 = vsel %vm3547, %v3506, 0
  %v3648 = vsel %vm3547, %v3507, 0
  %v3651 = vsel %vm3547, %v3508, 0
  %v3654 = vsel %vm3547, %v3509, 0
  %v3657 = vsel %vm3547, %v3510, 0
  %v3660 = vsel %vm3547, %v3511, 0
  %v3663 = vsel %vm3547, %v3512, 0
  %v3666 = vsel %vm3547, %v3513, 0
  %v3669 = vsel %vm3547, %v3514, 0
  %v3672 = vsel %vm3547, %v3515, 0
  %v3675 = vsel %vm3547, %v3516, 0
  %v3678 = vsel %vm3547, %v3517, 0
  %v3681 = vsel %vm3547, %v3518, 0
  %v3684 = vsel %vm3547, %v3519, 0
  %v3687 = vsel %vm3547, %v3520, 0
  %v3690 = vsel %vm3547, %v3521, 0
  %v3693 = vsel %vm3547, %v3522, 0
  %v3696 = vsel %vm3547, %v3523, 0
  %v3699 = vsel %vm3547, %v3524, 0
  %v3702 = vsel %vm3547, %v3525, 0
  %v3705 = vsel %vm3547, %v3526, 0
  %v3708 = vsel %vm3547, %v3527, 0
  %v3711 = vsel %vm3547, %v3528, 0
  %v3714 = vsel %vm3547, %v3529, 0
  %v3717 = vsel %vm3547, %v3530, 0
  %v3720 = vsel %vm3547, %v3531, 0
  %v3723 = vsel %vm3547, %v3532, 0
  %v3726 = vsel %vm3547, %v3533, 0
  %v3729 = vsel %vm3547, %v3534, 0
  %v3732 = vsel %vm3547, %v3535, 0
  %v3735 = vsel %vm3547, %v3536, 0
  %v3738 = vsel %vm3547, %v3537, 0
  %vm3740 = vcmask 1043456
  %v3742 = vsel %vm3740, %v3542, 0
  %3744 = vmatpush.msra.mxu0 0.0
  %3745 = vmatpush.msra.mxu0 0.0
  %3746 = vmatpush.msra.mxu0 0.0
  %3747 = vmatpush.msra.mxu0 0.0
  %3748 = vmatpush.msra.mxu0 0.0
  %3749 = vmatpush.msra.mxu0 0.0
  %3750 = vmatpush.msra.mxu0 0.0
  %3751 = vmatpush.msra.mxu0 0.0
  %3752 = vmatpush.msra.mxu0 0.0
  %3753 = vmatpush.msra.mxu0 0.0
  %3754 = vmatpush.msra.mxu0 0.0
  %3755 = vmatpush.msra.mxu0 %v3742
  %3756 = vmatpush.msra.mxu0 %v3541
  %3757 = vmatpush.msra.mxu0 %v3540
  %3758 = vmatpush.msra.mxu0 %v3539
  %3759 = vmatpush.msra.mxu0 %v3538
  %3760 = vmatmul.f32.gmra.mxu0 %v3549
  %v3761 = vpop.f32.mrf.mxu0
  %v3762 = vadd.f32 %v3545, %v3761
  %3763 = vmatmul.f32.gmra.mxu0 %v3552
  %v3764 = vpop.f32.mrf.mxu0
  %v3765 = vadd.f32 %v3545, %v3764
  %3766 = vmatmul.f32.gmra.mxu0 %v3555
  %v3767 = vpop.f32.mrf.mxu0
  %v3768 = vadd.f32 %v3545, %v3767
  %3769 = vmatmul.f32.gmra.mxu0 %v3558
  %v3770 = vpop.f32.mrf.mxu0
  %v3771 = vadd.f32 %v3545, %v3770
  %3772 = vmatmul.f32.gmra.mxu0 %v3561
  %v3773 = vpop.f32.mrf.mxu0
  %v3774 = vadd.f32 %v3545, %v3773
  %3775 = vmatmul.f32.gmra.mxu0 %v3564
  %v3776 = vpop.f32.mrf.mxu0
  %v3777 = vadd.f32 %v3545, %v3776
  %3778 = vmatmul.f32.gmra.mxu0 %v3567
  %v3779 = vpop.f32.mrf.mxu0
  %v3780 = vadd.f32 %v3545, %v3779
  %3781 = vmatmul.f32.gmra.mxu0 %v3570
  %v3782 = vpop.f32.mrf.mxu0
  %v3783 = vadd.f32 %v3545, %v3782
  %3784 = vmatmul.f32.gmra.mxu0 %v3573
  %v3785 = vpop.f32.mrf.mxu0
  %v3786 = vadd.f32 %v3545, %v3785
  %3787 = vmatmul.f32.gmra.mxu0 %v3576
  %v3788 = vpop.f32.mrf.mxu0
  %v3789 = vadd.f32 %v3545, %v3788
  %3790 = vmatmul.f32.gmra.mxu0 %v3579
  %v3791 = vpop.f32.mrf.mxu0
  %v3792 = vadd.f32 %v3545, %v3791
  %3793 = vmatmul.f32.gmra.mxu0 %v3582
  %v3794 = vpop.f32.mrf.mxu0
  %v3795 = vadd.f32 %v3545, %v3794
  %3796 = vmatmul.f32.gmra.mxu0 %v3585
  %v3797 = vpop.f32.mrf.mxu0
  %v3798 = vadd.f32 %v3545, %v3797
  %3799 = vmatmul.f32.gmra.mxu0 %v3588
  %v3800 = vpop.f32.mrf.mxu0
  %v3801 = vadd.f32 %v3545, %v3800
  %3802 = vmatmul.f32.gmra.mxu0 %v3591
  %v3803 = vpop.f32.mrf.mxu0
  %v3804 = vadd.f32 %v3545, %v3803
  %3805 = vmatmul.f32.gmra.mxu0 %v3594
  %v3806 = vpop.f32.mrf.mxu0
  %v3807 = vadd.f32 %v3545, %v3806
  %3808 = vmatmul.f32.gmra.mxu0 %v3597
  %v3809 = vpop.f32.mrf.mxu0
  %v3810 = vadd.f32 %v3545, %v3809
  %3811 = vmatmul.f32.gmra.mxu0 %v3600
  %v3812 = vpop.f32.mrf.mxu0
  %v3813 = vadd.f32 %v3545, %v3812
  %3814 = vmatmul.f32.gmra.mxu0 %v3603
  %v3815 = vpop.f32.mrf.mxu0
  %v3816 = vadd.f32 %v3545, %v3815
  %3817 = vmatmul.f32.gmra.mxu0 %v3606
  %v3818 = vpop.f32.mrf.mxu0
  %v3819 = vadd.f32 %v3545, %v3818
  %3820 = vmatmul.f32.gmra.mxu0 %v3609
  %v3821 = vpop.f32.mrf.mxu0
  %v3822 = vadd.f32 %v3545, %v3821
  %3823 = vmatmul.f32.gmra.mxu0 %v3612
  %v3824 = vpop.f32.mrf.mxu0
  %v3825 = vadd.f32 %v3545, %v3824
  %3826 = vmatmul.f32.gmra.mxu0 %v3615
  %v3827 = vpop.f32.mrf.mxu0
  %v3828 = vadd.f32 %v3545, %v3827
  %3829 = vmatmul.f32.gmra.mxu0 %v3618
  %v3830 = vpop.f32.mrf.mxu0
  %v3831 = vadd.f32 %v3545, %v3830
  %3832 = vmatmul.f32.gmra.mxu0 %v3621
  %v3833 = vpop.f32.mrf.mxu0
  %v3834 = vadd.f32 %v3545, %v3833
  %3835 = vmatmul.f32.gmra.mxu0 %v3624
  %v3836 = vpop.f32.mrf.mxu0
  %v3837 = vadd.f32 %v3545, %v3836
  %3838 = vmatmul.f32.gmra.mxu0 %v3627
  %v3839 = vpop.f32.mrf.mxu0
  %v3840 = vadd.f32 %v3545, %v3839
  %3841 = vmatmul.f32.gmra.mxu0 %v3630
  %v3842 = vpop.f32.mrf.mxu0
  %v3843 = vadd.f32 %v3545, %v3842
  %3844 = vmatmul.f32.gmra.mxu0 %v3633
  %v3845 = vpop.f32.mrf.mxu0
  %v3846 = vadd.f32 %v3545, %v3845
  %3847 = vmatmul.f32.gmra.mxu0 %v3636
  %v3848 = vpop.f32.mrf.mxu0
  %v3849 = vadd.f32 %v3545, %v3848
  %3850 = vmatmul.f32.gmra.mxu0 %v3639
  %v3851 = vpop.f32.mrf.mxu0
  %v3852 = vadd.f32 %v3545, %v3851
  %3853 = vmatmul.f32.gmra.mxu0 %v3642
  %v3854 = vpop.f32.mrf.mxu0
  %v3855 = vadd.f32 %v3545, %v3854
  %3856 = vmatmul.f32.gmra.mxu0 %v3645
  %v3857 = vpop.f32.mrf.mxu0
  %v3858 = vadd.f32 %v3545, %v3857
  %3859 = vmatmul.f32.gmra.mxu0 %v3648
  %v3860 = vpop.f32.mrf.mxu0
  %v3861 = vadd.f32 %v3545, %v3860
  %3862 = vmatmul.f32.gmra.mxu0 %v3651
  %v3863 = vpop.f32.mrf.mxu0
  %v3864 = vadd.f32 %v3545, %v3863
  %3865 = vmatmul.f32.gmra.mxu0 %v3654
  %v3866 = vpop.f32.mrf.mxu0
  %v3867 = vadd.f32 %v3545, %v3866
  %3868 = vmatmul.f32.gmra.mxu0 %v3657
  %v3869 = vpop.f32.mrf.mxu0
  %v3870 = vadd.f32 %v3545, %v3869
  %3871 = vmatmul.f32.gmra.mxu0 %v3660
  %v3872 = vpop.f32.mrf.mxu0
  %v3873 = vadd.f32 %v3545, %v3872
  %3874 = vmatmul.f32.gmra.mxu0 %v3663
  %v3875 = vpop.f32.mrf.mxu0
  %v3876 = vadd.f32 %v3545, %v3875
  %3877 = vmatmul.f32.gmra.mxu0 %v3666
  %v3878 = vpop.f32.mrf.mxu0
  %v3879 = vadd.f32 %v3545, %v3878
  %3880 = vmatmul.f32.gmra.mxu0 %v3669
  %v3881 = vpop.f32.mrf.mxu0
  %v3882 = vadd.f32 %v3545, %v3881
  %3883 = vmatmul.f32.gmra.mxu0 %v3672
  %v3884 = vpop.f32.mrf.mxu0
  %v3885 = vadd.f32 %v3545, %v3884
  %3886 = vmatmul.f32.gmra.mxu0 %v3675
  %v3887 = vpop.f32.mrf.mxu0
  %v3888 = vadd.f32 %v3545, %v3887
  %3889 = vmatmul.f32.gmra.mxu0 %v3678
  %v3890 = vpop.f32.mrf.mxu0
  %v3891 = vadd.f32 %v3545, %v3890
  %3892 = vmatmul.f32.gmra.mxu0 %v3681
  %v3893 = vpop.f32.mrf.mxu0
  %v3894 = vadd.f32 %v3545, %v3893
  %3895 = vmatmul.f32.gmra.mxu0 %v3684
  %v3896 = vpop.f32.mrf.mxu0
  %v3897 = vadd.f32 %v3545, %v3896
  %3898 = vmatmul.f32.gmra.mxu0 %v3687
  %v3899 = vpop.f32.mrf.mxu0
  %v3900 = vadd.f32 %v3545, %v3899
  %3901 = vmatmul.f32.gmra.mxu0 %v3690
  %v3902 = vpop.f32.mrf.mxu0
  %v3903 = vadd.f32 %v3545, %v3902
  %3904 = vmatmul.f32.gmra.mxu0 %v3693
  %v3905 = vpop.f32.mrf.mxu0
  %v3906 = vadd.f32 %v3545, %v3905
  %3907 = vmatmul.f32.gmra.mxu0 %v3696
  %v3908 = vpop.f32.mrf.mxu0
  %v3909 = vadd.f32 %v3545, %v3908
  %3910 = vmatmul.f32.gmra.mxu0 %v3699
  %v3911 = vpop.f32.mrf.mxu0
  %v3912 = vadd.f32 %v3545, %v3911
  %3913 = vmatmul.f32.gmra.mxu0 %v3702
  %v3914 = vpop.f32.mrf.mxu0
  %v3915 = vadd.f32 %v3545, %v3914
  %3916 = vmatmul.f32.gmra.mxu0 %v3705
  %v3917 = vpop.f32.mrf.mxu0
  %v3918 = vadd.f32 %v3545, %v3917
  %3919 = vmatmul.f32.gmra.mxu0 %v3708
  %v3920 = vpop.f32.mrf.mxu0
  %v3921 = vadd.f32 %v3545, %v3920
  %3922 = vmatmul.f32.gmra.mxu0 %v3711
  %v3923 = vpop.f32.mrf.mxu0
  %v3924 = vadd.f32 %v3545, %v3923
  %3925 = vmatmul.f32.gmra.mxu0 %v3714
  %v3926 = vpop.f32.mrf.mxu0
  %v3927 = vadd.f32 %v3545, %v3926
  %3928 = vmatmul.f32.gmra.mxu0 %v3717
  %v3929 = vpop.f32.mrf.mxu0
  %v3930 = vadd.f32 %v3545, %v3929
  %3931 = vmatmul.f32.gmra.mxu0 %v3720
  %v3932 = vpop.f32.mrf.mxu0
  %v3933 = vadd.f32 %v3545, %v3932
  %3934 = vmatmul.f32.gmra.mxu0 %v3723
  %v3935 = vpop.f32.mrf.mxu0
  %v3936 = vadd.f32 %v3545, %v3935
  %3937 = vmatmul.f32.gmra.mxu0 %v3726
  %v3938 = vpop.f32.mrf.mxu0
  %v3939 = vadd.f32 %v3545, %v3938
  %3940 = vmatmul.f32.gmra.mxu0 %v3729
  %v3941 = vpop.f32.mrf.mxu0
  %v3942 = vadd.f32 %v3545, %v3941
  %3943 = vmatmul.f32.gmra.mxu0 %v3732
  %v3944 = vpop.f32.mrf.mxu0
  %v3945 = vadd.f32 %v3545, %v3944
  %3946 = vmatmul.f32.gmra.mxu0 %v3735
  %v3947 = vpop.f32.mrf.mxu0
  %v3948 = vadd.f32 %v3545, %v3947
  %3949 = vmatmul.f32.gmra.mxu0 %v3738
  %v3950 = vpop.f32.mrf.mxu0
  %v3951 = vadd.f32 %v3545, %v3950
  %3952 = vdwg.mxu0
  %v3953 = vmax.f32 %v3762, 0.0
  %v3954 = vmax.f32 %v3765, 0.0
  %v3955 = vmax.f32 %v3768, 0.0
  %v3956 = vmax.f32 %v3771, 0.0
  %v3957 = vmax.f32 %v3774, 0.0
  %v3958 = vmax.f32 %v3777, 0.0
  %v3959 = vmax.f32 %v3780, 0.0
  %v3960 = vmax.f32 %v3783, 0.0
  %v3961 = vmax.f32 %v3786, 0.0
  %v3962 = vmax.f32 %v3789, 0.0
  %v3963 = vmax.f32 %v3792, 0.0
  %v3964 = vmax.f32 %v3795, 0.0
  %v3965 = vmax.f32 %v3798, 0.0
  %v3966 = vmax.f32 %v3801, 0.0
  %v3967 = vmax.f32 %v3804, 0.0
  %v3968 = vmax.f32 %v3807, 0.0
  %v3969 = vmax.f32 %v3810, 0.0
  %v3970 = vmax.f32 %v3813, 0.0
  %v3971 = vmax.f32 %v3816, 0.0
  %v3972 = vmax.f32 %v3819, 0.0
  %v3973 = vmax.f32 %v3822, 0.0
  %v3974 = vmax.f32 %v3825, 0.0
  %v3975 = vmax.f32 %v3828, 0.0
  %v3976 = vmax.f32 %v3831, 0.0
  %v3977 = vmax.f32 %v3834, 0.0
  %v3978 = vmax.f32 %v3837, 0.0
  %v3979 = vmax.f32 %v3840, 0.0
  %v3980 = vmax.f32 %v3843, 0.0
  %v3981 = vmax.f32 %v3846, 0.0
  %v3982 = vmax.f32 %v3849, 0.0
  %v3983 = vmax.f32 %v3852, 0.0
  %v3984 = vmax.f32 %v3855, 0.0
  %v3985 = vmax.f32 %v3858, 0.0
  %v3986 = vmax.f32 %v3861, 0.0
  %v3987 = vmax.f32 %v3864, 0.0
  %v3988 = vmax.f32 %v3867, 0.0
  %v3989 = vmax.f32 %v3870, 0.0
  %v3990 = vmax.f32 %v3873, 0.0
  %v3991 = vmax.f32 %v3876, 0.0
  %v3992 = vmax.f32 %v3879, 0.0
  %v3993 = vmax.f32 %v3882, 0.0
  %v3994 = vmax.f32 %v3885, 0.0
  %v3995 = vmax.f32 %v3888, 0.0
  %v3996 = vmax.f32 %v3891, 0.0
  %v3997 = vmax.f32 %v3894, 0.0
  %v3998 = vmax.f32 %v3897, 0.0
  %v3999 = vmax.f32 %v3900, 0.0
  %v4000 = vmax.f32 %v3903, 0.0
  %v4001 = vmax.f32 %v3906, 0.0
  %v4002 = vmax.f32 %v3909, 0.0
  %v4003 = vmax.f32 %v3912, 0.0
  %v4004 = vmax.f32 %v3915, 0.0
  %v4005 = vmax.f32 %v3918, 0.0
  %v4006 = vmax.f32 %v3921, 0.0
  %v4007 = vmax.f32 %v3924, 0.0
  %v4008 = vmax.f32 %v3927, 0.0
  %v4009 = vmax.f32 %v3930, 0.0
  %v4010 = vmax.f32 %v3933, 0.0
  %v4011 = vmax.f32 %v3936, 0.0
  %v4012 = vmax.f32 %v3939, 0.0
  %v4013 = vmax.f32 %v3942, 0.0
  %v4014 = vmax.f32 %v3945, 0.0
  %v4015 = vmax.f32 %v3948, 0.0
  %v4016 = vmax.f32 %v3951, 0.0
  %vm4017 = vcmask 64512
  %4018 = vst.msk [vmem:[#allocation3] sm:$0xff] %vm4017, 0.0
  %4019 = vst.msk [vmem:[#allocation3 + $0x8] sm:$0xff] %vm4017, 0.0
  %vm4020 = vcmask 58368
  %4021 = vst.msk [vmem:[#allocation3 + $0x10] sm:$0x3] %vm4020, 0.0
  %4022 = vst.msk [vmem:[#allocation3 + $0x18] sm:$0xff] %vm4017, 0.0
  %4023 = vst.msk [vmem:[#allocation3 + $0x20] sm:$0xff] %vm4017, 0.0
  %4024 = vst.msk [vmem:[#allocation3 + $0x28] sm:$0x3] %vm4020, 0.0
  %4025 = vst.msk [vmem:[#allocation3 + $0x30] sm:$0xff] %vm4017, 0.0
  %4026 = vst.msk [vmem:[#allocation3 + $0x38] sm:$0xff] %vm4017, 0.0
  %4027 = vst.msk [vmem:[#allocation3 + $0x40] sm:$0x3] %vm4020, 0.0
  %4028 = vst.msk [vmem:[#allocation3 + $0x48] sm:$0xff] %vm4017, 0.0
  %4029 = vst.msk [vmem:[#allocation3 + $0x50] sm:$0xff] %vm4017, 0.0
  %4030 = vst.msk [vmem:[#allocation3 + $0x58] sm:$0x3] %vm4020, 0.0
  %4031 = vst.msk [vmem:[#allocation3 + $0x60] sm:$0xff] %vm4017, 0.0
  %4032 = vst.msk [vmem:[#allocation3 + $0x68] sm:$0xff] %vm4017, 0.0
  %4033 = vst.msk [vmem:[#allocation3 + $0x70] sm:$0x3] %vm4020, 0.0
  %4034 = vst.msk [vmem:[#allocation3 + $0x78] sm:$0xff] %vm4017, 0.0
  %4035 = vst.msk [vmem:[#allocation3 + $0x80] sm:$0xff] %vm4017, 0.0
  %4036 = vst.msk [vmem:[#allocation3 + $0x88] sm:$0x3] %vm4020, 0.0
  %4037 = vst.msk [vmem:[#allocation3 + $0x90] sm:$0xff] %vm4017, 0.0
  %4038 = vst.msk [vmem:[#allocation3 + $0x98] sm:$0xff] %vm4017, 0.0
  %4039 = vst.msk [vmem:[#allocation3 + $0xa0] sm:$0x3] %vm4020, 0.0
  %4040 = vst.msk [vmem:[#allocation3 + $0xa8] sm:$0xff] %vm4017, 0.0
  %4041 = vst.msk [vmem:[#allocation3 + $0xb0] sm:$0xff] %vm4017, 0.0
  %4042 = vst.msk [vmem:[#allocation3 + $0xb8] sm:$0x3] %vm4020, 0.0
  %4043 = vst.msk [vmem:[#allocation3 + $0xc0] sm:$0xff] %vm4017, 0.0
  %4044 = vst.msk [vmem:[#allocation3 + $0xc8] sm:$0xff] %vm4017, 0.0
  %4045 = vst.msk [vmem:[#allocation3 + $0xd0] sm:$0x3] %vm4020, 0.0
  %4046 = vst.msk [vmem:[#allocation3 + $0xd8] sm:$0xff] %vm4017, 0.0
  %4047 = vst.msk [vmem:[#allocation3 + $0xe0] sm:$0xff] %vm4017, 0.0
  %4048 = vst.msk [vmem:[#allocation3 + $0xe8] sm:$0x3] %vm4020, 0.0
  %4049 = vst.msk [vmem:[#allocation3 + $0xf0] sm:$0xff] %vm4017, 0.0
  %4050 = vst.msk [vmem:[#allocation3 + $0xf8] sm:$0xff] %vm4017, 0.0
  %4051 = vst.msk [vmem:[#allocation3 + $0x100] sm:$0x3] %vm4020, 0.0
  %4052 = vst.msk [vmem:[#allocation3 + $0x108] sm:$0xff] %vm4017, 0.0
  %4053 = vst.msk [vmem:[#allocation3 + $0x110] sm:$0xff] %vm4017, 0.0
  %4054 = vst.msk [vmem:[#allocation3 + $0x118] sm:$0x3] %vm4020, 0.0
  %4055 = vst.msk [vmem:[#allocation3 + $0x120] sm:$0xff] %vm4017, 0.0
  %4056 = vst.msk [vmem:[#allocation3 + $0x128] sm:$0xff] %vm4017, 0.0
  %4057 = vst.msk [vmem:[#allocation3 + $0x130] sm:$0x3] %vm4020, 0.0
  %4058 = vst.msk [vmem:[#allocation3 + $0x138] sm:$0xff] %vm4017, 0.0
  %4059 = vst.msk [vmem:[#allocation3 + $0x140] sm:$0xff] %vm4017, 0.0
  %4060 = vst.msk [vmem:[#allocation3 + $0x148] sm:$0x3] %vm4020, 0.0
  %4061 = vst.msk [vmem:[#allocation3 + $0x150] sm:$0xff] %vm4017, 0.0
  %4062 = vst.msk [vmem:[#allocation3 + $0x158] sm:$0xff] %vm4017, 0.0
  %4063 = vst.msk [vmem:[#allocation3 + $0x160] sm:$0x3] %vm4020, 0.0
  %4064 = vst.msk [vmem:[#allocation3 + $0x168] sm:$0xff] %vm4017, 0.0
  %4065 = vst.msk [vmem:[#allocation3 + $0x170] sm:$0xff] %vm4017, 0.0
  %4066 = vst.msk [vmem:[#allocation3 + $0x178] sm:$0x3] %vm4020, 0.0
  %4067 = vst.msk [vmem:[#allocation3 + $0x180] sm:$0xff] %vm4017, 0.0
  %4068 = vst.msk [vmem:[#allocation3 + $0x188] sm:$0xff] %vm4017, 0.0
  %4069 = vst.msk [vmem:[#allocation3 + $0x190] sm:$0x3] %vm4020, 0.0
  %4070 = vst.msk [vmem:[#allocation3 + $0x198] sm:$0xff] %vm4017, 0.0
  %4071 = vst.msk [vmem:[#allocation3 + $0x1a0] sm:$0xff] %vm4017, 0.0
  %4072 = vst.msk [vmem:[#allocation3 + $0x1a8] sm:$0x3] %vm4020, 0.0
  %4073 = vst.msk [vmem:[#allocation3 + $0x1b0] sm:$0xff] %vm4017, 0.0
  %4074 = vst.msk [vmem:[#allocation3 + $0x1b8] sm:$0xff] %vm4017, 0.0
  %4075 = vst.msk [vmem:[#allocation3 + $0x1c0] sm:$0x3] %vm4020, 0.0
  %4076 = vst.msk [vmem:[#allocation3 + $0x1c8] sm:$0xff] %vm4017, 0.0
  %4077 = vst.msk [vmem:[#allocation3 + $0x1d0] sm:$0xff] %vm4017, 0.0
  %4078 = vst.msk [vmem:[#allocation3 + $0x1d8] sm:$0x3] %vm4020, 0.0
  %4079 = vst.msk [vmem:[#allocation3 + $0x1e0] sm:$0xff] %vm4017, 0.0
  %4080 = vst.msk [vmem:[#allocation3 + $0x1e8] sm:$0xff] %vm4017, 0.0
  %4081 = vst.msk [vmem:[#allocation3 + $0x1f0] sm:$0x3] %vm4020, 0.0
  %4082 = vst.msk [vmem:[#allocation3 + $0x1f8] sm:$0xff] %vm4017, 0.0
  %4083 = vst.msk [vmem:[#allocation3 + $0x200] sm:$0xff] %vm4017, 0.0
  %4084 = vst.msk [vmem:[#allocation3 + $0x208] sm:$0x3] %vm4020, 0.0
  %4085 = vst.msk [vmem:[#allocation3 + $0x210] sm:$0xff] %vm4017, 0.0
  %4086 = vst.msk [vmem:[#allocation3 + $0x218] sm:$0xff] %vm4017, 0.0
  %4087 = vst.msk [vmem:[#allocation3 + $0x220] sm:$0x3] %vm4020, 0.0
  %4088 = vst.msk [vmem:[#allocation3 + $0x228] sm:$0xff] %vm4017, 0.0
  %4089 = vst.msk [vmem:[#allocation3 + $0x230] sm:$0xff] %vm4017, 0.0
  %4090 = vst.msk [vmem:[#allocation3 + $0x238] sm:$0x3] %vm4020, 0.0
  %4091 = vst.msk [vmem:[#allocation3 + $0x240] sm:$0xff] %vm4017, 0.0
  %4092 = vst.msk [vmem:[#allocation3 + $0x248] sm:$0xff] %vm4017, 0.0
  %4093 = vst.msk [vmem:[#allocation3 + $0x250] sm:$0x3] %vm4020, 0.0
  %4094 = vst.msk [vmem:[#allocation3 + $0x258] sm:$0xff] %vm4017, 0.0
  %4095 = vst.msk [vmem:[#allocation3 + $0x260] sm:$0xff] %vm4017, 0.0
  %4096 = vst.msk [vmem:[#allocation3 + $0x268] sm:$0x3] %vm4020, 0.0
  %4097 = vst.msk [vmem:[#allocation3 + $0x270] sm:$0xff] %vm4017, 0.0
  %4098 = vst.msk [vmem:[#allocation3 + $0x278] sm:$0xff] %vm4017, 0.0
  %4099 = vst.msk [vmem:[#allocation3 + $0x280] sm:$0x3] %vm4020, 0.0
  %4100 = vst.msk [vmem:[#allocation3 + $0x288] sm:$0xff] %vm4017, 0.0
  %4101 = vst.msk [vmem:[#allocation3 + $0x290] sm:$0xff] %vm4017, 0.0
  %4102 = vst.msk [vmem:[#allocation3 + $0x298] sm:$0x3] %vm4020, 0.0
  %4103 = vst.msk [vmem:[#allocation3 + $0x2a0] sm:$0xff] %vm4017, 0.0
  %4104 = vst.msk [vmem:[#allocation3 + $0x2a8] sm:$0xff] %vm4017, 0.0
  %4105 = vst.msk [vmem:[#allocation3 + $0x2b0] sm:$0x3] %vm4020, 0.0
  %4106 = vst.msk [vmem:[#allocation3 + $0x2b8] sm:$0xff] %vm4017, 0.0
  %4107 = vst.msk [vmem:[#allocation3 + $0x2c0] sm:$0xff] %vm4017, 0.0
  %4108 = vst.msk [vmem:[#allocation3 + $0x2c8] sm:$0x3] %vm4020, 0.0
  %4109 = vst.msk [vmem:[#allocation3 + $0x2d0] sm:$0xff] %vm4017, 0.0
  %4110 = vst.msk [vmem:[#allocation3 + $0x2d8] sm:$0xff] %vm4017, 0.0
  %4111 = vst.msk [vmem:[#allocation3 + $0x2e0] sm:$0x3] %vm4020, 0.0
  %4112 = vst.msk [vmem:[#allocation3 + $0x2e8] sm:$0xff] %vm4017, 0.0
  %4113 = vst.msk [vmem:[#allocation3 + $0x2f0] sm:$0xff] %vm4017, 0.0
  %4114 = vst.msk [vmem:[#allocation3 + $0x2f8] sm:$0x3] %vm4020, 0.0
  %4115 = vst.msk [vmem:[#allocation3 + $0x300] sm:$0xff] %vm4017, 0.0
  %4116 = vst.msk [vmem:[#allocation3 + $0x308] sm:$0xff] %vm4017, 0.0
  %4117 = vst.msk [vmem:[#allocation3 + $0x310] sm:$0x3] %vm4020, 0.0
  %4118 = vst.msk [vmem:[#allocation3 + $0x318] sm:$0xff] %vm4017, 0.0
  %4119 = vst.msk [vmem:[#allocation3 + $0x320] sm:$0xff] %vm4017, 0.0
  %4120 = vst.msk [vmem:[#allocation3 + $0x328] sm:$0x3] %vm4020, 0.0
  %4121 = vst.msk [vmem:[#allocation3 + $0x330] sm:$0xff] %vm4017, 0.0
  %4122 = vst.msk [vmem:[#allocation3 + $0x338] sm:$0xff] %vm4017, 0.0
  %4123 = vst.msk [vmem:[#allocation3 + $0x340] sm:$0x3] %vm4020, 0.0
  %4124 = vst.msk [vmem:[#allocation3 + $0x348] sm:$0xff] %vm4017, 0.0
  %4125 = vst.msk [vmem:[#allocation3 + $0x350] sm:$0xff] %vm4017, 0.0
  %4126 = vst.msk [vmem:[#allocation3 + $0x358] sm:$0x3] %vm4020, 0.0
  %s4127 = scalar_lea.vmem [#allocation3], 24
  %4128 = vst.msk [vmem:[%s4127 + $0x1] sm:$0xff] %vm4017, %v3953
  %4129 = vst.msk [vmem:[%s4127 + $0x9] sm:$0xff] %vm4017, %v3954
  %4130 = vst.msk [vmem:[%s4127 + $0x19] sm:$0xff] %vm4017, %v3955
  %4131 = vst.msk [vmem:[%s4127 + $0x21] sm:$0xff] %vm4017, %v3956
  %4132 = vst.msk [vmem:[%s4127 + $0x31] sm:$0xff] %vm4017, %v3957
  %4133 = vst.msk [vmem:[%s4127 + $0x39] sm:$0xff] %vm4017, %v3958
  %4134 = vst.msk [vmem:[%s4127 + $0x49] sm:$0xff] %vm4017, %v3959
  %4135 = vst.msk [vmem:[%s4127 + $0x51] sm:$0xff] %vm4017, %v3960
  %4136 = vst.msk [vmem:[%s4127 + $0x61] sm:$0xff] %vm4017, %v3961
  %4137 = vst.msk [vmem:[%s4127 + $0x69] sm:$0xff] %vm4017, %v3962
  %4138 = vst.msk [vmem:[%s4127 + $0x79] sm:$0xff] %vm4017, %v3963
  %4139 = vst.msk [vmem:[%s4127 + $0x81] sm:$0xff] %vm4017, %v3964
  %4140 = vst.msk [vmem:[%s4127 + $0x91] sm:$0xff] %vm4017, %v3965
  %4141 = vst.msk [vmem:[%s4127 + $0x99] sm:$0xff] %vm4017, %v3966
  %4142 = vst.msk [vmem:[%s4127 + $0xa9] sm:$0xff] %vm4017, %v3967
  %4143 = vst.msk [vmem:[%s4127 + $0xb1] sm:$0xff] %vm4017, %v3968
  %4144 = vst.msk [vmem:[%s4127 + $0xc1] sm:$0xff] %vm4017, %v3969
  %4145 = vst.msk [vmem:[%s4127 + $0xc9] sm:$0xff] %vm4017, %v3970
  %4146 = vst.msk [vmem:[%s4127 + $0xd9] sm:$0xff] %vm4017, %v3971
  %4147 = vst.msk [vmem:[%s4127 + $0xe1] sm:$0xff] %vm4017, %v3972
  %4148 = vst.msk [vmem:[%s4127 + $0xf1] sm:$0xff] %vm4017, %v3973
  %4149 = vst.msk [vmem:[%s4127 + $0xf9] sm:$0xff] %vm4017, %v3974
  %4150 = vst.msk [vmem:[%s4127 + $0x109] sm:$0xff] %vm4017, %v3975
  %4151 = vst.msk [vmem:[%s4127 + $0x111] sm:$0xff] %vm4017, %v3976
  %4152 = vst.msk [vmem:[%s4127 + $0x121] sm:$0xff] %vm4017, %v3977
  %4153 = vst.msk [vmem:[%s4127 + $0x129] sm:$0xff] %vm4017, %v3978
  %4154 = vst.msk [vmem:[%s4127 + $0x139] sm:$0xff] %vm4017, %v3979
  %4155 = vst.msk [vmem:[%s4127 + $0x141] sm:$0xff] %vm4017, %v3980
  %4156 = vst.msk [vmem:[%s4127 + $0x151] sm:$0xff] %vm4017, %v3981
  %4157 = vst.msk [vmem:[%s4127 + $0x159] sm:$0xff] %vm4017, %v3982
  %4158 = vst.msk [vmem:[%s4127 + $0x169] sm:$0xff] %vm4017, %v3983
  %4159 = vst.msk [vmem:[%s4127 + $0x171] sm:$0xff] %vm4017, %v3984
  %4160 = vst.msk [vmem:[%s4127 + $0x1b1] sm:$0xff] %vm4017, %v3985
  %4161 = vst.msk [vmem:[%s4127 + $0x1b9] sm:$0xff] %vm4017, %v3986
  %4162 = vst.msk [vmem:[%s4127 + $0x1c9] sm:$0xff] %vm4017, %v3987
  %4163 = vst.msk [vmem:[%s4127 + $0x1d1] sm:$0xff] %vm4017, %v3988
  %4164 = vst.msk [vmem:[%s4127 + $0x1e1] sm:$0xff] %vm4017, %v3989
  %4165 = vst.msk [vmem:[%s4127 + $0x1e9] sm:$0xff] %vm4017, %v3990
  %4166 = vst.msk [vmem:[%s4127 + $0x1f9] sm:$0xff] %vm4017, %v3991
  %4167 = vst.msk [vmem:[%s4127 + $0x201] sm:$0xff] %vm4017, %v3992
  %4168 = vst.msk [vmem:[%s4127 + $0x211] sm:$0xff] %vm4017, %v3993
  %4169 = vst.msk [vmem:[%s4127 + $0x219] sm:$0xff] %vm4017, %v3994
  %4170 = vst.msk [vmem:[%s4127 + $0x229] sm:$0xff] %vm4017, %v3995
  %4171 = vst.msk [vmem:[%s4127 + $0x231] sm:$0xff] %vm4017, %v3996
  %4172 = vst.msk [vmem:[%s4127 + $0x241] sm:$0xff] %vm4017, %v3997
  %4173 = vst.msk [vmem:[%s4127 + $0x249] sm:$0xff] %vm4017, %v3998
  %4174 = vst.msk [vmem:[%s4127 + $0x259] sm:$0xff] %vm4017, %v3999
  %4175 = vst.msk [vmem:[%s4127 + $0x261] sm:$0xff] %vm4017, %v4000
  %4176 = vst.msk [vmem:[%s4127 + $0x271] sm:$0xff] %vm4017, %v4001
  %4177 = vst.msk [vmem:[%s4127 + $0x279] sm:$0xff] %vm4017, %v4002
  %4178 = vst.msk [vmem:[%s4127 + $0x289] sm:$0xff] %vm4017, %v4003
  %4179 = vst.msk [vmem:[%s4127 + $0x291] sm:$0xff] %vm4017, %v4004
  %4180 = vst.msk [vmem:[%s4127 + $0x2a1] sm:$0xff] %vm4017, %v4005
  %4181 = vst.msk [vmem:[%s4127 + $0x2a9] sm:$0xff] %vm4017, %v4006
  %4182 = vst.msk [vmem:[%s4127 + $0x2b9] sm:$0xff] %vm4017, %v4007
  %4183 = vst.msk [vmem:[%s4127 + $0x2c1] sm:$0xff] %vm4017, %v4008
  %4184 = vst.msk [vmem:[%s4127 + $0x2d1] sm:$0xff] %vm4017, %v4009
  %4185 = vst.msk [vmem:[%s4127 + $0x2d9] sm:$0xff] %vm4017, %v4010
  %4186 = vst.msk [vmem:[%s4127 + $0x2e9] sm:$0xff] %vm4017, %v4011
  %4187 = vst.msk [vmem:[%s4127 + $0x2f1] sm:$0xff] %vm4017, %v4012
  %4188 = vst.msk [vmem:[%s4127 + $0x301] sm:$0xff] %vm4017, %v4013
  %4189 = vst.msk [vmem:[%s4127 + $0x309] sm:$0xff] %vm4017, %v4014
  %4190 = vst.msk [vmem:[%s4127 + $0x319] sm:$0xff] %vm4017, %v4015
  %4191 = vst.msk [vmem:[%s4127 + $0x321] sm:$0xff] %vm4017, %v4016
  %v4192 = vld [vmem:[#allocation3] sm:$0xff]
  %v4193 = vld [vmem:[#allocation3 + $0x8] sm:$0xff]
  %v4194 = vld [vmem:[#allocation3 + $0x18] sm:$0xff]
  %v4195 = vld [vmem:[#allocation3 + $0x20] sm:$0xff]
  %v4196 = vld [vmem:[#allocation3 + $0x30] sm:$0xff]
  %v4197 = vld [vmem:[#allocation3 + $0x38] sm:$0xff]
  %v4198 = vld [vmem:[#allocation3 + $0x48] sm:$0xff]
  %v4199 = vld [vmem:[#allocation3 + $0x50] sm:$0xff]
  %v4200 = vld [vmem:[#allocation3 + $0x60] sm:$0xff]
  %v4201 = vld [vmem:[#allocation3 + $0x68] sm:$0xff]
  %v4202 = vld [vmem:[#allocation3 + $0x78] sm:$0xff]
  %v4203 = vld [vmem:[#allocation3 + $0x80] sm:$0xff]
  %v4204 = vld [vmem:[#allocation3 + $0x90] sm:$0xff]
  %v4205 = vld [vmem:[#allocation3 + $0x98] sm:$0xff]
  %v4206 = vld [vmem:[#allocation3 + $0xa8] sm:$0xff]
  %v4207 = vld [vmem:[#allocation3 + $0xb0] sm:$0xff]
  %v4208 = vld [vmem:[#allocation3 + $0xc0] sm:$0xff]
  %v4209 = vld [vmem:[#allocation3 + $0xc8] sm:$0xff]
  %v4210 = vld [vmem:[#allocation3 + $0xd8] sm:$0xff]
  %v4211 = vld [vmem:[#allocation3 + $0xe0] sm:$0xff]
  %v4212 = vld [vmem:[#allocation3 + $0xf0] sm:$0xff]
  %v4213 = vld [vmem:[#allocation3 + $0xf8] sm:$0xff]
  %v4214 = vld [vmem:[#allocation3 + $0x108] sm:$0xff]
  %v4215 = vld [vmem:[#allocation3 + $0x110] sm:$0xff]
  %v4216 = vld [vmem:[#allocation3 + $0x120] sm:$0xff]
  %v4217 = vld [vmem:[#allocation3 + $0x128] sm:$0xff]
  %v4218 = vld [vmem:[#allocation3 + $0x138] sm:$0xff]
  %v4219 = vld [vmem:[#allocation3 + $0x140] sm:$0xff]
  %v4220 = vld [vmem:[#allocation3 + $0x150] sm:$0xff]
  %v4221 = vld [vmem:[#allocation3 + $0x158] sm:$0xff]
  %v4222 = vld [vmem:[#allocation3 + $0x168] sm:$0xff]
  %v4223 = vld [vmem:[#allocation3 + $0x170] sm:$0xff]
  %v4224 = vld [vmem:[#allocation3 + $0x1b0] sm:$0xff]
  %v4225 = vld [vmem:[#allocation3 + $0x1b8] sm:$0xff]
  %v4226 = vld [vmem:[#allocation3 + $0x1c8] sm:$0xff]
  %v4227 = vld [vmem:[#allocation3 + $0x1d0] sm:$0xff]
  %v4228 = vld [vmem:[#allocation3 + $0x1e0] sm:$0xff]
  %v4229 = vld [vmem:[#allocation3 + $0x1e8] sm:$0xff]
  %v4230 = vld [vmem:[#allocation3 + $0x1f8] sm:$0xff]
  %v4231 = vld [vmem:[#allocation3 + $0x200] sm:$0xff]
  %v4232 = vld [vmem:[#allocation3 + $0x210] sm:$0xff]
  %v4233 = vld [vmem:[#allocation3 + $0x218] sm:$0xff]
  %v4234 = vld [vmem:[#allocation3 + $0x228] sm:$0xff]
  %v4235 = vld [vmem:[#allocation3 + $0x230] sm:$0xff]
  %v4236 = vld [vmem:[#allocation3 + $0x240] sm:$0xff]
  %v4237 = vld [vmem:[#allocation3 + $0x248] sm:$0xff]
  %v4238 = vld [vmem:[#allocation3 + $0x258] sm:$0xff]
  %v4239 = vld [vmem:[#allocation3 + $0x260] sm:$0xff]
  %v4240 = vld [vmem:[#allocation3 + $0x270] sm:$0xff]
  %v4241 = vld [vmem:[#allocation3 + $0x278] sm:$0xff]
  %v4242 = vld [vmem:[#allocation3 + $0x288] sm:$0xff]
  %v4243 = vld [vmem:[#allocation3 + $0x290] sm:$0xff]
  %v4244 = vld [vmem:[#allocation3 + $0x2a0] sm:$0xff]
  %v4245 = vld [vmem:[#allocation3 + $0x2a8] sm:$0xff]
  %v4246 = vld [vmem:[#allocation3 + $0x2b8] sm:$0xff]
  %v4247 = vld [vmem:[#allocation3 + $0x2c0] sm:$0xff]
  %v4248 = vld [vmem:[#allocation3 + $0x2d0] sm:$0xff]
  %v4249 = vld [vmem:[#allocation3 + $0x2d8] sm:$0xff]
  %v4250 = vld [vmem:[#allocation3 + $0x2e8] sm:$0xff]
  %v4251 = vld [vmem:[#allocation3 + $0x2f0] sm:$0xff]
  %v4252 = vld [vmem:[#allocation3 + $0x300] sm:$0xff]
  %v4253 = vld [vmem:[#allocation3 + $0x308] sm:$0xff]
  %v4254 = vld [vmem:[#allocation3 + $0x318] sm:$0xff]
  %v4255 = vld [vmem:[#allocation3 + $0x320] sm:$0xff]
  %4256 = vst.msk [vmem:[#allocation4] sm:$0xff] %vm4017, %v4192
  %4257 = vst.msk [vmem:[#allocation4 + $0x8] sm:$0xff] %vm4017, %v4193
  %4258 = vst.msk [vmem:[#allocation4 + $0x10] sm:$0xff] %vm4017, %v4194
  %4259 = vst.msk [vmem:[#allocation4 + $0x18] sm:$0xff] %vm4017, %v4195
  %4260 = vst.msk [vmem:[#allocation4 + $0x20] sm:$0xff] %vm4017, %v4196
  %4261 = vst.msk [vmem:[#allocation4 + $0x28] sm:$0xff] %vm4017, %v4197
  %4262 = vst.msk [vmem:[#allocation4 + $0x30] sm:$0xff] %vm4017, %v4198
  %4263 = vst.msk [vmem:[#allocation4 + $0x38] sm:$0xff] %vm4017, %v4199
  %4264 = vst.msk [vmem:[#allocation4 + $0x40] sm:$0xff] %vm4017, %v4200
  %4265 = vst.msk [vmem:[#allocation4 + $0x48] sm:$0xff] %vm4017, %v4201
  %4266 = vst.msk [vmem:[#allocation4 + $0x50] sm:$0xff] %vm4017, %v4202
  %4267 = vst.msk [vmem:[#allocation4 + $0x58] sm:$0xff] %vm4017, %v4203
  %4268 = vst.msk [vmem:[#allocation4 + $0x60] sm:$0xff] %vm4017, %v4204
  %4269 = vst.msk [vmem:[#allocation4 + $0x68] sm:$0xff] %vm4017, %v4205
  %4270 = vst.msk [vmem:[#allocation4 + $0x70] sm:$0xff] %vm4017, %v4206
  %4271 = vst.msk [vmem:[#allocation4 + $0x78] sm:$0xff] %vm4017, %v4207
  %4272 = vst.msk [vmem:[#allocation4 + $0x80] sm:$0xff] %vm4017, %v4208
  %4273 = vst.msk [vmem:[#allocation4 + $0x88] sm:$0xff] %vm4017, %v4209
  %4274 = vst.msk [vmem:[#allocation4 + $0x90] sm:$0xff] %vm4017, %v4210
  %4275 = vst.msk [vmem:[#allocation4 + $0x98] sm:$0xff] %vm4017, %v4211
  %4276 = vst.msk [vmem:[#allocation4 + $0xa0] sm:$0xff] %vm4017, %v4212
  %4277 = vst.msk [vmem:[#allocation4 + $0xa8] sm:$0xff] %vm4017, %v4213
  %4278 = vst.msk [vmem:[#allocation4 + $0xb0] sm:$0xff] %vm4017, %v4214
  %4279 = vst.msk [vmem:[#allocation4 + $0xb8] sm:$0xff] %vm4017, %v4215
  %4280 = vst.msk [vmem:[#allocation4 + $0xc0] sm:$0xff] %vm4017, %v4216
  %4281 = vst.msk [vmem:[#allocation4 + $0xc8] sm:$0xff] %vm4017, %v4217
  %4282 = vst.msk [vmem:[#allocation4 + $0xd0] sm:$0xff] %vm4017, %v4218
  %4283 = vst.msk [vmem:[#allocation4 + $0xd8] sm:$0xff] %vm4017, %v4219
  %4284 = vst.msk [vmem:[#allocation4 + $0xe0] sm:$0xff] %vm4017, %v4220
  %4285 = vst.msk [vmem:[#allocation4 + $0xe8] sm:$0xff] %vm4017, %v4221
  %4286 = vst.msk [vmem:[#allocation4 + $0xf0] sm:$0xff] %vm4017, %v4222
  %4287 = vst.msk [vmem:[#allocation4 + $0xf8] sm:$0xff] %vm4017, %v4223
  %4288 = vst.msk [vmem:[#allocation4 + $0x100] sm:$0xff] %vm4017, %v4224
  %4289 = vst.msk [vmem:[#allocation4 + $0x108] sm:$0xff] %vm4017, %v4225
  %4290 = vst.msk [vmem:[#allocation4 + $0x110] sm:$0xff] %vm4017, %v4226
  %4291 = vst.msk [vmem:[#allocation4 + $0x118] sm:$0xff] %vm4017, %v4227
  %4292 = vst.msk [vmem:[#allocation4 + $0x120] sm:$0xff] %vm4017, %v4228
  %4293 = vst.msk [vmem:[#allocation4 + $0x128] sm:$0xff] %vm4017, %v4229
  %4294 = vst.msk [vmem:[#allocation4 + $0x130] sm:$0xff] %vm4017, %v4230
  %4295 = vst.msk [vmem:[#allocation4 + $0x138] sm:$0xff] %vm4017, %v4231
  %4296 = vst.msk [vmem:[#allocation4 + $0x140] sm:$0xff] %vm4017, %v4232
  %4297 = vst.msk [vmem:[#allocation4 + $0x148] sm:$0xff] %vm4017, %v4233
  %4298 = vst.msk [vmem:[#allocation4 + $0x150] sm:$0xff] %vm4017, %v4234
  %4299 = vst.msk [vmem:[#allocation4 + $0x158] sm:$0xff] %vm4017, %v4235
  %4300 = vst.msk [vmem:[#allocation4 + $0x160] sm:$0xff] %vm4017, %v4236
  %4301 = vst.msk [vmem:[#allocation4 + $0x168] sm:$0xff] %vm4017, %v4237
  %4302 = vst.msk [vmem:[#allocation4 + $0x170] sm:$0xff] %vm4017, %v4238
  %4303 = vst.msk [vmem:[#allocation4 + $0x178] sm:$0xff] %vm4017, %v4239
  %4304 = vst.msk [vmem:[#allocation4 + $0x180] sm:$0xff] %vm4017, %v4240
  %4305 = vst.msk [vmem:[#allocation4 + $0x188] sm:$0xff] %vm4017, %v4241
  %4306 = vst.msk [vmem:[#allocation4 + $0x190] sm:$0xff] %vm4017, %v4242
  %4307 = vst.msk [vmem:[#allocation4 + $0x198] sm:$0xff] %vm4017, %v4243
  %4308 = vst.msk [vmem:[#allocation4 + $0x1a0] sm:$0xff] %vm4017, %v4244
  %4309 = vst.msk [vmem:[#allocation4 + $0x1a8] sm:$0xff] %vm4017, %v4245
  %4310 = vst.msk [vmem:[#allocation4 + $0x1b0] sm:$0xff] %vm4017, %v4246
  %4311 = vst.msk [vmem:[#allocation4 + $0x1b8] sm:$0xff] %vm4017, %v4247
  %4312 = vst.msk [vmem:[#allocation4 + $0x1c0] sm:$0xff] %vm4017, %v4248
  %4313 = vst.msk [vmem:[#allocation4 + $0x1c8] sm:$0xff] %vm4017, %v4249
  %4314 = vst.msk [vmem:[#allocation4 + $0x1d0] sm:$0xff] %vm4017, %v4250
  %4315 = vst.msk [vmem:[#allocation4 + $0x1d8] sm:$0xff] %vm4017, %v4251
  %4316 = vst.msk [vmem:[#allocation4 + $0x1e0] sm:$0xff] %vm4017, %v4252
  %4317 = vst.msk [vmem:[#allocation4 + $0x1e8] sm:$0xff] %vm4017, %v4253
  %4318 = vst.msk [vmem:[#allocation4 + $0x1f0] sm:$0xff] %vm4017, %v4254
  %4319 = vst.msk [vmem:[#allocation4 + $0x1f8] sm:$0xff] %vm4017, %v4255
  %v4320 = vld [vmem:[#allocation3 + $0x1] sm:$0xff]
  %v4321 = vld [vmem:[#allocation3 + $0x9] sm:$0xff]
  %v4322 = vld [vmem:[#allocation3 + $0x19] sm:$0xff]
  %v4323 = vld [vmem:[#allocation3 + $0x21] sm:$0xff]
  %v4324 = vld [vmem:[#allocation3 + $0x31] sm:$0xff]
  %v4325 = vld [vmem:[#allocation3 + $0x39] sm:$0xff]
  %v4326 = vld [vmem:[#allocation3 + $0x49] sm:$0xff]
  %v4327 = vld [vmem:[#allocation3 + $0x51] sm:$0xff]
  %v4328 = vld [vmem:[#allocation3 + $0x61] sm:$0xff]
  %v4329 = vld [vmem:[#allocation3 + $0x69] sm:$0xff]
  %v4330 = vld [vmem:[#allocation3 + $0x79] sm:$0xff]
  %v4331 = vld [vmem:[#allocation3 + $0x81] sm:$0xff]
  %v4332 = vld [vmem:[#allocation3 + $0x91] sm:$0xff]
  %v4333 = vld [vmem:[#allocation3 + $0x99] sm:$0xff]
  %v4334 = vld [vmem:[#allocation3 + $0xa9] sm:$0xff]
  %v4335 = vld [vmem:[#allocation3 + $0xb1] sm:$0xff]
  %v4336 = vld [vmem:[#allocation3 + $0xc1] sm:$0xff]
  %v4337 = vld [vmem:[#allocation3 + $0xc9] sm:$0xff]
  %v4338 = vld [vmem:[#allocation3 + $0xd9] sm:$0xff]
  %v4339 = vld [vmem:[#allocation3 + $0xe1] sm:$0xff]
  %v4340 = vld [vmem:[#allocation3 + $0xf1] sm:$0xff]
  %v4341 = vld [vmem:[#allocation3 + $0xf9] sm:$0xff]
  %v4342 = vld [vmem:[#allocation3 + $0x109] sm:$0xff]
  %v4343 = vld [vmem:[#allocation3 + $0x111] sm:$0xff]
  %v4344 = vld [vmem:[#allocation3 + $0x121] sm:$0xff]
  %v4345 = vld [vmem:[#allocation3 + $0x129] sm:$0xff]
  %v4346 = vld [vmem:[#allocation3 + $0x139] sm:$0xff]
  %v4347 = vld [vmem:[#allocation3 + $0x141] sm:$0xff]
  %v4348 = vld [vmem:[#allocation3 + $0x151] sm:$0xff]
  %v4349 = vld [vmem:[#allocation3 + $0x159] sm:$0xff]
  %v4350 = vld [vmem:[#allocation3 + $0x169] sm:$0xff]
  %v4351 = vld [vmem:[#allocation3 + $0x171] sm:$0xff]
  %v4352 = vld [vmem:[#allocation3 + $0x1b1] sm:$0xff]
  %v4353 = vld [vmem:[#allocation3 + $0x1b9] sm:$0xff]
  %v4354 = vld [vmem:[#allocation3 + $0x1c9] sm:$0xff]
  %v4355 = vld [vmem:[#allocation3 + $0x1d1] sm:$0xff]
  %v4356 = vld [vmem:[#allocation3 + $0x1e1] sm:$0xff]
  %v4357 = vld [vmem:[#allocation3 + $0x1e9] sm:$0xff]
  %v4358 = vld [vmem:[#allocation3 + $0x1f9] sm:$0xff]
  %v4359 = vld [vmem:[#allocation3 + $0x201] sm:$0xff]
  %v4360 = vld [vmem:[#allocation3 + $0x211] sm:$0xff]
  %v4361 = vld [vmem:[#allocation3 + $0x219] sm:$0xff]
  %v4362 = vld [vmem:[#allocation3 + $0x229] sm:$0xff]
  %v4363 = vld [vmem:[#allocation3 + $0x231] sm:$0xff]
  %v4364 = vld [vmem:[#allocation3 + $0x241] sm:$0xff]
  %v4365 = vld [vmem:[#allocation3 + $0x249] sm:$0xff]
  %v4366 = vld [vmem:[#allocation3 + $0x259] sm:$0xff]
  %v4367 = vld [vmem:[#allocation3 + $0x261] sm:$0xff]
  %v4368 = vld [vmem:[#allocation3 + $0x271] sm:$0xff]
  %v4369 = vld [vmem:[#allocation3 + $0x279] sm:$0xff]
  %v4370 = vld [vmem:[#allocation3 + $0x289] sm:$0xff]
  %v4371 = vld [vmem:[#allocation3 + $0x291] sm:$0xff]
  %v4372 = vld [vmem:[#allocation3 + $0x2a1] sm:$0xff]
  %v4373 = vld [vmem:[#allocation3 + $0x2a9] sm:$0xff]
  %v4374 = vld [vmem:[#allocation3 + $0x2b9] sm:$0xff]
  %v4375 = vld [vmem:[#allocation3 + $0x2c1] sm:$0xff]
  %v4376 = vld [vmem:[#allocation3 + $0x2d1] sm:$0xff]
  %v4377 = vld [vmem:[#allocation3 + $0x2d9] sm:$0xff]
  %v4378 = vld [vmem:[#allocation3 + $0x2e9] sm:$0xff]
  %v4379 = vld [vmem:[#allocation3 + $0x2f1] sm:$0xff]
  %v4380 = vld [vmem:[#allocation3 + $0x301] sm:$0xff]
  %v4381 = vld [vmem:[#allocation3 + $0x309] sm:$0xff]
  %v4382 = vld [vmem:[#allocation3 + $0x319] sm:$0xff]
  %v4383 = vld [vmem:[#allocation3 + $0x321] sm:$0xff]
  %4448 = vrot.lane.b32.xlu0 %v4320, 8
  %v4449 = vpop.permute.xlu0 %4448
  %4450 = vrot.lane.b32.xlu0 %v4321, 8
  %v4451 = vpop.permute.xlu0 %4450
  %4452 = vrot.lane.b32.xlu0 %v4322, 8
  %v4453 = vpop.permute.xlu0 %4452
  %4454 = vrot.lane.b32.xlu0 %v4323, 8
  %v4455 = vpop.permute.xlu0 %4454
  %4456 = vrot.lane.b32.xlu0 %v4324, 8
  %v4457 = vpop.permute.xlu0 %4456
  %4458 = vrot.lane.b32.xlu0 %v4325, 8
  %v4459 = vpop.permute.xlu0 %4458
  %4460 = vrot.lane.b32.xlu0 %v4326, 8
  %v4461 = vpop.permute.xlu0 %4460
  %4462 = vrot.lane.b32.xlu0 %v4327, 8
  %v4463 = vpop.permute.xlu0 %4462
  %4464 = vrot.lane.b32.xlu0 %v4328, 8
  %v4465 = vpop.permute.xlu0 %4464
  %4466 = vrot.lane.b32.xlu0 %v4329, 8
  %v4467 = vpop.permute.xlu0 %4466
  %4468 = vrot.lane.b32.xlu0 %v4330, 8
  %v4469 = vpop.permute.xlu0 %4468
  %4470 = vrot.lane.b32.xlu0 %v4331, 8
  %v4471 = vpop.permute.xlu0 %4470
  %4472 = vrot.lane.b32.xlu0 %v4332, 8
  %v4473 = vpop.permute.xlu0 %4472
  %4474 = vrot.lane.b32.xlu0 %v4333, 8
  %v4475 = vpop.permute.xlu0 %4474
  %4476 = vrot.lane.b32.xlu0 %v4334, 8
  %v4477 = vpop.permute.xlu0 %4476
  %4478 = vrot.lane.b32.xlu0 %v4335, 8
  %v4479 = vpop.permute.xlu0 %4478
  %4480 = vrot.lane.b32.xlu0 %v4336, 8
  %v4481 = vpop.permute.xlu0 %4480
  %4482 = vrot.lane.b32.xlu0 %v4337, 8
  %v4483 = vpop.permute.xlu0 %4482
  %4484 = vrot.lane.b32.xlu0 %v4338, 8
  %v4485 = vpop.permute.xlu0 %4484
  %4486 = vrot.lane.b32.xlu0 %v4339, 8
  %v4487 = vpop.permute.xlu0 %4486
  %4488 = vrot.lane.b32.xlu0 %v4340, 8
  %v4489 = vpop.permute.xlu0 %4488
  %4490 = vrot.lane.b32.xlu0 %v4341, 8
  %v4491 = vpop.permute.xlu0 %4490
  %4492 = vrot.lane.b32.xlu0 %v4342, 8
  %v4493 = vpop.permute.xlu0 %4492
  %4494 = vrot.lane.b32.xlu0 %v4343, 8
  %v4495 = vpop.permute.xlu0 %4494
  %4496 = vrot.lane.b32.xlu0 %v4344, 8
  %v4497 = vpop.permute.xlu0 %4496
  %4498 = vrot.lane.b32.xlu0 %v4345, 8
  %v4499 = vpop.permute.xlu0 %4498
  %4500 = vrot.lane.b32.xlu0 %v4346, 8
  %v4501 = vpop.permute.xlu0 %4500
  %4502 = vrot.lane.b32.xlu0 %v4347, 8
  %v4503 = vpop.permute.xlu0 %4502
  %4504 = vrot.lane.b32.xlu0 %v4348, 8
  %v4505 = vpop.permute.xlu0 %4504
  %4506 = vrot.lane.b32.xlu0 %v4349, 8
  %v4507 = vpop.permute.xlu0 %4506
  %4508 = vrot.lane.b32.xlu0 %v4350, 8
  %v4509 = vpop.permute.xlu0 %4508
  %4510 = vrot.lane.b32.xlu0 %v4351, 8
  %v4511 = vpop.permute.xlu0 %4510
  %4512 = vrot.lane.b32.xlu0 %v4352, 8
  %v4513 = vpop.permute.xlu0 %4512
  %4514 = vrot.lane.b32.xlu0 %v4353, 8
  %v4515 = vpop.permute.xlu0 %4514
  %4516 = vrot.lane.b32.xlu0 %v4354, 8
  %v4517 = vpop.permute.xlu0 %4516
  %4518 = vrot.lane.b32.xlu0 %v4355, 8
  %v4519 = vpop.permute.xlu0 %4518
  %4520 = vrot.lane.b32.xlu0 %v4356, 8
  %v4521 = vpop.permute.xlu0 %4520
  %4522 = vrot.lane.b32.xlu0 %v4357, 8
  %v4523 = vpop.permute.xlu0 %4522
  %4524 = vrot.lane.b32.xlu0 %v4358, 8
  %v4525 = vpop.permute.xlu0 %4524
  %4526 = vrot.lane.b32.xlu0 %v4359, 8
  %v4527 = vpop.permute.xlu0 %4526
  %4528 = vrot.lane.b32.xlu0 %v4360, 8
  %v4529 = vpop.permute.xlu0 %4528
  %4530 = vrot.lane.b32.xlu0 %v4361, 8
  %v4531 = vpop.permute.xlu0 %4530
  %4532 = vrot.lane.b32.xlu0 %v4362, 8
  %v4533 = vpop.permute.xlu0 %4532
  %4534 = vrot.lane.b32.xlu0 %v4363, 8
  %v4535 = vpop.permute.xlu0 %4534
  %4536 = vrot.lane.b32.xlu0 %v4364, 8
  %v4537 = vpop.permute.xlu0 %4536
  %4538 = vrot.lane.b32.xlu0 %v4365, 8
  %v4539 = vpop.permute.xlu0 %4538
  %4540 = vrot.lane.b32.xlu0 %v4366, 8
  %v4541 = vpop.permute.xlu0 %4540
  %4542 = vrot.lane.b32.xlu0 %v4367, 8
  %v4543 = vpop.permute.xlu0 %4542
  %4544 = vrot.lane.b32.xlu0 %v4368, 8
  %v4545 = vpop.permute.xlu0 %4544
  %4546 = vrot.lane.b32.xlu0 %v4369, 8
  %v4547 = vpop.permute.xlu0 %4546
  %4548 = vrot.lane.b32.xlu0 %v4370, 8
  %v4549 = vpop.permute.xlu0 %4548
  %4550 = vrot.lane.b32.xlu0 %v4371, 8
  %v4551 = vpop.permute.xlu0 %4550
  %4552 = vrot.lane.b32.xlu0 %v4372, 8
  %v4553 = vpop.permute.xlu0 %4552
  %4554 = vrot.lane.b32.xlu0 %v4373, 8
  %v4555 = vpop.permute.xlu0 %4554
  %4556 = vrot.lane.b32.xlu0 %v4374, 8
  %v4557 = vpop.permute.xlu0 %4556
  %4558 = vrot.lane.b32.xlu0 %v4375, 8
  %v4559 = vpop.permute.xlu0 %4558
  %4560 = vrot.lane.b32.xlu0 %v4376, 8
  %v4561 = vpop.permute.xlu0 %4560
  %4562 = vrot.lane.b32.xlu0 %v4377, 8
  %v4563 = vpop.permute.xlu0 %4562
  %4564 = vrot.lane.b32.xlu0 %v4378, 8
  %v4565 = vpop.permute.xlu0 %4564
  %4566 = vrot.lane.b32.xlu0 %v4379, 8
  %v4567 = vpop.permute.xlu0 %4566
  %4568 = vrot.lane.b32.xlu0 %v4380, 8
  %v4569 = vpop.permute.xlu0 %4568
  %4570 = vrot.lane.b32.xlu0 %v4381, 8
  %v4571 = vpop.permute.xlu0 %4570
  %4572 = vrot.lane.b32.xlu0 %v4382, 8
  %v4573 = vpop.permute.xlu0 %4572
  %4574 = vrot.lane.b32.xlu0 %v4383, 8
  %v4575 = vpop.permute.xlu0 %4574
  %vm4640 = vcmask 130112
  %4641 = vst.msk [vmem:[#allocation4] sm:$0xff] %vm4640, %v4449
  %4642 = vst.msk [vmem:[#allocation4 + $0x8] sm:$0xff] %vm4640, %v4451
  %4643 = vst.msk [vmem:[#allocation4 + $0x10] sm:$0xff] %vm4640, %v4453
  %4644 = vst.msk [vmem:[#allocation4 + $0x18] sm:$0xff] %vm4640, %v4455
  %4645 = vst.msk [vmem:[#allocation4 + $0x20] sm:$0xff] %vm4640, %v4457
  %4646 = vst.msk [vmem:[#allocation4 + $0x28] sm:$0xff] %vm4640, %v4459
  %4647 = vst.msk [vmem:[#allocation4 + $0x30] sm:$0xff] %vm4640, %v4461
  %4648 = vst.msk [vmem:[#allocation4 + $0x38] sm:$0xff] %vm4640, %v4463
  %4649 = vst.msk [vmem:[#allocation4 + $0x40] sm:$0xff] %vm4640, %v4465
  %4650 = vst.msk [vmem:[#allocation4 + $0x48] sm:$0xff] %vm4640, %v4467
  %4651 = vst.msk [vmem:[#allocation4 + $0x50] sm:$0xff] %vm4640, %v4469
  %4652 = vst.msk [vmem:[#allocation4 + $0x58] sm:$0xff] %vm4640, %v4471
  %4653 = vst.msk [vmem:[#allocation4 + $0x60] sm:$0xff] %vm4640, %v4473
  %4654 = vst.msk [vmem:[#allocation4 + $0x68] sm:$0xff] %vm4640, %v4475
  %4655 = vst.msk [vmem:[#allocation4 + $0x70] sm:$0xff] %vm4640, %v4477
  %4656 = vst.msk [vmem:[#allocation4 + $0x78] sm:$0xff] %vm4640, %v4479
  %4657 = vst.msk [vmem:[#allocation4 + $0x80] sm:$0xff] %vm4640, %v4481
  %4658 = vst.msk [vmem:[#allocation4 + $0x88] sm:$0xff] %vm4640, %v4483
  %4659 = vst.msk [vmem:[#allocation4 + $0x90] sm:$0xff] %vm4640, %v4485
  %4660 = vst.msk [vmem:[#allocation4 + $0x98] sm:$0xff] %vm4640, %v4487
  %4661 = vst.msk [vmem:[#allocation4 + $0xa0] sm:$0xff] %vm4640, %v4489
  %4662 = vst.msk [vmem:[#allocation4 + $0xa8] sm:$0xff] %vm4640, %v4491
  %4663 = vst.msk [vmem:[#allocation4 + $0xb0] sm:$0xff] %vm4640, %v4493
  %4664 = vst.msk [vmem:[#allocation4 + $0xb8] sm:$0xff] %vm4640, %v4495
  %4665 = vst.msk [vmem:[#allocation4 + $0xc0] sm:$0xff] %vm4640, %v4497
  %4666 = vst.msk [vmem:[#allocation4 + $0xc8] sm:$0xff] %vm4640, %v4499
  %4667 = vst.msk [vmem:[#allocation4 + $0xd0] sm:$0xff] %vm4640, %v4501
  %4668 = vst.msk [vmem:[#allocation4 + $0xd8] sm:$0xff] %vm4640, %v4503
  %4669 = vst.msk [vmem:[#allocation4 + $0xe0] sm:$0xff] %vm4640, %v4505
  %4670 = vst.msk [vmem:[#allocation4 + $0xe8] sm:$0xff] %vm4640, %v4507
  %4671 = vst.msk [vmem:[#allocation4 + $0xf0] sm:$0xff] %vm4640, %v4509
  %4672 = vst.msk [vmem:[#allocation4 + $0xf8] sm:$0xff] %vm4640, %v4511
  %4673 = vst.msk [vmem:[#allocation4 + $0x100] sm:$0xff] %vm4640, %v4513
  %4674 = vst.msk [vmem:[#allocation4 + $0x108] sm:$0xff] %vm4640, %v4515
  %4675 = vst.msk [vmem:[#allocation4 + $0x110] sm:$0xff] %vm4640, %v4517
  %4676 = vst.msk [vmem:[#allocation4 + $0x118] sm:$0xff] %vm4640, %v4519
  %4677 = vst.msk [vmem:[#allocation4 + $0x120] sm:$0xff] %vm4640, %v4521
  %4678 = vst.msk [vmem:[#allocation4 + $0x128] sm:$0xff] %vm4640, %v4523
  %4679 = vst.msk [vmem:[#allocation4 + $0x130] sm:$0xff] %vm4640, %v4525
  %4680 = vst.msk [vmem:[#allocation4 + $0x138] sm:$0xff] %vm4640, %v4527
  %4681 = vst.msk [vmem:[#allocation4 + $0x140] sm:$0xff] %vm4640, %v4529
  %4682 = vst.msk [vmem:[#allocation4 + $0x148] sm:$0xff] %vm4640, %v4531
  %4683 = vst.msk [vmem:[#allocation4 + $0x150] sm:$0xff] %vm4640, %v4533
  %4684 = vst.msk [vmem:[#allocation4 + $0x158] sm:$0xff] %vm4640, %v4535
  %4685 = vst.msk [vmem:[#allocation4 + $0x160] sm:$0xff] %vm4640, %v4537
  %4686 = vst.msk [vmem:[#allocation4 + $0x168] sm:$0xff] %vm4640, %v4539
  %4687 = vst.msk [vmem:[#allocation4 + $0x170] sm:$0xff] %vm4640, %v4541
  %4688 = vst.msk [vmem:[#allocation4 + $0x178] sm:$0xff] %vm4640, %v4543
  %4689 = vst.msk [vmem:[#allocation4 + $0x180] sm:$0xff] %vm4640, %v4545
  %4690 = vst.msk [vmem:[#allocation4 + $0x188] sm:$0xff] %vm4640, %v4547
  %4691 = vst.msk [vmem:[#allocation4 + $0x190] sm:$0xff] %vm4640, %v4549
  %4692 = vst.msk [vmem:[#allocation4 + $0x198] sm:$0xff] %vm4640, %v4551
  %4693 = vst.msk [vmem:[#allocation4 + $0x1a0] sm:$0xff] %vm4640, %v4553
  %4694 = vst.msk [vmem:[#allocation4 + $0x1a8] sm:$0xff] %vm4640, %v4555
  %4695 = vst.msk [vmem:[#allocation4 + $0x1b0] sm:$0xff] %vm4640, %v4557
  %4696 = vst.msk [vmem:[#allocation4 + $0x1b8] sm:$0xff] %vm4640, %v4559
  %4697 = vst.msk [vmem:[#allocation4 + $0x1c0] sm:$0xff] %vm4640, %v4561
  %4698 = vst.msk [vmem:[#allocation4 + $0x1c8] sm:$0xff] %vm4640, %v4563
  %4699 = vst.msk [vmem:[#allocation4 + $0x1d0] sm:$0xff] %vm4640, %v4565
  %4700 = vst.msk [vmem:[#allocation4 + $0x1d8] sm:$0xff] %vm4640, %v4567
  %4701 = vst.msk [vmem:[#allocation4 + $0x1e0] sm:$0xff] %vm4640, %v4569
  %4702 = vst.msk [vmem:[#allocation4 + $0x1e8] sm:$0xff] %vm4640, %v4571
  %4703 = vst.msk [vmem:[#allocation4 + $0x1f0] sm:$0xff] %vm4640, %v4573
  %4704 = vst.msk [vmem:[#allocation4 + $0x1f8] sm:$0xff] %vm4640, %v4575
  %v4705 = vld [vmem:[#allocation3 + $0x2] sm:$0xff]
  %v4706 = vld [vmem:[#allocation3 + $0xa] sm:$0xff]
  %v4707 = vld [vmem:[#allocation3 + $0x1a] sm:$0xff]
  %v4708 = vld [vmem:[#allocation3 + $0x22] sm:$0xff]
  %v4709 = vld [vmem:[#allocation3 + $0x32] sm:$0xff]
  %v4710 = vld [vmem:[#allocation3 + $0x3a] sm:$0xff]
  %v4711 = vld [vmem:[#allocation3 + $0x4a] sm:$0xff]
  %v4712 = vld [vmem:[#allocation3 + $0x52] sm:$0xff]
  %v4713 = vld [vmem:[#allocation3 + $0x62] sm:$0xff]
  %v4714 = vld [vmem:[#allocation3 + $0x6a] sm:$0xff]
  %v4715 = vld [vmem:[#allocation3 + $0x7a] sm:$0xff]
  %v4716 = vld [vmem:[#allocation3 + $0x82] sm:$0xff]
  %v4717 = vld [vmem:[#allocation3 + $0x92] sm:$0xff]
  %v4718 = vld [vmem:[#allocation3 + $0x9a] sm:$0xff]
  %v4719 = vld [vmem:[#allocation3 + $0xaa] sm:$0xff]
  %v4720 = vld [vmem:[#allocation3 + $0xb2] sm:$0xff]
  %v4721 = vld [vmem:[#allocation3 + $0xc2] sm:$0xff]
  %v4722 = vld [vmem:[#allocation3 + $0xca] sm:$0xff]
  %v4723 = vld [vmem:[#allocation3 + $0xda] sm:$0xff]
  %v4724 = vld [vmem:[#allocation3 + $0xe2] sm:$0xff]
  %v4725 = vld [vmem:[#allocation3 + $0xf2] sm:$0xff]
  %v4726 = vld [vmem:[#allocation3 + $0xfa] sm:$0xff]
  %v4727 = vld [vmem:[#allocation3 + $0x10a] sm:$0xff]
  %v4728 = vld [vmem:[#allocation3 + $0x112] sm:$0xff]
  %v4729 = vld [vmem:[#allocation3 + $0x122] sm:$0xff]
  %v4730 = vld [vmem:[#allocation3 + $0x12a] sm:$0xff]
  %v4731 = vld [vmem:[#allocation3 + $0x13a] sm:$0xff]
  %v4732 = vld [vmem:[#allocation3 + $0x142] sm:$0xff]
  %v4733 = vld [vmem:[#allocation3 + $0x152] sm:$0xff]
  %v4734 = vld [vmem:[#allocation3 + $0x15a] sm:$0xff]
  %v4735 = vld [vmem:[#allocation3 + $0x16a] sm:$0xff]
  %v4736 = vld [vmem:[#allocation3 + $0x172] sm:$0xff]
  %v4737 = vld [vmem:[#allocation3 + $0x1b2] sm:$0xff]
  %v4738 = vld [vmem:[#allocation3 + $0x1ba] sm:$0xff]
  %v4739 = vld [vmem:[#allocation3 + $0x1ca] sm:$0xff]
  %v4740 = vld [vmem:[#allocation3 + $0x1d2] sm:$0xff]
  %v4741 = vld [vmem:[#allocation3 + $0x1e2] sm:$0xff]
  %v4742 = vld [vmem:[#allocation3 + $0x1ea] sm:$0xff]
  %v4743 = vld [vmem:[#allocation3 + $0x1fa] sm:$0xff]
  %v4744 = vld [vmem:[#allocation3 + $0x202] sm:$0xff]
  %v4745 = vld [vmem:[#allocation3 + $0x212] sm:$0xff]
  %v4746 = vld [vmem:[#allocation3 + $0x21a] sm:$0xff]
  %v4747 = vld [vmem:[#allocation3 + $0x22a] sm:$0xff]
  %v4748 = vld [vmem:[#allocation3 + $0x232] sm:$0xff]
  %v4749 = vld [vmem:[#allocation3 + $0x242] sm:$0xff]
  %v4750 = vld [vmem:[#allocation3 + $0x24a] sm:$0xff]
  %v4751 = vld [vmem:[#allocation3 + $0x25a] sm:$0xff]
  %v4752 = vld [vmem:[#allocation3 + $0x262] sm:$0xff]
  %v4753 = vld [vmem:[#allocation3 + $0x272] sm:$0xff]
  %v4754 = vld [vmem:[#allocation3 + $0x27a] sm:$0xff]
  %v4755 = vld [vmem:[#allocation3 + $0x28a] sm:$0xff]
  %v4756 = vld [vmem:[#allocation3 + $0x292] sm:$0xff]
  %v4757 = vld [vmem:[#allocation3 + $0x2a2] sm:$0xff]
  %v4758 = vld [vmem:[#allocation3 + $0x2aa] sm:$0xff]
  %v4759 = vld [vmem:[#allocation3 + $0x2ba] sm:$0xff]
  %v4760 = vld [vmem:[#allocation3 + $0x2c2] sm:$0xff]
  %v4761 = vld [vmem:[#allocation3 + $0x2d2] sm:$0xff]
  %v4762 = vld [vmem:[#allocation3 + $0x2da] sm:$0xff]
  %v4763 = vld [vmem:[#allocation3 + $0x2ea] sm:$0xff]
  %v4764 = vld [vmem:[#allocation3 + $0x2f2] sm:$0xff]
  %v4765 = vld [vmem:[#allocation3 + $0x302] sm:$0xff]
  %v4766 = vld [vmem:[#allocation3 + $0x30a] sm:$0xff]
  %v4767 = vld [vmem:[#allocation3 + $0x31a] sm:$0xff]
  %v4768 = vld [vmem:[#allocation3 + $0x322] sm:$0xff]
  %4833 = vrot.lane.b32.xlu0 %v4705, 16
  %v4834 = vpop.permute.xlu0 %4833
  %4835 = vrot.lane.b32.xlu0 %v4706, 16
  %v4836 = vpop.permute.xlu0 %4835
  %4837 = vrot.lane.b32.xlu0 %v4707, 16
  %v4838 = vpop.permute.xlu0 %4837
  %4839 = vrot.lane.b32.xlu0 %v4708, 16
  %v4840 = vpop.permute.xlu0 %4839
  %4841 = vrot.lane.b32.xlu0 %v4709, 16
  %v4842 = vpop.permute.xlu0 %4841
  %4843 = vrot.lane.b32.xlu0 %v4710, 16
  %v4844 = vpop.permute.xlu0 %4843
  %4845 = vrot.lane.b32.xlu0 %v4711, 16
  %v4846 = vpop.permute.xlu0 %4845
  %4847 = vrot.lane.b32.xlu0 %v4712, 16
  %v4848 = vpop.permute.xlu0 %4847
  %4849 = vrot.lane.b32.xlu0 %v4713, 16
  %v4850 = vpop.permute.xlu0 %4849
  %4851 = vrot.lane.b32.xlu0 %v4714, 16
  %v4852 = vpop.permute.xlu0 %4851
  %4853 = vrot.lane.b32.xlu0 %v4715, 16
  %v4854 = vpop.permute.xlu0 %4853
  %4855 = vrot.lane.b32.xlu0 %v4716, 16
  %v4856 = vpop.permute.xlu0 %4855
  %4857 = vrot.lane.b32.xlu0 %v4717, 16
  %v4858 = vpop.permute.xlu0 %4857
  %4859 = vrot.lane.b32.xlu0 %v4718, 16
  %v4860 = vpop.permute.xlu0 %4859
  %4861 = vrot.lane.b32.xlu0 %v4719, 16
  %v4862 = vpop.permute.xlu0 %4861
  %4863 = vrot.lane.b32.xlu0 %v4720, 16
  %v4864 = vpop.permute.xlu0 %4863
  %4865 = vrot.lane.b32.xlu0 %v4721, 16
  %v4866 = vpop.permute.xlu0 %4865
  %4867 = vrot.lane.b32.xlu0 %v4722, 16
  %v4868 = vpop.permute.xlu0 %4867
  %4869 = vrot.lane.b32.xlu0 %v4723, 16
  %v4870 = vpop.permute.xlu0 %4869
  %4871 = vrot.lane.b32.xlu0 %v4724, 16
  %v4872 = vpop.permute.xlu0 %4871
  %4873 = vrot.lane.b32.xlu0 %v4725, 16
  %v4874 = vpop.permute.xlu0 %4873
  %4875 = vrot.lane.b32.xlu0 %v4726, 16
  %v4876 = vpop.permute.xlu0 %4875
  %4877 = vrot.lane.b32.xlu0 %v4727, 16
  %v4878 = vpop.permute.xlu0 %4877
  %4879 = vrot.lane.b32.xlu0 %v4728, 16
  %v4880 = vpop.permute.xlu0 %4879
  %4881 = vrot.lane.b32.xlu0 %v4729, 16
  %v4882 = vpop.permute.xlu0 %4881
  %4883 = vrot.lane.b32.xlu0 %v4730, 16
  %v4884 = vpop.permute.xlu0 %4883
  %4885 = vrot.lane.b32.xlu0 %v4731, 16
  %v4886 = vpop.permute.xlu0 %4885
  %4887 = vrot.lane.b32.xlu0 %v4732, 16
  %v4888 = vpop.permute.xlu0 %4887
  %4889 = vrot.lane.b32.xlu0 %v4733, 16
  %v4890 = vpop.permute.xlu0 %4889
  %4891 = vrot.lane.b32.xlu0 %v4734, 16
  %v4892 = vpop.permute.xlu0 %4891
  %4893 = vrot.lane.b32.xlu0 %v4735, 16
  %v4894 = vpop.permute.xlu0 %4893
  %4895 = vrot.lane.b32.xlu0 %v4736, 16
  %v4896 = vpop.permute.xlu0 %4895
  %4897 = vrot.lane.b32.xlu0 %v4737, 16
  %v4898 = vpop.permute.xlu0 %4897
  %4899 = vrot.lane.b32.xlu0 %v4738, 16
  %v4900 = vpop.permute.xlu0 %4899
  %4901 = vrot.lane.b32.xlu0 %v4739, 16
  %v4902 = vpop.permute.xlu0 %4901
  %4903 = vrot.lane.b32.xlu0 %v4740, 16
  %v4904 = vpop.permute.xlu0 %4903
  %4905 = vrot.lane.b32.xlu0 %v4741, 16
  %v4906 = vpop.permute.xlu0 %4905
  %4907 = vrot.lane.b32.xlu0 %v4742, 16
  %v4908 = vpop.permute.xlu0 %4907
  %4909 = vrot.lane.b32.xlu0 %v4743, 16
  %v4910 = vpop.permute.xlu0 %4909
  %4911 = vrot.lane.b32.xlu0 %v4744, 16
  %v4912 = vpop.permute.xlu0 %4911
  %4913 = vrot.lane.b32.xlu0 %v4745, 16
  %v4914 = vpop.permute.xlu0 %4913
  %4915 = vrot.lane.b32.xlu0 %v4746, 16
  %v4916 = vpop.permute.xlu0 %4915
  %4917 = vrot.lane.b32.xlu0 %v4747, 16
  %v4918 = vpop.permute.xlu0 %4917
  %4919 = vrot.lane.b32.xlu0 %v4748, 16
  %v4920 = vpop.permute.xlu0 %4919
  %4921 = vrot.lane.b32.xlu0 %v4749, 16
  %v4922 = vpop.permute.xlu0 %4921
  %4923 = vrot.lane.b32.xlu0 %v4750, 16
  %v4924 = vpop.permute.xlu0 %4923
  %4925 = vrot.lane.b32.xlu0 %v4751, 16
  %v4926 = vpop.permute.xlu0 %4925
  %4927 = vrot.lane.b32.xlu0 %v4752, 16
  %v4928 = vpop.permute.xlu0 %4927
  %4929 = vrot.lane.b32.xlu0 %v4753, 16
  %v4930 = vpop.permute.xlu0 %4929
  %4931 = vrot.lane.b32.xlu0 %v4754, 16
  %v4932 = vpop.permute.xlu0 %4931
  %4933 = vrot.lane.b32.xlu0 %v4755, 16
  %v4934 = vpop.permute.xlu0 %4933
  %4935 = vrot.lane.b32.xlu0 %v4756, 16
  %v4936 = vpop.permute.xlu0 %4935
  %4937 = vrot.lane.b32.xlu0 %v4757, 16
  %v4938 = vpop.permute.xlu0 %4937
  %4939 = vrot.lane.b32.xlu0 %v4758, 16
  %v4940 = vpop.permute.xlu0 %4939
  %4941 = vrot.lane.b32.xlu0 %v4759, 16
  %v4942 = vpop.permute.xlu0 %4941
  %4943 = vrot.lane.b32.xlu0 %v4760, 16
  %v4944 = vpop.permute.xlu0 %4943
  %4945 = vrot.lane.b32.xlu0 %v4761, 16
  %v4946 = vpop.permute.xlu0 %4945
  %4947 = vrot.lane.b32.xlu0 %v4762, 16
  %v4948 = vpop.permute.xlu0 %4947
  %4949 = vrot.lane.b32.xlu0 %v4763, 16
  %v4950 = vpop.permute.xlu0 %4949
  %4951 = vrot.lane.b32.xlu0 %v4764, 16
  %v4952 = vpop.permute.xlu0 %4951
  %4953 = vrot.lane.b32.xlu0 %v4765, 16
  %v4954 = vpop.permute.xlu0 %4953
  %4955 = vrot.lane.b32.xlu0 %v4766, 16
  %v4956 = vpop.permute.xlu0 %4955
  %4957 = vrot.lane.b32.xlu0 %v4767, 16
  %v4958 = vpop.permute.xlu0 %4957
  %4959 = vrot.lane.b32.xlu0 %v4768, 16
  %v4960 = vpop.permute.xlu0 %4959
  %vm5025 = vcmask 195712
  %5026 = vst.msk [vmem:[#allocation4] sm:$0xff] %vm5025, %v4834
  %5027 = vst.msk [vmem:[#allocation4 + $0x8] sm:$0xff] %vm5025, %v4836
  %5028 = vst.msk [vmem:[#allocation4 + $0x10] sm:$0xff] %vm5025, %v4838
  %5029 = vst.msk [vmem:[#allocation4 + $0x18] sm:$0xff] %vm5025, %v4840
  %5030 = vst.msk [vmem:[#allocation4 + $0x20] sm:$0xff] %vm5025, %v4842
  %5031 = vst.msk [vmem:[#allocation4 + $0x28] sm:$0xff] %vm5025, %v4844
  %5032 = vst.msk [vmem:[#allocation4 + $0x30] sm:$0xff] %vm5025, %v4846
  %5033 = vst.msk [vmem:[#allocation4 + $0x38] sm:$0xff] %vm5025, %v4848
  %5034 = vst.msk [vmem:[#allocation4 + $0x40] sm:$0xff] %vm5025, %v4850
  %5035 = vst.msk [vmem:[#allocation4 + $0x48] sm:$0xff] %vm5025, %v4852
  %5036 = vst.msk [vmem:[#allocation4 + $0x50] sm:$0xff] %vm5025, %v4854
  %5037 = vst.msk [vmem:[#allocation4 + $0x58] sm:$0xff] %vm5025, %v4856
  %5038 = vst.msk [vmem:[#allocation4 + $0x60] sm:$0xff] %vm5025, %v4858
  %5039 = vst.msk [vmem:[#allocation4 + $0x68] sm:$0xff] %vm5025, %v4860
  %5040 = vst.msk [vmem:[#allocation4 + $0x70] sm:$0xff] %vm5025, %v4862
  %5041 = vst.msk [vmem:[#allocation4 + $0x78] sm:$0xff] %vm5025, %v4864
  %5042 = vst.msk [vmem:[#allocation4 + $0x80] sm:$0xff] %vm5025, %v4866
  %5043 = vst.msk [vmem:[#allocation4 + $0x88] sm:$0xff] %vm5025, %v4868
  %5044 = vst.msk [vmem:[#allocation4 + $0x90] sm:$0xff] %vm5025, %v4870
  %5045 = vst.msk [vmem:[#allocation4 + $0x98] sm:$0xff] %vm5025, %v4872
  %5046 = vst.msk [vmem:[#allocation4 + $0xa0] sm:$0xff] %vm5025, %v4874
  %5047 = vst.msk [vmem:[#allocation4 + $0xa8] sm:$0xff] %vm5025, %v4876
  %5048 = vst.msk [vmem:[#allocation4 + $0xb0] sm:$0xff] %vm5025, %v4878
  %5049 = vst.msk [vmem:[#allocation4 + $0xb8] sm:$0xff] %vm5025, %v4880
  %5050 = vst.msk [vmem:[#allocation4 + $0xc0] sm:$0xff] %vm5025, %v4882
  %5051 = vst.msk [vmem:[#allocation4 + $0xc8] sm:$0xff] %vm5025, %v4884
  %5052 = vst.msk [vmem:[#allocation4 + $0xd0] sm:$0xff] %vm5025, %v4886
  %5053 = vst.msk [vmem:[#allocation4 + $0xd8] sm:$0xff] %vm5025, %v4888
  %5054 = vst.msk [vmem:[#allocation4 + $0xe0] sm:$0xff] %vm5025, %v4890
  %5055 = vst.msk [vmem:[#allocation4 + $0xe8] sm:$0xff] %vm5025, %v4892
  %5056 = vst.msk [vmem:[#allocation4 + $0xf0] sm:$0xff] %vm5025, %v4894
  %5057 = vst.msk [vmem:[#allocation4 + $0xf8] sm:$0xff] %vm5025, %v4896
  %5058 = vst.msk [vmem:[#allocation4 + $0x100] sm:$0xff] %vm5025, %v4898
  %5059 = vst.msk [vmem:[#allocation4 + $0x108] sm:$0xff] %vm5025, %v4900
  %5060 = vst.msk [vmem:[#allocation4 + $0x110] sm:$0xff] %vm5025, %v4902
  %5061 = vst.msk [vmem:[#allocation4 + $0x118] sm:$0xff] %vm5025, %v4904
  %5062 = vst.msk [vmem:[#allocation4 + $0x120] sm:$0xff] %vm5025, %v4906
  %5063 = vst.msk [vmem:[#allocation4 + $0x128] sm:$0xff] %vm5025, %v4908
  %5064 = vst.msk [vmem:[#allocation4 + $0x130] sm:$0xff] %vm5025, %v4910
  %5065 = vst.msk [vmem:[#allocation4 + $0x138] sm:$0xff] %vm5025, %v4912
  %5066 = vst.msk [vmem:[#allocation4 + $0x140] sm:$0xff] %vm5025, %v4914
  %5067 = vst.msk [vmem:[#allocation4 + $0x148] sm:$0xff] %vm5025, %v4916
  %5068 = vst.msk [vmem:[#allocation4 + $0x150] sm:$0xff] %vm5025, %v4918
  %5069 = vst.msk [vmem:[#allocation4 + $0x158] sm:$0xff] %vm5025, %v4920
  %5070 = vst.msk [vmem:[#allocation4 + $0x160] sm:$0xff] %vm5025, %v4922
  %5071 = vst.msk [vmem:[#allocation4 + $0x168] sm:$0xff] %vm5025, %v4924
  %5072 = vst.msk [vmem:[#allocation4 + $0x170] sm:$0xff] %vm5025, %v4926
  %5073 = vst.msk [vmem:[#allocation4 + $0x178] sm:$0xff] %vm5025, %v4928
  %5074 = vst.msk [vmem:[#allocation4 + $0x180] sm:$0xff] %vm5025, %v4930
  %5075 = vst.msk [vmem:[#allocation4 + $0x188] sm:$0xff] %vm5025, %v4932
  %5076 = vst.msk [vmem:[#allocation4 + $0x190] sm:$0xff] %vm5025, %v4934
  %5077 = vst.msk [vmem:[#allocation4 + $0x198] sm:$0xff] %vm5025, %v4936
  %5078 = vst.msk [vmem:[#allocation4 + $0x1a0] sm:$0xff] %vm5025, %v4938
  %5079 = vst.msk [vmem:[#allocation4 + $0x1a8] sm:$0xff] %vm5025, %v4940
  %5080 = vst.msk [vmem:[#allocation4 + $0x1b0] sm:$0xff] %vm5025, %v4942
  %5081 = vst.msk [vmem:[#allocation4 + $0x1b8] sm:$0xff] %vm5025, %v4944
  %5082 = vst.msk [vmem:[#allocation4 + $0x1c0] sm:$0xff] %vm5025, %v4946
  %5083 = vst.msk [vmem:[#allocation4 + $0x1c8] sm:$0xff] %vm5025, %v4948
  %5084 = vst.msk [vmem:[#allocation4 + $0x1d0] sm:$0xff] %vm5025, %v4950
  %5085 = vst.msk [vmem:[#allocation4 + $0x1d8] sm:$0xff] %vm5025, %v4952
  %5086 = vst.msk [vmem:[#allocation4 + $0x1e0] sm:$0xff] %vm5025, %v4954
  %5087 = vst.msk [vmem:[#allocation4 + $0x1e8] sm:$0xff] %vm5025, %v4956
  %5088 = vst.msk [vmem:[#allocation4 + $0x1f0] sm:$0xff] %vm5025, %v4958
  %5089 = vst.msk [vmem:[#allocation4 + $0x1f8] sm:$0xff] %vm5025, %v4960
  %v5090 = vld [vmem:[%s4127] sm:$0xff]
  %v5091 = vld [vmem:[%s4127 + $0x8] sm:$0xff]
  %v5092 = vld [vmem:[%s4127 + $0x18] sm:$0xff]
  %v5093 = vld [vmem:[%s4127 + $0x20] sm:$0xff]
  %v5094 = vld [vmem:[%s4127 + $0x30] sm:$0xff]
  %v5095 = vld [vmem:[%s4127 + $0x38] sm:$0xff]
  %v5096 = vld [vmem:[%s4127 + $0x48] sm:$0xff]
  %v5097 = vld [vmem:[%s4127 + $0x50] sm:$0xff]
  %v5098 = vld [vmem:[%s4127 + $0x60] sm:$0xff]
  %v5099 = vld [vmem:[%s4127 + $0x68] sm:$0xff]
  %v5100 = vld [vmem:[%s4127 + $0x78] sm:$0xff]
  %v5101 = vld [vmem:[%s4127 + $0x80] sm:$0xff]
  %v5102 = vld [vmem:[%s4127 + $0x90] sm:$0xff]
  %v5103 = vld [vmem:[%s4127 + $0x98] sm:$0xff]
  %v5104 = vld [vmem:[%s4127 + $0xa8] sm:$0xff]
  %v5105 = vld [vmem:[%s4127 + $0xb0] sm:$0xff]
  %v5106 = vld [vmem:[%s4127 + $0xc0] sm:$0xff]
  %v5107 = vld [vmem:[%s4127 + $0xc8] sm:$0xff]
  %v5108 = vld [vmem:[%s4127 + $0xd8] sm:$0xff]
  %v5109 = vld [vmem:[%s4127 + $0xe0] sm:$0xff]
  %v5110 = vld [vmem:[%s4127 + $0xf0] sm:$0xff]
  %v5111 = vld [vmem:[%s4127 + $0xf8] sm:$0xff]
  %v5112 = vld [vmem:[%s4127 + $0x108] sm:$0xff]
  %v5113 = vld [vmem:[%s4127 + $0x110] sm:$0xff]
  %v5114 = vld [vmem:[%s4127 + $0x120] sm:$0xff]
  %v5115 = vld [vmem:[%s4127 + $0x128] sm:$0xff]
  %v5116 = vld [vmem:[%s4127 + $0x138] sm:$0xff]
  %v5117 = vld [vmem:[%s4127 + $0x140] sm:$0xff]
  %v5118 = vld [vmem:[%s4127 + $0x150] sm:$0xff]
  %v5119 = vld [vmem:[%s4127 + $0x158] sm:$0xff]
  %v5120 = vld [vmem:[%s4127 + $0x168] sm:$0xff]
  %v5121 = vld [vmem:[%s4127 + $0x170] sm:$0xff]
  %v5122 = vld [vmem:[%s4127 + $0x1b0] sm:$0xff]
  %v5123 = vld [vmem:[%s4127 + $0x1b8] sm:$0xff]
  %v5124 = vld [vmem:[%s4127 + $0x1c8] sm:$0xff]
  %v5125 = vld [vmem:[%s4127 + $0x1d0] sm:$0xff]
  %v5126 = vld [vmem:[%s4127 + $0x1e0] sm:$0xff]
  %v5127 = vld [vmem:[%s4127 + $0x1e8] sm:$0xff]
  %v5128 = vld [vmem:[%s4127 + $0x1f8] sm:$0xff]
  %v5129 = vld [vmem:[%s4127 + $0x200] sm:$0xff]
  %v5130 = vld [vmem:[%s4127 + $0x210] sm:$0xff]
  %v5131 = vld [vmem:[%s4127 + $0x218] sm:$0xff]
  %v5132 = vld [vmem:[%s4127 + $0x228] sm:$0xff]
  %v5133 = vld [vmem:[%s4127 + $0x230] sm:$0xff]
  %v5134 = vld [vmem:[%s4127 + $0x240] sm:$0xff]
  %v5135 = vld [vmem:[%s4127 + $0x248] sm:$0xff]
  %v5136 = vld [vmem:[%s4127 + $0x258] sm:$0xff]
  %v5137 = vld [vmem:[%s4127 + $0x260] sm:$0xff]
  %v5138 = vld [vmem:[%s4127 + $0x270] sm:$0xff]
  %v5139 = vld [vmem:[%s4127 + $0x278] sm:$0xff]
  %v5140 = vld [vmem:[%s4127 + $0x288] sm:$0xff]
  %v5141 = vld [vmem:[%s4127 + $0x290] sm:$0xff]
  %v5142 = vld [vmem:[%s4127 + $0x2a0] sm:$0xff]
  %v5143 = vld [vmem:[%s4127 + $0x2a8] sm:$0xff]
  %v5144 = vld [vmem:[%s4127 + $0x2b8] sm:$0xff]
  %v5145 = vld [vmem:[%s4127 + $0x2c0] sm:$0xff]
  %v5146 = vld [vmem:[%s4127 + $0x2d0] sm:$0xff]
  %v5147 = vld [vmem:[%s4127 + $0x2d8] sm:$0xff]
  %v5148 = vld [vmem:[%s4127 + $0x2e8] sm:$0xff]
  %v5149 = vld [vmem:[%s4127 + $0x2f0] sm:$0xff]
  %v5150 = vld [vmem:[%s4127 + $0x300] sm:$0xff]
  %v5151 = vld [vmem:[%s4127 + $0x308] sm:$0xff]
  %v5152 = vld [vmem:[%s4127 + $0x318] sm:$0xff]
  %v5153 = vld [vmem:[%s4127 + $0x320] sm:$0xff]
  %5218 = vrot.lane.b32.xlu0 %v5090, 24
  %v5219 = vpop.permute.xlu0 %5218
  %5220 = vrot.lane.b32.xlu0 %v5091, 24
  %v5221 = vpop.permute.xlu0 %5220
  %5222 = vrot.lane.b32.xlu0 %v5092, 24
  %v5223 = vpop.permute.xlu0 %5222
  %5224 = vrot.lane.b32.xlu0 %v5093, 24
  %v5225 = vpop.permute.xlu0 %5224
  %5226 = vrot.lane.b32.xlu0 %v5094, 24
  %v5227 = vpop.permute.xlu0 %5226
  %5228 = vrot.lane.b32.xlu0 %v5095, 24
  %v5229 = vpop.permute.xlu0 %5228
  %5230 = vrot.lane.b32.xlu0 %v5096, 24
  %v5231 = vpop.permute.xlu0 %5230
  %5232 = vrot.lane.b32.xlu0 %v5097, 24
  %v5233 = vpop.permute.xlu0 %5232
  %5234 = vrot.lane.b32.xlu0 %v5098, 24
  %v5235 = vpop.permute.xlu0 %5234
  %5236 = vrot.lane.b32.xlu0 %v5099, 24
  %v5237 = vpop.permute.xlu0 %5236
  %5238 = vrot.lane.b32.xlu0 %v5100, 24
  %v5239 = vpop.permute.xlu0 %5238
  %5240 = vrot.lane.b32.xlu0 %v5101, 24
  %v5241 = vpop.permute.xlu0 %5240
  %5242 = vrot.lane.b32.xlu0 %v5102, 24
  %v5243 = vpop.permute.xlu0 %5242
  %5244 = vrot.lane.b32.xlu0 %v5103, 24
  %v5245 = vpop.permute.xlu0 %5244
  %5246 = vrot.lane.b32.xlu0 %v5104, 24
  %v5247 = vpop.permute.xlu0 %5246
  %5248 = vrot.lane.b32.xlu0 %v5105, 24
  %v5249 = vpop.permute.xlu0 %5248
  %5250 = vrot.lane.b32.xlu0 %v5106, 24
  %v5251 = vpop.permute.xlu0 %5250
  %5252 = vrot.lane.b32.xlu0 %v5107, 24
  %v5253 = vpop.permute.xlu0 %5252
  %5254 = vrot.lane.b32.xlu0 %v5108, 24
  %v5255 = vpop.permute.xlu0 %5254
  %5256 = vrot.lane.b32.xlu0 %v5109, 24
  %v5257 = vpop.permute.xlu0 %5256
  %5258 = vrot.lane.b32.xlu0 %v5110, 24
  %v5259 = vpop.permute.xlu0 %5258
  %5260 = vrot.lane.b32.xlu0 %v5111, 24
  %v5261 = vpop.permute.xlu0 %5260
  %5262 = vrot.lane.b32.xlu0 %v5112, 24
  %v5263 = vpop.permute.xlu0 %5262
  %5264 = vrot.lane.b32.xlu0 %v5113, 24
  %v5265 = vpop.permute.xlu0 %5264
  %5266 = vrot.lane.b32.xlu0 %v5114, 24
  %v5267 = vpop.permute.xlu0 %5266
  %5268 = vrot.lane.b32.xlu0 %v5115, 24
  %v5269 = vpop.permute.xlu0 %5268
  %5270 = vrot.lane.b32.xlu0 %v5116, 24
  %v5271 = vpop.permute.xlu0 %5270
  %5272 = vrot.lane.b32.xlu0 %v5117, 24
  %v5273 = vpop.permute.xlu0 %5272
  %5274 = vrot.lane.b32.xlu0 %v5118, 24
  %v5275 = vpop.permute.xlu0 %5274
  %5276 = vrot.lane.b32.xlu0 %v5119, 24
  %v5277 = vpop.permute.xlu0 %5276
  %5278 = vrot.lane.b32.xlu0 %v5120, 24
  %v5279 = vpop.permute.xlu0 %5278
  %5280 = vrot.lane.b32.xlu0 %v5121, 24
  %v5281 = vpop.permute.xlu0 %5280
  %5282 = vrot.lane.b32.xlu0 %v5122, 24
  %v5283 = vpop.permute.xlu0 %5282
  %5284 = vrot.lane.b32.xlu0 %v5123, 24
  %v5285 = vpop.permute.xlu0 %5284
  %5286 = vrot.lane.b32.xlu0 %v5124, 24
  %v5287 = vpop.permute.xlu0 %5286
  %5288 = vrot.lane.b32.xlu0 %v5125, 24
  %v5289 = vpop.permute.xlu0 %5288
  %5290 = vrot.lane.b32.xlu0 %v5126, 24
  %v5291 = vpop.permute.xlu0 %5290
  %5292 = vrot.lane.b32.xlu0 %v5127, 24
  %v5293 = vpop.permute.xlu0 %5292
  %5294 = vrot.lane.b32.xlu0 %v5128, 24
  %v5295 = vpop.permute.xlu0 %5294
  %5296 = vrot.lane.b32.xlu0 %v5129, 24
  %v5297 = vpop.permute.xlu0 %5296
  %5298 = vrot.lane.b32.xlu0 %v5130, 24
  %v5299 = vpop.permute.xlu0 %5298
  %5300 = vrot.lane.b32.xlu0 %v5131, 24
  %v5301 = vpop.permute.xlu0 %5300
  %5302 = vrot.lane.b32.xlu0 %v5132, 24
  %v5303 = vpop.permute.xlu0 %5302
  %5304 = vrot.lane.b32.xlu0 %v5133, 24
  %v5305 = vpop.permute.xlu0 %5304
  %5306 = vrot.lane.b32.xlu0 %v5134, 24
  %v5307 = vpop.permute.xlu0 %5306
  %5308 = vrot.lane.b32.xlu0 %v5135, 24
  %v5309 = vpop.permute.xlu0 %5308
  %5310 = vrot.lane.b32.xlu0 %v5136, 24
  %v5311 = vpop.permute.xlu0 %5310
  %5312 = vrot.lane.b32.xlu0 %v5137, 24
  %v5313 = vpop.permute.xlu0 %5312
  %5314 = vrot.lane.b32.xlu0 %v5138, 24
  %v5315 = vpop.permute.xlu0 %5314
  %5316 = vrot.lane.b32.xlu0 %v5139, 24
  %v5317 = vpop.permute.xlu0 %5316
  %5318 = vrot.lane.b32.xlu0 %v5140, 24
  %v5319 = vpop.permute.xlu0 %5318
  %5320 = vrot.lane.b32.xlu0 %v5141, 24
  %v5321 = vpop.permute.xlu0 %5320
  %5322 = vrot.lane.b32.xlu0 %v5142, 24
  %v5323 = vpop.permute.xlu0 %5322
  %5324 = vrot.lane.b32.xlu0 %v5143, 24
  %v5325 = vpop.permute.xlu0 %5324
  %5326 = vrot.lane.b32.xlu0 %v5144, 24
  %v5327 = vpop.permute.xlu0 %5326
  %5328 = vrot.lane.b32.xlu0 %v5145, 24
  %v5329 = vpop.permute.xlu0 %5328
  %5330 = vrot.lane.b32.xlu0 %v5146, 24
  %v5331 = vpop.permute.xlu0 %5330
  %5332 = vrot.lane.b32.xlu0 %v5147, 24
  %v5333 = vpop.permute.xlu0 %5332
  %5334 = vrot.lane.b32.xlu0 %v5148, 24
  %v5335 = vpop.permute.xlu0 %5334
  %5336 = vrot.lane.b32.xlu0 %v5149, 24
  %v5337 = vpop.permute.xlu0 %5336
  %5338 = vrot.lane.b32.xlu0 %v5150, 24
  %v5339 = vpop.permute.xlu0 %5338
  %5340 = vrot.lane.b32.xlu0 %v5151, 24
  %v5341 = vpop.permute.xlu0 %5340
  %5342 = vrot.lane.b32.xlu0 %v5152, 24
  %v5343 = vpop.permute.xlu0 %5342
  %5344 = vrot.lane.b32.xlu0 %v5153, 24
  %v5345 = vpop.permute.xlu0 %5344
  %vm5410 = vcmask 261312
  %5411 = vst.msk [vmem:[#allocation4] sm:$0xff] %vm5410, %v5219
  %5412 = vst.msk [vmem:[#allocation4 + $0x8] sm:$0xff] %vm5410, %v5221
  %5413 = vst.msk [vmem:[#allocation4 + $0x10] sm:$0xff] %vm5410, %v5223
  %5414 = vst.msk [vmem:[#allocation4 + $0x18] sm:$0xff] %vm5410, %v5225
  %5415 = vst.msk [vmem:[#allocation4 + $0x20] sm:$0xff] %vm5410, %v5227
  %5416 = vst.msk [vmem:[#allocation4 + $0x28] sm:$0xff] %vm5410, %v5229
  %5417 = vst.msk [vmem:[#allocation4 + $0x30] sm:$0xff] %vm5410, %v5231
  %5418 = vst.msk [vmem:[#allocation4 + $0x38] sm:$0xff] %vm5410, %v5233
  %5419 = vst.msk [vmem:[#allocation4 + $0x40] sm:$0xff] %vm5410, %v5235
  %5420 = vst.msk [vmem:[#allocation4 + $0x48] sm:$0xff] %vm5410, %v5237
  %5421 = vst.msk [vmem:[#allocation4 + $0x50] sm:$0xff] %vm5410, %v5239
  %5422 = vst.msk [vmem:[#allocation4 + $0x58] sm:$0xff] %vm5410, %v5241
  %5423 = vst.msk [vmem:[#allocation4 + $0x60] sm:$0xff] %vm5410, %v5243
  %5424 = vst.msk [vmem:[#allocation4 + $0x68] sm:$0xff] %vm5410, %v5245
  %5425 = vst.msk [vmem:[#allocation4 + $0x70] sm:$0xff] %vm5410, %v5247
  %5426 = vst.msk [vmem:[#allocation4 + $0x78] sm:$0xff] %vm5410, %v5249
  %5427 = vst.msk [vmem:[#allocation4 + $0x80] sm:$0xff] %vm5410, %v5251
  %5428 = vst.msk [vmem:[#allocation4 + $0x88] sm:$0xff] %vm5410, %v5253
  %5429 = vst.msk [vmem:[#allocation4 + $0x90] sm:$0xff] %vm5410, %v5255
  %5430 = vst.msk [vmem:[#allocation4 + $0x98] sm:$0xff] %vm5410, %v5257
  %5431 = vst.msk [vmem:[#allocation4 + $0xa0] sm:$0xff] %vm5410, %v5259
  %5432 = vst.msk [vmem:[#allocation4 + $0xa8] sm:$0xff] %vm5410, %v5261
  %5433 = vst.msk [vmem:[#allocation4 + $0xb0] sm:$0xff] %vm5410, %v5263
  %5434 = vst.msk [vmem:[#allocation4 + $0xb8] sm:$0xff] %vm5410, %v5265
  %5435 = vst.msk [vmem:[#allocation4 + $0xc0] sm:$0xff] %vm5410, %v5267
  %5436 = vst.msk [vmem:[#allocation4 + $0xc8] sm:$0xff] %vm5410, %v5269
  %5437 = vst.msk [vmem:[#allocation4 + $0xd0] sm:$0xff] %vm5410, %v5271
  %5438 = vst.msk [vmem:[#allocation4 + $0xd8] sm:$0xff] %vm5410, %v5273
  %5439 = vst.msk [vmem:[#allocation4 + $0xe0] sm:$0xff] %vm5410, %v5275
  %5440 = vst.msk [vmem:[#allocation4 + $0xe8] sm:$0xff] %vm5410, %v5277
  %5441 = vst.msk [vmem:[#allocation4 + $0xf0] sm:$0xff] %vm5410, %v5279
  %5442 = vst.msk [vmem:[#allocation4 + $0xf8] sm:$0xff] %vm5410, %v5281
  %5443 = vst.msk [vmem:[#allocation4 + $0x100] sm:$0xff] %vm5410, %v5283
  %5444 = vst.msk [vmem:[#allocation4 + $0x108] sm:$0xff] %vm5410, %v5285
  %5445 = vst.msk [vmem:[#allocation4 + $0x110] sm:$0xff] %vm5410, %v5287
  %5446 = vst.msk [vmem:[#allocation4 + $0x118] sm:$0xff] %vm5410, %v5289
  %5447 = vst.msk [vmem:[#allocation4 + $0x120] sm:$0xff] %vm5410, %v5291
  %5448 = vst.msk [vmem:[#allocation4 + $0x128] sm:$0xff] %vm5410, %v5293
  %5449 = vst.msk [vmem:[#allocation4 + $0x130] sm:$0xff] %vm5410, %v5295
  %5450 = vst.msk [vmem:[#allocation4 + $0x138] sm:$0xff] %vm5410, %v5297
  %5451 = vst.msk [vmem:[#allocation4 + $0x140] sm:$0xff] %vm5410, %v5299
  %5452 = vst.msk [vmem:[#allocation4 + $0x148] sm:$0xff] %vm5410, %v5301
  %5453 = vst.msk [vmem:[#allocation4 + $0x150] sm:$0xff] %vm5410, %v5303
  %5454 = vst.msk [vmem:[#allocation4 + $0x158] sm:$0xff] %vm5410, %v5305
  %5455 = vst.msk [vmem:[#allocation4 + $0x160] sm:$0xff] %vm5410, %v5307
  %5456 = vst.msk [vmem:[#allocation4 + $0x168] sm:$0xff] %vm5410, %v5309
  %5457 = vst.msk [vmem:[#allocation4 + $0x170] sm:$0xff] %vm5410, %v5311
  %5458 = vst.msk [vmem:[#allocation4 + $0x178] sm:$0xff] %vm5410, %v5313
  %5459 = vst.msk [vmem:[#allocation4 + $0x180] sm:$0xff] %vm5410, %v5315
  %5460 = vst.msk [vmem:[#allocation4 + $0x188] sm:$0xff] %vm5410, %v5317
  %5461 = vst.msk [vmem:[#allocation4 + $0x190] sm:$0xff] %vm5410, %v5319
  %5462 = vst.msk [vmem:[#allocation4 + $0x198] sm:$0xff] %vm5410, %v5321
  %5463 = vst.msk [vmem:[#allocation4 + $0x1a0] sm:$0xff] %vm5410, %v5323
  %5464 = vst.msk [vmem:[#allocation4 + $0x1a8] sm:$0xff] %vm5410, %v5325
  %5465 = vst.msk [vmem:[#allocation4 + $0x1b0] sm:$0xff] %vm5410, %v5327
  %5466 = vst.msk [vmem:[#allocation4 + $0x1b8] sm:$0xff] %vm5410, %v5329
  %5467 = vst.msk [vmem:[#allocation4 + $0x1c0] sm:$0xff] %vm5410, %v5331
  %5468 = vst.msk [vmem:[#allocation4 + $0x1c8] sm:$0xff] %vm5410, %v5333
  %5469 = vst.msk [vmem:[#allocation4 + $0x1d0] sm:$0xff] %vm5410, %v5335
  %5470 = vst.msk [vmem:[#allocation4 + $0x1d8] sm:$0xff] %vm5410, %v5337
  %5471 = vst.msk [vmem:[#allocation4 + $0x1e0] sm:$0xff] %vm5410, %v5339
  %5472 = vst.msk [vmem:[#allocation4 + $0x1e8] sm:$0xff] %vm5410, %v5341
  %5473 = vst.msk [vmem:[#allocation4 + $0x1f0] sm:$0xff] %vm5410, %v5343
  %5474 = vst.msk [vmem:[#allocation4 + $0x1f8] sm:$0xff] %vm5410, %v5345
  %v5475 = vld [vmem:[%s4127 + $0x1] sm:$0xff]
  %v5476 = vld [vmem:[%s4127 + $0x9] sm:$0xff]
  %v5477 = vld [vmem:[%s4127 + $0x19] sm:$0xff]
  %v5478 = vld [vmem:[%s4127 + $0x21] sm:$0xff]
  %v5479 = vld [vmem:[%s4127 + $0x31] sm:$0xff]
  %v5480 = vld [vmem:[%s4127 + $0x39] sm:$0xff]
  %v5481 = vld [vmem:[%s4127 + $0x49] sm:$0xff]
  %v5482 = vld [vmem:[%s4127 + $0x51] sm:$0xff]
  %v5483 = vld [vmem:[%s4127 + $0x61] sm:$0xff]
  %v5484 = vld [vmem:[%s4127 + $0x69] sm:$0xff]
  %v5485 = vld [vmem:[%s4127 + $0x79] sm:$0xff]
  %v5486 = vld [vmem:[%s4127 + $0x81] sm:$0xff]
  %v5487 = vld [vmem:[%s4127 + $0x91] sm:$0xff]
  %v5488 = vld [vmem:[%s4127 + $0x99] sm:$0xff]
  %v5489 = vld [vmem:[%s4127 + $0xa9] sm:$0xff]
  %v5490 = vld [vmem:[%s4127 + $0xb1] sm:$0xff]
  %v5491 = vld [vmem:[%s4127 + $0xc1] sm:$0xff]
  %v5492 = vld [vmem:[%s4127 + $0xc9] sm:$0xff]
  %v5493 = vld [vmem:[%s4127 + $0xd9] sm:$0xff]
  %v5494 = vld [vmem:[%s4127 + $0xe1] sm:$0xff]
  %v5495 = vld [vmem:[%s4127 + $0xf1] sm:$0xff]
  %v5496 = vld [vmem:[%s4127 + $0xf9] sm:$0xff]
  %v5497 = vld [vmem:[%s4127 + $0x109] sm:$0xff]
  %v5498 = vld [vmem:[%s4127 + $0x111] sm:$0xff]
  %v5499 = vld [vmem:[%s4127 + $0x121] sm:$0xff]
  %v5500 = vld [vmem:[%s4127 + $0x129] sm:$0xff]
  %v5501 = vld [vmem:[%s4127 + $0x139] sm:$0xff]
  %v5502 = vld [vmem:[%s4127 + $0x141] sm:$0xff]
  %v5503 = vld [vmem:[%s4127 + $0x151] sm:$0xff]
  %v5504 = vld [vmem:[%s4127 + $0x159] sm:$0xff]
  %v5505 = vld [vmem:[%s4127 + $0x169] sm:$0xff]
  %v5506 = vld [vmem:[%s4127 + $0x171] sm:$0xff]
  %v5507 = vld [vmem:[%s4127 + $0x1b1] sm:$0xff]
  %v5508 = vld [vmem:[%s4127 + $0x1b9] sm:$0xff]
  %v5509 = vld [vmem:[%s4127 + $0x1c9] sm:$0xff]
  %v5510 = vld [vmem:[%s4127 + $0x1d1] sm:$0xff]
  %v5511 = vld [vmem:[%s4127 + $0x1e1] sm:$0xff]
  %v5512 = vld [vmem:[%s4127 + $0x1e9] sm:$0xff]
  %v5513 = vld [vmem:[%s4127 + $0x1f9] sm:$0xff]
  %v5514 = vld [vmem:[%s4127 + $0x201] sm:$0xff]
  %v5515 = vld [vmem:[%s4127 + $0x211] sm:$0xff]
  %v5516 = vld [vmem:[%s4127 + $0x219] sm:$0xff]
  %v5517 = vld [vmem:[%s4127 + $0x229] sm:$0xff]
  %v5518 = vld [vmem:[%s4127 + $0x231] sm:$0xff]
  %v5519 = vld [vmem:[%s4127 + $0x241] sm:$0xff]
  %v5520 = vld [vmem:[%s4127 + $0x249] sm:$0xff]
  %v5521 = vld [vmem:[%s4127 + $0x259] sm:$0xff]
  %v5522 = vld [vmem:[%s4127 + $0x261] sm:$0xff]
  %v5523 = vld [vmem:[%s4127 + $0x271] sm:$0xff]
  %v5524 = vld [vmem:[%s4127 + $0x279] sm:$0xff]
  %v5525 = vld [vmem:[%s4127 + $0x289] sm:$0xff]
  %v5526 = vld [vmem:[%s4127 + $0x291] sm:$0xff]
  %v5527 = vld [vmem:[%s4127 + $0x2a1] sm:$0xff]
  %v5528 = vld [vmem:[%s4127 + $0x2a9] sm:$0xff]
  %v5529 = vld [vmem:[%s4127 + $0x2b9] sm:$0xff]
  %v5530 = vld [vmem:[%s4127 + $0x2c1] sm:$0xff]
  %v5531 = vld [vmem:[%s4127 + $0x2d1] sm:$0xff]
  %v5532 = vld [vmem:[%s4127 + $0x2d9] sm:$0xff]
  %v5533 = vld [vmem:[%s4127 + $0x2e9] sm:$0xff]
  %v5534 = vld [vmem:[%s4127 + $0x2f1] sm:$0xff]
  %v5535 = vld [vmem:[%s4127 + $0x301] sm:$0xff]
  %v5536 = vld [vmem:[%s4127 + $0x309] sm:$0xff]
  %v5537 = vld [vmem:[%s4127 + $0x319] sm:$0xff]
  %v5538 = vld [vmem:[%s4127 + $0x321] sm:$0xff]
  %5603 = vrot.lane.b32.xlu0 %v5475, 32
  %v5604 = vpop.permute.xlu0 %5603
  %5605 = vrot.lane.b32.xlu0 %v5476, 32
  %v5606 = vpop.permute.xlu0 %5605
  %5607 = vrot.lane.b32.xlu0 %v5477, 32
  %v5608 = vpop.permute.xlu0 %5607
  %5609 = vrot.lane.b32.xlu0 %v5478, 32
  %v5610 = vpop.permute.xlu0 %5609
  %5611 = vrot.lane.b32.xlu0 %v5479, 32
  %v5612 = vpop.permute.xlu0 %5611
  %5613 = vrot.lane.b32.xlu0 %v5480, 32
  %v5614 = vpop.permute.xlu0 %5613
  %5615 = vrot.lane.b32.xlu0 %v5481, 32
  %v5616 = vpop.permute.xlu0 %5615
  %5617 = vrot.lane.b32.xlu0 %v5482, 32
  %v5618 = vpop.permute.xlu0 %5617
  %5619 = vrot.lane.b32.xlu0 %v5483, 32
  %v5620 = vpop.permute.xlu0 %5619
  %5621 = vrot.lane.b32.xlu0 %v5484, 32
  %v5622 = vpop.permute.xlu0 %5621
  %5623 = vrot.lane.b32.xlu0 %v5485, 32
  %v5624 = vpop.permute.xlu0 %5623
  %5625 = vrot.lane.b32.xlu0 %v5486, 32
  %v5626 = vpop.permute.xlu0 %5625
  %5627 = vrot.lane.b32.xlu0 %v5487, 32
  %v5628 = vpop.permute.xlu0 %5627
  %5629 = vrot.lane.b32.xlu0 %v5488, 32
  %v5630 = vpop.permute.xlu0 %5629
  %5631 = vrot.lane.b32.xlu0 %v5489, 32
  %v5632 = vpop.permute.xlu0 %5631
  %5633 = vrot.lane.b32.xlu0 %v5490, 32
  %v5634 = vpop.permute.xlu0 %5633
  %5635 = vrot.lane.b32.xlu0 %v5491, 32
  %v5636 = vpop.permute.xlu0 %5635
  %5637 = vrot.lane.b32.xlu0 %v5492, 32
  %v5638 = vpop.permute.xlu0 %5637
  %5639 = vrot.lane.b32.xlu0 %v5493, 32
  %v5640 = vpop.permute.xlu0 %5639
  %5641 = vrot.lane.b32.xlu0 %v5494, 32
  %v5642 = vpop.permute.xlu0 %5641
  %5643 = vrot.lane.b32.xlu0 %v5495, 32
  %v5644 = vpop.permute.xlu0 %5643
  %5645 = vrot.lane.b32.xlu0 %v5496, 32
  %v5646 = vpop.permute.xlu0 %5645
  %5647 = vrot.lane.b32.xlu0 %v5497, 32
  %v5648 = vpop.permute.xlu0 %5647
  %5649 = vrot.lane.b32.xlu0 %v5498, 32
  %v5650 = vpop.permute.xlu0 %5649
  %5651 = vrot.lane.b32.xlu0 %v5499, 32
  %v5652 = vpop.permute.xlu0 %5651
  %5653 = vrot.lane.b32.xlu0 %v5500, 32
  %v5654 = vpop.permute.xlu0 %5653
  %5655 = vrot.lane.b32.xlu0 %v5501, 32
  %v5656 = vpop.permute.xlu0 %5655
  %5657 = vrot.lane.b32.xlu0 %v5502, 32
  %v5658 = vpop.permute.xlu0 %5657
  %5659 = vrot.lane.b32.xlu0 %v5503, 32
  %v5660 = vpop.permute.xlu0 %5659
  %5661 = vrot.lane.b32.xlu0 %v5504, 32
  %v5662 = vpop.permute.xlu0 %5661
  %5663 = vrot.lane.b32.xlu0 %v5505, 32
  %v5664 = vpop.permute.xlu0 %5663
  %5665 = vrot.lane.b32.xlu0 %v5506, 32
  %v5666 = vpop.permute.xlu0 %5665
  %5667 = vrot.lane.b32.xlu0 %v5507, 32
  %v5668 = vpop.permute.xlu0 %5667
  %5669 = vrot.lane.b32.xlu0 %v5508, 32
  %v5670 = vpop.permute.xlu0 %5669
  %5671 = vrot.lane.b32.xlu0 %v5509, 32
  %v5672 = vpop.permute.xlu0 %5671
  %5673 = vrot.lane.b32.xlu0 %v5510, 32
  %v5674 = vpop.permute.xlu0 %5673
  %5675 = vrot.lane.b32.xlu0 %v5511, 32
  %v5676 = vpop.permute.xlu0 %5675
  %5677 = vrot.lane.b32.xlu0 %v5512, 32
  %v5678 = vpop.permute.xlu0 %5677
  %5679 = vrot.lane.b32.xlu0 %v5513, 32
  %v5680 = vpop.permute.xlu0 %5679
  %5681 = vrot.lane.b32.xlu0 %v5514, 32
  %v5682 = vpop.permute.xlu0 %5681
  %5683 = vrot.lane.b32.xlu0 %v5515, 32
  %v5684 = vpop.permute.xlu0 %5683
  %5685 = vrot.lane.b32.xlu0 %v5516, 32
  %v5686 = vpop.permute.xlu0 %5685
  %5687 = vrot.lane.b32.xlu0 %v5517, 32
  %v5688 = vpop.permute.xlu0 %5687
  %5689 = vrot.lane.b32.xlu0 %v5518, 32
  %v5690 = vpop.permute.xlu0 %5689
  %5691 = vrot.lane.b32.xlu0 %v5519, 32
  %v5692 = vpop.permute.xlu0 %5691
  %5693 = vrot.lane.b32.xlu0 %v5520, 32
  %v5694 = vpop.permute.xlu0 %5693
  %5695 = vrot.lane.b32.xlu0 %v5521, 32
  %v5696 = vpop.permute.xlu0 %5695
  %5697 = vrot.lane.b32.xlu0 %v5522, 32
  %v5698 = vpop.permute.xlu0 %5697
  %5699 = vrot.lane.b32.xlu0 %v5523, 32
  %v5700 = vpop.permute.xlu0 %5699
  %5701 = vrot.lane.b32.xlu0 %v5524, 32
  %v5702 = vpop.permute.xlu0 %5701
  %5703 = vrot.lane.b32.xlu0 %v5525, 32
  %v5704 = vpop.permute.xlu0 %5703
  %5705 = vrot.lane.b32.xlu0 %v5526, 32
  %v5706 = vpop.permute.xlu0 %5705
  %5707 = vrot.lane.b32.xlu0 %v5527, 32
  %v5708 = vpop.permute.xlu0 %5707
  %5709 = vrot.lane.b32.xlu0 %v5528, 32
  %v5710 = vpop.permute.xlu0 %5709
  %5711 = vrot.lane.b32.xlu0 %v5529, 32
  %v5712 = vpop.permute.xlu0 %5711
  %5713 = vrot.lane.b32.xlu0 %v5530, 32
  %v5714 = vpop.permute.xlu0 %5713
  %5715 = vrot.lane.b32.xlu0 %v5531, 32
  %v5716 = vpop.permute.xlu0 %5715
  %5717 = vrot.lane.b32.xlu0 %v5532, 32
  %v5718 = vpop.permute.xlu0 %5717
  %5719 = vrot.lane.b32.xlu0 %v5533, 32
  %v5720 = vpop.permute.xlu0 %5719
  %5721 = vrot.lane.b32.xlu0 %v5534, 32
  %v5722 = vpop.permute.xlu0 %5721
  %5723 = vrot.lane.b32.xlu0 %v5535, 32
  %v5724 = vpop.permute.xlu0 %5723
  %5725 = vrot.lane.b32.xlu0 %v5536, 32
  %v5726 = vpop.permute.xlu0 %5725
  %5727 = vrot.lane.b32.xlu0 %v5537, 32
  %v5728 = vpop.permute.xlu0 %5727
  %5729 = vrot.lane.b32.xlu0 %v5538, 32
  %v5730 = vpop.permute.xlu0 %5729
  %vm5795 = vcmask 326912
  %5796 = vst.msk [vmem:[#allocation4] sm:$0xff] %vm5795, %v5604
  %5797 = vst.msk [vmem:[#allocation4 + $0x8] sm:$0xff] %vm5795, %v5606
  %5798 = vst.msk [vmem:[#allocation4 + $0x10] sm:$0xff] %vm5795, %v5608
  %5799 = vst.msk [vmem:[#allocation4 + $0x18] sm:$0xff] %vm5795, %v5610
  %5800 = vst.msk [vmem:[#allocation4 + $0x20] sm:$0xff] %vm5795, %v5612
  %5801 = vst.msk [vmem:[#allocation4 + $0x28] sm:$0xff] %vm5795, %v5614
  %5802 = vst.msk [vmem:[#allocation4 + $0x30] sm:$0xff] %vm5795, %v5616
  %5803 = vst.msk [vmem:[#allocation4 + $0x38] sm:$0xff] %vm5795, %v5618
  %5804 = vst.msk [vmem:[#allocation4 + $0x40] sm:$0xff] %vm5795, %v5620
  %5805 = vst.msk [vmem:[#allocation4 + $0x48] sm:$0xff] %vm5795, %v5622
  %5806 = vst.msk [vmem:[#allocation4 + $0x50] sm:$0xff] %vm5795, %v5624
  %5807 = vst.msk [vmem:[#allocation4 + $0x58] sm:$0xff] %vm5795, %v5626
  %5808 = vst.msk [vmem:[#allocation4 + $0x60] sm:$0xff] %vm5795, %v5628
  %5809 = vst.msk [vmem:[#allocation4 + $0x68] sm:$0xff] %vm5795, %v5630
  %5810 = vst.msk [vmem:[#allocation4 + $0x70] sm:$0xff] %vm5795, %v5632
  %5811 = vst.msk [vmem:[#allocation4 + $0x78] sm:$0xff] %vm5795, %v5634
  %5812 = vst.msk [vmem:[#allocation4 + $0x80] sm:$0xff] %vm5795, %v5636
  %5813 = vst.msk [vmem:[#allocation4 + $0x88] sm:$0xff] %vm5795, %v5638
  %5814 = vst.msk [vmem:[#allocation4 + $0x90] sm:$0xff] %vm5795, %v5640
  %5815 = vst.msk [vmem:[#allocation4 + $0x98] sm:$0xff] %vm5795, %v5642
  %5816 = vst.msk [vmem:[#allocation4 + $0xa0] sm:$0xff] %vm5795, %v5644
  %5817 = vst.msk [vmem:[#allocation4 + $0xa8] sm:$0xff] %vm5795, %v5646
  %5818 = vst.msk [vmem:[#allocation4 + $0xb0] sm:$0xff] %vm5795, %v5648
  %5819 = vst.msk [vmem:[#allocation4 + $0xb8] sm:$0xff] %vm5795, %v5650
  %5820 = vst.msk [vmem:[#allocation4 + $0xc0] sm:$0xff] %vm5795, %v5652
  %5821 = vst.msk [vmem:[#allocation4 + $0xc8] sm:$0xff] %vm5795, %v5654
  %5822 = vst.msk [vmem:[#allocation4 + $0xd0] sm:$0xff] %vm5795, %v5656
  %5823 = vst.msk [vmem:[#allocation4 + $0xd8] sm:$0xff] %vm5795, %v5658
  %5824 = vst.msk [vmem:[#allocation4 + $0xe0] sm:$0xff] %vm5795, %v5660
  %5825 = vst.msk [vmem:[#allocation4 + $0xe8] sm:$0xff] %vm5795, %v5662
  %5826 = vst.msk [vmem:[#allocation4 + $0xf0] sm:$0xff] %vm5795, %v5664
  %5827 = vst.msk [vmem:[#allocation4 + $0xf8] sm:$0xff] %vm5795, %v5666
  %5828 = vst.msk [vmem:[#allocation4 + $0x100] sm:$0xff] %vm5795, %v5668
  %5829 = vst.msk [vmem:[#allocation4 + $0x108] sm:$0xff] %vm5795, %v5670
  %5830 = vst.msk [vmem:[#allocation4 + $0x110] sm:$0xff] %vm5795, %v5672
  %5831 = vst.msk [vmem:[#allocation4 + $0x118] sm:$0xff] %vm5795, %v5674
  %5832 = vst.msk [vmem:[#allocation4 + $0x120] sm:$0xff] %vm5795, %v5676
  %5833 = vst.msk [vmem:[#allocation4 + $0x128] sm:$0xff] %vm5795, %v5678
  %5834 = vst.msk [vmem:[#allocation4 + $0x130] sm:$0xff] %vm5795, %v5680
  %5835 = vst.msk [vmem:[#allocation4 + $0x138] sm:$0xff] %vm5795, %v5682
  %5836 = vst.msk [vmem:[#allocation4 + $0x140] sm:$0xff] %vm5795, %v5684
  %5837 = vst.msk [vmem:[#allocation4 + $0x148] sm:$0xff] %vm5795, %v5686
  %5838 = vst.msk [vmem:[#allocation4 + $0x150] sm:$0xff] %vm5795, %v5688
  %5839 = vst.msk [vmem:[#allocation4 + $0x158] sm:$0xff] %vm5795, %v5690
  %5840 = vst.msk [vmem:[#allocation4 + $0x160] sm:$0xff] %vm5795, %v5692
  %5841 = vst.msk [vmem:[#allocation4 + $0x168] sm:$0xff] %vm5795, %v5694
  %5842 = vst.msk [vmem:[#allocation4 + $0x170] sm:$0xff] %vm5795, %v5696
  %5843 = vst.msk [vmem:[#allocation4 + $0x178] sm:$0xff] %vm5795, %v5698
  %5844 = vst.msk [vmem:[#allocation4 + $0x180] sm:$0xff] %vm5795, %v5700
  %5845 = vst.msk [vmem:[#allocation4 + $0x188] sm:$0xff] %vm5795, %v5702
  %5846 = vst.msk [vmem:[#allocation4 + $0x190] sm:$0xff] %vm5795, %v5704
  %5847 = vst.msk [vmem:[#allocation4 + $0x198] sm:$0xff] %vm5795, %v5706
  %5848 = vst.msk [vmem:[#allocation4 + $0x1a0] sm:$0xff] %vm5795, %v5708
  %5849 = vst.msk [vmem:[#allocation4 + $0x1a8] sm:$0xff] %vm5795, %v5710
  %5850 = vst.msk [vmem:[#allocation4 + $0x1b0] sm:$0xff] %vm5795, %v5712
  %5851 = vst.msk [vmem:[#allocation4 + $0x1b8] sm:$0xff] %vm5795, %v5714
  %5852 = vst.msk [vmem:[#allocation4 + $0x1c0] sm:$0xff] %vm5795, %v5716
  %5853 = vst.msk [vmem:[#allocation4 + $0x1c8] sm:$0xff] %vm5795, %v5718
  %5854 = vst.msk [vmem:[#allocation4 + $0x1d0] sm:$0xff] %vm5795, %v5720
  %5855 = vst.msk [vmem:[#allocation4 + $0x1d8] sm:$0xff] %vm5795, %v5722
  %5856 = vst.msk [vmem:[#allocation4 + $0x1e0] sm:$0xff] %vm5795, %v5724
  %5857 = vst.msk [vmem:[#allocation4 + $0x1e8] sm:$0xff] %vm5795, %v5726
  %5858 = vst.msk [vmem:[#allocation4 + $0x1f0] sm:$0xff] %vm5795, %v5728
  %5859 = vst.msk [vmem:[#allocation4 + $0x1f8] sm:$0xff] %vm5795, %v5730
  %v5860 = vld [vmem:[%s4127 + $0x2] sm:$0xff]
  %v5861 = vld [vmem:[%s4127 + $0xa] sm:$0xff]
  %v5862 = vld [vmem:[%s4127 + $0x1a] sm:$0xff]
  %v5863 = vld [vmem:[%s4127 + $0x22] sm:$0xff]
  %v5864 = vld [vmem:[%s4127 + $0x32] sm:$0xff]
  %v5865 = vld [vmem:[%s4127 + $0x3a] sm:$0xff]
  %v5866 = vld [vmem:[%s4127 + $0x4a] sm:$0xff]
  %v5867 = vld [vmem:[%s4127 + $0x52] sm:$0xff]
  %v5868 = vld [vmem:[%s4127 + $0x62] sm:$0xff]
  %v5869 = vld [vmem:[%s4127 + $0x6a] sm:$0xff]
  %v5870 = vld [vmem:[%s4127 + $0x7a] sm:$0xff]
  %v5871 = vld [vmem:[%s4127 + $0x82] sm:$0xff]
  %v5872 = vld [vmem:[%s4127 + $0x92] sm:$0xff]
  %v5873 = vld [vmem:[%s4127 + $0x9a] sm:$0xff]
  %v5874 = vld [vmem:[%s4127 + $0xaa] sm:$0xff]
  %v5875 = vld [vmem:[%s4127 + $0xb2] sm:$0xff]
  %v5876 = vld [vmem:[%s4127 + $0xc2] sm:$0xff]
  %v5877 = vld [vmem:[%s4127 + $0xca] sm:$0xff]
  %v5878 = vld [vmem:[%s4127 + $0xda] sm:$0xff]
  %v5879 = vld [vmem:[%s4127 + $0xe2] sm:$0xff]
  %v5880 = vld [vmem:[%s4127 + $0xf2] sm:$0xff]
  %v5881 = vld [vmem:[%s4127 + $0xfa] sm:$0xff]
  %v5882 = vld [vmem:[%s4127 + $0x10a] sm:$0xff]
  %v5883 = vld [vmem:[%s4127 + $0x112] sm:$0xff]
  %v5884 = vld [vmem:[%s4127 + $0x122] sm:$0xff]
  %v5885 = vld [vmem:[%s4127 + $0x12a] sm:$0xff]
  %v5886 = vld [vmem:[%s4127 + $0x13a] sm:$0xff]
  %v5887 = vld [vmem:[%s4127 + $0x142] sm:$0xff]
  %v5888 = vld [vmem:[%s4127 + $0x152] sm:$0xff]
  %v5889 = vld [vmem:[%s4127 + $0x15a] sm:$0xff]
  %v5890 = vld [vmem:[%s4127 + $0x16a] sm:$0xff]
  %v5891 = vld [vmem:[%s4127 + $0x172] sm:$0xff]
  %v5892 = vld [vmem:[%s4127 + $0x1b2] sm:$0xff]
  %v5893 = vld [vmem:[%s4127 + $0x1ba] sm:$0xff]
  %v5894 = vld [vmem:[%s4127 + $0x1ca] sm:$0xff]
  %v5895 = vld [vmem:[%s4127 + $0x1d2] sm:$0xff]
  %v5896 = vld [vmem:[%s4127 + $0x1e2] sm:$0xff]
  %v5897 = vld [vmem:[%s4127 + $0x1ea] sm:$0xff]
  %v5898 = vld [vmem:[%s4127 + $0x1fa] sm:$0xff]
  %v5899 = vld [vmem:[%s4127 + $0x202] sm:$0xff]
  %v5900 = vld [vmem:[%s4127 + $0x212] sm:$0xff]
  %v5901 = vld [vmem:[%s4127 + $0x21a] sm:$0xff]
  %v5902 = vld [vmem:[%s4127 + $0x22a] sm:$0xff]
  %v5903 = vld [vmem:[%s4127 + $0x232] sm:$0xff]
  %v5904 = vld [vmem:[%s4127 + $0x242] sm:$0xff]
  %v5905 = vld [vmem:[%s4127 + $0x24a] sm:$0xff]
  %v5906 = vld [vmem:[%s4127 + $0x25a] sm:$0xff]
  %v5907 = vld [vmem:[%s4127 + $0x262] sm:$0xff]
  %v5908 = vld [vmem:[%s4127 + $0x272] sm:$0xff]
  %v5909 = vld [vmem:[%s4127 + $0x27a] sm:$0xff]
  %v5910 = vld [vmem:[%s4127 + $0x28a] sm:$0xff]
  %v5911 = vld [vmem:[%s4127 + $0x292] sm:$0xff]
  %v5912 = vld [vmem:[%s4127 + $0x2a2] sm:$0xff]
  %v5913 = vld [vmem:[%s4127 + $0x2aa] sm:$0xff]
  %v5914 = vld [vmem:[%s4127 + $0x2ba] sm:$0xff]
  %v5915 = vld [vmem:[%s4127 + $0x2c2] sm:$0xff]
  %v5916 = vld [vmem:[%s4127 + $0x2d2] sm:$0xff]
  %v5917 = vld [vmem:[%s4127 + $0x2da] sm:$0xff]
  %v5918 = vld [vmem:[%s4127 + $0x2ea] sm:$0xff]
  %v5919 = vld [vmem:[%s4127 + $0x2f2] sm:$0xff]
  %v5920 = vld [vmem:[%s4127 + $0x302] sm:$0xff]
  %v5921 = vld [vmem:[%s4127 + $0x30a] sm:$0xff]
  %v5922 = vld [vmem:[%s4127 + $0x31a] sm:$0xff]
  %v5923 = vld [vmem:[%s4127 + $0x322] sm:$0xff]
  %5988 = vrot.lane.b32.xlu0 %v5860, 40
  %v5989 = vpop.permute.xlu0 %5988
  %5990 = vrot.lane.b32.xlu0 %v5861, 40
  %v5991 = vpop.permute.xlu0 %5990
  %5992 = vrot.lane.b32.xlu0 %v5862, 40
  %v5993 = vpop.permute.xlu0 %5992
  %5994 = vrot.lane.b32.xlu0 %v5863, 40
  %v5995 = vpop.permute.xlu0 %5994
  %5996 = vrot.lane.b32.xlu0 %v5864, 40
  %v5997 = vpop.permute.xlu0 %5996
  %5998 = vrot.lane.b32.xlu0 %v5865, 40
  %v5999 = vpop.permute.xlu0 %5998
  %6000 = vrot.lane.b32.xlu0 %v5866, 40
  %v6001 = vpop.permute.xlu0 %6000
  %6002 = vrot.lane.b32.xlu0 %v5867, 40
  %v6003 = vpop.permute.xlu0 %6002
  %6004 = vrot.lane.b32.xlu0 %v5868, 40
  %v6005 = vpop.permute.xlu0 %6004
  %6006 = vrot.lane.b32.xlu0 %v5869, 40
  %v6007 = vpop.permute.xlu0 %6006
  %6008 = vrot.lane.b32.xlu0 %v5870, 40
  %v6009 = vpop.permute.xlu0 %6008
  %6010 = vrot.lane.b32.xlu0 %v5871, 40
  %v6011 = vpop.permute.xlu0 %6010
  %6012 = vrot.lane.b32.xlu0 %v5872, 40
  %v6013 = vpop.permute.xlu0 %6012
  %6014 = vrot.lane.b32.xlu0 %v5873, 40
  %v6015 = vpop.permute.xlu0 %6014
  %6016 = vrot.lane.b32.xlu0 %v5874, 40
  %v6017 = vpop.permute.xlu0 %6016
  %6018 = vrot.lane.b32.xlu0 %v5875, 40
  %v6019 = vpop.permute.xlu0 %6018
  %6020 = vrot.lane.b32.xlu0 %v5876, 40
  %v6021 = vpop.permute.xlu0 %6020
  %6022 = vrot.lane.b32.xlu0 %v5877, 40
  %v6023 = vpop.permute.xlu0 %6022
  %6024 = vrot.lane.b32.xlu0 %v5878, 40
  %v6025 = vpop.permute.xlu0 %6024
  %6026 = vrot.lane.b32.xlu0 %v5879, 40
  %v6027 = vpop.permute.xlu0 %6026
  %6028 = vrot.lane.b32.xlu0 %v5880, 40
  %v6029 = vpop.permute.xlu0 %6028
  %6030 = vrot.lane.b32.xlu0 %v5881, 40
  %v6031 = vpop.permute.xlu0 %6030
  %6032 = vrot.lane.b32.xlu0 %v5882, 40
  %v6033 = vpop.permute.xlu0 %6032
  %6034 = vrot.lane.b32.xlu0 %v5883, 40
  %v6035 = vpop.permute.xlu0 %6034
  %6036 = vrot.lane.b32.xlu0 %v5884, 40
  %v6037 = vpop.permute.xlu0 %6036
  %6038 = vrot.lane.b32.xlu0 %v5885, 40
  %v6039 = vpop.permute.xlu0 %6038
  %6040 = vrot.lane.b32.xlu0 %v5886, 40
  %v6041 = vpop.permute.xlu0 %6040
  %6042 = vrot.lane.b32.xlu0 %v5887, 40
  %v6043 = vpop.permute.xlu0 %6042
  %6044 = vrot.lane.b32.xlu0 %v5888, 40
  %v6045 = vpop.permute.xlu0 %6044
  %6046 = vrot.lane.b32.xlu0 %v5889, 40
  %v6047 = vpop.permute.xlu0 %6046
  %6048 = vrot.lane.b32.xlu0 %v5890, 40
  %v6049 = vpop.permute.xlu0 %6048
  %6050 = vrot.lane.b32.xlu0 %v5891, 40
  %v6051 = vpop.permute.xlu0 %6050
  %6052 = vrot.lane.b32.xlu0 %v5892, 40
  %v6053 = vpop.permute.xlu0 %6052
  %6054 = vrot.lane.b32.xlu0 %v5893, 40
  %v6055 = vpop.permute.xlu0 %6054
  %6056 = vrot.lane.b32.xlu0 %v5894, 40
  %v6057 = vpop.permute.xlu0 %6056
  %6058 = vrot.lane.b32.xlu0 %v5895, 40
  %v6059 = vpop.permute.xlu0 %6058
  %6060 = vrot.lane.b32.xlu0 %v5896, 40
  %v6061 = vpop.permute.xlu0 %6060
  %6062 = vrot.lane.b32.xlu0 %v5897, 40
  %v6063 = vpop.permute.xlu0 %6062
  %6064 = vrot.lane.b32.xlu0 %v5898, 40
  %v6065 = vpop.permute.xlu0 %6064
  %6066 = vrot.lane.b32.xlu0 %v5899, 40
  %v6067 = vpop.permute.xlu0 %6066
  %6068 = vrot.lane.b32.xlu0 %v5900, 40
  %v6069 = vpop.permute.xlu0 %6068
  %6070 = vrot.lane.b32.xlu0 %v5901, 40
  %v6071 = vpop.permute.xlu0 %6070
  %6072 = vrot.lane.b32.xlu0 %v5902, 40
  %v6073 = vpop.permute.xlu0 %6072
  %6074 = vrot.lane.b32.xlu0 %v5903, 40
  %v6075 = vpop.permute.xlu0 %6074
  %6076 = vrot.lane.b32.xlu0 %v5904, 40
  %v6077 = vpop.permute.xlu0 %6076
  %6078 = vrot.lane.b32.xlu0 %v5905, 40
  %v6079 = vpop.permute.xlu0 %6078
  %6080 = vrot.lane.b32.xlu0 %v5906, 40
  %v6081 = vpop.permute.xlu0 %6080
  %6082 = vrot.lane.b32.xlu0 %v5907, 40
  %v6083 = vpop.permute.xlu0 %6082
  %6084 = vrot.lane.b32.xlu0 %v5908, 40
  %v6085 = vpop.permute.xlu0 %6084
  %6086 = vrot.lane.b32.xlu0 %v5909, 40
  %v6087 = vpop.permute.xlu0 %6086
  %6088 = vrot.lane.b32.xlu0 %v5910, 40
  %v6089 = vpop.permute.xlu0 %6088
  %6090 = vrot.lane.b32.xlu0 %v5911, 40
  %v6091 = vpop.permute.xlu0 %6090
  %6092 = vrot.lane.b32.xlu0 %v5912, 40
  %v6093 = vpop.permute.xlu0 %6092
  %6094 = vrot.lane.b32.xlu0 %v5913, 40
  %v6095 = vpop.permute.xlu0 %6094
  %6096 = vrot.lane.b32.xlu0 %v5914, 40
  %v6097 = vpop.permute.xlu0 %6096
  %6098 = vrot.lane.b32.xlu0 %v5915, 40
  %v6099 = vpop.permute.xlu0 %6098
  %6100 = vrot.lane.b32.xlu0 %v5916, 40
  %v6101 = vpop.permute.xlu0 %6100
  %6102 = vrot.lane.b32.xlu0 %v5917, 40
  %v6103 = vpop.permute.xlu0 %6102
  %6104 = vrot.lane.b32.xlu0 %v5918, 40
  %v6105 = vpop.permute.xlu0 %6104
  %6106 = vrot.lane.b32.xlu0 %v5919, 40
  %v6107 = vpop.permute.xlu0 %6106
  %6108 = vrot.lane.b32.xlu0 %v5920, 40
  %v6109 = vpop.permute.xlu0 %6108
  %6110 = vrot.lane.b32.xlu0 %v5921, 40
  %v6111 = vpop.permute.xlu0 %6110
  %6112 = vrot.lane.b32.xlu0 %v5922, 40
  %v6113 = vpop.permute.xlu0 %6112
  %6114 = vrot.lane.b32.xlu0 %v5923, 40
  %v6115 = vpop.permute.xlu0 %6114
  %vm6180 = vcmask 392512
  %6181 = vst.msk [vmem:[#allocation4] sm:$0xff] %vm6180, %v5989
  %6182 = vst.msk [vmem:[#allocation4 + $0x8] sm:$0xff] %vm6180, %v5991
  %6183 = vst.msk [vmem:[#allocation4 + $0x10] sm:$0xff] %vm6180, %v5993
  %6184 = vst.msk [vmem:[#allocation4 + $0x18] sm:$0xff] %vm6180, %v5995
  %6185 = vst.msk [vmem:[#allocation4 + $0x20] sm:$0xff] %vm6180, %v5997
  %6186 = vst.msk [vmem:[#allocation4 + $0x28] sm:$0xff] %vm6180, %v5999
  %6187 = vst.msk [vmem:[#allocation4 + $0x30] sm:$0xff] %vm6180, %v6001
  %6188 = vst.msk [vmem:[#allocation4 + $0x38] sm:$0xff] %vm6180, %v6003
  %6189 = vst.msk [vmem:[#allocation4 + $0x40] sm:$0xff] %vm6180, %v6005
  %6190 = vst.msk [vmem:[#allocation4 + $0x48] sm:$0xff] %vm6180, %v6007
  %6191 = vst.msk [vmem:[#allocation4 + $0x50] sm:$0xff] %vm6180, %v6009
  %6192 = vst.msk [vmem:[#allocation4 + $0x58] sm:$0xff] %vm6180, %v6011
  %6193 = vst.msk [vmem:[#allocation4 + $0x60] sm:$0xff] %vm6180, %v6013
  %6194 = vst.msk [vmem:[#allocation4 + $0x68] sm:$0xff] %vm6180, %v6015
  %6195 = vst.msk [vmem:[#allocation4 + $0x70] sm:$0xff] %vm6180, %v6017
  %6196 = vst.msk [vmem:[#allocation4 + $0x78] sm:$0xff] %vm6180, %v6019
  %6197 = vst.msk [vmem:[#allocation4 + $0x80] sm:$0xff] %vm6180, %v6021
  %6198 = vst.msk [vmem:[#allocation4 + $0x88] sm:$0xff] %vm6180, %v6023
  %6199 = vst.msk [vmem:[#allocation4 + $0x90] sm:$0xff] %vm6180, %v6025
  %6200 = vst.msk [vmem:[#allocation4 + $0x98] sm:$0xff] %vm6180, %v6027
  %6201 = vst.msk [vmem:[#allocation4 + $0xa0] sm:$0xff] %vm6180, %v6029
  %6202 = vst.msk [vmem:[#allocation4 + $0xa8] sm:$0xff] %vm6180, %v6031
  %6203 = vst.msk [vmem:[#allocation4 + $0xb0] sm:$0xff] %vm6180, %v6033
  %6204 = vst.msk [vmem:[#allocation4 + $0xb8] sm:$0xff] %vm6180, %v6035
  %6205 = vst.msk [vmem:[#allocation4 + $0xc0] sm:$0xff] %vm6180, %v6037
  %6206 = vst.msk [vmem:[#allocation4 + $0xc8] sm:$0xff] %vm6180, %v6039
  %6207 = vst.msk [vmem:[#allocation4 + $0xd0] sm:$0xff] %vm6180, %v6041
  %6208 = vst.msk [vmem:[#allocation4 + $0xd8] sm:$0xff] %vm6180, %v6043
  %6209 = vst.msk [vmem:[#allocation4 + $0xe0] sm:$0xff] %vm6180, %v6045
  %6210 = vst.msk [vmem:[#allocation4 + $0xe8] sm:$0xff] %vm6180, %v6047
  %6211 = vst.msk [vmem:[#allocation4 + $0xf0] sm:$0xff] %vm6180, %v6049
  %6212 = vst.msk [vmem:[#allocation4 + $0xf8] sm:$0xff] %vm6180, %v6051
  %6213 = vst.msk [vmem:[#allocation4 + $0x100] sm:$0xff] %vm6180, %v6053
  %6214 = vst.msk [vmem:[#allocation4 + $0x108] sm:$0xff] %vm6180, %v6055
  %6215 = vst.msk [vmem:[#allocation4 + $0x110] sm:$0xff] %vm6180, %v6057
  %6216 = vst.msk [vmem:[#allocation4 + $0x118] sm:$0xff] %vm6180, %v6059
  %6217 = vst.msk [vmem:[#allocation4 + $0x120] sm:$0xff] %vm6180, %v6061
  %6218 = vst.msk [vmem:[#allocation4 + $0x128] sm:$0xff] %vm6180, %v6063
  %6219 = vst.msk [vmem:[#allocation4 + $0x130] sm:$0xff] %vm6180, %v6065
  %6220 = vst.msk [vmem:[#allocation4 + $0x138] sm:$0xff] %vm6180, %v6067
  %6221 = vst.msk [vmem:[#allocation4 + $0x140] sm:$0xff] %vm6180, %v6069
  %6222 = vst.msk [vmem:[#allocation4 + $0x148] sm:$0xff] %vm6180, %v6071
  %6223 = vst.msk [vmem:[#allocation4 + $0x150] sm:$0xff] %vm6180, %v6073
  %6224 = vst.msk [vmem:[#allocation4 + $0x158] sm:$0xff] %vm6180, %v6075
  %6225 = vst.msk [vmem:[#allocation4 + $0x160] sm:$0xff] %vm6180, %v6077
  %6226 = vst.msk [vmem:[#allocation4 + $0x168] sm:$0xff] %vm6180, %v6079
  %6227 = vst.msk [vmem:[#allocation4 + $0x170] sm:$0xff] %vm6180, %v6081
  %6228 = vst.msk [vmem:[#allocation4 + $0x178] sm:$0xff] %vm6180, %v6083
  %6229 = vst.msk [vmem:[#allocation4 + $0x180] sm:$0xff] %vm6180, %v6085
  %6230 = vst.msk [vmem:[#allocation4 + $0x188] sm:$0xff] %vm6180, %v6087
  %6231 = vst.msk [vmem:[#allocation4 + $0x190] sm:$0xff] %vm6180, %v6089
  %6232 = vst.msk [vmem:[#allocation4 + $0x198] sm:$0xff] %vm6180, %v6091
  %6233 = vst.msk [vmem:[#allocation4 + $0x1a0] sm:$0xff] %vm6180, %v6093
  %6234 = vst.msk [vmem:[#allocation4 + $0x1a8] sm:$0xff] %vm6180, %v6095
  %6235 = vst.msk [vmem:[#allocation4 + $0x1b0] sm:$0xff] %vm6180, %v6097
  %6236 = vst.msk [vmem:[#allocation4 + $0x1b8] sm:$0xff] %vm6180, %v6099
  %6237 = vst.msk [vmem:[#allocation4 + $0x1c0] sm:$0xff] %vm6180, %v6101
  %6238 = vst.msk [vmem:[#allocation4 + $0x1c8] sm:$0xff] %vm6180, %v6103
  %6239 = vst.msk [vmem:[#allocation4 + $0x1d0] sm:$0xff] %vm6180, %v6105
  %6240 = vst.msk [vmem:[#allocation4 + $0x1d8] sm:$0xff] %vm6180, %v6107
  %6241 = vst.msk [vmem:[#allocation4 + $0x1e0] sm:$0xff] %vm6180, %v6109
  %6242 = vst.msk [vmem:[#allocation4 + $0x1e8] sm:$0xff] %vm6180, %v6111
  %6243 = vst.msk [vmem:[#allocation4 + $0x1f0] sm:$0xff] %vm6180, %v6113
  %6244 = vst.msk [vmem:[#allocation4 + $0x1f8] sm:$0xff] %vm6180, %v6115
  %s6245 = scalar_lea.vmem [#allocation3], 48
  %v6246 = vld [vmem:[%s6245] sm:$0xff]
  %v6247 = vld [vmem:[%s6245 + $0x8] sm:$0xff]
  %v6248 = vld [vmem:[%s6245 + $0x18] sm:$0xff]
  %v6249 = vld [vmem:[%s6245 + $0x20] sm:$0xff]
  %v6250 = vld [vmem:[%s6245 + $0x30] sm:$0xff]
  %v6251 = vld [vmem:[%s6245 + $0x38] sm:$0xff]
  %v6252 = vld [vmem:[%s6245 + $0x48] sm:$0xff]
  %v6253 = vld [vmem:[%s6245 + $0x50] sm:$0xff]
  %v6254 = vld [vmem:[%s6245 + $0x60] sm:$0xff]
  %v6255 = vld [vmem:[%s6245 + $0x68] sm:$0xff]
  %v6256 = vld [vmem:[%s6245 + $0x78] sm:$0xff]
  %v6257 = vld [vmem:[%s6245 + $0x80] sm:$0xff]
  %v6258 = vld [vmem:[%s6245 + $0x90] sm:$0xff]
  %v6259 = vld [vmem:[%s6245 + $0x98] sm:$0xff]
  %v6260 = vld [vmem:[%s6245 + $0xa8] sm:$0xff]
  %v6261 = vld [vmem:[%s6245 + $0xb0] sm:$0xff]
  %v6262 = vld [vmem:[%s6245 + $0xc0] sm:$0xff]
  %v6263 = vld [vmem:[%s6245 + $0xc8] sm:$0xff]
  %v6264 = vld [vmem:[%s6245 + $0xd8] sm:$0xff]
  %v6265 = vld [vmem:[%s6245 + $0xe0] sm:$0xff]
  %v6266 = vld [vmem:[%s6245 + $0xf0] sm:$0xff]
  %v6267 = vld [vmem:[%s6245 + $0xf8] sm:$0xff]
  %v6268 = vld [vmem:[%s6245 + $0x108] sm:$0xff]
  %v6269 = vld [vmem:[%s6245 + $0x110] sm:$0xff]
  %v6270 = vld [vmem:[%s6245 + $0x120] sm:$0xff]
  %v6271 = vld [vmem:[%s6245 + $0x128] sm:$0xff]
  %v6272 = vld [vmem:[%s6245 + $0x138] sm:$0xff]
  %v6273 = vld [vmem:[%s6245 + $0x140] sm:$0xff]
  %v6274 = vld [vmem:[%s6245 + $0x150] sm:$0xff]
  %v6275 = vld [vmem:[%s6245 + $0x158] sm:$0xff]
  %v6276 = vld [vmem:[%s6245 + $0x168] sm:$0xff]
  %v6277 = vld [vmem:[%s6245 + $0x170] sm:$0xff]
  %v6278 = vld [vmem:[%s6245 + $0x1b0] sm:$0xff]
  %v6279 = vld [vmem:[%s6245 + $0x1b8] sm:$0xff]
  %v6280 = vld [vmem:[%s6245 + $0x1c8] sm:$0xff]
  %v6281 = vld [vmem:[%s6245 + $0x1d0] sm:$0xff]
  %v6282 = vld [vmem:[%s6245 + $0x1e0] sm:$0xff]
  %v6283 = vld [vmem:[%s6245 + $0x1e8] sm:$0xff]
  %v6284 = vld [vmem:[%s6245 + $0x1f8] sm:$0xff]
  %v6285 = vld [vmem:[%s6245 + $0x200] sm:$0xff]
  %v6286 = vld [vmem:[%s6245 + $0x210] sm:$0xff]
  %v6287 = vld [vmem:[%s6245 + $0x218] sm:$0xff]
  %v6288 = vld [vmem:[%s6245 + $0x228] sm:$0xff]
  %v6289 = vld [vmem:[%s6245 + $0x230] sm:$0xff]
  %v6290 = vld [vmem:[%s6245 + $0x240] sm:$0xff]
  %v6291 = vld [vmem:[%s6245 + $0x248] sm:$0xff]
  %v6292 = vld [vmem:[%s6245 + $0x258] sm:$0xff]
  %v6293 = vld [vmem:[%s6245 + $0x260] sm:$0xff]
  %v6294 = vld [vmem:[%s6245 + $0x270] sm:$0xff]
  %v6295 = vld [vmem:[%s6245 + $0x278] sm:$0xff]
  %v6296 = vld [vmem:[%s6245 + $0x288] sm:$0xff]
  %v6297 = vld [vmem:[%s6245 + $0x290] sm:$0xff]
  %v6298 = vld [vmem:[%s6245 + $0x2a0] sm:$0xff]
  %v6299 = vld [vmem:[%s6245 + $0x2a8] sm:$0xff]
  %v6300 = vld [vmem:[%s6245 + $0x2b8] sm:$0xff]
  %v6301 = vld [vmem:[%s6245 + $0x2c0] sm:$0xff]
  %v6302 = vld [vmem:[%s6245 + $0x2d0] sm:$0xff]
  %v6303 = vld [vmem:[%s6245 + $0x2d8] sm:$0xff]
  %v6304 = vld [vmem:[%s6245 + $0x2e8] sm:$0xff]
  %v6305 = vld [vmem:[%s6245 + $0x2f0] sm:$0xff]
  %v6306 = vld [vmem:[%s6245 + $0x300] sm:$0xff]
  %v6307 = vld [vmem:[%s6245 + $0x308] sm:$0xff]
  %v6308 = vld [vmem:[%s6245 + $0x318] sm:$0xff]
  %v6309 = vld [vmem:[%s6245 + $0x320] sm:$0xff]
  %6374 = vrot.lane.b32.xlu0 %v6246, 48
  %v6375 = vpop.permute.xlu0 %6374
  %6376 = vrot.lane.b32.xlu0 %v6247, 48
  %v6377 = vpop.permute.xlu0 %6376
  %6378 = vrot.lane.b32.xlu0 %v6248, 48
  %v6379 = vpop.permute.xlu0 %6378
  %6380 = vrot.lane.b32.xlu0 %v6249, 48
  %v6381 = vpop.permute.xlu0 %6380
  %6382 = vrot.lane.b32.xlu0 %v6250, 48
  %v6383 = vpop.permute.xlu0 %6382
  %6384 = vrot.lane.b32.xlu0 %v6251, 48
  %v6385 = vpop.permute.xlu0 %6384
  %6386 = vrot.lane.b32.xlu0 %v6252, 48
  %v6387 = vpop.permute.xlu0 %6386
  %6388 = vrot.lane.b32.xlu0 %v6253, 48
  %v6389 = vpop.permute.xlu0 %6388
  %6390 = vrot.lane.b32.xlu0 %v6254, 48
  %v6391 = vpop.permute.xlu0 %6390
  %6392 = vrot.lane.b32.xlu0 %v6255, 48
  %v6393 = vpop.permute.xlu0 %6392
  %6394 = vrot.lane.b32.xlu0 %v6256, 48
  %v6395 = vpop.permute.xlu0 %6394
  %6396 = vrot.lane.b32.xlu0 %v6257, 48
  %v6397 = vpop.permute.xlu0 %6396
  %6398 = vrot.lane.b32.xlu0 %v6258, 48
  %v6399 = vpop.permute.xlu0 %6398
  %6400 = vrot.lane.b32.xlu0 %v6259, 48
  %v6401 = vpop.permute.xlu0 %6400
  %6402 = vrot.lane.b32.xlu0 %v6260, 48
  %v6403 = vpop.permute.xlu0 %6402
  %6404 = vrot.lane.b32.xlu0 %v6261, 48
  %v6405 = vpop.permute.xlu0 %6404
  %6406 = vrot.lane.b32.xlu0 %v6262, 48
  %v6407 = vpop.permute.xlu0 %6406
  %6408 = vrot.lane.b32.xlu0 %v6263, 48
  %v6409 = vpop.permute.xlu0 %6408
  %6410 = vrot.lane.b32.xlu0 %v6264, 48
  %v6411 = vpop.permute.xlu0 %6410
  %6412 = vrot.lane.b32.xlu0 %v6265, 48
  %v6413 = vpop.permute.xlu0 %6412
  %6414 = vrot.lane.b32.xlu0 %v6266, 48
  %v6415 = vpop.permute.xlu0 %6414
  %6416 = vrot.lane.b32.xlu0 %v6267, 48
  %v6417 = vpop.permute.xlu0 %6416
  %6418 = vrot.lane.b32.xlu0 %v6268, 48
  %v6419 = vpop.permute.xlu0 %6418
  %6420 = vrot.lane.b32.xlu0 %v6269, 48
  %v6421 = vpop.permute.xlu0 %6420
  %6422 = vrot.lane.b32.xlu0 %v6270, 48
  %v6423 = vpop.permute.xlu0 %6422
  %6424 = vrot.lane.b32.xlu0 %v6271, 48
  %v6425 = vpop.permute.xlu0 %6424
  %6426 = vrot.lane.b32.xlu0 %v6272, 48
  %v6427 = vpop.permute.xlu0 %6426
  %6428 = vrot.lane.b32.xlu0 %v6273, 48
  %v6429 = vpop.permute.xlu0 %6428
  %6430 = vrot.lane.b32.xlu0 %v6274, 48
  %v6431 = vpop.permute.xlu0 %6430
  %6432 = vrot.lane.b32.xlu0 %v6275, 48
  %v6433 = vpop.permute.xlu0 %6432
  %6434 = vrot.lane.b32.xlu0 %v6276, 48
  %v6435 = vpop.permute.xlu0 %6434
  %6436 = vrot.lane.b32.xlu0 %v6277, 48
  %v6437 = vpop.permute.xlu0 %6436
  %6438 = vrot.lane.b32.xlu0 %v6278, 48
  %v6439 = vpop.permute.xlu0 %6438
  %6440 = vrot.lane.b32.xlu0 %v6279, 48
  %v6441 = vpop.permute.xlu0 %6440
  %6442 = vrot.lane.b32.xlu0 %v6280, 48
  %v6443 = vpop.permute.xlu0 %6442
  %6444 = vrot.lane.b32.xlu0 %v6281, 48
  %v6445 = vpop.permute.xlu0 %6444
  %6446 = vrot.lane.b32.xlu0 %v6282, 48
  %v6447 = vpop.permute.xlu0 %6446
  %6448 = vrot.lane.b32.xlu0 %v6283, 48
  %v6449 = vpop.permute.xlu0 %6448
  %6450 = vrot.lane.b32.xlu0 %v6284, 48
  %v6451 = vpop.permute.xlu0 %6450
  %6452 = vrot.lane.b32.xlu0 %v6285, 48
  %v6453 = vpop.permute.xlu0 %6452
  %6454 = vrot.lane.b32.xlu0 %v6286, 48
  %v6455 = vpop.permute.xlu0 %6454
  %6456 = vrot.lane.b32.xlu0 %v6287, 48
  %v6457 = vpop.permute.xlu0 %6456
  %6458 = vrot.lane.b32.xlu0 %v6288, 48
  %v6459 = vpop.permute.xlu0 %6458
  %6460 = vrot.lane.b32.xlu0 %v6289, 48
  %v6461 = vpop.permute.xlu0 %6460
  %6462 = vrot.lane.b32.xlu0 %v6290, 48
  %v6463 = vpop.permute.xlu0 %6462
  %6464 = vrot.lane.b32.xlu0 %v6291, 48
  %v6465 = vpop.permute.xlu0 %6464
  %6466 = vrot.lane.b32.xlu0 %v6292, 48
  %v6467 = vpop.permute.xlu0 %6466
  %6468 = vrot.lane.b32.xlu0 %v6293, 48
  %v6469 = vpop.permute.xlu0 %6468
  %6470 = vrot.lane.b32.xlu0 %v6294, 48
  %v6471 = vpop.permute.xlu0 %6470
  %6472 = vrot.lane.b32.xlu0 %v6295, 48
  %v6473 = vpop.permute.xlu0 %6472
  %6474 = vrot.lane.b32.xlu0 %v6296, 48
  %v6475 = vpop.permute.xlu0 %6474
  %6476 = vrot.lane.b32.xlu0 %v6297, 48
  %v6477 = vpop.permute.xlu0 %6476
  %6478 = vrot.lane.b32.xlu0 %v6298, 48
  %v6479 = vpop.permute.xlu0 %6478
  %6480 = vrot.lane.b32.xlu0 %v6299, 48
  %v6481 = vpop.permute.xlu0 %6480
  %6482 = vrot.lane.b32.xlu0 %v6300, 48
  %v6483 = vpop.permute.xlu0 %6482
  %6484 = vrot.lane.b32.xlu0 %v6301, 48
  %v6485 = vpop.permute.xlu0 %6484
  %6486 = vrot.lane.b32.xlu0 %v6302, 48
  %v6487 = vpop.permute.xlu0 %6486
  %6488 = vrot.lane.b32.xlu0 %v6303, 48
  %v6489 = vpop.permute.xlu0 %6488
  %6490 = vrot.lane.b32.xlu0 %v6304, 48
  %v6491 = vpop.permute.xlu0 %6490
  %6492 = vrot.lane.b32.xlu0 %v6305, 48
  %v6493 = vpop.permute.xlu0 %6492
  %6494 = vrot.lane.b32.xlu0 %v6306, 48
  %v6495 = vpop.permute.xlu0 %6494
  %6496 = vrot.lane.b32.xlu0 %v6307, 48
  %v6497 = vpop.permute.xlu0 %6496
  %6498 = vrot.lane.b32.xlu0 %v6308, 48
  %v6499 = vpop.permute.xlu0 %6498
  %6500 = vrot.lane.b32.xlu0 %v6309, 48
  %v6501 = vpop.permute.xlu0 %6500
  %vm6566 = vcmask 458112
  %6567 = vst.msk [vmem:[#allocation4] sm:$0xff] %vm6566, %v6375
  %6568 = vst.msk [vmem:[#allocation4 + $0x8] sm:$0xff] %vm6566, %v6377
  %6569 = vst.msk [vmem:[#allocation4 + $0x10] sm:$0xff] %vm6566, %v6379
  %6570 = vst.msk [vmem:[#allocation4 + $0x18] sm:$0xff] %vm6566, %v6381
  %6571 = vst.msk [vmem:[#allocation4 + $0x20] sm:$0xff] %vm6566, %v6383
  %6572 = vst.msk [vmem:[#allocation4 + $0x28] sm:$0xff] %vm6566, %v6385
  %6573 = vst.msk [vmem:[#allocation4 + $0x30] sm:$0xff] %vm6566, %v6387
  %6574 = vst.msk [vmem:[#allocation4 + $0x38] sm:$0xff] %vm6566, %v6389
  %6575 = vst.msk [vmem:[#allocation4 + $0x40] sm:$0xff] %vm6566, %v6391
  %6576 = vst.msk [vmem:[#allocation4 + $0x48] sm:$0xff] %vm6566, %v6393
  %6577 = vst.msk [vmem:[#allocation4 + $0x50] sm:$0xff] %vm6566, %v6395
  %6578 = vst.msk [vmem:[#allocation4 + $0x58] sm:$0xff] %vm6566, %v6397
  %6579 = vst.msk [vmem:[#allocation4 + $0x60] sm:$0xff] %vm6566, %v6399
  %6580 = vst.msk [vmem:[#allocation4 + $0x68] sm:$0xff] %vm6566, %v6401
  %6581 = vst.msk [vmem:[#allocation4 + $0x70] sm:$0xff] %vm6566, %v6403
  %6582 = vst.msk [vmem:[#allocation4 + $0x78] sm:$0xff] %vm6566, %v6405
  %6583 = vst.msk [vmem:[#allocation4 + $0x80] sm:$0xff] %vm6566, %v6407
  %6584 = vst.msk [vmem:[#allocation4 + $0x88] sm:$0xff] %vm6566, %v6409
  %6585 = vst.msk [vmem:[#allocation4 + $0x90] sm:$0xff] %vm6566, %v6411
  %6586 = vst.msk [vmem:[#allocation4 + $0x98] sm:$0xff] %vm6566, %v6413
  %6587 = vst.msk [vmem:[#allocation4 + $0xa0] sm:$0xff] %vm6566, %v6415
  %6588 = vst.msk [vmem:[#allocation4 + $0xa8] sm:$0xff] %vm6566, %v6417
  %6589 = vst.msk [vmem:[#allocation4 + $0xb0] sm:$0xff] %vm6566, %v6419
  %6590 = vst.msk [vmem:[#allocation4 + $0xb8] sm:$0xff] %vm6566, %v6421
  %6591 = vst.msk [vmem:[#allocation4 + $0xc0] sm:$0xff] %vm6566, %v6423
  %6592 = vst.msk [vmem:[#allocation4 + $0xc8] sm:$0xff] %vm6566, %v6425
  %6593 = vst.msk [vmem:[#allocation4 + $0xd0] sm:$0xff] %vm6566, %v6427
  %6594 = vst.msk [vmem:[#allocation4 + $0xd8] sm:$0xff] %vm6566, %v6429
  %6595 = vst.msk [vmem:[#allocation4 + $0xe0] sm:$0xff] %vm6566, %v6431
  %6596 = vst.msk [vmem:[#allocation4 + $0xe8] sm:$0xff] %vm6566, %v6433
  %6597 = vst.msk [vmem:[#allocation4 + $0xf0] sm:$0xff] %vm6566, %v6435
  %6598 = vst.msk [vmem:[#allocation4 + $0xf8] sm:$0xff] %vm6566, %v6437
  %6599 = vst.msk [vmem:[#allocation4 + $0x100] sm:$0xff] %vm6566, %v6439
  %6600 = vst.msk [vmem:[#allocation4 + $0x108] sm:$0xff] %vm6566, %v6441
  %6601 = vst.msk [vmem:[#allocation4 + $0x110] sm:$0xff] %vm6566, %v6443
  %6602 = vst.msk [vmem:[#allocation4 + $0x118] sm:$0xff] %vm6566, %v6445
  %6603 = vst.msk [vmem:[#allocation4 + $0x120] sm:$0xff] %vm6566, %v6447
  %6604 = vst.msk [vmem:[#allocation4 + $0x128] sm:$0xff] %vm6566, %v6449
  %6605 = vst.msk [vmem:[#allocation4 + $0x130] sm:$0xff] %vm6566, %v6451
  %6606 = vst.msk [vmem:[#allocation4 + $0x138] sm:$0xff] %vm6566, %v6453
  %6607 = vst.msk [vmem:[#allocation4 + $0x140] sm:$0xff] %vm6566, %v6455
  %6608 = vst.msk [vmem:[#allocation4 + $0x148] sm:$0xff] %vm6566, %v6457
  %6609 = vst.msk [vmem:[#allocation4 + $0x150] sm:$0xff] %vm6566, %v6459
  %6610 = vst.msk [vmem:[#allocation4 + $0x158] sm:$0xff] %vm6566, %v6461
  %6611 = vst.msk [vmem:[#allocation4 + $0x160] sm:$0xff] %vm6566, %v6463
  %6612 = vst.msk [vmem:[#allocation4 + $0x168] sm:$0xff] %vm6566, %v6465
  %6613 = vst.msk [vmem:[#allocation4 + $0x170] sm:$0xff] %vm6566, %v6467
  %6614 = vst.msk [vmem:[#allocation4 + $0x178] sm:$0xff] %vm6566, %v6469
  %6615 = vst.msk [vmem:[#allocation4 + $0x180] sm:$0xff] %vm6566, %v6471
  %6616 = vst.msk [vmem:[#allocation4 + $0x188] sm:$0xff] %vm6566, %v6473
  %6617 = vst.msk [vmem:[#allocation4 + $0x190] sm:$0xff] %vm6566, %v6475
  %6618 = vst.msk [vmem:[#allocation4 + $0x198] sm:$0xff] %vm6566, %v6477
  %6619 = vst.msk [vmem:[#allocation4 + $0x1a0] sm:$0xff] %vm6566, %v6479
  %6620 = vst.msk [vmem:[#allocation4 + $0x1a8] sm:$0xff] %vm6566, %v6481
  %6621 = vst.msk [vmem:[#allocation4 + $0x1b0] sm:$0xff] %vm6566, %v6483
  %6622 = vst.msk [vmem:[#allocation4 + $0x1b8] sm:$0xff] %vm6566, %v6485
  %6623 = vst.msk [vmem:[#allocation4 + $0x1c0] sm:$0xff] %vm6566, %v6487
  %6624 = vst.msk [vmem:[#allocation4 + $0x1c8] sm:$0xff] %vm6566, %v6489
  %6625 = vst.msk [vmem:[#allocation4 + $0x1d0] sm:$0xff] %vm6566, %v6491
  %6626 = vst.msk [vmem:[#allocation4 + $0x1d8] sm:$0xff] %vm6566, %v6493
  %6627 = vst.msk [vmem:[#allocation4 + $0x1e0] sm:$0xff] %vm6566, %v6495
  %6628 = vst.msk [vmem:[#allocation4 + $0x1e8] sm:$0xff] %vm6566, %v6497
  %6629 = vst.msk [vmem:[#allocation4 + $0x1f0] sm:$0xff] %vm6566, %v6499
  %6630 = vst.msk [vmem:[#allocation4 + $0x1f8] sm:$0xff] %vm6566, %v6501
  %v6631 = vld [vmem:[%s6245 + $0x1] sm:$0xff]
  %v6632 = vld [vmem:[%s6245 + $0x9] sm:$0xff]
  %v6633 = vld [vmem:[%s6245 + $0x19] sm:$0xff]
  %v6634 = vld [vmem:[%s6245 + $0x21] sm:$0xff]
  %v6635 = vld [vmem:[%s6245 + $0x31] sm:$0xff]
  %v6636 = vld [vmem:[%s6245 + $0x39] sm:$0xff]
  %v6637 = vld [vmem:[%s6245 + $0x49] sm:$0xff]
  %v6638 = vld [vmem:[%s6245 + $0x51] sm:$0xff]
  %v6639 = vld [vmem:[%s6245 + $0x61] sm:$0xff]
  %v6640 = vld [vmem:[%s6245 + $0x69] sm:$0xff]
  %v6641 = vld [vmem:[%s6245 + $0x79] sm:$0xff]
  %v6642 = vld [vmem:[%s6245 + $0x81] sm:$0xff]
  %v6643 = vld [vmem:[%s6245 + $0x91] sm:$0xff]
  %v6644 = vld [vmem:[%s6245 + $0x99] sm:$0xff]
  %v6645 = vld [vmem:[%s6245 + $0xa9] sm:$0xff]
  %v6646 = vld [vmem:[%s6245 + $0xb1] sm:$0xff]
  %v6647 = vld [vmem:[%s6245 + $0xc1] sm:$0xff]
  %v6648 = vld [vmem:[%s6245 + $0xc9] sm:$0xff]
  %v6649 = vld [vmem:[%s6245 + $0xd9] sm:$0xff]
  %v6650 = vld [vmem:[%s6245 + $0xe1] sm:$0xff]
  %v6651 = vld [vmem:[%s6245 + $0xf1] sm:$0xff]
  %v6652 = vld [vmem:[%s6245 + $0xf9] sm:$0xff]
  %v6653 = vld [vmem:[%s6245 + $0x109] sm:$0xff]
  %v6654 = vld [vmem:[%s6245 + $0x111] sm:$0xff]
  %v6655 = vld [vmem:[%s6245 + $0x121] sm:$0xff]
  %v6656 = vld [vmem:[%s6245 + $0x129] sm:$0xff]
  %v6657 = vld [vmem:[%s6245 + $0x139] sm:$0xff]
  %v6658 = vld [vmem:[%s6245 + $0x141] sm:$0xff]
  %v6659 = vld [vmem:[%s6245 + $0x151] sm:$0xff]
  %v6660 = vld [vmem:[%s6245 + $0x159] sm:$0xff]
  %v6661 = vld [vmem:[%s6245 + $0x169] sm:$0xff]
  %v6662 = vld [vmem:[%s6245 + $0x171] sm:$0xff]
  %v6663 = vld [vmem:[%s6245 + $0x1b1] sm:$0xff]
  %v6664 = vld [vmem:[%s6245 + $0x1b9] sm:$0xff]
  %v6665 = vld [vmem:[%s6245 + $0x1c9] sm:$0xff]
  %v6666 = vld [vmem:[%s6245 + $0x1d1] sm:$0xff]
  %v6667 = vld [vmem:[%s6245 + $0x1e1] sm:$0xff]
  %v6668 = vld [vmem:[%s6245 + $0x1e9] sm:$0xff]
  %v6669 = vld [vmem:[%s6245 + $0x1f9] sm:$0xff]
  %v6670 = vld [vmem:[%s6245 + $0x201] sm:$0xff]
  %v6671 = vld [vmem:[%s6245 + $0x211] sm:$0xff]
  %v6672 = vld [vmem:[%s6245 + $0x219] sm:$0xff]
  %v6673 = vld [vmem:[%s6245 + $0x229] sm:$0xff]
  %v6674 = vld [vmem:[%s6245 + $0x231] sm:$0xff]
  %v6675 = vld [vmem:[%s6245 + $0x241] sm:$0xff]
  %v6676 = vld [vmem:[%s6245 + $0x249] sm:$0xff]
  %v6677 = vld [vmem:[%s6245 + $0x259] sm:$0xff]
  %v6678 = vld [vmem:[%s6245 + $0x261] sm:$0xff]
  %v6679 = vld [vmem:[%s6245 + $0x271] sm:$0xff]
  %v6680 = vld [vmem:[%s6245 + $0x279] sm:$0xff]
  %v6681 = vld [vmem:[%s6245 + $0x289] sm:$0xff]
  %v6682 = vld [vmem:[%s6245 + $0x291] sm:$0xff]
  %v6683 = vld [vmem:[%s6245 + $0x2a1] sm:$0xff]
  %v6684 = vld [vmem:[%s6245 + $0x2a9] sm:$0xff]
  %v6685 = vld [vmem:[%s6245 + $0x2b9] sm:$0xff]
  %v6686 = vld [vmem:[%s6245 + $0x2c1] sm:$0xff]
  %v6687 = vld [vmem:[%s6245 + $0x2d1] sm:$0xff]
  %v6688 = vld [vmem:[%s6245 + $0x2d9] sm:$0xff]
  %v6689 = vld [vmem:[%s6245 + $0x2e9] sm:$0xff]
  %v6690 = vld [vmem:[%s6245 + $0x2f1] sm:$0xff]
  %v6691 = vld [vmem:[%s6245 + $0x301] sm:$0xff]
  %v6692 = vld [vmem:[%s6245 + $0x309] sm:$0xff]
  %v6693 = vld [vmem:[%s6245 + $0x319] sm:$0xff]
  %v6694 = vld [vmem:[%s6245 + $0x321] sm:$0xff]
  %6759 = vrot.lane.b32.xlu0 %v6631, 56
  %v6760 = vpop.permute.xlu0 %6759
  %6761 = vrot.lane.b32.xlu0 %v6632, 56
  %v6762 = vpop.permute.xlu0 %6761
  %6763 = vrot.lane.b32.xlu0 %v6633, 56
  %v6764 = vpop.permute.xlu0 %6763
  %6765 = vrot.lane.b32.xlu0 %v6634, 56
  %v6766 = vpop.permute.xlu0 %6765
  %6767 = vrot.lane.b32.xlu0 %v6635, 56
  %v6768 = vpop.permute.xlu0 %6767
  %6769 = vrot.lane.b32.xlu0 %v6636, 56
  %v6770 = vpop.permute.xlu0 %6769
  %6771 = vrot.lane.b32.xlu0 %v6637, 56
  %v6772 = vpop.permute.xlu0 %6771
  %6773 = vrot.lane.b32.xlu0 %v6638, 56
  %v6774 = vpop.permute.xlu0 %6773
  %6775 = vrot.lane.b32.xlu0 %v6639, 56
  %v6776 = vpop.permute.xlu0 %6775
  %6777 = vrot.lane.b32.xlu0 %v6640, 56
  %v6778 = vpop.permute.xlu0 %6777
  %6779 = vrot.lane.b32.xlu0 %v6641, 56
  %v6780 = vpop.permute.xlu0 %6779
  %6781 = vrot.lane.b32.xlu0 %v6642, 56
  %v6782 = vpop.permute.xlu0 %6781
  %6783 = vrot.lane.b32.xlu0 %v6643, 56
  %v6784 = vpop.permute.xlu0 %6783
  %6785 = vrot.lane.b32.xlu0 %v6644, 56
  %v6786 = vpop.permute.xlu0 %6785
  %6787 = vrot.lane.b32.xlu0 %v6645, 56
  %v6788 = vpop.permute.xlu0 %6787
  %6789 = vrot.lane.b32.xlu0 %v6646, 56
  %v6790 = vpop.permute.xlu0 %6789
  %6791 = vrot.lane.b32.xlu0 %v6647, 56
  %v6792 = vpop.permute.xlu0 %6791
  %6793 = vrot.lane.b32.xlu0 %v6648, 56
  %v6794 = vpop.permute.xlu0 %6793
  %6795 = vrot.lane.b32.xlu0 %v6649, 56
  %v6796 = vpop.permute.xlu0 %6795
  %6797 = vrot.lane.b32.xlu0 %v6650, 56
  %v6798 = vpop.permute.xlu0 %6797
  %6799 = vrot.lane.b32.xlu0 %v6651, 56
  %v6800 = vpop.permute.xlu0 %6799
  %6801 = vrot.lane.b32.xlu0 %v6652, 56
  %v6802 = vpop.permute.xlu0 %6801
  %6803 = vrot.lane.b32.xlu0 %v6653, 56
  %v6804 = vpop.permute.xlu0 %6803
  %6805 = vrot.lane.b32.xlu0 %v6654, 56
  %v6806 = vpop.permute.xlu0 %6805
  %6807 = vrot.lane.b32.xlu0 %v6655, 56
  %v6808 = vpop.permute.xlu0 %6807
  %6809 = vrot.lane.b32.xlu0 %v6656, 56
  %v6810 = vpop.permute.xlu0 %6809
  %6811 = vrot.lane.b32.xlu0 %v6657, 56
  %v6812 = vpop.permute.xlu0 %6811
  %6813 = vrot.lane.b32.xlu0 %v6658, 56
  %v6814 = vpop.permute.xlu0 %6813
  %6815 = vrot.lane.b32.xlu0 %v6659, 56
  %v6816 = vpop.permute.xlu0 %6815
  %6817 = vrot.lane.b32.xlu0 %v6660, 56
  %v6818 = vpop.permute.xlu0 %6817
  %6819 = vrot.lane.b32.xlu0 %v6661, 56
  %v6820 = vpop.permute.xlu0 %6819
  %6821 = vrot.lane.b32.xlu0 %v6662, 56
  %v6822 = vpop.permute.xlu0 %6821
  %6823 = vrot.lane.b32.xlu0 %v6663, 56
  %v6824 = vpop.permute.xlu0 %6823
  %6825 = vrot.lane.b32.xlu0 %v6664, 56
  %v6826 = vpop.permute.xlu0 %6825
  %6827 = vrot.lane.b32.xlu0 %v6665, 56
  %v6828 = vpop.permute.xlu0 %6827
  %6829 = vrot.lane.b32.xlu0 %v6666, 56
  %v6830 = vpop.permute.xlu0 %6829
  %6831 = vrot.lane.b32.xlu0 %v6667, 56
  %v6832 = vpop.permute.xlu0 %6831
  %6833 = vrot.lane.b32.xlu0 %v6668, 56
  %v6834 = vpop.permute.xlu0 %6833
  %6835 = vrot.lane.b32.xlu0 %v6669, 56
  %v6836 = vpop.permute.xlu0 %6835
  %6837 = vrot.lane.b32.xlu0 %v6670, 56
  %v6838 = vpop.permute.xlu0 %6837
  %6839 = vrot.lane.b32.xlu0 %v6671, 56
  %v6840 = vpop.permute.xlu0 %6839
  %6841 = vrot.lane.b32.xlu0 %v6672, 56
  %v6842 = vpop.permute.xlu0 %6841
  %6843 = vrot.lane.b32.xlu0 %v6673, 56
  %v6844 = vpop.permute.xlu0 %6843
  %6845 = vrot.lane.b32.xlu0 %v6674, 56
  %v6846 = vpop.permute.xlu0 %6845
  %6847 = vrot.lane.b32.xlu0 %v6675, 56
  %v6848 = vpop.permute.xlu0 %6847
  %6849 = vrot.lane.b32.xlu0 %v6676, 56
  %v6850 = vpop.permute.xlu0 %6849
  %6851 = vrot.lane.b32.xlu0 %v6677, 56
  %v6852 = vpop.permute.xlu0 %6851
  %6853 = vrot.lane.b32.xlu0 %v6678, 56
  %v6854 = vpop.permute.xlu0 %6853
  %6855 = vrot.lane.b32.xlu0 %v6679, 56
  %v6856 = vpop.permute.xlu0 %6855
  %6857 = vrot.lane.b32.xlu0 %v6680, 56
  %v6858 = vpop.permute.xlu0 %6857
  %6859 = vrot.lane.b32.xlu0 %v6681, 56
  %v6860 = vpop.permute.xlu0 %6859
  %6861 = vrot.lane.b32.xlu0 %v6682, 56
  %v6862 = vpop.permute.xlu0 %6861
  %6863 = vrot.lane.b32.xlu0 %v6683, 56
  %v6864 = vpop.permute.xlu0 %6863
  %6865 = vrot.lane.b32.xlu0 %v6684, 56
  %v6866 = vpop.permute.xlu0 %6865
  %6867 = vrot.lane.b32.xlu0 %v6685, 56
  %v6868 = vpop.permute.xlu0 %6867
  %6869 = vrot.lane.b32.xlu0 %v6686, 56
  %v6870 = vpop.permute.xlu0 %6869
  %6871 = vrot.lane.b32.xlu0 %v6687, 56
  %v6872 = vpop.permute.xlu0 %6871
  %6873 = vrot.lane.b32.xlu0 %v6688, 56
  %v6874 = vpop.permute.xlu0 %6873
  %6875 = vrot.lane.b32.xlu0 %v6689, 56
  %v6876 = vpop.permute.xlu0 %6875
  %6877 = vrot.lane.b32.xlu0 %v6690, 56
  %v6878 = vpop.permute.xlu0 %6877
  %6879 = vrot.lane.b32.xlu0 %v6691, 56
  %v6880 = vpop.permute.xlu0 %6879
  %6881 = vrot.lane.b32.xlu0 %v6692, 56
  %v6882 = vpop.permute.xlu0 %6881
  %6883 = vrot.lane.b32.xlu0 %v6693, 56
  %v6884 = vpop.permute.xlu0 %6883
  %6885 = vrot.lane.b32.xlu0 %v6694, 56
  %v6886 = vpop.permute.xlu0 %6885
  %vm6951 = vcmask 523712
  %6952 = vst.msk [vmem:[#allocation4] sm:$0xff] %vm6951, %v6760
  %6953 = vst.msk [vmem:[#allocation4 + $0x8] sm:$0xff] %vm6951, %v6762
  %6954 = vst.msk [vmem:[#allocation4 + $0x10] sm:$0xff] %vm6951, %v6764
  %6955 = vst.msk [vmem:[#allocation4 + $0x18] sm:$0xff] %vm6951, %v6766
  %6956 = vst.msk [vmem:[#allocation4 + $0x20] sm:$0xff] %vm6951, %v6768
  %6957 = vst.msk [vmem:[#allocation4 + $0x28] sm:$0xff] %vm6951, %v6770
  %6958 = vst.msk [vmem:[#allocation4 + $0x30] sm:$0xff] %vm6951, %v6772
  %6959 = vst.msk [vmem:[#allocation4 + $0x38] sm:$0xff] %vm6951, %v6774
  %6960 = vst.msk [vmem:[#allocation4 + $0x40] sm:$0xff] %vm6951, %v6776
  %6961 = vst.msk [vmem:[#allocation4 + $0x48] sm:$0xff] %vm6951, %v6778
  %6962 = vst.msk [vmem:[#allocation4 + $0x50] sm:$0xff] %vm6951, %v6780
  %6963 = vst.msk [vmem:[#allocation4 + $0x58] sm:$0xff] %vm6951, %v6782
  %6964 = vst.msk [vmem:[#allocation4 + $0x60] sm:$0xff] %vm6951, %v6784
  %6965 = vst.msk [vmem:[#allocation4 + $0x68] sm:$0xff] %vm6951, %v6786
  %6966 = vst.msk [vmem:[#allocation4 + $0x70] sm:$0xff] %vm6951, %v6788
  %6967 = vst.msk [vmem:[#allocation4 + $0x78] sm:$0xff] %vm6951, %v6790
  %6968 = vst.msk [vmem:[#allocation4 + $0x80] sm:$0xff] %vm6951, %v6792
  %6969 = vst.msk [vmem:[#allocation4 + $0x88] sm:$0xff] %vm6951, %v6794
  %6970 = vst.msk [vmem:[#allocation4 + $0x90] sm:$0xff] %vm6951, %v6796
  %6971 = vst.msk [vmem:[#allocation4 + $0x98] sm:$0xff] %vm6951, %v6798
  %6972 = vst.msk [vmem:[#allocation4 + $0xa0] sm:$0xff] %vm6951, %v6800
  %6973 = vst.msk [vmem:[#allocation4 + $0xa8] sm:$0xff] %vm6951, %v6802
  %6974 = vst.msk [vmem:[#allocation4 + $0xb0] sm:$0xff] %vm6951, %v6804
  %6975 = vst.msk [vmem:[#allocation4 + $0xb8] sm:$0xff] %vm6951, %v6806
  %6976 = vst.msk [vmem:[#allocation4 + $0xc0] sm:$0xff] %vm6951, %v6808
  %6977 = vst.msk [vmem:[#allocation4 + $0xc8] sm:$0xff] %vm6951, %v6810
  %6978 = vst.msk [vmem:[#allocation4 + $0xd0] sm:$0xff] %vm6951, %v6812
  %6979 = vst.msk [vmem:[#allocation4 + $0xd8] sm:$0xff] %vm6951, %v6814
  %6980 = vst.msk [vmem:[#allocation4 + $0xe0] sm:$0xff] %vm6951, %v6816
  %6981 = vst.msk [vmem:[#allocation4 + $0xe8] sm:$0xff] %vm6951, %v6818
  %6982 = vst.msk [vmem:[#allocation4 + $0xf0] sm:$0xff] %vm6951, %v6820
  %6983 = vst.msk [vmem:[#allocation4 + $0xf8] sm:$0xff] %vm6951, %v6822
  %6984 = vst.msk [vmem:[#allocation4 + $0x100] sm:$0xff] %vm6951, %v6824
  %6985 = vst.msk [vmem:[#allocation4 + $0x108] sm:$0xff] %vm6951, %v6826
  %6986 = vst.msk [vmem:[#allocation4 + $0x110] sm:$0xff] %vm6951, %v6828
  %6987 = vst.msk [vmem:[#allocation4 + $0x118] sm:$0xff] %vm6951, %v6830
  %6988 = vst.msk [vmem:[#allocation4 + $0x120] sm:$0xff] %vm6951, %v6832
  %6989 = vst.msk [vmem:[#allocation4 + $0x128] sm:$0xff] %vm6951, %v6834
  %6990 = vst.msk [vmem:[#allocation4 + $0x130] sm:$0xff] %vm6951, %v6836
  %6991 = vst.msk [vmem:[#allocation4 + $0x138] sm:$0xff] %vm6951, %v6838
  %6992 = vst.msk [vmem:[#allocation4 + $0x140] sm:$0xff] %vm6951, %v6840
  %6993 = vst.msk [vmem:[#allocation4 + $0x148] sm:$0xff] %vm6951, %v6842
  %6994 = vst.msk [vmem:[#allocation4 + $0x150] sm:$0xff] %vm6951, %v6844
  %6995 = vst.msk [vmem:[#allocation4 + $0x158] sm:$0xff] %vm6951, %v6846
  %6996 = vst.msk [vmem:[#allocation4 + $0x160] sm:$0xff] %vm6951, %v6848
  %6997 = vst.msk [vmem:[#allocation4 + $0x168] sm:$0xff] %vm6951, %v6850
  %6998 = vst.msk [vmem:[#allocation4 + $0x170] sm:$0xff] %vm6951, %v6852
  %6999 = vst.msk [vmem:[#allocation4 + $0x178] sm:$0xff] %vm6951, %v6854
  %7000 = vst.msk [vmem:[#allocation4 + $0x180] sm:$0xff] %vm6951, %v6856
  %7001 = vst.msk [vmem:[#allocation4 + $0x188] sm:$0xff] %vm6951, %v6858
  %7002 = vst.msk [vmem:[#allocation4 + $0x190] sm:$0xff] %vm6951, %v6860
  %7003 = vst.msk [vmem:[#allocation4 + $0x198] sm:$0xff] %vm6951, %v6862
  %7004 = vst.msk [vmem:[#allocation4 + $0x1a0] sm:$0xff] %vm6951, %v6864
  %7005 = vst.msk [vmem:[#allocation4 + $0x1a8] sm:$0xff] %vm6951, %v6866
  %7006 = vst.msk [vmem:[#allocation4 + $0x1b0] sm:$0xff] %vm6951, %v6868
  %7007 = vst.msk [vmem:[#allocation4 + $0x1b8] sm:$0xff] %vm6951, %v6870
  %7008 = vst.msk [vmem:[#allocation4 + $0x1c0] sm:$0xff] %vm6951, %v6872
  %7009 = vst.msk [vmem:[#allocation4 + $0x1c8] sm:$0xff] %vm6951, %v6874
  %7010 = vst.msk [vmem:[#allocation4 + $0x1d0] sm:$0xff] %vm6951, %v6876
  %7011 = vst.msk [vmem:[#allocation4 + $0x1d8] sm:$0xff] %vm6951, %v6878
  %7012 = vst.msk [vmem:[#allocation4 + $0x1e0] sm:$0xff] %vm6951, %v6880
  %7013 = vst.msk [vmem:[#allocation4 + $0x1e8] sm:$0xff] %vm6951, %v6882
  %7014 = vst.msk [vmem:[#allocation4 + $0x1f0] sm:$0xff] %vm6951, %v6884
  %7015 = vst.msk [vmem:[#allocation4 + $0x1f8] sm:$0xff] %vm6951, %v6886
  %v7016 = vld [vmem:[%s6245 + $0x2] sm:$0xff]
  %v7017 = vld [vmem:[%s6245 + $0xa] sm:$0xff]
  %v7018 = vld [vmem:[%s6245 + $0x1a] sm:$0xff]
  %v7019 = vld [vmem:[%s6245 + $0x22] sm:$0xff]
  %v7020 = vld [vmem:[%s6245 + $0x32] sm:$0xff]
  %v7021 = vld [vmem:[%s6245 + $0x3a] sm:$0xff]
  %v7022 = vld [vmem:[%s6245 + $0x4a] sm:$0xff]
  %v7023 = vld [vmem:[%s6245 + $0x52] sm:$0xff]
  %v7024 = vld [vmem:[%s6245 + $0x62] sm:$0xff]
  %v7025 = vld [vmem:[%s6245 + $0x6a] sm:$0xff]
  %v7026 = vld [vmem:[%s6245 + $0x7a] sm:$0xff]
  %v7027 = vld [vmem:[%s6245 + $0x82] sm:$0xff]
  %v7028 = vld [vmem:[%s6245 + $0x92] sm:$0xff]
  %v7029 = vld [vmem:[%s6245 + $0x9a] sm:$0xff]
  %v7030 = vld [vmem:[%s6245 + $0xaa] sm:$0xff]
  %v7031 = vld [vmem:[%s6245 + $0xb2] sm:$0xff]
  %v7032 = vld [vmem:[%s6245 + $0xc2] sm:$0xff]
  %v7033 = vld [vmem:[%s6245 + $0xca] sm:$0xff]
  %v7034 = vld [vmem:[%s6245 + $0xda] sm:$0xff]
  %v7035 = vld [vmem:[%s6245 + $0xe2] sm:$0xff]
  %v7036 = vld [vmem:[%s6245 + $0xf2] sm:$0xff]
  %v7037 = vld [vmem:[%s6245 + $0xfa] sm:$0xff]
  %v7038 = vld [vmem:[%s6245 + $0x10a] sm:$0xff]
  %v7039 = vld [vmem:[%s6245 + $0x112] sm:$0xff]
  %v7040 = vld [vmem:[%s6245 + $0x122] sm:$0xff]
  %v7041 = vld [vmem:[%s6245 + $0x12a] sm:$0xff]
  %v7042 = vld [vmem:[%s6245 + $0x13a] sm:$0xff]
  %v7043 = vld [vmem:[%s6245 + $0x142] sm:$0xff]
  %v7044 = vld [vmem:[%s6245 + $0x152] sm:$0xff]
  %v7045 = vld [vmem:[%s6245 + $0x15a] sm:$0xff]
  %v7046 = vld [vmem:[%s6245 + $0x16a] sm:$0xff]
  %v7047 = vld [vmem:[%s6245 + $0x172] sm:$0xff]
  %v7048 = vld [vmem:[%s6245 + $0x1b2] sm:$0xff]
  %v7049 = vld [vmem:[%s6245 + $0x1ba] sm:$0xff]
  %v7050 = vld [vmem:[%s6245 + $0x1ca] sm:$0xff]
  %v7051 = vld [vmem:[%s6245 + $0x1d2] sm:$0xff]
  %v7052 = vld [vmem:[%s6245 + $0x1e2] sm:$0xff]
  %v7053 = vld [vmem:[%s6245 + $0x1ea] sm:$0xff]
  %v7054 = vld [vmem:[%s6245 + $0x1fa] sm:$0xff]
  %v7055 = vld [vmem:[%s6245 + $0x202] sm:$0xff]
  %v7056 = vld [vmem:[%s6245 + $0x212] sm:$0xff]
  %v7057 = vld [vmem:[%s6245 + $0x21a] sm:$0xff]
  %v7058 = vld [vmem:[%s6245 + $0x22a] sm:$0xff]
  %v7059 = vld [vmem:[%s6245 + $0x232] sm:$0xff]
  %v7060 = vld [vmem:[%s6245 + $0x242] sm:$0xff]
  %v7061 = vld [vmem:[%s6245 + $0x24a] sm:$0xff]
  %v7062 = vld [vmem:[%s6245 + $0x25a] sm:$0xff]
  %v7063 = vld [vmem:[%s6245 + $0x262] sm:$0xff]
  %v7064 = vld [vmem:[%s6245 + $0x272] sm:$0xff]
  %v7065 = vld [vmem:[%s6245 + $0x27a] sm:$0xff]
  %v7066 = vld [vmem:[%s6245 + $0x28a] sm:$0xff]
  %v7067 = vld [vmem:[%s6245 + $0x292] sm:$0xff]
  %v7068 = vld [vmem:[%s6245 + $0x2a2] sm:$0xff]
  %v7069 = vld [vmem:[%s6245 + $0x2aa] sm:$0xff]
  %v7070 = vld [vmem:[%s6245 + $0x2ba] sm:$0xff]
  %v7071 = vld [vmem:[%s6245 + $0x2c2] sm:$0xff]
  %v7072 = vld [vmem:[%s6245 + $0x2d2] sm:$0xff]
  %v7073 = vld [vmem:[%s6245 + $0x2da] sm:$0xff]
  %v7074 = vld [vmem:[%s6245 + $0x2ea] sm:$0xff]
  %v7075 = vld [vmem:[%s6245 + $0x2f2] sm:$0xff]
  %v7076 = vld [vmem:[%s6245 + $0x302] sm:$0xff]
  %v7077 = vld [vmem:[%s6245 + $0x30a] sm:$0xff]
  %v7078 = vld [vmem:[%s6245 + $0x31a] sm:$0xff]
  %v7079 = vld [vmem:[%s6245 + $0x322] sm:$0xff]
  %7144 = vrot.lane.b32.xlu0 %v7016, 64
  %v7145 = vpop.permute.xlu0 %7144
  %7146 = vrot.lane.b32.xlu0 %v7017, 64
  %v7147 = vpop.permute.xlu0 %7146
  %7148 = vrot.lane.b32.xlu0 %v7018, 64
  %v7149 = vpop.permute.xlu0 %7148
  %7150 = vrot.lane.b32.xlu0 %v7019, 64
  %v7151 = vpop.permute.xlu0 %7150
  %7152 = vrot.lane.b32.xlu0 %v7020, 64
  %v7153 = vpop.permute.xlu0 %7152
  %7154 = vrot.lane.b32.xlu0 %v7021, 64
  %v7155 = vpop.permute.xlu0 %7154
  %7156 = vrot.lane.b32.xlu0 %v7022, 64
  %v7157 = vpop.permute.xlu0 %7156
  %7158 = vrot.lane.b32.xlu0 %v7023, 64
  %v7159 = vpop.permute.xlu0 %7158
  %7160 = vrot.lane.b32.xlu0 %v7024, 64
  %v7161 = vpop.permute.xlu0 %7160
  %7162 = vrot.lane.b32.xlu0 %v7025, 64
  %v7163 = vpop.permute.xlu0 %7162
  %7164 = vrot.lane.b32.xlu0 %v7026, 64
  %v7165 = vpop.permute.xlu0 %7164
  %7166 = vrot.lane.b32.xlu0 %v7027, 64
  %v7167 = vpop.permute.xlu0 %7166
  %7168 = vrot.lane.b32.xlu0 %v7028, 64
  %v7169 = vpop.permute.xlu0 %7168
  %7170 = vrot.lane.b32.xlu0 %v7029, 64
  %v7171 = vpop.permute.xlu0 %7170
  %7172 = vrot.lane.b32.xlu0 %v7030, 64
  %v7173 = vpop.permute.xlu0 %7172
  %7174 = vrot.lane.b32.xlu0 %v7031, 64
  %v7175 = vpop.permute.xlu0 %7174
  %7176 = vrot.lane.b32.xlu0 %v7032, 64
  %v7177 = vpop.permute.xlu0 %7176
  %7178 = vrot.lane.b32.xlu0 %v7033, 64
  %v7179 = vpop.permute.xlu0 %7178
  %7180 = vrot.lane.b32.xlu0 %v7034, 64
  %v7181 = vpop.permute.xlu0 %7180
  %7182 = vrot.lane.b32.xlu0 %v7035, 64
  %v7183 = vpop.permute.xlu0 %7182
  %7184 = vrot.lane.b32.xlu0 %v7036, 64
  %v7185 = vpop.permute.xlu0 %7184
  %7186 = vrot.lane.b32.xlu0 %v7037, 64
  %v7187 = vpop.permute.xlu0 %7186
  %7188 = vrot.lane.b32.xlu0 %v7038, 64
  %v7189 = vpop.permute.xlu0 %7188
  %7190 = vrot.lane.b32.xlu0 %v7039, 64
  %v7191 = vpop.permute.xlu0 %7190
  %7192 = vrot.lane.b32.xlu0 %v7040, 64
  %v7193 = vpop.permute.xlu0 %7192
  %7194 = vrot.lane.b32.xlu0 %v7041, 64
  %v7195 = vpop.permute.xlu0 %7194
  %7196 = vrot.lane.b32.xlu0 %v7042, 64
  %v7197 = vpop.permute.xlu0 %7196
  %7198 = vrot.lane.b32.xlu0 %v7043, 64
  %v7199 = vpop.permute.xlu0 %7198
  %7200 = vrot.lane.b32.xlu0 %v7044, 64
  %v7201 = vpop.permute.xlu0 %7200
  %7202 = vrot.lane.b32.xlu0 %v7045, 64
  %v7203 = vpop.permute.xlu0 %7202
  %7204 = vrot.lane.b32.xlu0 %v7046, 64
  %v7205 = vpop.permute.xlu0 %7204
  %7206 = vrot.lane.b32.xlu0 %v7047, 64
  %v7207 = vpop.permute.xlu0 %7206
  %7208 = vrot.lane.b32.xlu0 %v7048, 64
  %v7209 = vpop.permute.xlu0 %7208
  %7210 = vrot.lane.b32.xlu0 %v7049, 64
  %v7211 = vpop.permute.xlu0 %7210
  %7212 = vrot.lane.b32.xlu0 %v7050, 64
  %v7213 = vpop.permute.xlu0 %7212
  %7214 = vrot.lane.b32.xlu0 %v7051, 64
  %v7215 = vpop.permute.xlu0 %7214
  %7216 = vrot.lane.b32.xlu0 %v7052, 64
  %v7217 = vpop.permute.xlu0 %7216
  %7218 = vrot.lane.b32.xlu0 %v7053, 64
  %v7219 = vpop.permute.xlu0 %7218
  %7220 = vrot.lane.b32.xlu0 %v7054, 64
  %v7221 = vpop.permute.xlu0 %7220
  %7222 = vrot.lane.b32.xlu0 %v7055, 64
  %v7223 = vpop.permute.xlu0 %7222
  %7224 = vrot.lane.b32.xlu0 %v7056, 64
  %v7225 = vpop.permute.xlu0 %7224
  %7226 = vrot.lane.b32.xlu0 %v7057, 64
  %v7227 = vpop.permute.xlu0 %7226
  %7228 = vrot.lane.b32.xlu0 %v7058, 64
  %v7229 = vpop.permute.xlu0 %7228
  %7230 = vrot.lane.b32.xlu0 %v7059, 64
  %v7231 = vpop.permute.xlu0 %7230
  %7232 = vrot.lane.b32.xlu0 %v7060, 64
  %v7233 = vpop.permute.xlu0 %7232
  %7234 = vrot.lane.b32.xlu0 %v7061, 64
  %v7235 = vpop.permute.xlu0 %7234
  %7236 = vrot.lane.b32.xlu0 %v7062, 64
  %v7237 = vpop.permute.xlu0 %7236
  %7238 = vrot.lane.b32.xlu0 %v7063, 64
  %v7239 = vpop.permute.xlu0 %7238
  %7240 = vrot.lane.b32.xlu0 %v7064, 64
  %v7241 = vpop.permute.xlu0 %7240
  %7242 = vrot.lane.b32.xlu0 %v7065, 64
  %v7243 = vpop.permute.xlu0 %7242
  %7244 = vrot.lane.b32.xlu0 %v7066, 64
  %v7245 = vpop.permute.xlu0 %7244
  %7246 = vrot.lane.b32.xlu0 %v7067, 64
  %v7247 = vpop.permute.xlu0 %7246
  %7248 = vrot.lane.b32.xlu0 %v7068, 64
  %v7249 = vpop.permute.xlu0 %7248
  %7250 = vrot.lane.b32.xlu0 %v7069, 64
  %v7251 = vpop.permute.xlu0 %7250
  %7252 = vrot.lane.b32.xlu0 %v7070, 64
  %v7253 = vpop.permute.xlu0 %7252
  %7254 = vrot.lane.b32.xlu0 %v7071, 64
  %v7255 = vpop.permute.xlu0 %7254
  %7256 = vrot.lane.b32.xlu0 %v7072, 64
  %v7257 = vpop.permute.xlu0 %7256
  %7258 = vrot.lane.b32.xlu0 %v7073, 64
  %v7259 = vpop.permute.xlu0 %7258
  %7260 = vrot.lane.b32.xlu0 %v7074, 64
  %v7261 = vpop.permute.xlu0 %7260
  %7262 = vrot.lane.b32.xlu0 %v7075, 64
  %v7263 = vpop.permute.xlu0 %7262
  %7264 = vrot.lane.b32.xlu0 %v7076, 64
  %v7265 = vpop.permute.xlu0 %7264
  %7266 = vrot.lane.b32.xlu0 %v7077, 64
  %v7267 = vpop.permute.xlu0 %7266
  %7268 = vrot.lane.b32.xlu0 %v7078, 64
  %v7269 = vpop.permute.xlu0 %7268
  %7270 = vrot.lane.b32.xlu0 %v7079, 64
  %v7271 = vpop.permute.xlu0 %7270
  %vm7336 = vcmask 589312
  %7337 = vst.msk [vmem:[#allocation4] sm:$0xff] %vm7336, %v7145
  %7338 = vst.msk [vmem:[#allocation4 + $0x8] sm:$0xff] %vm7336, %v7147
  %7339 = vst.msk [vmem:[#allocation4 + $0x10] sm:$0xff] %vm7336, %v7149
  %7340 = vst.msk [vmem:[#allocation4 + $0x18] sm:$0xff] %vm7336, %v7151
  %7341 = vst.msk [vmem:[#allocation4 + $0x20] sm:$0xff] %vm7336, %v7153
  %7342 = vst.msk [vmem:[#allocation4 + $0x28] sm:$0xff] %vm7336, %v7155
  %7343 = vst.msk [vmem:[#allocation4 + $0x30] sm:$0xff] %vm7336, %v7157
  %7344 = vst.msk [vmem:[#allocation4 + $0x38] sm:$0xff] %vm7336, %v7159
  %7345 = vst.msk [vmem:[#allocation4 + $0x40] sm:$0xff] %vm7336, %v7161
  %7346 = vst.msk [vmem:[#allocation4 + $0x48] sm:$0xff] %vm7336, %v7163
  %7347 = vst.msk [vmem:[#allocation4 + $0x50] sm:$0xff] %vm7336, %v7165
  %7348 = vst.msk [vmem:[#allocation4 + $0x58] sm:$0xff] %vm7336, %v7167
  %7349 = vst.msk [vmem:[#allocation4 + $0x60] sm:$0xff] %vm7336, %v7169
  %7350 = vst.msk [vmem:[#allocation4 + $0x68] sm:$0xff] %vm7336, %v7171
  %7351 = vst.msk [vmem:[#allocation4 + $0x70] sm:$0xff] %vm7336, %v7173
  %7352 = vst.msk [vmem:[#allocation4 + $0x78] sm:$0xff] %vm7336, %v7175
  %7353 = vst.msk [vmem:[#allocation4 + $0x80] sm:$0xff] %vm7336, %v7177
  %7354 = vst.msk [vmem:[#allocation4 + $0x88] sm:$0xff] %vm7336, %v7179
  %7355 = vst.msk [vmem:[#allocation4 + $0x90] sm:$0xff] %vm7336, %v7181
  %7356 = vst.msk [vmem:[#allocation4 + $0x98] sm:$0xff] %vm7336, %v7183
  %7357 = vst.msk [vmem:[#allocation4 + $0xa0] sm:$0xff] %vm7336, %v7185
  %7358 = vst.msk [vmem:[#allocation4 + $0xa8] sm:$0xff] %vm7336, %v7187
  %7359 = vst.msk [vmem:[#allocation4 + $0xb0] sm:$0xff] %vm7336, %v7189
  %7360 = vst.msk [vmem:[#allocation4 + $0xb8] sm:$0xff] %vm7336, %v7191
  %7361 = vst.msk [vmem:[#allocation4 + $0xc0] sm:$0xff] %vm7336, %v7193
  %7362 = vst.msk [vmem:[#allocation4 + $0xc8] sm:$0xff] %vm7336, %v7195
  %7363 = vst.msk [vmem:[#allocation4 + $0xd0] sm:$0xff] %vm7336, %v7197
  %7364 = vst.msk [vmem:[#allocation4 + $0xd8] sm:$0xff] %vm7336, %v7199
  %7365 = vst.msk [vmem:[#allocation4 + $0xe0] sm:$0xff] %vm7336, %v7201
  %7366 = vst.msk [vmem:[#allocation4 + $0xe8] sm:$0xff] %vm7336, %v7203
  %7367 = vst.msk [vmem:[#allocation4 + $0xf0] sm:$0xff] %vm7336, %v7205
  %7368 = vst.msk [vmem:[#allocation4 + $0xf8] sm:$0xff] %vm7336, %v7207
  %7369 = vst.msk [vmem:[#allocation4 + $0x100] sm:$0xff] %vm7336, %v7209
  %7370 = vst.msk [vmem:[#allocation4 + $0x108] sm:$0xff] %vm7336, %v7211
  %7371 = vst.msk [vmem:[#allocation4 + $0x110] sm:$0xff] %vm7336, %v7213
  %7372 = vst.msk [vmem:[#allocation4 + $0x118] sm:$0xff] %vm7336, %v7215
  %7373 = vst.msk [vmem:[#allocation4 + $0x120] sm:$0xff] %vm7336, %v7217
  %7374 = vst.msk [vmem:[#allocation4 + $0x128] sm:$0xff] %vm7336, %v7219
  %7375 = vst.msk [vmem:[#allocation4 + $0x130] sm:$0xff] %vm7336, %v7221
  %7376 = vst.msk [vmem:[#allocation4 + $0x138] sm:$0xff] %vm7336, %v7223
  %7377 = vst.msk [vmem:[#allocation4 + $0x140] sm:$0xff] %vm7336, %v7225
  %7378 = vst.msk [vmem:[#allocation4 + $0x148] sm:$0xff] %vm7336, %v7227
  %7379 = vst.msk [vmem:[#allocation4 + $0x150] sm:$0xff] %vm7336, %v7229
  %7380 = vst.msk [vmem:[#allocation4 + $0x158] sm:$0xff] %vm7336, %v7231
  %7381 = vst.msk [vmem:[#allocation4 + $0x160] sm:$0xff] %vm7336, %v7233
  %7382 = vst.msk [vmem:[#allocation4 + $0x168] sm:$0xff] %vm7336, %v7235
  %7383 = vst.msk [vmem:[#allocation4 + $0x170] sm:$0xff] %vm7336, %v7237
  %7384 = vst.msk [vmem:[#allocation4 + $0x178] sm:$0xff] %vm7336, %v7239
  %7385 = vst.msk [vmem:[#allocation4 + $0x180] sm:$0xff] %vm7336, %v7241
  %7386 = vst.msk [vmem:[#allocation4 + $0x188] sm:$0xff] %vm7336, %v7243
  %7387 = vst.msk [vmem:[#allocation4 + $0x190] sm:$0xff] %vm7336, %v7245
  %7388 = vst.msk [vmem:[#allocation4 + $0x198] sm:$0xff] %vm7336, %v7247
  %7389 = vst.msk [vmem:[#allocation4 + $0x1a0] sm:$0xff] %vm7336, %v7249
  %7390 = vst.msk [vmem:[#allocation4 + $0x1a8] sm:$0xff] %vm7336, %v7251
  %7391 = vst.msk [vmem:[#allocation4 + $0x1b0] sm:$0xff] %vm7336, %v7253
  %7392 = vst.msk [vmem:[#allocation4 + $0x1b8] sm:$0xff] %vm7336, %v7255
  %7393 = vst.msk [vmem:[#allocation4 + $0x1c0] sm:$0xff] %vm7336, %v7257
  %7394 = vst.msk [vmem:[#allocation4 + $0x1c8] sm:$0xff] %vm7336, %v7259
  %7395 = vst.msk [vmem:[#allocation4 + $0x1d0] sm:$0xff] %vm7336, %v7261
  %7396 = vst.msk [vmem:[#allocation4 + $0x1d8] sm:$0xff] %vm7336, %v7263
  %7397 = vst.msk [vmem:[#allocation4 + $0x1e0] sm:$0xff] %vm7336, %v7265
  %7398 = vst.msk [vmem:[#allocation4 + $0x1e8] sm:$0xff] %vm7336, %v7267
  %7399 = vst.msk [vmem:[#allocation4 + $0x1f0] sm:$0xff] %vm7336, %v7269
  %7400 = vst.msk [vmem:[#allocation4 + $0x1f8] sm:$0xff] %vm7336, %v7271
  %v7401 = vld [vmem:[#allocation4] sm:$0xff]
  %v7402 = vld [vmem:[#allocation4 + $0x8] sm:$0xff]
  %v7403 = vld [vmem:[#allocation4 + $0x10] sm:$0xff]
  %v7404 = vld [vmem:[#allocation4 + $0x18] sm:$0xff]
  %v7405 = vld [vmem:[#allocation4 + $0x20] sm:$0xff]
  %v7406 = vld [vmem:[#allocation4 + $0x28] sm:$0xff]
  %v7407 = vld [vmem:[#allocation4 + $0x30] sm:$0xff]
  %v7408 = vld [vmem:[#allocation4 + $0x38] sm:$0xff]
  %v7409 = vld [vmem:[#allocation4 + $0x40] sm:$0xff]
  %v7410 = vld [vmem:[#allocation4 + $0x48] sm:$0xff]
  %v7411 = vld [vmem:[#allocation4 + $0x50] sm:$0xff]
  %v7412 = vld [vmem:[#allocation4 + $0x58] sm:$0xff]
  %v7413 = vld [vmem:[#allocation4 + $0x60] sm:$0xff]
  %v7414 = vld [vmem:[#allocation4 + $0x68] sm:$0xff]
  %v7415 = vld [vmem:[#allocation4 + $0x70] sm:$0xff]
  %v7416 = vld [vmem:[#allocation4 + $0x78] sm:$0xff]
  %v7417 = vld [vmem:[#allocation4 + $0x80] sm:$0xff]
  %v7418 = vld [vmem:[#allocation4 + $0x88] sm:$0xff]
  %v7419 = vld [vmem:[#allocation4 + $0x90] sm:$0xff]
  %v7420 = vld [vmem:[#allocation4 + $0x98] sm:$0xff]
  %v7421 = vld [vmem:[#allocation4 + $0xa0] sm:$0xff]
  %v7422 = vld [vmem:[#allocation4 + $0xa8] sm:$0xff]
  %v7423 = vld [vmem:[#allocation4 + $0xb0] sm:$0xff]
  %v7424 = vld [vmem:[#allocation4 + $0xb8] sm:$0xff]
  %v7425 = vld [vmem:[#allocation4 + $0xc0] sm:$0xff]
  %v7426 = vld [vmem:[#allocation4 + $0xc8] sm:$0xff]
  %v7427 = vld [vmem:[#allocation4 + $0xd0] sm:$0xff]
  %v7428 = vld [vmem:[#allocation4 + $0xd8] sm:$0xff]
  %v7429 = vld [vmem:[#allocation4 + $0xe0] sm:$0xff]
  %v7430 = vld [vmem:[#allocation4 + $0xe8] sm:$0xff]
  %v7431 = vld [vmem:[#allocation4 + $0xf0] sm:$0xff]
  %v7432 = vld [vmem:[#allocation4 + $0xf8] sm:$0xff]
  %v7433 = vld [vmem:[#allocation4 + $0x100] sm:$0xff]
  %v7434 = vld [vmem:[#allocation4 + $0x108] sm:$0xff]
  %v7435 = vld [vmem:[#allocation4 + $0x110] sm:$0xff]
  %v7436 = vld [vmem:[#allocation4 + $0x118] sm:$0xff]
  %v7437 = vld [vmem:[#allocation4 + $0x120] sm:$0xff]
  %v7438 = vld [vmem:[#allocation4 + $0x128] sm:$0xff]
  %v7439 = vld [vmem:[#allocation4 + $0x130] sm:$0xff]
  %v7440 = vld [vmem:[#allocation4 + $0x138] sm:$0xff]
  %v7441 = vld [vmem:[#allocation4 + $0x140] sm:$0xff]
  %v7442 = vld [vmem:[#allocation4 + $0x148] sm:$0xff]
  %v7443 = vld [vmem:[#allocation4 + $0x150] sm:$0xff]
  %v7444 = vld [vmem:[#allocation4 + $0x158] sm:$0xff]
  %v7445 = vld [vmem:[#allocation4 + $0x160] sm:$0xff]
  %v7446 = vld [vmem:[#allocation4 + $0x168] sm:$0xff]
  %v7447 = vld [vmem:[#allocation4 + $0x170] sm:$0xff]
  %v7448 = vld [vmem:[#allocation4 + $0x178] sm:$0xff]
  %v7449 = vld [vmem:[#allocation4 + $0x180] sm:$0xff]
  %v7450 = vld [vmem:[#allocation4 + $0x188] sm:$0xff]
  %v7451 = vld [vmem:[#allocation4 + $0x190] sm:$0xff]
  %v7452 = vld [vmem:[#allocation4 + $0x198] sm:$0xff]
  %v7453 = vld [vmem:[#allocation4 + $0x1a0] sm:$0xff]
  %v7454 = vld [vmem:[#allocation4 + $0x1a8] sm:$0xff]
  %v7455 = vld [vmem:[#allocation4 + $0x1b0] sm:$0xff]
  %v7456 = vld [vmem:[#allocation4 + $0x1b8] sm:$0xff]
  %v7457 = vld [vmem:[#allocation4 + $0x1c0] sm:$0xff]
  %v7458 = vld [vmem:[#allocation4 + $0x1c8] sm:$0xff]
  %v7459 = vld [vmem:[#allocation4 + $0x1d0] sm:$0xff]
  %v7460 = vld [vmem:[#allocation4 + $0x1d8] sm:$0xff]
  %v7461 = vld [vmem:[#allocation4 + $0x1e0] sm:$0xff]
  %v7462 = vld [vmem:[#allocation4 + $0x1e8] sm:$0xff]
  %v7463 = vld [vmem:[#allocation4 + $0x1f0] sm:$0xff]
  %v7464 = vld [vmem:[#allocation4 + $0x1f8] sm:$0xff]
  %v7465 = vld [vmem:[%s3] sm:$0xff]
  %v7466 = vld [vmem:[%s3 + $0x8] sm:$0xff]
  %v7467 = vld [vmem:[%s3 + $0x10] sm:$0xff]
  %v7468 = vld [vmem:[%s3 + $0x18] sm:$0xff]
  %v7469 = vld [vmem:[%s3 + $0x20] sm:$0xff]
  %v7470 = vld [vmem:[%s3 + $0x28] sm:$0xff]
  %v7471 = vld [vmem:[%s3 + $0x30] sm:$0xff]
  %v7472 = vld [vmem:[%s3 + $0x38] sm:$0xff]
  %v7473 = vld [vmem:[%s3 + $0x40] sm:$0xff]
  %v7474 = vld [vmem:[%s4] sm:$0x1]
  %v7476 = vperm.slane %v7474, 0
  %vm7478 = vcmask 588800
  %v7480 = vsel %vm7478, %v7401, 0
  %v7483 = vsel %vm7478, %v7402, 0
  %v7486 = vsel %vm7478, %v7403, 0
  %v7489 = vsel %vm7478, %v7404, 0
  %v7492 = vsel %vm7478, %v7405, 0
  %v7495 = vsel %vm7478, %v7406, 0
  %v7498 = vsel %vm7478, %v7407, 0
  %v7501 = vsel %vm7478, %v7408, 0
  %v7504 = vsel %vm7478, %v7409, 0
  %v7507 = vsel %vm7478, %v7410, 0
  %v7510 = vsel %vm7478, %v7411, 0
  %v7513 = vsel %vm7478, %v7412, 0
  %v7516 = vsel %vm7478, %v7413, 0
  %v7519 = vsel %vm7478, %v7414, 0
  %v7522 = vsel %vm7478, %v7415, 0
  %v7525 = vsel %vm7478, %v7416, 0
  %v7528 = vsel %vm7478, %v7417, 0
  %v7531 = vsel %vm7478, %v7418, 0
  %v7534 = vsel %vm7478, %v7419, 0
  %v7537 = vsel %vm7478, %v7420, 0
  %v7540 = vsel %vm7478, %v7421, 0
  %v7543 = vsel %vm7478, %v7422, 0
  %v7546 = vsel %vm7478, %v7423, 0
  %v7549 = vsel %vm7478, %v7424, 0
  %v7552 = vsel %vm7478, %v7425, 0
  %v7555 = vsel %vm7478, %v7426, 0
  %v7558 = vsel %vm7478, %v7427, 0
  %v7561 = vsel %vm7478, %v7428, 0
  %v7564 = vsel %vm7478, %v7429, 0
  %v7567 = vsel %vm7478, %v7430, 0
  %v7570 = vsel %vm7478, %v7431, 0
  %v7573 = vsel %vm7478, %v7432, 0
  %v7576 = vsel %vm7478, %v7433, 0
  %v7579 = vsel %vm7478, %v7434, 0
  %v7582 = vsel %vm7478, %v7435, 0
  %v7585 = vsel %vm7478, %v7436, 0
  %v7588 = vsel %vm7478, %v7437, 0
  %v7591 = vsel %vm7478, %v7438, 0
  %v7594 = vsel %vm7478, %v7439, 0
  %v7597 = vsel %vm7478, %v7440, 0
  %v7600 = vsel %vm7478, %v7441, 0
  %v7603 = vsel %vm7478, %v7442, 0
  %v7606 = vsel %vm7478, %v7443, 0
  %v7609 = vsel %vm7478, %v7444, 0
  %v7612 = vsel %vm7478, %v7445, 0
  %v7615 = vsel %vm7478, %v7446, 0
  %v7618 = vsel %vm7478, %v7447, 0
  %v7621 = vsel %vm7478, %v7448, 0
  %v7624 = vsel %vm7478, %v7449, 0
  %v7627 = vsel %vm7478, %v7450, 0
  %v7630 = vsel %vm7478, %v7451, 0
  %v7633 = vsel %vm7478, %v7452, 0
  %v7636 = vsel %vm7478, %v7453, 0
  %v7639 = vsel %vm7478, %v7454, 0
  %v7642 = vsel %vm7478, %v7455, 0
  %v7645 = vsel %vm7478, %v7456, 0
  %v7648 = vsel %vm7478, %v7457, 0
  %v7651 = vsel %vm7478, %v7458, 0
  %v7654 = vsel %vm7478, %v7459, 0
  %v7657 = vsel %vm7478, %v7460, 0
  %v7660 = vsel %vm7478, %v7461, 0
  %v7663 = vsel %vm7478, %v7462, 0
  %v7666 = vsel %vm7478, %v7463, 0
  %v7669 = vsel %vm7478, %v7464, 0
  %7671 = vmatpush.msra.mxu0 0.0
  %7672 = vmatpush.msra.mxu0 0.0
  %7673 = vmatpush.msra.mxu0 0.0
  %7674 = vmatpush.msra.mxu0 0.0
  %7675 = vmatpush.msra.mxu0 0.0
  %7676 = vmatpush.msra.mxu0 0.0
  %7677 = vmatpush.msra.mxu0 0.0
  %7678 = vmatpush.msra.mxu0 %v7473
  %7679 = vmatpush.msra.mxu0 %v7472
  %7680 = vmatpush.msra.mxu0 %v7471
  %7681 = vmatpush.msra.mxu0 %v7470
  %7682 = vmatpush.msra.mxu0 %v7469
  %7683 = vmatpush.msra.mxu0 %v7468
  %7684 = vmatpush.msra.mxu0 %v7467
  %7685 = vmatpush.msra.mxu0 %v7466
  %7686 = vmatpush.msra.mxu0 %v7465
  %7687 = vmatmul.f32.gmra.mxu0 %v7480
  %v7688 = vpop.f32.mrf.mxu0
  %v7689 = vadd.f32 %v7476, %v7688
  %7690 = vmatmul.f32.gmra.mxu0 %v7483
  %v7691 = vpop.f32.mrf.mxu0
  %v7692 = vadd.f32 %v7476, %v7691
  %7693 = vmatmul.f32.gmra.mxu0 %v7486
  %v7694 = vpop.f32.mrf.mxu0
  %v7695 = vadd.f32 %v7476, %v7694
  %7696 = vmatmul.f32.gmra.mxu0 %v7489
  %v7697 = vpop.f32.mrf.mxu0
  %v7698 = vadd.f32 %v7476, %v7697
  %7699 = vmatmul.f32.gmra.mxu0 %v7492
  %v7700 = vpop.f32.mrf.mxu0
  %v7701 = vadd.f32 %v7476, %v7700
  %7702 = vmatmul.f32.gmra.mxu0 %v7495
  %v7703 = vpop.f32.mrf.mxu0
  %v7704 = vadd.f32 %v7476, %v7703
  %7705 = vmatmul.f32.gmra.mxu0 %v7498
  %v7706 = vpop.f32.mrf.mxu0
  %v7707 = vadd.f32 %v7476, %v7706
  %7708 = vmatmul.f32.gmra.mxu0 %v7501
  %v7709 = vpop.f32.mrf.mxu0
  %v7710 = vadd.f32 %v7476, %v7709
  %7711 = vmatmul.f32.gmra.mxu0 %v7504
  %v7712 = vpop.f32.mrf.mxu0
  %v7713 = vadd.f32 %v7476, %v7712
  %7714 = vmatmul.f32.gmra.mxu0 %v7507
  %v7715 = vpop.f32.mrf.mxu0
  %v7716 = vadd.f32 %v7476, %v7715
  %7717 = vmatmul.f32.gmra.mxu0 %v7510
  %v7718 = vpop.f32.mrf.mxu0
  %v7719 = vadd.f32 %v7476, %v7718
  %7720 = vmatmul.f32.gmra.mxu0 %v7513
  %v7721 = vpop.f32.mrf.mxu0
  %v7722 = vadd.f32 %v7476, %v7721
  %7723 = vmatmul.f32.gmra.mxu0 %v7516
  %v7724 = vpop.f32.mrf.mxu0
  %v7725 = vadd.f32 %v7476, %v7724
  %7726 = vmatmul.f32.gmra.mxu0 %v7519
  %v7727 = vpop.f32.mrf.mxu0
  %v7728 = vadd.f32 %v7476, %v7727
  %7729 = vmatmul.f32.gmra.mxu0 %v7522
  %v7730 = vpop.f32.mrf.mxu0
  %v7731 = vadd.f32 %v7476, %v7730
  %7732 = vmatmul.f32.gmra.mxu0 %v7525
  %v7733 = vpop.f32.mrf.mxu0
  %v7734 = vadd.f32 %v7476, %v7733
  %7735 = vmatmul.f32.gmra.mxu0 %v7528
  %v7736 = vpop.f32.mrf.mxu0
  %v7737 = vadd.f32 %v7476, %v7736
  %7738 = vmatmul.f32.gmra.mxu0 %v7531
  %v7739 = vpop.f32.mrf.mxu0
  %v7740 = vadd.f32 %v7476, %v7739
  %7741 = vmatmul.f32.gmra.mxu0 %v7534
  %v7742 = vpop.f32.mrf.mxu0
  %v7743 = vadd.f32 %v7476, %v7742
  %7744 = vmatmul.f32.gmra.mxu0 %v7537
  %v7745 = vpop.f32.mrf.mxu0
  %v7746 = vadd.f32 %v7476, %v7745
  %7747 = vmatmul.f32.gmra.mxu0 %v7540
  %v7748 = vpop.f32.mrf.mxu0
  %v7749 = vadd.f32 %v7476, %v7748
  %7750 = vmatmul.f32.gmra.mxu0 %v7543
  %v7751 = vpop.f32.mrf.mxu0
  %v7752 = vadd.f32 %v7476, %v7751
  %7753 = vmatmul.f32.gmra.mxu0 %v7546
  %v7754 = vpop.f32.mrf.mxu0
  %v7755 = vadd.f32 %v7476, %v7754
  %7756 = vmatmul.f32.gmra.mxu0 %v7549
  %v7757 = vpop.f32.mrf.mxu0
  %v7758 = vadd.f32 %v7476, %v7757
  %7759 = vmatmul.f32.gmra.mxu0 %v7552
  %v7760 = vpop.f32.mrf.mxu0
  %v7761 = vadd.f32 %v7476, %v7760
  %7762 = vmatmul.f32.gmra.mxu0 %v7555
  %v7763 = vpop.f32.mrf.mxu0
  %v7764 = vadd.f32 %v7476, %v7763
  %7765 = vmatmul.f32.gmra.mxu0 %v7558
  %v7766 = vpop.f32.mrf.mxu0
  %v7767 = vadd.f32 %v7476, %v7766
  %7768 = vmatmul.f32.gmra.mxu0 %v7561
  %v7769 = vpop.f32.mrf.mxu0
  %v7770 = vadd.f32 %v7476, %v7769
  %7771 = vmatmul.f32.gmra.mxu0 %v7564
  %v7772 = vpop.f32.mrf.mxu0
  %v7773 = vadd.f32 %v7476, %v7772
  %7774 = vmatmul.f32.gmra.mxu0 %v7567
  %v7775 = vpop.f32.mrf.mxu0
  %v7776 = vadd.f32 %v7476, %v7775
  %7777 = vmatmul.f32.gmra.mxu0 %v7570
  %v7778 = vpop.f32.mrf.mxu0
  %v7779 = vadd.f32 %v7476, %v7778
  %7780 = vmatmul.f32.gmra.mxu0 %v7573
  %v7781 = vpop.f32.mrf.mxu0
  %v7782 = vadd.f32 %v7476, %v7781
  %7783 = vmatmul.f32.gmra.mxu0 %v7576
  %v7784 = vpop.f32.mrf.mxu0
  %v7785 = vadd.f32 %v7476, %v7784
  %7786 = vmatmul.f32.gmra.mxu0 %v7579
  %v7787 = vpop.f32.mrf.mxu0
  %v7788 = vadd.f32 %v7476, %v7787
  %7789 = vmatmul.f32.gmra.mxu0 %v7582
  %v7790 = vpop.f32.mrf.mxu0
  %v7791 = vadd.f32 %v7476, %v7790
  %7792 = vmatmul.f32.gmra.mxu0 %v7585
  %v7793 = vpop.f32.mrf.mxu0
  %v7794 = vadd.f32 %v7476, %v7793
  %7795 = vmatmul.f32.gmra.mxu0 %v7588
  %v7796 = vpop.f32.mrf.mxu0
  %v7797 = vadd.f32 %v7476, %v7796
  %7798 = vmatmul.f32.gmra.mxu0 %v7591
  %v7799 = vpop.f32.mrf.mxu0
  %v7800 = vadd.f32 %v7476, %v7799
  %7801 = vmatmul.f32.gmra.mxu0 %v7594
  %v7802 = vpop.f32.mrf.mxu0
  %v7803 = vadd.f32 %v7476, %v7802
  %7804 = vmatmul.f32.gmra.mxu0 %v7597
  %v7805 = vpop.f32.mrf.mxu0
  %v7806 = vadd.f32 %v7476, %v7805
  %7807 = vmatmul.f32.gmra.mxu0 %v7600
  %v7808 = vpop.f32.mrf.mxu0
  %v7809 = vadd.f32 %v7476, %v7808
  %7810 = vmatmul.f32.gmra.mxu0 %v7603
  %v7811 = vpop.f32.mrf.mxu0
  %v7812 = vadd.f32 %v7476, %v7811
  %7813 = vmatmul.f32.gmra.mxu0 %v7606
  %v7814 = vpop.f32.mrf.mxu0
  %v7815 = vadd.f32 %v7476, %v7814
  %7816 = vmatmul.f32.gmra.mxu0 %v7609
  %v7817 = vpop.f32.mrf.mxu0
  %v7818 = vadd.f32 %v7476, %v7817
  %7819 = vmatmul.f32.gmra.mxu0 %v7612
  %v7820 = vpop.f32.mrf.mxu0
  %v7821 = vadd.f32 %v7476, %v7820
  %7822 = vmatmul.f32.gmra.mxu0 %v7615
  %v7823 = vpop.f32.mrf.mxu0
  %v7824 = vadd.f32 %v7476, %v7823
  %7825 = vmatmul.f32.gmra.mxu0 %v7618
  %v7826 = vpop.f32.mrf.mxu0
  %v7827 = vadd.f32 %v7476, %v7826
  %7828 = vmatmul.f32.gmra.mxu0 %v7621
  %v7829 = vpop.f32.mrf.mxu0
  %v7830 = vadd.f32 %v7476, %v7829
  %7831 = vmatmul.f32.gmra.mxu0 %v7624
  %v7832 = vpop.f32.mrf.mxu0
  %v7833 = vadd.f32 %v7476, %v7832
  %7834 = vmatmul.f32.gmra.mxu0 %v7627
  %v7835 = vpop.f32.mrf.mxu0
  %v7836 = vadd.f32 %v7476, %v7835
  %7837 = vmatmul.f32.gmra.mxu0 %v7630
  %v7838 = vpop.f32.mrf.mxu0
  %v7839 = vadd.f32 %v7476, %v7838
  %7840 = vmatmul.f32.gmra.mxu0 %v7633
  %v7841 = vpop.f32.mrf.mxu0
  %v7842 = vadd.f32 %v7476, %v7841
  %7843 = vmatmul.f32.gmra.mxu0 %v7636
  %v7844 = vpop.f32.mrf.mxu0
  %v7845 = vadd.f32 %v7476, %v7844
  %7846 = vmatmul.f32.gmra.mxu0 %v7639
  %v7847 = vpop.f32.mrf.mxu0
  %v7848 = vadd.f32 %v7476, %v7847
  %7849 = vmatmul.f32.gmra.mxu0 %v7642
  %v7850 = vpop.f32.mrf.mxu0
  %v7851 = vadd.f32 %v7476, %v7850
  %7852 = vmatmul.f32.gmra.mxu0 %v7645
  %v7853 = vpop.f32.mrf.mxu0
  %v7854 = vadd.f32 %v7476, %v7853
  %7855 = vmatmul.f32.gmra.mxu0 %v7648
  %v7856 = vpop.f32.mrf.mxu0
  %v7857 = vadd.f32 %v7476, %v7856
  %7858 = vmatmul.f32.gmra.mxu0 %v7651
  %v7859 = vpop.f32.mrf.mxu0
  %v7860 = vadd.f32 %v7476, %v7859
  %7861 = vmatmul.f32.gmra.mxu0 %v7654
  %v7862 = vpop.f32.mrf.mxu0
  %v7863 = vadd.f32 %v7476, %v7862
  %7864 = vmatmul.f32.gmra.mxu0 %v7657
  %v7865 = vpop.f32.mrf.mxu0
  %v7866 = vadd.f32 %v7476, %v7865
  %7867 = vmatmul.f32.gmra.mxu0 %v7660
  %v7868 = vpop.f32.mrf.mxu0
  %v7869 = vadd.f32 %v7476, %v7868
  %7870 = vmatmul.f32.gmra.mxu0 %v7663
  %v7871 = vpop.f32.mrf.mxu0
  %v7872 = vadd.f32 %v7476, %v7871
  %7873 = vmatmul.f32.gmra.mxu0 %v7666
  %v7874 = vpop.f32.mrf.mxu0
  %v7875 = vadd.f32 %v7476, %v7874
  %7876 = vmatmul.f32.gmra.mxu0 %v7669
  %v7877 = vpop.f32.mrf.mxu0
  %v7878 = vadd.f32 %v7476, %v7877
  %7879 = vdwg.mxu0
  %v7880 = vmax.f32 %v7689, 0.0
  %v7881 = vmax.f32 %v7692, 0.0
  %v7882 = vmax.f32 %v7695, 0.0
  %v7883 = vmax.f32 %v7698, 0.0
  %v7884 = vmax.f32 %v7701, 0.0
  %v7885 = vmax.f32 %v7704, 0.0
  %v7886 = vmax.f32 %v7707, 0.0
  %v7887 = vmax.f32 %v7710, 0.0
  %v7888 = vmax.f32 %v7713, 0.0
  %v7889 = vmax.f32 %v7716, 0.0
  %v7890 = vmax.f32 %v7719, 0.0
  %v7891 = vmax.f32 %v7722, 0.0
  %v7892 = vmax.f32 %v7725, 0.0
  %v7893 = vmax.f32 %v7728, 0.0
  %v7894 = vmax.f32 %v7731, 0.0
  %v7895 = vmax.f32 %v7734, 0.0
  %v7896 = vmax.f32 %v7737, 0.0
  %v7897 = vmax.f32 %v7740, 0.0
  %v7898 = vmax.f32 %v7743, 0.0
  %v7899 = vmax.f32 %v7746, 0.0
  %v7900 = vmax.f32 %v7749, 0.0
  %v7901 = vmax.f32 %v7752, 0.0
  %v7902 = vmax.f32 %v7755, 0.0
  %v7903 = vmax.f32 %v7758, 0.0
  %v7904 = vmax.f32 %v7761, 0.0
  %v7905 = vmax.f32 %v7764, 0.0
  %v7906 = vmax.f32 %v7767, 0.0
  %v7907 = vmax.f32 %v7770, 0.0
  %v7908 = vmax.f32 %v7773, 0.0
  %v7909 = vmax.f32 %v7776, 0.0
  %v7910 = vmax.f32 %v7779, 0.0
  %v7911 = vmax.f32 %v7782, 0.0
  %v7912 = vmax.f32 %v7785, 0.0
  %v7913 = vmax.f32 %v7788, 0.0
  %v7914 = vmax.f32 %v7791, 0.0
  %v7915 = vmax.f32 %v7794, 0.0
  %v7916 = vmax.f32 %v7797, 0.0
  %v7917 = vmax.f32 %v7800, 0.0
  %v7918 = vmax.f32 %v7803, 0.0
  %v7919 = vmax.f32 %v7806, 0.0
  %v7920 = vmax.f32 %v7809, 0.0
  %v7921 = vmax.f32 %v7812, 0.0
  %v7922 = vmax.f32 %v7815, 0.0
  %v7923 = vmax.f32 %v7818, 0.0
  %v7924 = vmax.f32 %v7821, 0.0
  %v7925 = vmax.f32 %v7824, 0.0
  %v7926 = vmax.f32 %v7827, 0.0
  %v7927 = vmax.f32 %v7830, 0.0
  %v7928 = vmax.f32 %v7833, 0.0
  %v7929 = vmax.f32 %v7836, 0.0
  %v7930 = vmax.f32 %v7839, 0.0
  %v7931 = vmax.f32 %v7842, 0.0
  %v7932 = vmax.f32 %v7845, 0.0
  %v7933 = vmax.f32 %v7848, 0.0
  %v7934 = vmax.f32 %v7851, 0.0
  %v7935 = vmax.f32 %v7854, 0.0
  %v7936 = vmax.f32 %v7857, 0.0
  %v7937 = vmax.f32 %v7860, 0.0
  %v7938 = vmax.f32 %v7863, 0.0
  %v7939 = vmax.f32 %v7866, 0.0
  %v7940 = vmax.f32 %v7869, 0.0
  %v7941 = vmax.f32 %v7872, 0.0
  %v7942 = vmax.f32 %v7875, 0.0
  %v7943 = vmax.f32 %v7878, 0.0
  %v7944 = vsel %vm4017, %v7880, 0.0
  %v7945 = vsel %vm4017, %v7881, 0.0
  %v7946 = vadd.f32 %v7944, %v7945
  %v7947 = vsel %vm4017, %v7882, 0.0
  %v7948 = vadd.f32 %v7946, %v7947
  %v7949 = vsel %vm4017, %v7883, 0.0
  %v7950 = vadd.f32 %v7948, %v7949
  %v7951 = vsel %vm4017, %v7884, 0.0
  %v7952 = vadd.f32 %v7950, %v7951
  %v7953 = vsel %vm4017, %v7885, 0.0
  %v7954 = vadd.f32 %v7952, %v7953
  %v7955 = vsel %vm4017, %v7886, 0.0
  %v7956 = vadd.f32 %v7954, %v7955
  %v7957 = vsel %vm4017, %v7887, 0.0
  %v7958 = vadd.f32 %v7956, %v7957
  %v7959 = vsel %vm4017, %v7888, 0.0
  %v7960 = vadd.f32 %v7958, %v7959
  %v7961 = vsel %vm4017, %v7889, 0.0
  %v7962 = vadd.f32 %v7960, %v7961
  %v7963 = vsel %vm4017, %v7890, 0.0
  %v7964 = vadd.f32 %v7962, %v7963
  %v7965 = vsel %vm4017, %v7891, 0.0
  %v7966 = vadd.f32 %v7964, %v7965
  %v7967 = vsel %vm4017, %v7892, 0.0
  %v7968 = vadd.f32 %v7966, %v7967
  %v7969 = vsel %vm4017, %v7893, 0.0
  %v7970 = vadd.f32 %v7968, %v7969
  %v7971 = vsel %vm4017, %v7894, 0.0
  %v7972 = vadd.f32 %v7970, %v7971
  %v7973 = vsel %vm4017, %v7895, 0.0
  %v7974 = vadd.f32 %v7972, %v7973
  %v7975 = vsel %vm4017, %v7896, 0.0
  %v7976 = vadd.f32 %v7974, %v7975
  %v7977 = vsel %vm4017, %v7897, 0.0
  %v7978 = vadd.f32 %v7976, %v7977
  %v7979 = vsel %vm4017, %v7898, 0.0
  %v7980 = vadd.f32 %v7978, %v7979
  %v7981 = vsel %vm4017, %v7899, 0.0
  %v7982 = vadd.f32 %v7980, %v7981
  %v7983 = vsel %vm4017, %v7900, 0.0
  %v7984 = vadd.f32 %v7982, %v7983
  %v7985 = vsel %vm4017, %v7901, 0.0
  %v7986 = vadd.f32 %v7984, %v7985
  %v7987 = vsel %vm4017, %v7902, 0.0
  %v7988 = vadd.f32 %v7986, %v7987
  %v7989 = vsel %vm4017, %v7903, 0.0
  %v7990 = vadd.f32 %v7988, %v7989
  %v7991 = vsel %vm4017, %v7904, 0.0
  %v7992 = vadd.f32 %v7990, %v7991
  %v7993 = vsel %vm4017, %v7905, 0.0
  %v7994 = vadd.f32 %v7992, %v7993
  %v7995 = vsel %vm4017, %v7906, 0.0
  %v7996 = vadd.f32 %v7994, %v7995
  %v7997 = vsel %vm4017, %v7907, 0.0
  %v7998 = vadd.f32 %v7996, %v7997
  %v7999 = vsel %vm4017, %v7908, 0.0
  %v8000 = vadd.f32 %v7998, %v7999
  %v8001 = vsel %vm4017, %v7909, 0.0
  %v8002 = vadd.f32 %v8000, %v8001
  %v8003 = vsel %vm4017, %v7910, 0.0
  %v8004 = vadd.f32 %v8002, %v8003
  %v8005 = vsel %vm4017, %v7911, 0.0
  %v8006 = vadd.f32 %v8004, %v8005
  %v8007 = vsel %vm4017, %v7912, 0.0
  %v8008 = vadd.f32 %v8006, %v8007
  %v8009 = vsel %vm4017, %v7913, 0.0
  %v8010 = vadd.f32 %v8008, %v8009
  %v8011 = vsel %vm4017, %v7914, 0.0
  %v8012 = vadd.f32 %v8010, %v8011
  %v8013 = vsel %vm4017, %v7915, 0.0
  %v8014 = vadd.f32 %v8012, %v8013
  %v8015 = vsel %vm4017, %v7916, 0.0
  %v8016 = vadd.f32 %v8014, %v8015
  %v8017 = vsel %vm4017, %v7917, 0.0
  %v8018 = vadd.f32 %v8016, %v8017
  %v8019 = vsel %vm4017, %v7918, 0.0
  %v8020 = vadd.f32 %v8018, %v8019
  %v8021 = vsel %vm4017, %v7919, 0.0
  %v8022 = vadd.f32 %v8020, %v8021
  %v8023 = vsel %vm4017, %v7920, 0.0
  %v8024 = vadd.f32 %v8022, %v8023
  %v8025 = vsel %vm4017, %v7921, 0.0
  %v8026 = vadd.f32 %v8024, %v8025
  %v8027 = vsel %vm4017, %v7922, 0.0
  %v8028 = vadd.f32 %v8026, %v8027
  %v8029 = vsel %vm4017, %v7923, 0.0
  %v8030 = vadd.f32 %v8028, %v8029
  %v8031 = vsel %vm4017, %v7924, 0.0
  %v8032 = vadd.f32 %v8030, %v8031
  %v8033 = vsel %vm4017, %v7925, 0.0
  %v8034 = vadd.f32 %v8032, %v8033
  %v8035 = vsel %vm4017, %v7926, 0.0
  %v8036 = vadd.f32 %v8034, %v8035
  %v8037 = vsel %vm4017, %v7927, 0.0
  %v8038 = vadd.f32 %v8036, %v8037
  %v8039 = vsel %vm4017, %v7928, 0.0
  %v8040 = vadd.f32 %v8038, %v8039
  %v8041 = vsel %vm4017, %v7929, 0.0
  %v8042 = vadd.f32 %v8040, %v8041
  %v8043 = vsel %vm4017, %v7930, 0.0
  %v8044 = vadd.f32 %v8042, %v8043
  %v8045 = vsel %vm4017, %v7931, 0.0
  %v8046 = vadd.f32 %v8044, %v8045
  %v8047 = vsel %vm4017, %v7932, 0.0
  %v8048 = vadd.f32 %v8046, %v8047
  %v8049 = vsel %vm4017, %v7933, 0.0
  %v8050 = vadd.f32 %v8048, %v8049
  %v8051 = vsel %vm4017, %v7934, 0.0
  %v8052 = vadd.f32 %v8050, %v8051
  %v8053 = vsel %vm4017, %v7935, 0.0
  %v8054 = vadd.f32 %v8052, %v8053
  %v8055 = vsel %vm4017, %v7936, 0.0
  %v8056 = vadd.f32 %v8054, %v8055
  %v8057 = vsel %vm4017, %v7937, 0.0
  %v8058 = vadd.f32 %v8056, %v8057
  %v8059 = vsel %vm4017, %v7938, 0.0
  %v8060 = vadd.f32 %v8058, %v8059
  %v8061 = vsel %vm4017, %v7939, 0.0
  %v8062 = vadd.f32 %v8060, %v8061
  %v8063 = vsel %vm4017, %v7940, 0.0
  %v8064 = vadd.f32 %v8062, %v8063
  %v8065 = vsel %vm4017, %v7941, 0.0
  %v8066 = vadd.f32 %v8064, %v8065
  %v8067 = vsel %vm4017, %v7942, 0.0
  %v8068 = vadd.f32 %v8066, %v8067
  %v8069 = vsel %vm4017, %v7943, 0.0
  %v8070 = vadd.f32 %v8068, %v8069
  %v8071 = vrot.slane %v8070, 4
  %v8072 = vadd.f32 %v8070, %v8071
  %v8073 = vrot.slane %v8072, 2
  %v8074 = vadd.f32 %v8072, %v8073
  %v8075 = vrot.slane %v8074, 1
  %v8076 = vadd.f32 %v8074, %v8075
  %v8077 = vrcp.pop 512.0
  %v8078 = vmul.f32 512.0, %v8077
  %v8079 = vsub.f32 1.0, %v8078
  %v8080 = vmul.f32 %v8077, %v8079
  %v8081 = vadd.f32 %v8077, %v8080
  %vm8082 = vweird.f32 %v8077
  %v8083 = vsel %vm8082, %v8077, %v8081
  %v8084 = vmul.f32 %v8076, %v8083
  %v8085 = vsub.f32 %v7880, %v8084
  %v8086 = vsub.f32 %v7881, %v8084
  %v8087 = vsub.f32 %v7882, %v8084
  %v8088 = vsub.f32 %v7883, %v8084
  %v8089 = vsub.f32 %v7884, %v8084
  %v8090 = vsub.f32 %v7885, %v8084
  %v8091 = vsub.f32 %v7886, %v8084
  %v8092 = vsub.f32 %v7887, %v8084
  %v8093 = vsub.f32 %v7888, %v8084
  %v8094 = vsub.f32 %v7889, %v8084
  %v8095 = vsub.f32 %v7890, %v8084
  %v8096 = vsub.f32 %v7891, %v8084
  %v8097 = vsub.f32 %v7892, %v8084
  %v8098 = vsub.f32 %v7893, %v8084
  %v8099 = vsub.f32 %v7894, %v8084
  %v8100 = vsub.f32 %v7895, %v8084
  %v8101 = vsub.f32 %v7896, %v8084
  %v8102 = vsub.f32 %v7897, %v8084
  %v8103 = vsub.f32 %v7898, %v8084
  %v8104 = vsub.f32 %v7899, %v8084
  %v8105 = vsub.f32 %v7900, %v8084
  %v8106 = vsub.f32 %v7901, %v8084
  %v8107 = vsub.f32 %v7902, %v8084
  %v8108 = vsub.f32 %v7903, %v8084
  %v8109 = vsub.f32 %v7904, %v8084
  %v8110 = vsub.f32 %v7905, %v8084
  %v8111 = vsub.f32 %v7906, %v8084
  %v8112 = vsub.f32 %v7907, %v8084
  %v8113 = vsub.f32 %v7908, %v8084
  %v8114 = vsub.f32 %v7909, %v8084
  %v8115 = vsub.f32 %v7910, %v8084
  %v8116 = vsub.f32 %v7911, %v8084
  %v8117 = vsub.f32 %v7912, %v8084
  %v8118 = vsub.f32 %v7913, %v8084
  %v8119 = vsub.f32 %v7914, %v8084
  %v8120 = vsub.f32 %v7915, %v8084
  %v8121 = vsub.f32 %v7916, %v8084
  %v8122 = vsub.f32 %v7917, %v8084
  %v8123 = vsub.f32 %v7918, %v8084
  %v8124 = vsub.f32 %v7919, %v8084
  %v8125 = vsub.f32 %v7920, %v8084
  %v8126 = vsub.f32 %v7921, %v8084
  %v8127 = vsub.f32 %v7922, %v8084
  %v8128 = vsub.f32 %v7923, %v8084
  %v8129 = vsub.f32 %v7924, %v8084
  %v8130 = vsub.f32 %v7925, %v8084
  %v8131 = vsub.f32 %v7926, %v8084
  %v8132 = vsub.f32 %v7927, %v8084
  %v8133 = vsub.f32 %v7928, %v8084
  %v8134 = vsub.f32 %v7929, %v8084
  %v8135 = vsub.f32 %v7930, %v8084
  %v8136 = vsub.f32 %v7931, %v8084
  %v8137 = vsub.f32 %v7932, %v8084
  %v8138 = vsub.f32 %v7933, %v8084
  %v8139 = vsub.f32 %v7934, %v8084
  %v8140 = vsub.f32 %v7935, %v8084
  %v8141 = vsub.f32 %v7936, %v8084
  %v8142 = vsub.f32 %v7937, %v8084
  %v8143 = vsub.f32 %v7938, %v8084
  %v8144 = vsub.f32 %v7939, %v8084
  %v8145 = vsub.f32 %v7940, %v8084
  %v8146 = vsub.f32 %v7941, %v8084
  %v8147 = vsub.f32 %v7942, %v8084
  %v8148 = vsub.f32 %v7943, %v8084
  %v8149 = vmul.f32 %v8085, %v8085
  %v8150 = vmul.f32 %v8086, %v8086
  %v8151 = vmul.f32 %v8087, %v8087
  %v8152 = vmul.f32 %v8088, %v8088
  %v8153 = vmul.f32 %v8089, %v8089
  %v8154 = vmul.f32 %v8090, %v8090
  %v8155 = vmul.f32 %v8091, %v8091
  %v8156 = vmul.f32 %v8092, %v8092
  %v8157 = vmul.f32 %v8093, %v8093
  %v8158 = vmul.f32 %v8094, %v8094
  %v8159 = vmul.f32 %v8095, %v8095
  %v8160 = vmul.f32 %v8096, %v8096
  %v8161 = vmul.f32 %v8097, %v8097
  %v8162 = vmul.f32 %v8098, %v8098
  %v8163 = vmul.f32 %v8099, %v8099
  %v8164 = vmul.f32 %v8100, %v8100
  %v8165 = vmul.f32 %v8101, %v8101
  %v8166 = vmul.f32 %v8102, %v8102
  %v8167 = vmul.f32 %v8103, %v8103
  %v8168 = vmul.f32 %v8104, %v8104
  %v8169 = vmul.f32 %v8105, %v8105
  %v8170 = vmul.f32 %v8106, %v8106
  %v8171 = vmul.f32 %v8107, %v8107
  %v8172 = vmul.f32 %v8108, %v8108
  %v8173 = vmul.f32 %v8109, %v8109
  %v8174 = vmul.f32 %v8110, %v8110
  %v8175 = vmul.f32 %v8111, %v8111
  %v8176 = vmul.f32 %v8112, %v8112
  %v8177 = vmul.f32 %v8113, %v8113
  %v8178 = vmul.f32 %v8114, %v8114
  %v8179 = vmul.f32 %v8115, %v8115
  %v8180 = vmul.f32 %v8116, %v8116
  %v8181 = vmul.f32 %v8117, %v8117
  %v8182 = vmul.f32 %v8118, %v8118
  %v8183 = vmul.f32 %v8119, %v8119
  %v8184 = vmul.f32 %v8120, %v8120
  %v8185 = vmul.f32 %v8121, %v8121
  %v8186 = vmul.f32 %v8122, %v8122
  %v8187 = vmul.f32 %v8123, %v8123
  %v8188 = vmul.f32 %v8124, %v8124
  %v8189 = vmul.f32 %v8125, %v8125
  %v8190 = vmul.f32 %v8126, %v8126
  %v8191 = vmul.f32 %v8127, %v8127
  %v8192 = vmul.f32 %v8128, %v8128
  %v8193 = vmul.f32 %v8129, %v8129
  %v8194 = vmul.f32 %v8130, %v8130
  %v8195 = vmul.f32 %v8131, %v8131
  %v8196 = vmul.f32 %v8132, %v8132
  %v8197 = vmul.f32 %v8133, %v8133
  %v8198 = vmul.f32 %v8134, %v8134
  %v8199 = vmul.f32 %v8135, %v8135
  %v8200 = vmul.f32 %v8136, %v8136
  %v8201 = vmul.f32 %v8137, %v8137
  %v8202 = vmul.f32 %v8138, %v8138
  %v8203 = vmul.f32 %v8139, %v8139
  %v8204 = vmul.f32 %v8140, %v8140
  %v8205 = vmul.f32 %v8141, %v8141
  %v8206 = vmul.f32 %v8142, %v8142
  %v8207 = vmul.f32 %v8143, %v8143
  %v8208 = vmul.f32 %v8144, %v8144
  %v8209 = vmul.f32 %v8145, %v8145
  %v8210 = vmul.f32 %v8146, %v8146
  %v8211 = vmul.f32 %v8147, %v8147
  %v8212 = vmul.f32 %v8148, %v8148
  %v8213 = vsel %vm4017, %v8149, 0.0
  %v8214 = vsel %vm4017, %v8150, 0.0
  %v8215 = vadd.f32 %v8213, %v8214
  %v8216 = vsel %vm4017, %v8151, 0.0
  %v8217 = vadd.f32 %v8215, %v8216
  %v8218 = vsel %vm4017, %v8152, 0.0
  %v8219 = vadd.f32 %v8217, %v8218
  %v8220 = vsel %vm4017, %v8153, 0.0
  %v8221 = vadd.f32 %v8219, %v8220
  %v8222 = vsel %vm4017, %v8154, 0.0
  %v8223 = vadd.f32 %v8221, %v8222
  %v8224 = vsel %vm4017, %v8155, 0.0
  %v8225 = vadd.f32 %v8223, %v8224
  %v8226 = vsel %vm4017, %v8156, 0.0
  %v8227 = vadd.f32 %v8225, %v8226
  %v8228 = vsel %vm4017, %v8157, 0.0
  %v8229 = vadd.f32 %v8227, %v8228
  %v8230 = vsel %vm4017, %v8158, 0.0
  %v8231 = vadd.f32 %v8229, %v8230
  %v8232 = vsel %vm4017, %v8159, 0.0
  %v8233 = vadd.f32 %v8231, %v8232
  %v8234 = vsel %vm4017, %v8160, 0.0
  %v8235 = vadd.f32 %v8233, %v8234
  %v8236 = vsel %vm4017, %v8161, 0.0
  %v8237 = vadd.f32 %v8235, %v8236
  %v8238 = vsel %vm4017, %v8162, 0.0
  %v8239 = vadd.f32 %v8237, %v8238
  %v8240 = vsel %vm4017, %v8163, 0.0
  %v8241 = vadd.f32 %v8239, %v8240
  %v8242 = vsel %vm4017, %v8164, 0.0
  %v8243 = vadd.f32 %v8241, %v8242
  %v8244 = vsel %vm4017, %v8165, 0.0
  %v8245 = vadd.f32 %v8243, %v8244
  %v8246 = vsel %vm4017, %v8166, 0.0
  %v8247 = vadd.f32 %v8245, %v8246
  %v8248 = vsel %vm4017, %v8167, 0.0
  %v8249 = vadd.f32 %v8247, %v8248
  %v8250 = vsel %vm4017, %v8168, 0.0
  %v8251 = vadd.f32 %v8249, %v8250
  %v8252 = vsel %vm4017, %v8169, 0.0
  %v8253 = vadd.f32 %v8251, %v8252
  %v8254 = vsel %vm4017, %v8170, 0.0
  %v8255 = vadd.f32 %v8253, %v8254
  %v8256 = vsel %vm4017, %v8171, 0.0
  %v8257 = vadd.f32 %v8255, %v8256
  %v8258 = vsel %vm4017, %v8172, 0.0
  %v8259 = vadd.f32 %v8257, %v8258
  %v8260 = vsel %vm4017, %v8173, 0.0
  %v8261 = vadd.f32 %v8259, %v8260
  %v8262 = vsel %vm4017, %v8174, 0.0
  %v8263 = vadd.f32 %v8261, %v8262
  %v8264 = vsel %vm4017, %v8175, 0.0
  %v8265 = vadd.f32 %v8263, %v8264
  %v8266 = vsel %vm4017, %v8176, 0.0
  %v8267 = vadd.f32 %v8265, %v8266
  %v8268 = vsel %vm4017, %v8177, 0.0
  %v8269 = vadd.f32 %v8267, %v8268
  %v8270 = vsel %vm4017, %v8178, 0.0
  %v8271 = vadd.f32 %v8269, %v8270
  %v8272 = vsel %vm4017, %v8179, 0.0
  %v8273 = vadd.f32 %v8271, %v8272
  %v8274 = vsel %vm4017, %v8180, 0.0
  %v8275 = vadd.f32 %v8273, %v8274
  %v8276 = vsel %vm4017, %v8181, 0.0
  %v8277 = vadd.f32 %v8275, %v8276
  %v8278 = vsel %vm4017, %v8182, 0.0
  %v8279 = vadd.f32 %v8277, %v8278
  %v8280 = vsel %vm4017, %v8183, 0.0
  %v8281 = vadd.f32 %v8279, %v8280
  %v8282 = vsel %vm4017, %v8184, 0.0
  %v8283 = vadd.f32 %v8281, %v8282
  %v8284 = vsel %vm4017, %v8185, 0.0
  %v8285 = vadd.f32 %v8283, %v8284
  %v8286 = vsel %vm4017, %v8186, 0.0
  %v8287 = vadd.f32 %v8285, %v8286
  %v8288 = vsel %vm4017, %v8187, 0.0
  %v8289 = vadd.f32 %v8287, %v8288
  %v8290 = vsel %vm4017, %v8188, 0.0
  %v8291 = vadd.f32 %v8289, %v8290
  %v8292 = vsel %vm4017, %v8189, 0.0
  %v8293 = vadd.f32 %v8291, %v8292
  %v8294 = vsel %vm4017, %v8190, 0.0
  %v8295 = vadd.f32 %v8293, %v8294
  %v8296 = vsel %vm4017, %v8191, 0.0
  %v8297 = vadd.f32 %v8295, %v8296
  %v8298 = vsel %vm4017, %v8192, 0.0
  %v8299 = vadd.f32 %v8297, %v8298
  %v8300 = vsel %vm4017, %v8193, 0.0
  %v8301 = vadd.f32 %v8299, %v8300
  %v8302 = vsel %vm4017, %v8194, 0.0
  %v8303 = vadd.f32 %v8301, %v8302
  %v8304 = vsel %vm4017, %v8195, 0.0
  %v8305 = vadd.f32 %v8303, %v8304
  %v8306 = vsel %vm4017, %v8196, 0.0
  %v8307 = vadd.f32 %v8305, %v8306
  %v8308 = vsel %vm4017, %v8197, 0.0
  %v8309 = vadd.f32 %v8307, %v8308
  %v8310 = vsel %vm4017, %v8198, 0.0
  %v8311 = vadd.f32 %v8309, %v8310
  %v8312 = vsel %vm4017, %v8199, 0.0
  %v8313 = vadd.f32 %v8311, %v8312
  %v8314 = vsel %vm4017, %v8200, 0.0
  %v8315 = vadd.f32 %v8313, %v8314
  %v8316 = vsel %vm4017, %v8201, 0.0
  %v8317 = vadd.f32 %v8315, %v8316
  %v8318 = vsel %vm4017, %v8202, 0.0
  %v8319 = vadd.f32 %v8317, %v8318
  %v8320 = vsel %vm4017, %v8203, 0.0
  %v8321 = vadd.f32 %v8319, %v8320
  %v8322 = vsel %vm4017, %v8204, 0.0
  %v8323 = vadd.f32 %v8321, %v8322
  %v8324 = vsel %vm4017, %v8205, 0.0
  %v8325 = vadd.f32 %v8323, %v8324
  %v8326 = vsel %vm4017, %v8206, 0.0
  %v8327 = vadd.f32 %v8325, %v8326
  %v8328 = vsel %vm4017, %v8207, 0.0
  %v8329 = vadd.f32 %v8327, %v8328
  %v8330 = vsel %vm4017, %v8208, 0.0
  %v8331 = vadd.f32 %v8329, %v8330
  %v8332 = vsel %vm4017, %v8209, 0.0
  %v8333 = vadd.f32 %v8331, %v8332
  %v8334 = vsel %vm4017, %v8210, 0.0
  %v8335 = vadd.f32 %v8333, %v8334
  %v8336 = vsel %vm4017, %v8211, 0.0
  %v8337 = vadd.f32 %v8335, %v8336
  %v8338 = vsel %vm4017, %v8212, 0.0
  %v8339 = vadd.f32 %v8337, %v8338
  %v8340 = vrot.slane %v8339, 4
  %v8341 = vadd.f32 %v8339, %v8340
  %v8342 = vrot.slane %v8341, 2
  %v8343 = vadd.f32 %v8341, %v8342
  %v8344 = vrot.slane %v8343, 1
  %v8345 = vadd.f32 %v8343, %v8344
  %v8346 = vmul.f32 %v8345, %v8083
  %v8347 = vld [vmem:[%s5] sm:$0x1]
  %v8348 = vadd.f32 %v8346, 1e-05
  %v8349 = vrsqrt.pop %v8348
  %v8350 = vmul.f32 %v8349, %v8348
  %v8351 = vmul.f32 %v8350, %v8349
  %v8352 = vmul.f32 0.5, %v8351
  %v8353 = vsub.f32 1.5, %v8352
  %v8354 = vmul.f32 %v8349, %v8353
  %vm8355 = vweird.f32 %v8348
  %vm8356 = vweird.f32 %v8349
  %vm8357 = vmor %vm8355, %vm8356
  %v8358 = vsel %vm8357, %v8349, %v8354
  %v8359 = vmul.f32 %v8347, %v8358
  %v8361 = vperm.slane %v8359, 0
  %v8363 = vmul.f32 %v8085, %v8361
  %v8364 = vmul.f32 %v8086, %v8361
  %v8365 = vmul.f32 %v8087, %v8361
  %v8366 = vmul.f32 %v8088, %v8361
  %v8367 = vmul.f32 %v8089, %v8361
  %v8368 = vmul.f32 %v8090, %v8361
  %v8369 = vmul.f32 %v8091, %v8361
  %v8370 = vmul.f32 %v8092, %v8361
  %v8371 = vmul.f32 %v8093, %v8361
  %v8372 = vmul.f32 %v8094, %v8361
  %v8373 = vmul.f32 %v8095, %v8361
  %v8374 = vmul.f32 %v8096, %v8361
  %v8375 = vmul.f32 %v8097, %v8361
  %v8376 = vmul.f32 %v8098, %v8361
  %v8377 = vmul.f32 %v8099, %v8361
  %v8378 = vmul.f32 %v8100, %v8361
  %v8379 = vmul.f32 %v8101, %v8361
  %v8380 = vmul.f32 %v8102, %v8361
  %v8381 = vmul.f32 %v8103, %v8361
  %v8382 = vmul.f32 %v8104, %v8361
  %v8383 = vmul.f32 %v8105, %v8361
  %v8384 = vmul.f32 %v8106, %v8361
  %v8385 = vmul.f32 %v8107, %v8361
  %v8386 = vmul.f32 %v8108, %v8361
  %v8387 = vmul.f32 %v8109, %v8361
  %v8388 = vmul.f32 %v8110, %v8361
  %v8389 = vmul.f32 %v8111, %v8361
  %v8390 = vmul.f32 %v8112, %v8361
  %v8391 = vmul.f32 %v8113, %v8361
  %v8392 = vmul.f32 %v8114, %v8361
  %v8393 = vmul.f32 %v8115, %v8361
  %v8394 = vmul.f32 %v8116, %v8361
  %v8395 = vmul.f32 %v8117, %v8361
  %v8396 = vmul.f32 %v8118, %v8361
  %v8397 = vmul.f32 %v8119, %v8361
  %v8398 = vmul.f32 %v8120, %v8361
  %v8399 = vmul.f32 %v8121, %v8361
  %v8400 = vmul.f32 %v8122, %v8361
  %v8401 = vmul.f32 %v8123, %v8361
  %v8402 = vmul.f32 %v8124, %v8361
  %v8403 = vmul.f32 %v8125, %v8361
  %v8404 = vmul.f32 %v8126, %v8361
  %v8405 = vmul.f32 %v8127, %v8361
  %v8406 = vmul.f32 %v8128, %v8361
  %v8407 = vmul.f32 %v8129, %v8361
  %v8408 = vmul.f32 %v8130, %v8361
  %v8409 = vmul.f32 %v8131, %v8361
  %v8410 = vmul.f32 %v8132, %v8361
  %v8411 = vmul.f32 %v8133, %v8361
  %v8412 = vmul.f32 %v8134, %v8361
  %v8413 = vmul.f32 %v8135, %v8361
  %v8414 = vmul.f32 %v8136, %v8361
  %v8415 = vmul.f32 %v8137, %v8361
  %v8416 = vmul.f32 %v8138, %v8361
  %v8417 = vmul.f32 %v8139, %v8361
  %v8418 = vmul.f32 %v8140, %v8361
  %v8419 = vmul.f32 %v8141, %v8361
  %v8420 = vmul.f32 %v8142, %v8361
  %v8421 = vmul.f32 %v8143, %v8361
  %v8422 = vmul.f32 %v8144, %v8361
  %v8423 = vmul.f32 %v8145, %v8361
  %v8424 = vmul.f32 %v8146, %v8361
  %v8425 = vmul.f32 %v8147, %v8361
  %v8426 = vmul.f32 %v8148, %v8361
  %v8427 = vld [vmem:[%s6] sm:$0x1]
  %v8429 = vperm.slane %v8427, 0
  %v8431 = vadd.f32 %v8363, %v8429
  %v8432 = vadd.f32 %v8364, %v8429
  %v8433 = vadd.f32 %v8365, %v8429
  %v8434 = vadd.f32 %v8366, %v8429
  %v8435 = vadd.f32 %v8367, %v8429
  %v8436 = vadd.f32 %v8368, %v8429
  %v8437 = vadd.f32 %v8369, %v8429
  %v8438 = vadd.f32 %v8370, %v8429
  %v8439 = vadd.f32 %v8371, %v8429
  %v8440 = vadd.f32 %v8372, %v8429
  %v8441 = vadd.f32 %v8373, %v8429
  %v8442 = vadd.f32 %v8374, %v8429
  %v8443 = vadd.f32 %v8375, %v8429
  %v8444 = vadd.f32 %v8376, %v8429
  %v8445 = vadd.f32 %v8377, %v8429
  %v8446 = vadd.f32 %v8378, %v8429
  %v8447 = vadd.f32 %v8379, %v8429
  %v8448 = vadd.f32 %v8380, %v8429
  %v8449 = vadd.f32 %v8381, %v8429
  %v8450 = vadd.f32 %v8382, %v8429
  %v8451 = vadd.f32 %v8383, %v8429
  %v8452 = vadd.f32 %v8384, %v8429
  %v8453 = vadd.f32 %v8385, %v8429
  %v8454 = vadd.f32 %v8386, %v8429
  %v8455 = vadd.f32 %v8387, %v8429
  %v8456 = vadd.f32 %v8388, %v8429
  %v8457 = vadd.f32 %v8389, %v8429
  %v8458 = vadd.f32 %v8390, %v8429
  %v8459 = vadd.f32 %v8391, %v8429
  %v8460 = vadd.f32 %v8392, %v8429
  %v8461 = vadd.f32 %v8393, %v8429
  %v8462 = vadd.f32 %v8394, %v8429
  %v8463 = vadd.f32 %v8395, %v8429
  %v8464 = vadd.f32 %v8396, %v8429
  %v8465 = vadd.f32 %v8397, %v8429
  %v8466 = vadd.f32 %v8398, %v8429
  %v8467 = vadd.f32 %v8399, %v8429
  %v8468 = vadd.f32 %v8400, %v8429
  %v8469 = vadd.f32 %v8401, %v8429
  %v8470 = vadd.f32 %v8402, %v8429
  %v8471 = vadd.f32 %v8403, %v8429
  %v8472 = vadd.f32 %v8404, %v8429
  %v8473 = vadd.f32 %v8405, %v8429
  %v8474 = vadd.f32 %v8406, %v8429
  %v8475 = vadd.f32 %v8407, %v8429
  %v8476 = vadd.f32 %v8408, %v8429
  %v8477 = vadd.f32 %v8409, %v8429
  %v8478 = vadd.f32 %v8410, %v8429
  %v8479 = vadd.f32 %v8411, %v8429
  %v8480 = vadd.f32 %v8412, %v8429
  %v8481 = vadd.f32 %v8413, %v8429
  %v8482 = vadd.f32 %v8414, %v8429
  %v8483 = vadd.f32 %v8415, %v8429
  %v8484 = vadd.f32 %v8416, %v8429
  %v8485 = vadd.f32 %v8417, %v8429
  %v8486 = vadd.f32 %v8418, %v8429
  %v8487 = vadd.f32 %v8419, %v8429
  %v8488 = vadd.f32 %v8420, %v8429
  %v8489 = vadd.f32 %v8421, %v8429
  %v8490 = vadd.f32 %v8422, %v8429
  %v8491 = vadd.f32 %v8423, %v8429
  %v8492 = vadd.f32 %v8424, %v8429
  %v8493 = vadd.f32 %v8425, %v8429
  %v8494 = vadd.f32 %v8426, %v8429
  %v8559 = vrot.slane %v8431, 2
  %v8560 = vrot.slane %v8431, 4
  %v8561 = vrot.slane %v8431, 6
  %v8562 = vrot.slane %v8432, 2
  %v8563 = vrot.slane %v8432, 4
  %v8564 = vrot.slane %v8432, 6
  %v8565 = vrot.slane %v8433, 2
  %v8566 = vrot.slane %v8433, 4
  %v8567 = vrot.slane %v8433, 6
  %v8568 = vrot.slane %v8434, 2
  %v8569 = vrot.slane %v8434, 4
  %v8570 = vrot.slane %v8434, 6
  %v8571 = vrot.slane %v8435, 2
  %v8572 = vrot.slane %v8435, 4
  %v8573 = vrot.slane %v8435, 6
  %v8574 = vrot.slane %v8436, 2
  %v8575 = vrot.slane %v8436, 4
  %v8576 = vrot.slane %v8436, 6
  %v8577 = vrot.slane %v8437, 2
  %v8578 = vrot.slane %v8437, 4
  %v8579 = vrot.slane %v8437, 6
  %v8580 = vrot.slane %v8438, 2
  %v8581 = vrot.slane %v8438, 4
  %v8582 = vrot.slane %v8438, 6
  %v8583 = vrot.slane %v8439, 2
  %v8584 = vrot.slane %v8439, 4
  %v8585 = vrot.slane %v8439, 6
  %v8586 = vrot.slane %v8440, 2
  %v8587 = vrot.slane %v8440, 4
  %v8588 = vrot.slane %v8440, 6
  %v8589 = vrot.slane %v8441, 2
  %v8590 = vrot.slane %v8441, 4
  %v8591 = vrot.slane %v8441, 6
  %v8592 = vrot.slane %v8442, 2
  %v8593 = vrot.slane %v8442, 4
  %v8594 = vrot.slane %v8442, 6
  %v8595 = vrot.slane %v8443, 2
  %v8596 = vrot.slane %v8443, 4
  %v8597 = vrot.slane %v8443, 6
  %v8598 = vrot.slane %v8444, 2
  %v8599 = vrot.slane %v8444, 4
  %v8600 = vrot.slane %v8444, 6
  %v8601 = vrot.slane %v8445, 2
  %v8602 = vrot.slane %v8445, 4
  %v8603 = vrot.slane %v8445, 6
  %v8604 = vrot.slane %v8446, 2
  %v8605 = vrot.slane %v8446, 4
  %v8606 = vrot.slane %v8446, 6
  %v8607 = vrot.slane %v8447, 2
  %v8608 = vrot.slane %v8447, 4
  %v8609 = vrot.slane %v8447, 6
  %v8610 = vrot.slane %v8448, 2
  %v8611 = vrot.slane %v8448, 4
  %v8612 = vrot.slane %v8448, 6
  %v8613 = vrot.slane %v8449, 2
  %v8614 = vrot.slane %v8449, 4
  %v8615 = vrot.slane %v8449, 6
  %v8616 = vrot.slane %v8450, 2
  %v8617 = vrot.slane %v8450, 4
  %v8618 = vrot.slane %v8450, 6
  %v8619 = vrot.slane %v8451, 2
  %v8620 = vrot.slane %v8451, 4
  %v8621 = vrot.slane %v8451, 6
  %v8622 = vrot.slane %v8452, 2
  %v8623 = vrot.slane %v8452, 4
  %v8624 = vrot.slane %v8452, 6
  %v8625 = vrot.slane %v8453, 2
  %v8626 = vrot.slane %v8453, 4
  %v8627 = vrot.slane %v8453, 6
  %v8628 = vrot.slane %v8454, 2
  %v8629 = vrot.slane %v8454, 4
  %v8630 = vrot.slane %v8454, 6
  %v8631 = vrot.slane %v8455, 2
  %v8632 = vrot.slane %v8455, 4
  %v8633 = vrot.slane %v8455, 6
  %v8634 = vrot.slane %v8456, 2
  %v8635 = vrot.slane %v8456, 4
  %v8636 = vrot.slane %v8456, 6
  %v8637 = vrot.slane %v8457, 2
  %v8638 = vrot.slane %v8457, 4
  %v8639 = vrot.slane %v8457, 6
  %v8640 = vrot.slane %v8458, 2
  %v8641 = vrot.slane %v8458, 4
  %v8642 = vrot.slane %v8458, 6
  %v8643 = vrot.slane %v8459, 2
  %v8644 = vrot.slane %v8459, 4
  %v8645 = vrot.slane %v8459, 6
  %v8646 = vrot.slane %v8460, 2
  %v8647 = vrot.slane %v8460, 4
  %v8648 = vrot.slane %v8460, 6
  %v8649 = vrot.slane %v8461, 2
  %v8650 = vrot.slane %v8461, 4
  %v8651 = vrot.slane %v8461, 6
  %v8652 = vrot.slane %v8462, 2
  %v8653 = vrot.slane %v8462, 4
  %v8654 = vrot.slane %v8462, 6
  %v8655 = vrot.slane %v8463, 2
  %v8656 = vrot.slane %v8463, 4
  %v8657 = vrot.slane %v8463, 6
  %v8658 = vrot.slane %v8464, 2
  %v8659 = vrot.slane %v8464, 4
  %v8660 = vrot.slane %v8464, 6
  %v8661 = vrot.slane %v8465, 2
  %v8662 = vrot.slane %v8465, 4
  %v8663 = vrot.slane %v8465, 6
  %v8664 = vrot.slane %v8466, 2
  %v8665 = vrot.slane %v8466, 4
  %v8666 = vrot.slane %v8466, 6
  %v8667 = vrot.slane %v8467, 2
  %v8668 = vrot.slane %v8467, 4
  %v8669 = vrot.slane %v8467, 6
  %v8670 = vrot.slane %v8468, 2
  %v8671 = vrot.slane %v8468, 4
  %v8672 = vrot.slane %v8468, 6
  %v8673 = vrot.slane %v8469, 2
  %v8674 = vrot.slane %v8469, 4
  %v8675 = vrot.slane %v8469, 6
  %v8676 = vrot.slane %v8470, 2
  %v8677 = vrot.slane %v8470, 4
  %v8678 = vrot.slane %v8470, 6
  %v8679 = vrot.slane %v8471, 2
  %v8680 = vrot.slane %v8471, 4
  %v8681 = vrot.slane %v8471, 6
  %v8682 = vrot.slane %v8472, 2
  %v8683 = vrot.slane %v8472, 4
  %v8684 = vrot.slane %v8472, 6
  %v8685 = vrot.slane %v8473, 2
  %v8686 = vrot.slane %v8473, 4
  %v8687 = vrot.slane %v8473, 6
  %v8688 = vrot.slane %v8474, 2
  %v8689 = vrot.slane %v8474, 4
  %v8690 = vrot.slane %v8474, 6
  %v8691 = vrot.slane %v8475, 2
  %v8692 = vrot.slane %v8475, 4
  %v8693 = vrot.slane %v8475, 6
  %v8694 = vrot.slane %v8476, 2
  %v8695 = vrot.slane %v8476, 4
  %v8696 = vrot.slane %v8476, 6
  %v8697 = vrot.slane %v8477, 2
  %v8698 = vrot.slane %v8477, 4
  %v8699 = vrot.slane %v8477, 6
  %v8700 = vrot.slane %v8478, 2
  %v8701 = vrot.slane %v8478, 4
  %v8702 = vrot.slane %v8478, 6
  %v8703 = vrot.slane %v8479, 2
  %v8704 = vrot.slane %v8479, 4
  %v8705 = vrot.slane %v8479, 6
  %v8706 = vrot.slane %v8480, 2
  %v8707 = vrot.slane %v8480, 4
  %v8708 = vrot.slane %v8480, 6
  %v8709 = vrot.slane %v8481, 2
  %v8710 = vrot.slane %v8481, 4
  %v8711 = vrot.slane %v8481, 6
  %v8712 = vrot.slane %v8482, 2
  %v8713 = vrot.slane %v8482, 4
  %v8714 = vrot.slane %v8482, 6
  %v8715 = vrot.slane %v8483, 2
  %v8716 = vrot.slane %v8483, 4
  %v8717 = vrot.slane %v8483, 6
  %v8718 = vrot.slane %v8484, 2
  %v8719 = vrot.slane %v8484, 4
  %v8720 = vrot.slane %v8484, 6
  %v8721 = vrot.slane %v8485, 2
  %v8722 = vrot.slane %v8485, 4
  %v8723 = vrot.slane %v8485, 6
  %v8724 = vrot.slane %v8486, 2
  %v8725 = vrot.slane %v8486, 4
  %v8726 = vrot.slane %v8486, 6
  %v8727 = vrot.slane %v8487, 2
  %v8728 = vrot.slane %v8487, 4
  %v8729 = vrot.slane %v8487, 6
  %v8730 = vrot.slane %v8488, 2
  %v8731 = vrot.slane %v8488, 4
  %v8732 = vrot.slane %v8488, 6
  %v8733 = vrot.slane %v8489, 2
  %v8734 = vrot.slane %v8489, 4
  %v8735 = vrot.slane %v8489, 6
  %v8736 = vrot.slane %v8490, 2
  %v8737 = vrot.slane %v8490, 4
  %v8738 = vrot.slane %v8490, 6
  %v8739 = vrot.slane %v8491, 2
  %v8740 = vrot.slane %v8491, 4
  %v8741 = vrot.slane %v8491, 6
  %v8742 = vrot.slane %v8492, 2
  %v8743 = vrot.slane %v8492, 4
  %v8744 = vrot.slane %v8492, 6
  %v8745 = vrot.slane %v8493, 2
  %v8746 = vrot.slane %v8493, 4
  %v8747 = vrot.slane %v8493, 6
  %v8748 = vrot.slane %v8494, 2
  %v8749 = vrot.slane %v8494, 4
  %v8750 = vrot.slane %v8494, 6
  %v8943 = vsel %vm4020, %v8431, -inf
  %v8944 = vrot.slane %v8943, 4
  %v8945 = vmax.f32 %v8943, %v8944
  %v8946 = vrot.slane %v8945, 2
  %v8947 = vmax.f32 %v8945, %v8946
  %v8948 = vrot.slane %v8947, 1
  %v8949 = vmax.f32 %v8947, %v8948
  %v8950 = vsel %vm4020, %v8559, -inf
  %v8951 = vrot.slane %v8950, 4
  %v8952 = vmax.f32 %v8950, %v8951
  %v8953 = vrot.slane %v8952, 2
  %v8954 = vmax.f32 %v8952, %v8953
  %v8955 = vrot.slane %v8954, 1
  %v8956 = vmax.f32 %v8954, %v8955
  %v8957 = vsel %vm4020, %v8560, -inf
  %v8958 = vrot.slane %v8957, 4
  %v8959 = vmax.f32 %v8957, %v8958
  %v8960 = vrot.slane %v8959, 2
  %v8961 = vmax.f32 %v8959, %v8960
  %v8962 = vrot.slane %v8961, 1
  %v8963 = vmax.f32 %v8961, %v8962
  %v8964 = vsel %vm4020, %v8561, -inf
  %v8965 = vrot.slane %v8964, 4
  %v8966 = vmax.f32 %v8964, %v8965
  %v8967 = vrot.slane %v8966, 2
  %v8968 = vmax.f32 %v8966, %v8967
  %v8969 = vrot.slane %v8968, 1
  %v8970 = vmax.f32 %v8968, %v8969
  %v8971 = vsel %vm4020, %v8432, -inf
  %v8972 = vrot.slane %v8971, 4
  %v8973 = vmax.f32 %v8971, %v8972
  %v8974 = vrot.slane %v8973, 2
  %v8975 = vmax.f32 %v8973, %v8974
  %v8976 = vrot.slane %v8975, 1
  %v8977 = vmax.f32 %v8975, %v8976
  %v8978 = vsel %vm4020, %v8562, -inf
  %v8979 = vrot.slane %v8978, 4
  %v8980 = vmax.f32 %v8978, %v8979
  %v8981 = vrot.slane %v8980, 2
  %v8982 = vmax.f32 %v8980, %v8981
  %v8983 = vrot.slane %v8982, 1
  %v8984 = vmax.f32 %v8982, %v8983
  %v8985 = vsel %vm4020, %v8563, -inf
  %v8986 = vrot.slane %v8985, 4
  %v8987 = vmax.f32 %v8985, %v8986
  %v8988 = vrot.slane %v8987, 2
  %v8989 = vmax.f32 %v8987, %v8988
  %v8990 = vrot.slane %v8989, 1
  %v8991 = vmax.f32 %v8989, %v8990
  %v8992 = vsel %vm4020, %v8564, -inf
  %v8993 = vrot.slane %v8992, 4
  %v8994 = vmax.f32 %v8992, %v8993
  %v8995 = vrot.slane %v8994, 2
  %v8996 = vmax.f32 %v8994, %v8995
  %v8997 = vrot.slane %v8996, 1
  %v8998 = vmax.f32 %v8996, %v8997
  %v8999 = vsel %vm4020, %v8433, -inf
  %v9000 = vrot.slane %v8999, 4
  %v9001 = vmax.f32 %v8999, %v9000
  %v9002 = vrot.slane %v9001, 2
  %v9003 = vmax.f32 %v9001, %v9002
  %v9004 = vrot.slane %v9003, 1
  %v9005 = vmax.f32 %v9003, %v9004
  %v9006 = vsel %vm4020, %v8565, -inf
  %v9007 = vrot.slane %v9006, 4
  %v9008 = vmax.f32 %v9006, %v9007
  %v9009 = vrot.slane %v9008, 2
  %v9010 = vmax.f32 %v9008, %v9009
  %v9011 = vrot.slane %v9010, 1
  %v9012 = vmax.f32 %v9010, %v9011
  %v9013 = vsel %vm4020, %v8566, -inf
  %v9014 = vrot.slane %v9013, 4
  %v9015 = vmax.f32 %v9013, %v9014
  %v9016 = vrot.slane %v9015, 2
  %v9017 = vmax.f32 %v9015, %v9016
  %v9018 = vrot.slane %v9017, 1
  %v9019 = vmax.f32 %v9017, %v9018
  %v9020 = vsel %vm4020, %v8567, -inf
  %v9021 = vrot.slane %v9020, 4
  %v9022 = vmax.f32 %v9020, %v9021
  %v9023 = vrot.slane %v9022, 2
  %v9024 = vmax.f32 %v9022, %v9023
  %v9025 = vrot.slane %v9024, 1
  %v9026 = vmax.f32 %v9024, %v9025
  %v9027 = vsel %vm4020, %v8434, -inf
  %v9028 = vrot.slane %v9027, 4
  %v9029 = vmax.f32 %v9027, %v9028
  %v9030 = vrot.slane %v9029, 2
  %v9031 = vmax.f32 %v9029, %v9030
  %v9032 = vrot.slane %v9031, 1
  %v9033 = vmax.f32 %v9031, %v9032
  %v9034 = vsel %vm4020, %v8568, -inf
  %v9035 = vrot.slane %v9034, 4
  %v9036 = vmax.f32 %v9034, %v9035
  %v9037 = vrot.slane %v9036, 2
  %v9038 = vmax.f32 %v9036, %v9037
  %v9039 = vrot.slane %v9038, 1
  %v9040 = vmax.f32 %v9038, %v9039
  %v9041 = vsel %vm4020, %v8569, -inf
  %v9042 = vrot.slane %v9041, 4
  %v9043 = vmax.f32 %v9041, %v9042
  %v9044 = vrot.slane %v9043, 2
  %v9045 = vmax.f32 %v9043, %v9044
  %v9046 = vrot.slane %v9045, 1
  %v9047 = vmax.f32 %v9045, %v9046
  %v9048 = vsel %vm4020, %v8570, -inf
  %v9049 = vrot.slane %v9048, 4
  %v9050 = vmax.f32 %v9048, %v9049
  %v9051 = vrot.slane %v9050, 2
  %v9052 = vmax.f32 %v9050, %v9051
  %v9053 = vrot.slane %v9052, 1
  %v9054 = vmax.f32 %v9052, %v9053
  %v9055 = vsel %vm4020, %v8435, -inf
  %v9056 = vrot.slane %v9055, 4
  %v9057 = vmax.f32 %v9055, %v9056
  %v9058 = vrot.slane %v9057, 2
  %v9059 = vmax.f32 %v9057, %v9058
  %v9060 = vrot.slane %v9059, 1
  %v9061 = vmax.f32 %v9059, %v9060
  %v9062 = vsel %vm4020, %v8571, -inf
  %v9063 = vrot.slane %v9062, 4
  %v9064 = vmax.f32 %v9062, %v9063
  %v9065 = vrot.slane %v9064, 2
  %v9066 = vmax.f32 %v9064, %v9065
  %v9067 = vrot.slane %v9066, 1
  %v9068 = vmax.f32 %v9066, %v9067
  %v9069 = vsel %vm4020, %v8572, -inf
  %v9070 = vrot.slane %v9069, 4
  %v9071 = vmax.f32 %v9069, %v9070
  %v9072 = vrot.slane %v9071, 2
  %v9073 = vmax.f32 %v9071, %v9072
  %v9074 = vrot.slane %v9073, 1
  %v9075 = vmax.f32 %v9073, %v9074
  %v9076 = vsel %vm4020, %v8573, -inf
  %v9077 = vrot.slane %v9076, 4
  %v9078 = vmax.f32 %v9076, %v9077
  %v9079 = vrot.slane %v9078, 2
  %v9080 = vmax.f32 %v9078, %v9079
  %v9081 = vrot.slane %v9080, 1
  %v9082 = vmax.f32 %v9080, %v9081
  %v9083 = vsel %vm4020, %v8436, -inf
  %v9084 = vrot.slane %v9083, 4
  %v9085 = vmax.f32 %v9083, %v9084
  %v9086 = vrot.slane %v9085, 2
  %v9087 = vmax.f32 %v9085, %v9086
  %v9088 = vrot.slane %v9087, 1
  %v9089 = vmax.f32 %v9087, %v9088
  %v9090 = vsel %vm4020, %v8574, -inf
  %v9091 = vrot.slane %v9090, 4
  %v9092 = vmax.f32 %v9090, %v9091
  %v9093 = vrot.slane %v9092, 2
  %v9094 = vmax.f32 %v9092, %v9093
  %v9095 = vrot.slane %v9094, 1
  %v9096 = vmax.f32 %v9094, %v9095
  %v9097 = vsel %vm4020, %v8575, -inf
  %v9098 = vrot.slane %v9097, 4
  %v9099 = vmax.f32 %v9097, %v9098
  %v9100 = vrot.slane %v9099, 2
  %v9101 = vmax.f32 %v9099, %v9100
  %v9102 = vrot.slane %v9101, 1
  %v9103 = vmax.f32 %v9101, %v9102
  %v9104 = vsel %vm4020, %v8576, -inf
  %v9105 = vrot.slane %v9104, 4
  %v9106 = vmax.f32 %v9104, %v9105
  %v9107 = vrot.slane %v9106, 2
  %v9108 = vmax.f32 %v9106, %v9107
  %v9109 = vrot.slane %v9108, 1
  %v9110 = vmax.f32 %v9108, %v9109
  %v9111 = vsel %vm4020, %v8437, -inf
  %v9112 = vrot.slane %v9111, 4
  %v9113 = vmax.f32 %v9111, %v9112
  %v9114 = vrot.slane %v9113, 2
  %v9115 = vmax.f32 %v9113, %v9114
  %v9116 = vrot.slane %v9115, 1
  %v9117 = vmax.f32 %v9115, %v9116
  %v9118 = vsel %vm4020, %v8577, -inf
  %v9119 = vrot.slane %v9118, 4
  %v9120 = vmax.f32 %v9118, %v9119
  %v9121 = vrot.slane %v9120, 2
  %v9122 = vmax.f32 %v9120, %v9121
  %v9123 = vrot.slane %v9122, 1
  %v9124 = vmax.f32 %v9122, %v9123
  %v9125 = vsel %vm4020, %v8578, -inf
  %v9126 = vrot.slane %v9125, 4
  %v9127 = vmax.f32 %v9125, %v9126
  %v9128 = vrot.slane %v9127, 2
  %v9129 = vmax.f32 %v9127, %v9128
  %v9130 = vrot.slane %v9129, 1
  %v9131 = vmax.f32 %v9129, %v9130
  %v9132 = vsel %vm4020, %v8579, -inf
  %v9133 = vrot.slane %v9132, 4
  %v9134 = vmax.f32 %v9132, %v9133
  %v9135 = vrot.slane %v9134, 2
  %v9136 = vmax.f32 %v9134, %v9135
  %v9137 = vrot.slane %v9136, 1
  %v9138 = vmax.f32 %v9136, %v9137
  %v9139 = vsel %vm4020, %v8438, -inf
  %v9140 = vrot.slane %v9139, 4
  %v9141 = vmax.f32 %v9139, %v9140
  %v9142 = vrot.slane %v9141, 2
  %v9143 = vmax.f32 %v9141, %v9142
  %v9144 = vrot.slane %v9143, 1
  %v9145 = vmax.f32 %v9143, %v9144
  %v9146 = vsel %vm4020, %v8580, -inf
  %v9147 = vrot.slane %v9146, 4
  %v9148 = vmax.f32 %v9146, %v9147
  %v9149 = vrot.slane %v9148, 2
  %v9150 = vmax.f32 %v9148, %v9149
  %v9151 = vrot.slane %v9150, 1
  %v9152 = vmax.f32 %v9150, %v9151
  %v9153 = vsel %vm4020, %v8581, -inf
  %v9154 = vrot.slane %v9153, 4
  %v9155 = vmax.f32 %v9153, %v9154
  %v9156 = vrot.slane %v9155, 2
  %v9157 = vmax.f32 %v9155, %v9156
  %v9158 = vrot.slane %v9157, 1
  %v9159 = vmax.f32 %v9157, %v9158
  %v9160 = vsel %vm4020, %v8582, -inf
  %v9161 = vrot.slane %v9160, 4
  %v9162 = vmax.f32 %v9160, %v9161
  %v9163 = vrot.slane %v9162, 2
  %v9164 = vmax.f32 %v9162, %v9163
  %v9165 = vrot.slane %v9164, 1
  %v9166 = vmax.f32 %v9164, %v9165
  %v9167 = vsel %vm4020, %v8439, -inf
  %v9168 = vrot.slane %v9167, 4
  %v9169 = vmax.f32 %v9167, %v9168
  %v9170 = vrot.slane %v9169, 2
  %v9171 = vmax.f32 %v9169, %v9170
  %v9172 = vrot.slane %v9171, 1
  %v9173 = vmax.f32 %v9171, %v9172
  %v9174 = vsel %vm4020, %v8583, -inf
  %v9175 = vrot.slane %v9174, 4
  %v9176 = vmax.f32 %v9174, %v9175
  %v9177 = vrot.slane %v9176, 2
  %v9178 = vmax.f32 %v9176, %v9177
  %v9179 = vrot.slane %v9178, 1
  %v9180 = vmax.f32 %v9178, %v9179
  %v9181 = vsel %vm4020, %v8584, -inf
  %v9182 = vrot.slane %v9181, 4
  %v9183 = vmax.f32 %v9181, %v9182
  %v9184 = vrot.slane %v9183, 2
  %v9185 = vmax.f32 %v9183, %v9184
  %v9186 = vrot.slane %v9185, 1
  %v9187 = vmax.f32 %v9185, %v9186
  %v9188 = vsel %vm4020, %v8585, -inf
  %v9189 = vrot.slane %v9188, 4
  %v9190 = vmax.f32 %v9188, %v9189
  %v9191 = vrot.slane %v9190, 2
  %v9192 = vmax.f32 %v9190, %v9191
  %v9193 = vrot.slane %v9192, 1
  %v9194 = vmax.f32 %v9192, %v9193
  %v9195 = vsel %vm4020, %v8440, -inf
  %v9196 = vrot.slane %v9195, 4
  %v9197 = vmax.f32 %v9195, %v9196
  %v9198 = vrot.slane %v9197, 2
  %v9199 = vmax.f32 %v9197, %v9198
  %v9200 = vrot.slane %v9199, 1
  %v9201 = vmax.f32 %v9199, %v9200
  %v9202 = vsel %vm4020, %v8586, -inf
  %v9203 = vrot.slane %v9202, 4
  %v9204 = vmax.f32 %v9202, %v9203
  %v9205 = vrot.slane %v9204, 2
  %v9206 = vmax.f32 %v9204, %v9205
  %v9207 = vrot.slane %v9206, 1
  %v9208 = vmax.f32 %v9206, %v9207
  %v9209 = vsel %vm4020, %v8587, -inf
  %v9210 = vrot.slane %v9209, 4
  %v9211 = vmax.f32 %v9209, %v9210
  %v9212 = vrot.slane %v9211, 2
  %v9213 = vmax.f32 %v9211, %v9212
  %v9214 = vrot.slane %v9213, 1
  %v9215 = vmax.f32 %v9213, %v9214
  %v9216 = vsel %vm4020, %v8588, -inf
  %v9217 = vrot.slane %v9216, 4
  %v9218 = vmax.f32 %v9216, %v9217
  %v9219 = vrot.slane %v9218, 2
  %v9220 = vmax.f32 %v9218, %v9219
  %v9221 = vrot.slane %v9220, 1
  %v9222 = vmax.f32 %v9220, %v9221
  %v9223 = vsel %vm4020, %v8441, -inf
  %v9224 = vrot.slane %v9223, 4
  %v9225 = vmax.f32 %v9223, %v9224
  %v9226 = vrot.slane %v9225, 2
  %v9227 = vmax.f32 %v9225, %v9226
  %v9228 = vrot.slane %v9227, 1
  %v9229 = vmax.f32 %v9227, %v9228
  %v9230 = vsel %vm4020, %v8589, -inf
  %v9231 = vrot.slane %v9230, 4
  %v9232 = vmax.f32 %v9230, %v9231
  %v9233 = vrot.slane %v9232, 2
  %v9234 = vmax.f32 %v9232, %v9233
  %v9235 = vrot.slane %v9234, 1
  %v9236 = vmax.f32 %v9234, %v9235
  %v9237 = vsel %vm4020, %v8590, -inf
  %v9238 = vrot.slane %v9237, 4
  %v9239 = vmax.f32 %v9237, %v9238
  %v9240 = vrot.slane %v9239, 2
  %v9241 = vmax.f32 %v9239, %v9240
  %v9242 = vrot.slane %v9241, 1
  %v9243 = vmax.f32 %v9241, %v9242
  %v9244 = vsel %vm4020, %v8591, -inf
  %v9245 = vrot.slane %v9244, 4
  %v9246 = vmax.f32 %v9244, %v9245
  %v9247 = vrot.slane %v9246, 2
  %v9248 = vmax.f32 %v9246, %v9247
  %v9249 = vrot.slane %v9248, 1
  %v9250 = vmax.f32 %v9248, %v9249
  %v9251 = vsel %vm4020, %v8442, -inf
  %v9252 = vrot.slane %v9251, 4
  %v9253 = vmax.f32 %v9251, %v9252
  %v9254 = vrot.slane %v9253, 2
  %v9255 = vmax.f32 %v9253, %v9254
  %v9256 = vrot.slane %v9255, 1
  %v9257 = vmax.f32 %v9255, %v9256
  %v9258 = vsel %vm4020, %v8592, -inf
  %v9259 = vrot.slane %v9258, 4
  %v9260 = vmax.f32 %v9258, %v9259
  %v9261 = vrot.slane %v9260, 2
  %v9262 = vmax.f32 %v9260, %v9261
  %v9263 = vrot.slane %v9262, 1
  %v9264 = vmax.f32 %v9262, %v9263
  %v9265 = vsel %vm4020, %v8593, -inf
  %v9266 = vrot.slane %v9265, 4
  %v9267 = vmax.f32 %v9265, %v9266
  %v9268 = vrot.slane %v9267, 2
  %v9269 = vmax.f32 %v9267, %v9268
  %v9270 = vrot.slane %v9269, 1
  %v9271 = vmax.f32 %v9269, %v9270
  %v9272 = vsel %vm4020, %v8594, -inf
  %v9273 = vrot.slane %v9272, 4
  %v9274 = vmax.f32 %v9272, %v9273
  %v9275 = vrot.slane %v9274, 2
  %v9276 = vmax.f32 %v9274, %v9275
  %v9277 = vrot.slane %v9276, 1
  %v9278 = vmax.f32 %v9276, %v9277
  %v9279 = vsel %vm4020, %v8443, -inf
  %v9280 = vrot.slane %v9279, 4
  %v9281 = vmax.f32 %v9279, %v9280
  %v9282 = vrot.slane %v9281, 2
  %v9283 = vmax.f32 %v9281, %v9282
  %v9284 = vrot.slane %v9283, 1
  %v9285 = vmax.f32 %v9283, %v9284
  %v9286 = vsel %vm4020, %v8595, -inf
  %v9287 = vrot.slane %v9286, 4
  %v9288 = vmax.f32 %v9286, %v9287
  %v9289 = vrot.slane %v9288, 2
  %v9290 = vmax.f32 %v9288, %v9289
  %v9291 = vrot.slane %v9290, 1
  %v9292 = vmax.f32 %v9290, %v9291
  %v9293 = vsel %vm4020, %v8596, -inf
  %v9294 = vrot.slane %v9293, 4
  %v9295 = vmax.f32 %v9293, %v9294
  %v9296 = vrot.slane %v9295, 2
  %v9297 = vmax.f32 %v9295, %v9296
  %v9298 = vrot.slane %v9297, 1
  %v9299 = vmax.f32 %v9297, %v9298
  %v9300 = vsel %vm4020, %v8597, -inf
  %v9301 = vrot.slane %v9300, 4
  %v9302 = vmax.f32 %v9300, %v9301
  %v9303 = vrot.slane %v9302, 2
  %v9304 = vmax.f32 %v9302, %v9303
  %v9305 = vrot.slane %v9304, 1
  %v9306 = vmax.f32 %v9304, %v9305
  %v9307 = vsel %vm4020, %v8444, -inf
  %v9308 = vrot.slane %v9307, 4
  %v9309 = vmax.f32 %v9307, %v9308
  %v9310 = vrot.slane %v9309, 2
  %v9311 = vmax.f32 %v9309, %v9310
  %v9312 = vrot.slane %v9311, 1
  %v9313 = vmax.f32 %v9311, %v9312
  %v9314 = vsel %vm4020, %v8598, -inf
  %v9315 = vrot.slane %v9314, 4
  %v9316 = vmax.f32 %v9314, %v9315
  %v9317 = vrot.slane %v9316, 2
  %v9318 = vmax.f32 %v9316, %v9317
  %v9319 = vrot.slane %v9318, 1
  %v9320 = vmax.f32 %v9318, %v9319
  %v9321 = vsel %vm4020, %v8599, -inf
  %v9322 = vrot.slane %v9321, 4
  %v9323 = vmax.f32 %v9321, %v9322
  %v9324 = vrot.slane %v9323, 2
  %v9325 = vmax.f32 %v9323, %v9324
  %v9326 = vrot.slane %v9325, 1
  %v9327 = vmax.f32 %v9325, %v9326
  %v9328 = vsel %vm4020, %v8600, -inf
  %v9329 = vrot.slane %v9328, 4
  %v9330 = vmax.f32 %v9328, %v9329
  %v9331 = vrot.slane %v9330, 2
  %v9332 = vmax.f32 %v9330, %v9331
  %v9333 = vrot.slane %v9332, 1
  %v9334 = vmax.f32 %v9332, %v9333
  %v9335 = vsel %vm4020, %v8445, -inf
  %v9336 = vrot.slane %v9335, 4
  %v9337 = vmax.f32 %v9335, %v9336
  %v9338 = vrot.slane %v9337, 2
  %v9339 = vmax.f32 %v9337, %v9338
  %v9340 = vrot.slane %v9339, 1
  %v9341 = vmax.f32 %v9339, %v9340
  %v9342 = vsel %vm4020, %v8601, -inf
  %v9343 = vrot.slane %v9342, 4
  %v9344 = vmax.f32 %v9342, %v9343
  %v9345 = vrot.slane %v9344, 2
  %v9346 = vmax.f32 %v9344, %v9345
  %v9347 = vrot.slane %v9346, 1
  %v9348 = vmax.f32 %v9346, %v9347
  %v9349 = vsel %vm4020, %v8602, -inf
  %v9350 = vrot.slane %v9349, 4
  %v9351 = vmax.f32 %v9349, %v9350
  %v9352 = vrot.slane %v9351, 2
  %v9353 = vmax.f32 %v9351, %v9352
  %v9354 = vrot.slane %v9353, 1
  %v9355 = vmax.f32 %v9353, %v9354
  %v9356 = vsel %vm4020, %v8603, -inf
  %v9357 = vrot.slane %v9356, 4
  %v9358 = vmax.f32 %v9356, %v9357
  %v9359 = vrot.slane %v9358, 2
  %v9360 = vmax.f32 %v9358, %v9359
  %v9361 = vrot.slane %v9360, 1
  %v9362 = vmax.f32 %v9360, %v9361
  %v9363 = vsel %vm4020, %v8446, -inf
  %v9364 = vrot.slane %v9363, 4
  %v9365 = vmax.f32 %v9363, %v9364
  %v9366 = vrot.slane %v9365, 2
  %v9367 = vmax.f32 %v9365, %v9366
  %v9368 = vrot.slane %v9367, 1
  %v9369 = vmax.f32 %v9367, %v9368
  %v9370 = vsel %vm4020, %v8604, -inf
  %v9371 = vrot.slane %v9370, 4
  %v9372 = vmax.f32 %v9370, %v9371
  %v9373 = vrot.slane %v9372, 2
  %v9374 = vmax.f32 %v9372, %v9373
  %v9375 = vrot.slane %v9374, 1
  %v9376 = vmax.f32 %v9374, %v9375
  %v9377 = vsel %vm4020, %v8605, -inf
  %v9378 = vrot.slane %v9377, 4
  %v9379 = vmax.f32 %v9377, %v9378
  %v9380 = vrot.slane %v9379, 2
  %v9381 = vmax.f32 %v9379, %v9380
  %v9382 = vrot.slane %v9381, 1
  %v9383 = vmax.f32 %v9381, %v9382
  %v9384 = vsel %vm4020, %v8606, -inf
  %v9385 = vrot.slane %v9384, 4
  %v9386 = vmax.f32 %v9384, %v9385
  %v9387 = vrot.slane %v9386, 2
  %v9388 = vmax.f32 %v9386, %v9387
  %v9389 = vrot.slane %v9388, 1
  %v9390 = vmax.f32 %v9388, %v9389
  %v9391 = vsel %vm4020, %v8447, -inf
  %v9392 = vrot.slane %v9391, 4
  %v9393 = vmax.f32 %v9391, %v9392
  %v9394 = vrot.slane %v9393, 2
  %v9395 = vmax.f32 %v9393, %v9394
  %v9396 = vrot.slane %v9395, 1
  %v9397 = vmax.f32 %v9395, %v9396
  %v9398 = vsel %vm4020, %v8607, -inf
  %v9399 = vrot.slane %v9398, 4
  %v9400 = vmax.f32 %v9398, %v9399
  %v9401 = vrot.slane %v9400, 2
  %v9402 = vmax.f32 %v9400, %v9401
  %v9403 = vrot.slane %v9402, 1
  %v9404 = vmax.f32 %v9402, %v9403
  %v9405 = vsel %vm4020, %v8608, -inf
  %v9406 = vrot.slane %v9405, 4
  %v9407 = vmax.f32 %v9405, %v9406
  %v9408 = vrot.slane %v9407, 2
  %v9409 = vmax.f32 %v9407, %v9408
  %v9410 = vrot.slane %v9409, 1
  %v9411 = vmax.f32 %v9409, %v9410
  %v9412 = vsel %vm4020, %v8609, -inf
  %v9413 = vrot.slane %v9412, 4
  %v9414 = vmax.f32 %v9412, %v9413
  %v9415 = vrot.slane %v9414, 2
  %v9416 = vmax.f32 %v9414, %v9415
  %v9417 = vrot.slane %v9416, 1
  %v9418 = vmax.f32 %v9416, %v9417
  %v9419 = vsel %vm4020, %v8448, -inf
  %v9420 = vrot.slane %v9419, 4
  %v9421 = vmax.f32 %v9419, %v9420
  %v9422 = vrot.slane %v9421, 2
  %v9423 = vmax.f32 %v9421, %v9422
  %v9424 = vrot.slane %v9423, 1
  %v9425 = vmax.f32 %v9423, %v9424
  %v9426 = vsel %vm4020, %v8610, -inf
  %v9427 = vrot.slane %v9426, 4
  %v9428 = vmax.f32 %v9426, %v9427
  %v9429 = vrot.slane %v9428, 2
  %v9430 = vmax.f32 %v9428, %v9429
  %v9431 = vrot.slane %v9430, 1
  %v9432 = vmax.f32 %v9430, %v9431
  %v9433 = vsel %vm4020, %v8611, -inf
  %v9434 = vrot.slane %v9433, 4
  %v9435 = vmax.f32 %v9433, %v9434
  %v9436 = vrot.slane %v9435, 2
  %v9437 = vmax.f32 %v9435, %v9436
  %v9438 = vrot.slane %v9437, 1
  %v9439 = vmax.f32 %v9437, %v9438
  %v9440 = vsel %vm4020, %v8612, -inf
  %v9441 = vrot.slane %v9440, 4
  %v9442 = vmax.f32 %v9440, %v9441
  %v9443 = vrot.slane %v9442, 2
  %v9444 = vmax.f32 %v9442, %v9443
  %v9445 = vrot.slane %v9444, 1
  %v9446 = vmax.f32 %v9444, %v9445
  %v9447 = vsel %vm4020, %v8449, -inf
  %v9448 = vrot.slane %v9447, 4
  %v9449 = vmax.f32 %v9447, %v9448
  %v9450 = vrot.slane %v9449, 2
  %v9451 = vmax.f32 %v9449, %v9450
  %v9452 = vrot.slane %v9451, 1
  %v9453 = vmax.f32 %v9451, %v9452
  %v9454 = vsel %vm4020, %v8613, -inf
  %v9455 = vrot.slane %v9454, 4
  %v9456 = vmax.f32 %v9454, %v9455
  %v9457 = vrot.slane %v9456, 2
  %v9458 = vmax.f32 %v9456, %v9457
  %v9459 = vrot.slane %v9458, 1
  %v9460 = vmax.f32 %v9458, %v9459
  %v9461 = vsel %vm4020, %v8614, -inf
  %v9462 = vrot.slane %v9461, 4
  %v9463 = vmax.f32 %v9461, %v9462
  %v9464 = vrot.slane %v9463, 2
  %v9465 = vmax.f32 %v9463, %v9464
  %v9466 = vrot.slane %v9465, 1
  %v9467 = vmax.f32 %v9465, %v9466
  %v9468 = vsel %vm4020, %v8615, -inf
  %v9469 = vrot.slane %v9468, 4
  %v9470 = vmax.f32 %v9468, %v9469
  %v9471 = vrot.slane %v9470, 2
  %v9472 = vmax.f32 %v9470, %v9471
  %v9473 = vrot.slane %v9472, 1
  %v9474 = vmax.f32 %v9472, %v9473
  %v9475 = vsel %vm4020, %v8450, -inf
  %v9476 = vrot.slane %v9475, 4
  %v9477 = vmax.f32 %v9475, %v9476
  %v9478 = vrot.slane %v9477, 2
  %v9479 = vmax.f32 %v9477, %v9478
  %v9480 = vrot.slane %v9479, 1
  %v9481 = vmax.f32 %v9479, %v9480
  %v9482 = vsel %vm4020, %v8616, -inf
  %v9483 = vrot.slane %v9482, 4
  %v9484 = vmax.f32 %v9482, %v9483
  %v9485 = vrot.slane %v9484, 2
  %v9486 = vmax.f32 %v9484, %v9485
  %v9487 = vrot.slane %v9486, 1
  %v9488 = vmax.f32 %v9486, %v9487
  %v9489 = vsel %vm4020, %v8617, -inf
  %v9490 = vrot.slane %v9489, 4
  %v9491 = vmax.f32 %v9489, %v9490
  %v9492 = vrot.slane %v9491, 2
  %v9493 = vmax.f32 %v9491, %v9492
  %v9494 = vrot.slane %v9493, 1
  %v9495 = vmax.f32 %v9493, %v9494
  %v9496 = vsel %vm4020, %v8618, -inf
  %v9497 = vrot.slane %v9496, 4
  %v9498 = vmax.f32 %v9496, %v9497
  %v9499 = vrot.slane %v9498, 2
  %v9500 = vmax.f32 %v9498, %v9499
  %v9501 = vrot.slane %v9500, 1
  %v9502 = vmax.f32 %v9500, %v9501
  %v9503 = vsel %vm4020, %v8451, -inf
  %v9504 = vrot.slane %v9503, 4
  %v9505 = vmax.f32 %v9503, %v9504
  %v9506 = vrot.slane %v9505, 2
  %v9507 = vmax.f32 %v9505, %v9506
  %v9508 = vrot.slane %v9507, 1
  %v9509 = vmax.f32 %v9507, %v9508
  %v9510 = vsel %vm4020, %v8619, -inf
  %v9511 = vrot.slane %v9510, 4
  %v9512 = vmax.f32 %v9510, %v9511
  %v9513 = vrot.slane %v9512, 2
  %v9514 = vmax.f32 %v9512, %v9513
  %v9515 = vrot.slane %v9514, 1
  %v9516 = vmax.f32 %v9514, %v9515
  %v9517 = vsel %vm4020, %v8620, -inf
  %v9518 = vrot.slane %v9517, 4
  %v9519 = vmax.f32 %v9517, %v9518
  %v9520 = vrot.slane %v9519, 2
  %v9521 = vmax.f32 %v9519, %v9520
  %v9522 = vrot.slane %v9521, 1
  %v9523 = vmax.f32 %v9521, %v9522
  %v9524 = vsel %vm4020, %v8621, -inf
  %v9525 = vrot.slane %v9524, 4
  %v9526 = vmax.f32 %v9524, %v9525
  %v9527 = vrot.slane %v9526, 2
  %v9528 = vmax.f32 %v9526, %v9527
  %v9529 = vrot.slane %v9528, 1
  %v9530 = vmax.f32 %v9528, %v9529
  %v9531 = vsel %vm4020, %v8452, -inf
  %v9532 = vrot.slane %v9531, 4
  %v9533 = vmax.f32 %v9531, %v9532
  %v9534 = vrot.slane %v9533, 2
  %v9535 = vmax.f32 %v9533, %v9534
  %v9536 = vrot.slane %v9535, 1
  %v9537 = vmax.f32 %v9535, %v9536
  %v9538 = vsel %vm4020, %v8622, -inf
  %v9539 = vrot.slane %v9538, 4
  %v9540 = vmax.f32 %v9538, %v9539
  %v9541 = vrot.slane %v9540, 2
  %v9542 = vmax.f32 %v9540, %v9541
  %v9543 = vrot.slane %v9542, 1
  %v9544 = vmax.f32 %v9542, %v9543
  %v9545 = vsel %vm4020, %v8623, -inf
  %v9546 = vrot.slane %v9545, 4
  %v9547 = vmax.f32 %v9545, %v9546
  %v9548 = vrot.slane %v9547, 2
  %v9549 = vmax.f32 %v9547, %v9548
  %v9550 = vrot.slane %v9549, 1
  %v9551 = vmax.f32 %v9549, %v9550
  %v9552 = vsel %vm4020, %v8624, -inf
  %v9553 = vrot.slane %v9552, 4
  %v9554 = vmax.f32 %v9552, %v9553
  %v9555 = vrot.slane %v9554, 2
  %v9556 = vmax.f32 %v9554, %v9555
  %v9557 = vrot.slane %v9556, 1
  %v9558 = vmax.f32 %v9556, %v9557
  %v9559 = vsel %vm4020, %v8453, -inf
  %v9560 = vrot.slane %v9559, 4
  %v9561 = vmax.f32 %v9559, %v9560
  %v9562 = vrot.slane %v9561, 2
  %v9563 = vmax.f32 %v9561, %v9562
  %v9564 = vrot.slane %v9563, 1
  %v9565 = vmax.f32 %v9563, %v9564
  %v9566 = vsel %vm4020, %v8625, -inf
  %v9567 = vrot.slane %v9566, 4
  %v9568 = vmax.f32 %v9566, %v9567
  %v9569 = vrot.slane %v9568, 2
  %v9570 = vmax.f32 %v9568, %v9569
  %v9571 = vrot.slane %v9570, 1
  %v9572 = vmax.f32 %v9570, %v9571
  %v9573 = vsel %vm4020, %v8626, -inf
  %v9574 = vrot.slane %v9573, 4
  %v9575 = vmax.f32 %v9573, %v9574
  %v9576 = vrot.slane %v9575, 2
  %v9577 = vmax.f32 %v9575, %v9576
  %v9578 = vrot.slane %v9577, 1
  %v9579 = vmax.f32 %v9577, %v9578
  %v9580 = vsel %vm4020, %v8627, -inf
  %v9581 = vrot.slane %v9580, 4
  %v9582 = vmax.f32 %v9580, %v9581
  %v9583 = vrot.slane %v9582, 2
  %v9584 = vmax.f32 %v9582, %v9583
  %v9585 = vrot.slane %v9584, 1
  %v9586 = vmax.f32 %v9584, %v9585
  %v9587 = vsel %vm4020, %v8454, -inf
  %v9588 = vrot.slane %v9587, 4
  %v9589 = vmax.f32 %v9587, %v9588
  %v9590 = vrot.slane %v9589, 2
  %v9591 = vmax.f32 %v9589, %v9590
  %v9592 = vrot.slane %v9591, 1
  %v9593 = vmax.f32 %v9591, %v9592
  %v9594 = vsel %vm4020, %v8628, -inf
  %v9595 = vrot.slane %v9594, 4
  %v9596 = vmax.f32 %v9594, %v9595
  %v9597 = vrot.slane %v9596, 2
  %v9598 = vmax.f32 %v9596, %v9597
  %v9599 = vrot.slane %v9598, 1
  %v9600 = vmax.f32 %v9598, %v9599
  %v9601 = vsel %vm4020, %v8629, -inf
  %v9602 = vrot.slane %v9601, 4
  %v9603 = vmax.f32 %v9601, %v9602
  %v9604 = vrot.slane %v9603, 2
  %v9605 = vmax.f32 %v9603, %v9604
  %v9606 = vrot.slane %v9605, 1
  %v9607 = vmax.f32 %v9605, %v9606
  %v9608 = vsel %vm4020, %v8630, -inf
  %v9609 = vrot.slane %v9608, 4
  %v9610 = vmax.f32 %v9608, %v9609
  %v9611 = vrot.slane %v9610, 2
  %v9612 = vmax.f32 %v9610, %v9611
  %v9613 = vrot.slane %v9612, 1
  %v9614 = vmax.f32 %v9612, %v9613
  %v9615 = vsel %vm4020, %v8455, -inf
  %v9616 = vrot.slane %v9615, 4
  %v9617 = vmax.f32 %v9615, %v9616
  %v9618 = vrot.slane %v9617, 2
  %v9619 = vmax.f32 %v9617, %v9618
  %v9620 = vrot.slane %v9619, 1
  %v9621 = vmax.f32 %v9619, %v9620
  %v9622 = vsel %vm4020, %v8631, -inf
  %v9623 = vrot.slane %v9622, 4
  %v9624 = vmax.f32 %v9622, %v9623
  %v9625 = vrot.slane %v9624, 2
  %v9626 = vmax.f32 %v9624, %v9625
  %v9627 = vrot.slane %v9626, 1
  %v9628 = vmax.f32 %v9626, %v9627
  %v9629 = vsel %vm4020, %v8632, -inf
  %v9630 = vrot.slane %v9629, 4
  %v9631 = vmax.f32 %v9629, %v9630
  %v9632 = vrot.slane %v9631, 2
  %v9633 = vmax.f32 %v9631, %v9632
  %v9634 = vrot.slane %v9633, 1
  %v9635 = vmax.f32 %v9633, %v9634
  %v9636 = vsel %vm4020, %v8633, -inf
  %v9637 = vrot.slane %v9636, 4
  %v9638 = vmax.f32 %v9636, %v9637
  %v9639 = vrot.slane %v9638, 2
  %v9640 = vmax.f32 %v9638, %v9639
  %v9641 = vrot.slane %v9640, 1
  %v9642 = vmax.f32 %v9640, %v9641
  %v9643 = vsel %vm4020, %v8456, -inf
  %v9644 = vrot.slane %v9643, 4
  %v9645 = vmax.f32 %v9643, %v9644
  %v9646 = vrot.slane %v9645, 2
  %v9647 = vmax.f32 %v9645, %v9646
  %v9648 = vrot.slane %v9647, 1
  %v9649 = vmax.f32 %v9647, %v9648
  %v9650 = vsel %vm4020, %v8634, -inf
  %v9651 = vrot.slane %v9650, 4
  %v9652 = vmax.f32 %v9650, %v9651
  %v9653 = vrot.slane %v9652, 2
  %v9654 = vmax.f32 %v9652, %v9653
  %v9655 = vrot.slane %v9654, 1
  %v9656 = vmax.f32 %v9654, %v9655
  %v9657 = vsel %vm4020, %v8635, -inf
  %v9658 = vrot.slane %v9657, 4
  %v9659 = vmax.f32 %v9657, %v9658
  %v9660 = vrot.slane %v9659, 2
  %v9661 = vmax.f32 %v9659, %v9660
  %v9662 = vrot.slane %v9661, 1
  %v9663 = vmax.f32 %v9661, %v9662
  %v9664 = vsel %vm4020, %v8636, -inf
  %v9665 = vrot.slane %v9664, 4
  %v9666 = vmax.f32 %v9664, %v9665
  %v9667 = vrot.slane %v9666, 2
  %v9668 = vmax.f32 %v9666, %v9667
  %v9669 = vrot.slane %v9668, 1
  %v9670 = vmax.f32 %v9668, %v9669
  %v9671 = vsel %vm4020, %v8457, -inf
  %v9672 = vrot.slane %v9671, 4
  %v9673 = vmax.f32 %v9671, %v9672
  %v9674 = vrot.slane %v9673, 2
  %v9675 = vmax.f32 %v9673, %v9674
  %v9676 = vrot.slane %v9675, 1
  %v9677 = vmax.f32 %v9675, %v9676
  %v9678 = vsel %vm4020, %v8637, -inf
  %v9679 = vrot.slane %v9678, 4
  %v9680 = vmax.f32 %v9678, %v9679
  %v9681 = vrot.slane %v9680, 2
  %v9682 = vmax.f32 %v9680, %v9681
  %v9683 = vrot.slane %v9682, 1
  %v9684 = vmax.f32 %v9682, %v9683
  %v9685 = vsel %vm4020, %v8638, -inf
  %v9686 = vrot.slane %v9685, 4
  %v9687 = vmax.f32 %v9685, %v9686
  %v9688 = vrot.slane %v9687, 2
  %v9689 = vmax.f32 %v9687, %v9688
  %v9690 = vrot.slane %v9689, 1
  %v9691 = vmax.f32 %v9689, %v9690
  %v9692 = vsel %vm4020, %v8639, -inf
  %v9693 = vrot.slane %v9692, 4
  %v9694 = vmax.f32 %v9692, %v9693
  %v9695 = vrot.slane %v9694, 2
  %v9696 = vmax.f32 %v9694, %v9695
  %v9697 = vrot.slane %v9696, 1
  %v9698 = vmax.f32 %v9696, %v9697
  %v9699 = vsel %vm4020, %v8458, -inf
  %v9700 = vrot.slane %v9699, 4
  %v9701 = vmax.f32 %v9699, %v9700
  %v9702 = vrot.slane %v9701, 2
  %v9703 = vmax.f32 %v9701, %v9702
  %v9704 = vrot.slane %v9703, 1
  %v9705 = vmax.f32 %v9703, %v9704
  %v9706 = vsel %vm4020, %v8640, -inf
  %v9707 = vrot.slane %v9706, 4
  %v9708 = vmax.f32 %v9706, %v9707
  %v9709 = vrot.slane %v9708, 2
  %v9710 = vmax.f32 %v9708, %v9709
  %v9711 = vrot.slane %v9710, 1
  %v9712 = vmax.f32 %v9710, %v9711
  %v9713 = vsel %vm4020, %v8641, -inf
  %v9714 = vrot.slane %v9713, 4
  %v9715 = vmax.f32 %v9713, %v9714
  %v9716 = vrot.slane %v9715, 2
  %v9717 = vmax.f32 %v9715, %v9716
  %v9718 = vrot.slane %v9717, 1
  %v9719 = vmax.f32 %v9717, %v9718
  %v9720 = vsel %vm4020, %v8642, -inf
  %v9721 = vrot.slane %v9720, 4
  %v9722 = vmax.f32 %v9720, %v9721
  %v9723 = vrot.slane %v9722, 2
  %v9724 = vmax.f32 %v9722, %v9723
  %v9725 = vrot.slane %v9724, 1
  %v9726 = vmax.f32 %v9724, %v9725
  %v9727 = vsel %vm4020, %v8459, -inf
  %v9728 = vrot.slane %v9727, 4
  %v9729 = vmax.f32 %v9727, %v9728
  %v9730 = vrot.slane %v9729, 2
  %v9731 = vmax.f32 %v9729, %v9730
  %v9732 = vrot.slane %v9731, 1
  %v9733 = vmax.f32 %v9731, %v9732
  %v9734 = vsel %vm4020, %v8643, -inf
  %v9735 = vrot.slane %v9734, 4
  %v9736 = vmax.f32 %v9734, %v9735
  %v9737 = vrot.slane %v9736, 2
  %v9738 = vmax.f32 %v9736, %v9737
  %v9739 = vrot.slane %v9738, 1
  %v9740 = vmax.f32 %v9738, %v9739
  %v9741 = vsel %vm4020, %v8644, -inf
  %v9742 = vrot.slane %v9741, 4
  %v9743 = vmax.f32 %v9741, %v9742
  %v9744 = vrot.slane %v9743, 2
  %v9745 = vmax.f32 %v9743, %v9744
  %v9746 = vrot.slane %v9745, 1
  %v9747 = vmax.f32 %v9745, %v9746
  %v9748 = vsel %vm4020, %v8645, -inf
  %v9749 = vrot.slane %v9748, 4
  %v9750 = vmax.f32 %v9748, %v9749
  %v9751 = vrot.slane %v9750, 2
  %v9752 = vmax.f32 %v9750, %v9751
  %v9753 = vrot.slane %v9752, 1
  %v9754 = vmax.f32 %v9752, %v9753
  %v9755 = vsel %vm4020, %v8460, -inf
  %v9756 = vrot.slane %v9755, 4
  %v9757 = vmax.f32 %v9755, %v9756
  %v9758 = vrot.slane %v9757, 2
  %v9759 = vmax.f32 %v9757, %v9758
  %v9760 = vrot.slane %v9759, 1
  %v9761 = vmax.f32 %v9759, %v9760
  %v9762 = vsel %vm4020, %v8646, -inf
  %v9763 = vrot.slane %v9762, 4
  %v9764 = vmax.f32 %v9762, %v9763
  %v9765 = vrot.slane %v9764, 2
  %v9766 = vmax.f32 %v9764, %v9765
  %v9767 = vrot.slane %v9766, 1
  %v9768 = vmax.f32 %v9766, %v9767
  %v9769 = vsel %vm4020, %v8647, -inf
  %v9770 = vrot.slane %v9769, 4
  %v9771 = vmax.f32 %v9769, %v9770
  %v9772 = vrot.slane %v9771, 2
  %v9773 = vmax.f32 %v9771, %v9772
  %v9774 = vrot.slane %v9773, 1
  %v9775 = vmax.f32 %v9773, %v9774
  %v9776 = vsel %vm4020, %v8648, -inf
  %v9777 = vrot.slane %v9776, 4
  %v9778 = vmax.f32 %v9776, %v9777
  %v9779 = vrot.slane %v9778, 2
  %v9780 = vmax.f32 %v9778, %v9779
  %v9781 = vrot.slane %v9780, 1
  %v9782 = vmax.f32 %v9780, %v9781
  %v9783 = vsel %vm4020, %v8461, -inf
  %v9784 = vrot.slane %v9783, 4
  %v9785 = vmax.f32 %v9783, %v9784
  %v9786 = vrot.slane %v9785, 2
  %v9787 = vmax.f32 %v9785, %v9786
  %v9788 = vrot.slane %v9787, 1
  %v9789 = vmax.f32 %v9787, %v9788
  %v9790 = vsel %vm4020, %v8649, -inf
  %v9791 = vrot.slane %v9790, 4
  %v9792 = vmax.f32 %v9790, %v9791
  %v9793 = vrot.slane %v9792, 2
  %v9794 = vmax.f32 %v9792, %v9793
  %v9795 = vrot.slane %v9794, 1
  %v9796 = vmax.f32 %v9794, %v9795
  %v9797 = vsel %vm4020, %v8650, -inf
  %v9798 = vrot.slane %v9797, 4
  %v9799 = vmax.f32 %v9797, %v9798
  %v9800 = vrot.slane %v9799, 2
  %v9801 = vmax.f32 %v9799, %v9800
  %v9802 = vrot.slane %v9801, 1
  %v9803 = vmax.f32 %v9801, %v9802
  %v9804 = vsel %vm4020, %v8651, -inf
  %v9805 = vrot.slane %v9804, 4
  %v9806 = vmax.f32 %v9804, %v9805
  %v9807 = vrot.slane %v9806, 2
  %v9808 = vmax.f32 %v9806, %v9807
  %v9809 = vrot.slane %v9808, 1
  %v9810 = vmax.f32 %v9808, %v9809
  %v9811 = vsel %vm4020, %v8462, -inf
  %v9812 = vrot.slane %v9811, 4
  %v9813 = vmax.f32 %v9811, %v9812
  %v9814 = vrot.slane %v9813, 2
  %v9815 = vmax.f32 %v9813, %v9814
  %v9816 = vrot.slane %v9815, 1
  %v9817 = vmax.f32 %v9815, %v9816
  %v9818 = vsel %vm4020, %v8652, -inf
  %v9819 = vrot.slane %v9818, 4
  %v9820 = vmax.f32 %v9818, %v9819
  %v9821 = vrot.slane %v9820, 2
  %v9822 = vmax.f32 %v9820, %v9821
  %v9823 = vrot.slane %v9822, 1
  %v9824 = vmax.f32 %v9822, %v9823
  %v9825 = vsel %vm4020, %v8653, -inf
  %v9826 = vrot.slane %v9825, 4
  %v9827 = vmax.f32 %v9825, %v9826
  %v9828 = vrot.slane %v9827, 2
  %v9829 = vmax.f32 %v9827, %v9828
  %v9830 = vrot.slane %v9829, 1
  %v9831 = vmax.f32 %v9829, %v9830
  %v9832 = vsel %vm4020, %v8654, -inf
  %v9833 = vrot.slane %v9832, 4
  %v9834 = vmax.f32 %v9832, %v9833
  %v9835 = vrot.slane %v9834, 2
  %v9836 = vmax.f32 %v9834, %v9835
  %v9837 = vrot.slane %v9836, 1
  %v9838 = vmax.f32 %v9836, %v9837
  %v9839 = vsel %vm4020, %v8463, -inf
  %v9840 = vrot.slane %v9839, 4
  %v9841 = vmax.f32 %v9839, %v9840
  %v9842 = vrot.slane %v9841, 2
  %v9843 = vmax.f32 %v9841, %v9842
  %v9844 = vrot.slane %v9843, 1
  %v9845 = vmax.f32 %v9843, %v9844
  %v9846 = vsel %vm4020, %v8655, -inf
  %v9847 = vrot.slane %v9846, 4
  %v9848 = vmax.f32 %v9846, %v9847
  %v9849 = vrot.slane %v9848, 2
  %v9850 = vmax.f32 %v9848, %v9849
  %v9851 = vrot.slane %v9850, 1
  %v9852 = vmax.f32 %v9850, %v9851
  %v9853 = vsel %vm4020, %v8656, -inf
  %v9854 = vrot.slane %v9853, 4
  %v9855 = vmax.f32 %v9853, %v9854
  %v9856 = vrot.slane %v9855, 2
  %v9857 = vmax.f32 %v9855, %v9856
  %v9858 = vrot.slane %v9857, 1
  %v9859 = vmax.f32 %v9857, %v9858
  %v9860 = vsel %vm4020, %v8657, -inf
  %v9861 = vrot.slane %v9860, 4
  %v9862 = vmax.f32 %v9860, %v9861
  %v9863 = vrot.slane %v9862, 2
  %v9864 = vmax.f32 %v9862, %v9863
  %v9865 = vrot.slane %v9864, 1
  %v9866 = vmax.f32 %v9864, %v9865
  %v9867 = vsel %vm4020, %v8464, -inf
  %v9868 = vrot.slane %v9867, 4
  %v9869 = vmax.f32 %v9867, %v9868
  %v9870 = vrot.slane %v9869, 2
  %v9871 = vmax.f32 %v9869, %v9870
  %v9872 = vrot.slane %v9871, 1
  %v9873 = vmax.f32 %v9871, %v9872
  %v9874 = vsel %vm4020, %v8658, -inf
  %v9875 = vrot.slane %v9874, 4
  %v9876 = vmax.f32 %v9874, %v9875
  %v9877 = vrot.slane %v9876, 2
  %v9878 = vmax.f32 %v9876, %v9877
  %v9879 = vrot.slane %v9878, 1
  %v9880 = vmax.f32 %v9878, %v9879
  %v9881 = vsel %vm4020, %v8659, -inf
  %v9882 = vrot.slane %v9881, 4
  %v9883 = vmax.f32 %v9881, %v9882
  %v9884 = vrot.slane %v9883, 2
  %v9885 = vmax.f32 %v9883, %v9884
  %v9886 = vrot.slane %v9885, 1
  %v9887 = vmax.f32 %v9885, %v9886
  %v9888 = vsel %vm4020, %v8660, -inf
  %v9889 = vrot.slane %v9888, 4
  %v9890 = vmax.f32 %v9888, %v9889
  %v9891 = vrot.slane %v9890, 2
  %v9892 = vmax.f32 %v9890, %v9891
  %v9893 = vrot.slane %v9892, 1
  %v9894 = vmax.f32 %v9892, %v9893
  %v9895 = vsel %vm4020, %v8465, -inf
  %v9896 = vrot.slane %v9895, 4
  %v9897 = vmax.f32 %v9895, %v9896
  %v9898 = vrot.slane %v9897, 2
  %v9899 = vmax.f32 %v9897, %v9898
  %v9900 = vrot.slane %v9899, 1
  %v9901 = vmax.f32 %v9899, %v9900
  %v9902 = vsel %vm4020, %v8661, -inf
  %v9903 = vrot.slane %v9902, 4
  %v9904 = vmax.f32 %v9902, %v9903
  %v9905 = vrot.slane %v9904, 2
  %v9906 = vmax.f32 %v9904, %v9905
  %v9907 = vrot.slane %v9906, 1
  %v9908 = vmax.f32 %v9906, %v9907
  %v9909 = vsel %vm4020, %v8662, -inf
  %v9910 = vrot.slane %v9909, 4
  %v9911 = vmax.f32 %v9909, %v9910
  %v9912 = vrot.slane %v9911, 2
  %v9913 = vmax.f32 %v9911, %v9912
  %v9914 = vrot.slane %v9913, 1
  %v9915 = vmax.f32 %v9913, %v9914
  %v9916 = vsel %vm4020, %v8663, -inf
  %v9917 = vrot.slane %v9916, 4
  %v9918 = vmax.f32 %v9916, %v9917
  %v9919 = vrot.slane %v9918, 2
  %v9920 = vmax.f32 %v9918, %v9919
  %v9921 = vrot.slane %v9920, 1
  %v9922 = vmax.f32 %v9920, %v9921
  %v9923 = vsel %vm4020, %v8466, -inf
  %v9924 = vrot.slane %v9923, 4
  %v9925 = vmax.f32 %v9923, %v9924
  %v9926 = vrot.slane %v9925, 2
  %v9927 = vmax.f32 %v9925, %v9926
  %v9928 = vrot.slane %v9927, 1
  %v9929 = vmax.f32 %v9927, %v9928
  %v9930 = vsel %vm4020, %v8664, -inf
  %v9931 = vrot.slane %v9930, 4
  %v9932 = vmax.f32 %v9930, %v9931
  %v9933 = vrot.slane %v9932, 2
  %v9934 = vmax.f32 %v9932, %v9933
  %v9935 = vrot.slane %v9934, 1
  %v9936 = vmax.f32 %v9934, %v9935
  %v9937 = vsel %vm4020, %v8665, -inf
  %v9938 = vrot.slane %v9937, 4
  %v9939 = vmax.f32 %v9937, %v9938
  %v9940 = vrot.slane %v9939, 2
  %v9941 = vmax.f32 %v9939, %v9940
  %v9942 = vrot.slane %v9941, 1
  %v9943 = vmax.f32 %v9941, %v9942
  %v9944 = vsel %vm4020, %v8666, -inf
  %v9945 = vrot.slane %v9944, 4
  %v9946 = vmax.f32 %v9944, %v9945
  %v9947 = vrot.slane %v9946, 2
  %v9948 = vmax.f32 %v9946, %v9947
  %v9949 = vrot.slane %v9948, 1
  %v9950 = vmax.f32 %v9948, %v9949
  %v9951 = vsel %vm4020, %v8467, -inf
  %v9952 = vrot.slane %v9951, 4
  %v9953 = vmax.f32 %v9951, %v9952
  %v9954 = vrot.slane %v9953, 2
  %v9955 = vmax.f32 %v9953, %v9954
  %v9956 = vrot.slane %v9955, 1
  %v9957 = vmax.f32 %v9955, %v9956
  %v9958 = vsel %vm4020, %v8667, -inf
  %v9959 = vrot.slane %v9958, 4
  %v9960 = vmax.f32 %v9958, %v9959
  %v9961 = vrot.slane %v9960, 2
  %v9962 = vmax.f32 %v9960, %v9961
  %v9963 = vrot.slane %v9962, 1
  %v9964 = vmax.f32 %v9962, %v9963
  %v9965 = vsel %vm4020, %v8668, -inf
  %v9966 = vrot.slane %v9965, 4
  %v9967 = vmax.f32 %v9965, %v9966
  %v9968 = vrot.slane %v9967, 2
  %v9969 = vmax.f32 %v9967, %v9968
  %v9970 = vrot.slane %v9969, 1
  %v9971 = vmax.f32 %v9969, %v9970
  %v9972 = vsel %vm4020, %v8669, -inf
  %v9973 = vrot.slane %v9972, 4
  %v9974 = vmax.f32 %v9972, %v9973
  %v9975 = vrot.slane %v9974, 2
  %v9976 = vmax.f32 %v9974, %v9975
  %v9977 = vrot.slane %v9976, 1
  %v9978 = vmax.f32 %v9976, %v9977
  %v9979 = vsel %vm4020, %v8468, -inf
  %v9980 = vrot.slane %v9979, 4
  %v9981 = vmax.f32 %v9979, %v9980
  %v9982 = vrot.slane %v9981, 2
  %v9983 = vmax.f32 %v9981, %v9982
  %v9984 = vrot.slane %v9983, 1
  %v9985 = vmax.f32 %v9983, %v9984
  %v9986 = vsel %vm4020, %v8670, -inf
  %v9987 = vrot.slane %v9986, 4
  %v9988 = vmax.f32 %v9986, %v9987
  %v9989 = vrot.slane %v9988, 2
  %v9990 = vmax.f32 %v9988, %v9989
  %v9991 = vrot.slane %v9990, 1
  %v9992 = vmax.f32 %v9990, %v9991
  %v9993 = vsel %vm4020, %v8671, -inf
  %v9994 = vrot.slane %v9993, 4
  %v9995 = vmax.f32 %v9993, %v9994
  %v9996 = vrot.slane %v9995, 2
  %v9997 = vmax.f32 %v9995, %v9996
  %v9998 = vrot.slane %v9997, 1
  %v9999 = vmax.f32 %v9997, %v9998
  %v10000 = vsel %vm4020, %v8672, -inf
  %v10001 = vrot.slane %v10000, 4
  %v10002 = vmax.f32 %v10000, %v10001
  %v10003 = vrot.slane %v10002, 2
  %v10004 = vmax.f32 %v10002, %v10003
  %v10005 = vrot.slane %v10004, 1
  %v10006 = vmax.f32 %v10004, %v10005
  %v10007 = vsel %vm4020, %v8469, -inf
  %v10008 = vrot.slane %v10007, 4
  %v10009 = vmax.f32 %v10007, %v10008
  %v10010 = vrot.slane %v10009, 2
  %v10011 = vmax.f32 %v10009, %v10010
  %v10012 = vrot.slane %v10011, 1
  %v10013 = vmax.f32 %v10011, %v10012
  %v10014 = vsel %vm4020, %v8673, -inf
  %v10015 = vrot.slane %v10014, 4
  %v10016 = vmax.f32 %v10014, %v10015
  %v10017 = vrot.slane %v10016, 2
  %v10018 = vmax.f32 %v10016, %v10017
  %v10019 = vrot.slane %v10018, 1
  %v10020 = vmax.f32 %v10018, %v10019
  %v10021 = vsel %vm4020, %v8674, -inf
  %v10022 = vrot.slane %v10021, 4
  %v10023 = vmax.f32 %v10021, %v10022
  %v10024 = vrot.slane %v10023, 2
  %v10025 = vmax.f32 %v10023, %v10024
  %v10026 = vrot.slane %v10025, 1
  %v10027 = vmax.f32 %v10025, %v10026
  %v10028 = vsel %vm4020, %v8675, -inf
  %v10029 = vrot.slane %v10028, 4
  %v10030 = vmax.f32 %v10028, %v10029
  %v10031 = vrot.slane %v10030, 2
  %v10032 = vmax.f32 %v10030, %v10031
  %v10033 = vrot.slane %v10032, 1
  %v10034 = vmax.f32 %v10032, %v10033
  %v10035 = vsel %vm4020, %v8470, -inf
  %v10036 = vrot.slane %v10035, 4
  %v10037 = vmax.f32 %v10035, %v10036
  %v10038 = vrot.slane %v10037, 2
  %v10039 = vmax.f32 %v10037, %v10038
  %v10040 = vrot.slane %v10039, 1
  %v10041 = vmax.f32 %v10039, %v10040
  %v10042 = vsel %vm4020, %v8676, -inf
  %v10043 = vrot.slane %v10042, 4
  %v10044 = vmax.f32 %v10042, %v10043
  %v10045 = vrot.slane %v10044, 2
  %v10046 = vmax.f32 %v10044, %v10045
  %v10047 = vrot.slane %v10046, 1
  %v10048 = vmax.f32 %v10046, %v10047
  %v10049 = vsel %vm4020, %v8677, -inf
  %v10050 = vrot.slane %v10049, 4
  %v10051 = vmax.f32 %v10049, %v10050
  %v10052 = vrot.slane %v10051, 2
  %v10053 = vmax.f32 %v10051, %v10052
  %v10054 = vrot.slane %v10053, 1
  %v10055 = vmax.f32 %v10053, %v10054
  %v10056 = vsel %vm4020, %v8678, -inf
  %v10057 = vrot.slane %v10056, 4
  %v10058 = vmax.f32 %v10056, %v10057
  %v10059 = vrot.slane %v10058, 2
  %v10060 = vmax.f32 %v10058, %v10059
  %v10061 = vrot.slane %v10060, 1
  %v10062 = vmax.f32 %v10060, %v10061
  %v10063 = vsel %vm4020, %v8471, -inf
  %v10064 = vrot.slane %v10063, 4
  %v10065 = vmax.f32 %v10063, %v10064
  %v10066 = vrot.slane %v10065, 2
  %v10067 = vmax.f32 %v10065, %v10066
  %v10068 = vrot.slane %v10067, 1
  %v10069 = vmax.f32 %v10067, %v10068
  %v10070 = vsel %vm4020, %v8679, -inf
  %v10071 = vrot.slane %v10070, 4
  %v10072 = vmax.f32 %v10070, %v10071
  %v10073 = vrot.slane %v10072, 2
  %v10074 = vmax.f32 %v10072, %v10073
  %v10075 = vrot.slane %v10074, 1
  %v10076 = vmax.f32 %v10074, %v10075
  %v10077 = vsel %vm4020, %v8680, -inf
  %v10078 = vrot.slane %v10077, 4
  %v10079 = vmax.f32 %v10077, %v10078
  %v10080 = vrot.slane %v10079, 2
  %v10081 = vmax.f32 %v10079, %v10080
  %v10082 = vrot.slane %v10081, 1
  %v10083 = vmax.f32 %v10081, %v10082
  %v10084 = vsel %vm4020, %v8681, -inf
  %v10085 = vrot.slane %v10084, 4
  %v10086 = vmax.f32 %v10084, %v10085
  %v10087 = vrot.slane %v10086, 2
  %v10088 = vmax.f32 %v10086, %v10087
  %v10089 = vrot.slane %v10088, 1
  %v10090 = vmax.f32 %v10088, %v10089
  %v10091 = vsel %vm4020, %v8472, -inf
  %v10092 = vrot.slane %v10091, 4
  %v10093 = vmax.f32 %v10091, %v10092
  %v10094 = vrot.slane %v10093, 2
  %v10095 = vmax.f32 %v10093, %v10094
  %v10096 = vrot.slane %v10095, 1
  %v10097 = vmax.f32 %v10095, %v10096
  %v10098 = vsel %vm4020, %v8682, -inf
  %v10099 = vrot.slane %v10098, 4
  %v10100 = vmax.f32 %v10098, %v10099
  %v10101 = vrot.slane %v10100, 2
  %v10102 = vmax.f32 %v10100, %v10101
  %v10103 = vrot.slane %v10102, 1
  %v10104 = vmax.f32 %v10102, %v10103
  %v10105 = vsel %vm4020, %v8683, -inf
  %v10106 = vrot.slane %v10105, 4
  %v10107 = vmax.f32 %v10105, %v10106
  %v10108 = vrot.slane %v10107, 2
  %v10109 = vmax.f32 %v10107, %v10108
  %v10110 = vrot.slane %v10109, 1
  %v10111 = vmax.f32 %v10109, %v10110
  %v10112 = vsel %vm4020, %v8684, -inf
  %v10113 = vrot.slane %v10112, 4
  %v10114 = vmax.f32 %v10112, %v10113
  %v10115 = vrot.slane %v10114, 2
  %v10116 = vmax.f32 %v10114, %v10115
  %v10117 = vrot.slane %v10116, 1
  %v10118 = vmax.f32 %v10116, %v10117
  %v10119 = vsel %vm4020, %v8473, -inf
  %v10120 = vrot.slane %v10119, 4
  %v10121 = vmax.f32 %v10119, %v10120
  %v10122 = vrot.slane %v10121, 2
  %v10123 = vmax.f32 %v10121, %v10122
  %v10124 = vrot.slane %v10123, 1
  %v10125 = vmax.f32 %v10123, %v10124
  %v10126 = vsel %vm4020, %v8685, -inf
  %v10127 = vrot.slane %v10126, 4
  %v10128 = vmax.f32 %v10126, %v10127
  %v10129 = vrot.slane %v10128, 2
  %v10130 = vmax.f32 %v10128, %v10129
  %v10131 = vrot.slane %v10130, 1
  %v10132 = vmax.f32 %v10130, %v10131
  %v10133 = vsel %vm4020, %v8686, -inf
  %v10134 = vrot.slane %v10133, 4
  %v10135 = vmax.f32 %v10133, %v10134
  %v10136 = vrot.slane %v10135, 2
  %v10137 = vmax.f32 %v10135, %v10136
  %v10138 = vrot.slane %v10137, 1
  %v10139 = vmax.f32 %v10137, %v10138
  %v10140 = vsel %vm4020, %v8687, -inf
  %v10141 = vrot.slane %v10140, 4
  %v10142 = vmax.f32 %v10140, %v10141
  %v10143 = vrot.slane %v10142, 2
  %v10144 = vmax.f32 %v10142, %v10143
  %v10145 = vrot.slane %v10144, 1
  %v10146 = vmax.f32 %v10144, %v10145
  %v10147 = vsel %vm4020, %v8474, -inf
  %v10148 = vrot.slane %v10147, 4
  %v10149 = vmax.f32 %v10147, %v10148
  %v10150 = vrot.slane %v10149, 2
  %v10151 = vmax.f32 %v10149, %v10150
  %v10152 = vrot.slane %v10151, 1
  %v10153 = vmax.f32 %v10151, %v10152
  %v10154 = vsel %vm4020, %v8688, -inf
  %v10155 = vrot.slane %v10154, 4
  %v10156 = vmax.f32 %v10154, %v10155
  %v10157 = vrot.slane %v10156, 2
  %v10158 = vmax.f32 %v10156, %v10157
  %v10159 = vrot.slane %v10158, 1
  %v10160 = vmax.f32 %v10158, %v10159
  %v10161 = vsel %vm4020, %v8689, -inf
  %v10162 = vrot.slane %v10161, 4
  %v10163 = vmax.f32 %v10161, %v10162
  %v10164 = vrot.slane %v10163, 2
  %v10165 = vmax.f32 %v10163, %v10164
  %v10166 = vrot.slane %v10165, 1
  %v10167 = vmax.f32 %v10165, %v10166
  %v10168 = vsel %vm4020, %v8690, -inf
  %v10169 = vrot.slane %v10168, 4
  %v10170 = vmax.f32 %v10168, %v10169
  %v10171 = vrot.slane %v10170, 2
  %v10172 = vmax.f32 %v10170, %v10171
  %v10173 = vrot.slane %v10172, 1
  %v10174 = vmax.f32 %v10172, %v10173
  %v10175 = vsel %vm4020, %v8475, -inf
  %v10176 = vrot.slane %v10175, 4
  %v10177 = vmax.f32 %v10175, %v10176
  %v10178 = vrot.slane %v10177, 2
  %v10179 = vmax.f32 %v10177, %v10178
  %v10180 = vrot.slane %v10179, 1
  %v10181 = vmax.f32 %v10179, %v10180
  %v10182 = vsel %vm4020, %v8691, -inf
  %v10183 = vrot.slane %v10182, 4
  %v10184 = vmax.f32 %v10182, %v10183
  %v10185 = vrot.slane %v10184, 2
  %v10186 = vmax.f32 %v10184, %v10185
  %v10187 = vrot.slane %v10186, 1
  %v10188 = vmax.f32 %v10186, %v10187
  %v10189 = vsel %vm4020, %v8692, -inf
  %v10190 = vrot.slane %v10189, 4
  %v10191 = vmax.f32 %v10189, %v10190
  %v10192 = vrot.slane %v10191, 2
  %v10193 = vmax.f32 %v10191, %v10192
  %v10194 = vrot.slane %v10193, 1
  %v10195 = vmax.f32 %v10193, %v10194
  %v10196 = vsel %vm4020, %v8693, -inf
  %v10197 = vrot.slane %v10196, 4
  %v10198 = vmax.f32 %v10196, %v10197
  %v10199 = vrot.slane %v10198, 2
  %v10200 = vmax.f32 %v10198, %v10199
  %v10201 = vrot.slane %v10200, 1
  %v10202 = vmax.f32 %v10200, %v10201
  %v10203 = vsel %vm4020, %v8476, -inf
  %v10204 = vrot.slane %v10203, 4
  %v10205 = vmax.f32 %v10203, %v10204
  %v10206 = vrot.slane %v10205, 2
  %v10207 = vmax.f32 %v10205, %v10206
  %v10208 = vrot.slane %v10207, 1
  %v10209 = vmax.f32 %v10207, %v10208
  %v10210 = vsel %vm4020, %v8694, -inf
  %v10211 = vrot.slane %v10210, 4
  %v10212 = vmax.f32 %v10210, %v10211
  %v10213 = vrot.slane %v10212, 2
  %v10214 = vmax.f32 %v10212, %v10213
  %v10215 = vrot.slane %v10214, 1
  %v10216 = vmax.f32 %v10214, %v10215
  %v10217 = vsel %vm4020, %v8695, -inf
  %v10218 = vrot.slane %v10217, 4
  %v10219 = vmax.f32 %v10217, %v10218
  %v10220 = vrot.slane %v10219, 2
  %v10221 = vmax.f32 %v10219, %v10220
  %v10222 = vrot.slane %v10221, 1
  %v10223 = vmax.f32 %v10221, %v10222
  %v10224 = vsel %vm4020, %v8696, -inf
  %v10225 = vrot.slane %v10224, 4
  %v10226 = vmax.f32 %v10224, %v10225
  %v10227 = vrot.slane %v10226, 2
  %v10228 = vmax.f32 %v10226, %v10227
  %v10229 = vrot.slane %v10228, 1
  %v10230 = vmax.f32 %v10228, %v10229
  %v10231 = vsel %vm4020, %v8477, -inf
  %v10232 = vrot.slane %v10231, 4
  %v10233 = vmax.f32 %v10231, %v10232
  %v10234 = vrot.slane %v10233, 2
  %v10235 = vmax.f32 %v10233, %v10234
  %v10236 = vrot.slane %v10235, 1
  %v10237 = vmax.f32 %v10235, %v10236
  %v10238 = vsel %vm4020, %v8697, -inf
  %v10239 = vrot.slane %v10238, 4
  %v10240 = vmax.f32 %v10238, %v10239
  %v10241 = vrot.slane %v10240, 2
  %v10242 = vmax.f32 %v10240, %v10241
  %v10243 = vrot.slane %v10242, 1
  %v10244 = vmax.f32 %v10242, %v10243
  %v10245 = vsel %vm4020, %v8698, -inf
  %v10246 = vrot.slane %v10245, 4
  %v10247 = vmax.f32 %v10245, %v10246
  %v10248 = vrot.slane %v10247, 2
  %v10249 = vmax.f32 %v10247, %v10248
  %v10250 = vrot.slane %v10249, 1
  %v10251 = vmax.f32 %v10249, %v10250
  %v10252 = vsel %vm4020, %v8699, -inf
  %v10253 = vrot.slane %v10252, 4
  %v10254 = vmax.f32 %v10252, %v10253
  %v10255 = vrot.slane %v10254, 2
  %v10256 = vmax.f32 %v10254, %v10255
  %v10257 = vrot.slane %v10256, 1
  %v10258 = vmax.f32 %v10256, %v10257
  %v10259 = vsel %vm4020, %v8478, -inf
  %v10260 = vrot.slane %v10259, 4
  %v10261 = vmax.f32 %v10259, %v10260
  %v10262 = vrot.slane %v10261, 2
  %v10263 = vmax.f32 %v10261, %v10262
  %v10264 = vrot.slane %v10263, 1
  %v10265 = vmax.f32 %v10263, %v10264
  %v10266 = vsel %vm4020, %v8700, -inf
  %v10267 = vrot.slane %v10266, 4
  %v10268 = vmax.f32 %v10266, %v10267
  %v10269 = vrot.slane %v10268, 2
  %v10270 = vmax.f32 %v10268, %v10269
  %v10271 = vrot.slane %v10270, 1
  %v10272 = vmax.f32 %v10270, %v10271
  %v10273 = vsel %vm4020, %v8701, -inf
  %v10274 = vrot.slane %v10273, 4
  %v10275 = vmax.f32 %v10273, %v10274
  %v10276 = vrot.slane %v10275, 2
  %v10277 = vmax.f32 %v10275, %v10276
  %v10278 = vrot.slane %v10277, 1
  %v10279 = vmax.f32 %v10277, %v10278
  %v10280 = vsel %vm4020, %v8702, -inf
  %v10281 = vrot.slane %v10280, 4
  %v10282 = vmax.f32 %v10280, %v10281
  %v10283 = vrot.slane %v10282, 2
  %v10284 = vmax.f32 %v10282, %v10283
  %v10285 = vrot.slane %v10284, 1
  %v10286 = vmax.f32 %v10284, %v10285
  %v10287 = vsel %vm4020, %v8479, -inf
  %v10288 = vrot.slane %v10287, 4
  %v10289 = vmax.f32 %v10287, %v10288
  %v10290 = vrot.slane %v10289, 2
  %v10291 = vmax.f32 %v10289, %v10290
  %v10292 = vrot.slane %v10291, 1
  %v10293 = vmax.f32 %v10291, %v10292
  %v10294 = vsel %vm4020, %v8703, -inf
  %v10295 = vrot.slane %v10294, 4
  %v10296 = vmax.f32 %v10294, %v10295
  %v10297 = vrot.slane %v10296, 2
  %v10298 = vmax.f32 %v10296, %v10297
  %v10299 = vrot.slane %v10298, 1
  %v10300 = vmax.f32 %v10298, %v10299
  %v10301 = vsel %vm4020, %v8704, -inf
  %v10302 = vrot.slane %v10301, 4
  %v10303 = vmax.f32 %v10301, %v10302
  %v10304 = vrot.slane %v10303, 2
  %v10305 = vmax.f32 %v10303, %v10304
  %v10306 = vrot.slane %v10305, 1
  %v10307 = vmax.f32 %v10305, %v10306
  %v10308 = vsel %vm4020, %v8705, -inf
  %v10309 = vrot.slane %v10308, 4
  %v10310 = vmax.f32 %v10308, %v10309
  %v10311 = vrot.slane %v10310, 2
  %v10312 = vmax.f32 %v10310, %v10311
  %v10313 = vrot.slane %v10312, 1
  %v10314 = vmax.f32 %v10312, %v10313
  %v10315 = vsel %vm4020, %v8480, -inf
  %v10316 = vrot.slane %v10315, 4
  %v10317 = vmax.f32 %v10315, %v10316
  %v10318 = vrot.slane %v10317, 2
  %v10319 = vmax.f32 %v10317, %v10318
  %v10320 = vrot.slane %v10319, 1
  %v10321 = vmax.f32 %v10319, %v10320
  %v10322 = vsel %vm4020, %v8706, -inf
  %v10323 = vrot.slane %v10322, 4
  %v10324 = vmax.f32 %v10322, %v10323
  %v10325 = vrot.slane %v10324, 2
  %v10326 = vmax.f32 %v10324, %v10325
  %v10327 = vrot.slane %v10326, 1
  %v10328 = vmax.f32 %v10326, %v10327
  %v10329 = vsel %vm4020, %v8707, -inf
  %v10330 = vrot.slane %v10329, 4
  %v10331 = vmax.f32 %v10329, %v10330
  %v10332 = vrot.slane %v10331, 2
  %v10333 = vmax.f32 %v10331, %v10332
  %v10334 = vrot.slane %v10333, 1
  %v10335 = vmax.f32 %v10333, %v10334
  %v10336 = vsel %vm4020, %v8708, -inf
  %v10337 = vrot.slane %v10336, 4
  %v10338 = vmax.f32 %v10336, %v10337
  %v10339 = vrot.slane %v10338, 2
  %v10340 = vmax.f32 %v10338, %v10339
  %v10341 = vrot.slane %v10340, 1
  %v10342 = vmax.f32 %v10340, %v10341
  %v10343 = vsel %vm4020, %v8481, -inf
  %v10344 = vrot.slane %v10343, 4
  %v10345 = vmax.f32 %v10343, %v10344
  %v10346 = vrot.slane %v10345, 2
  %v10347 = vmax.f32 %v10345, %v10346
  %v10348 = vrot.slane %v10347, 1
  %v10349 = vmax.f32 %v10347, %v10348
  %v10350 = vsel %vm4020, %v8709, -inf
  %v10351 = vrot.slane %v10350, 4
  %v10352 = vmax.f32 %v10350, %v10351
  %v10353 = vrot.slane %v10352, 2
  %v10354 = vmax.f32 %v10352, %v10353
  %v10355 = vrot.slane %v10354, 1
  %v10356 = vmax.f32 %v10354, %v10355
  %v10357 = vsel %vm4020, %v8710, -inf
  %v10358 = vrot.slane %v10357, 4
  %v10359 = vmax.f32 %v10357, %v10358
  %v10360 = vrot.slane %v10359, 2
  %v10361 = vmax.f32 %v10359, %v10360
  %v10362 = vrot.slane %v10361, 1
  %v10363 = vmax.f32 %v10361, %v10362
  %v10364 = vsel %vm4020, %v8711, -inf
  %v10365 = vrot.slane %v10364, 4
  %v10366 = vmax.f32 %v10364, %v10365
  %v10367 = vrot.slane %v10366, 2
  %v10368 = vmax.f32 %v10366, %v10367
  %v10369 = vrot.slane %v10368, 1
  %v10370 = vmax.f32 %v10368, %v10369
  %v10371 = vsel %vm4020, %v8482, -inf
  %v10372 = vrot.slane %v10371, 4
  %v10373 = vmax.f32 %v10371, %v10372
  %v10374 = vrot.slane %v10373, 2
  %v10375 = vmax.f32 %v10373, %v10374
  %v10376 = vrot.slane %v10375, 1
  %v10377 = vmax.f32 %v10375, %v10376
  %v10378 = vsel %vm4020, %v8712, -inf
  %v10379 = vrot.slane %v10378, 4
  %v10380 = vmax.f32 %v10378, %v10379
  %v10381 = vrot.slane %v10380, 2
  %v10382 = vmax.f32 %v10380, %v10381
  %v10383 = vrot.slane %v10382, 1
  %v10384 = vmax.f32 %v10382, %v10383
  %v10385 = vsel %vm4020, %v8713, -inf
  %v10386 = vrot.slane %v10385, 4
  %v10387 = vmax.f32 %v10385, %v10386
  %v10388 = vrot.slane %v10387, 2
  %v10389 = vmax.f32 %v10387, %v10388
  %v10390 = vrot.slane %v10389, 1
  %v10391 = vmax.f32 %v10389, %v10390
  %v10392 = vsel %vm4020, %v8714, -inf
  %v10393 = vrot.slane %v10392, 4
  %v10394 = vmax.f32 %v10392, %v10393
  %v10395 = vrot.slane %v10394, 2
  %v10396 = vmax.f32 %v10394, %v10395
  %v10397 = vrot.slane %v10396, 1
  %v10398 = vmax.f32 %v10396, %v10397
  %v10399 = vsel %vm4020, %v8483, -inf
  %v10400 = vrot.slane %v10399, 4
  %v10401 = vmax.f32 %v10399, %v10400
  %v10402 = vrot.slane %v10401, 2
  %v10403 = vmax.f32 %v10401, %v10402
  %v10404 = vrot.slane %v10403, 1
  %v10405 = vmax.f32 %v10403, %v10404
  %v10406 = vsel %vm4020, %v8715, -inf
  %v10407 = vrot.slane %v10406, 4
  %v10408 = vmax.f32 %v10406, %v10407
  %v10409 = vrot.slane %v10408, 2
  %v10410 = vmax.f32 %v10408, %v10409
  %v10411 = vrot.slane %v10410, 1
  %v10412 = vmax.f32 %v10410, %v10411
  %v10413 = vsel %vm4020, %v8716, -inf
  %v10414 = vrot.slane %v10413, 4
  %v10415 = vmax.f32 %v10413, %v10414
  %v10416 = vrot.slane %v10415, 2
  %v10417 = vmax.f32 %v10415, %v10416
  %v10418 = vrot.slane %v10417, 1
  %v10419 = vmax.f32 %v10417, %v10418
  %v10420 = vsel %vm4020, %v8717, -inf
  %v10421 = vrot.slane %v10420, 4
  %v10422 = vmax.f32 %v10420, %v10421
  %v10423 = vrot.slane %v10422, 2
  %v10424 = vmax.f32 %v10422, %v10423
  %v10425 = vrot.slane %v10424, 1
  %v10426 = vmax.f32 %v10424, %v10425
  %v10427 = vsel %vm4020, %v8484, -inf
  %v10428 = vrot.slane %v10427, 4
  %v10429 = vmax.f32 %v10427, %v10428
  %v10430 = vrot.slane %v10429, 2
  %v10431 = vmax.f32 %v10429, %v10430
  %v10432 = vrot.slane %v10431, 1
  %v10433 = vmax.f32 %v10431, %v10432
  %v10434 = vsel %vm4020, %v8718, -inf
  %v10435 = vrot.slane %v10434, 4
  %v10436 = vmax.f32 %v10434, %v10435
  %v10437 = vrot.slane %v10436, 2
  %v10438 = vmax.f32 %v10436, %v10437
  %v10439 = vrot.slane %v10438, 1
  %v10440 = vmax.f32 %v10438, %v10439
  %v10441 = vsel %vm4020, %v8719, -inf
  %v10442 = vrot.slane %v10441, 4
  %v10443 = vmax.f32 %v10441, %v10442
  %v10444 = vrot.slane %v10443, 2
  %v10445 = vmax.f32 %v10443, %v10444
  %v10446 = vrot.slane %v10445, 1
  %v10447 = vmax.f32 %v10445, %v10446
  %v10448 = vsel %vm4020, %v8720, -inf
  %v10449 = vrot.slane %v10448, 4
  %v10450 = vmax.f32 %v10448, %v10449
  %v10451 = vrot.slane %v10450, 2
  %v10452 = vmax.f32 %v10450, %v10451
  %v10453 = vrot.slane %v10452, 1
  %v10454 = vmax.f32 %v10452, %v10453
  %v10455 = vsel %vm4020, %v8485, -inf
  %v10456 = vrot.slane %v10455, 4
  %v10457 = vmax.f32 %v10455, %v10456
  %v10458 = vrot.slane %v10457, 2
  %v10459 = vmax.f32 %v10457, %v10458
  %v10460 = vrot.slane %v10459, 1
  %v10461 = vmax.f32 %v10459, %v10460
  %v10462 = vsel %vm4020, %v8721, -inf
  %v10463 = vrot.slane %v10462, 4
  %v10464 = vmax.f32 %v10462, %v10463
  %v10465 = vrot.slane %v10464, 2
  %v10466 = vmax.f32 %v10464, %v10465
  %v10467 = vrot.slane %v10466, 1
  %v10468 = vmax.f32 %v10466, %v10467
  %v10469 = vsel %vm4020, %v8722, -inf
  %v10470 = vrot.slane %v10469, 4
  %v10471 = vmax.f32 %v10469, %v10470
  %v10472 = vrot.slane %v10471, 2
  %v10473 = vmax.f32 %v10471, %v10472
  %v10474 = vrot.slane %v10473, 1
  %v10475 = vmax.f32 %v10473, %v10474
  %v10476 = vsel %vm4020, %v8723, -inf
  %v10477 = vrot.slane %v10476, 4
  %v10478 = vmax.f32 %v10476, %v10477
  %v10479 = vrot.slane %v10478, 2
  %v10480 = vmax.f32 %v10478, %v10479
  %v10481 = vrot.slane %v10480, 1
  %v10482 = vmax.f32 %v10480, %v10481
  %v10483 = vsel %vm4020, %v8486, -inf
  %v10484 = vrot.slane %v10483, 4
  %v10485 = vmax.f32 %v10483, %v10484
  %v10486 = vrot.slane %v10485, 2
  %v10487 = vmax.f32 %v10485, %v10486
  %v10488 = vrot.slane %v10487, 1
  %v10489 = vmax.f32 %v10487, %v10488
  %v10490 = vsel %vm4020, %v8724, -inf
  %v10491 = vrot.slane %v10490, 4
  %v10492 = vmax.f32 %v10490, %v10491
  %v10493 = vrot.slane %v10492, 2
  %v10494 = vmax.f32 %v10492, %v10493
  %v10495 = vrot.slane %v10494, 1
  %v10496 = vmax.f32 %v10494, %v10495
  %v10497 = vsel %vm4020, %v8725, -inf
  %v10498 = vrot.slane %v10497, 4
  %v10499 = vmax.f32 %v10497, %v10498
  %v10500 = vrot.slane %v10499, 2
  %v10501 = vmax.f32 %v10499, %v10500
  %v10502 = vrot.slane %v10501, 1
  %v10503 = vmax.f32 %v10501, %v10502
  %v10504 = vsel %vm4020, %v8726, -inf
  %v10505 = vrot.slane %v10504, 4
  %v10506 = vmax.f32 %v10504, %v10505
  %v10507 = vrot.slane %v10506, 2
  %v10508 = vmax.f32 %v10506, %v10507
  %v10509 = vrot.slane %v10508, 1
  %v10510 = vmax.f32 %v10508, %v10509
  %v10511 = vsel %vm4020, %v8487, -inf
  %v10512 = vrot.slane %v10511, 4
  %v10513 = vmax.f32 %v10511, %v10512
  %v10514 = vrot.slane %v10513, 2
  %v10515 = vmax.f32 %v10513, %v10514
  %v10516 = vrot.slane %v10515, 1
  %v10517 = vmax.f32 %v10515, %v10516
  %v10518 = vsel %vm4020, %v8727, -inf
  %v10519 = vrot.slane %v10518, 4
  %v10520 = vmax.f32 %v10518, %v10519
  %v10521 = vrot.slane %v10520, 2
  %v10522 = vmax.f32 %v10520, %v10521
  %v10523 = vrot.slane %v10522, 1
  %v10524 = vmax.f32 %v10522, %v10523
  %v10525 = vsel %vm4020, %v8728, -inf
  %v10526 = vrot.slane %v10525, 4
  %v10527 = vmax.f32 %v10525, %v10526
  %v10528 = vrot.slane %v10527, 2
  %v10529 = vmax.f32 %v10527, %v10528
  %v10530 = vrot.slane %v10529, 1
  %v10531 = vmax.f32 %v10529, %v10530
  %v10532 = vsel %vm4020, %v8729, -inf
  %v10533 = vrot.slane %v10532, 4
  %v10534 = vmax.f32 %v10532, %v10533
  %v10535 = vrot.slane %v10534, 2
  %v10536 = vmax.f32 %v10534, %v10535
  %v10537 = vrot.slane %v10536, 1
  %v10538 = vmax.f32 %v10536, %v10537
  %v10539 = vsel %vm4020, %v8488, -inf
  %v10540 = vrot.slane %v10539, 4
  %v10541 = vmax.f32 %v10539, %v10540
  %v10542 = vrot.slane %v10541, 2
  %v10543 = vmax.f32 %v10541, %v10542
  %v10544 = vrot.slane %v10543, 1
  %v10545 = vmax.f32 %v10543, %v10544
  %v10546 = vsel %vm4020, %v8730, -inf
  %v10547 = vrot.slane %v10546, 4
  %v10548 = vmax.f32 %v10546, %v10547
  %v10549 = vrot.slane %v10548, 2
  %v10550 = vmax.f32 %v10548, %v10549
  %v10551 = vrot.slane %v10550, 1
  %v10552 = vmax.f32 %v10550, %v10551
  %v10553 = vsel %vm4020, %v8731, -inf
  %v10554 = vrot.slane %v10553, 4
  %v10555 = vmax.f32 %v10553, %v10554
  %v10556 = vrot.slane %v10555, 2
  %v10557 = vmax.f32 %v10555, %v10556
  %v10558 = vrot.slane %v10557, 1
  %v10559 = vmax.f32 %v10557, %v10558
  %v10560 = vsel %vm4020, %v8732, -inf
  %v10561 = vrot.slane %v10560, 4
  %v10562 = vmax.f32 %v10560, %v10561
  %v10563 = vrot.slane %v10562, 2
  %v10564 = vmax.f32 %v10562, %v10563
  %v10565 = vrot.slane %v10564, 1
  %v10566 = vmax.f32 %v10564, %v10565
  %v10567 = vsel %vm4020, %v8489, -inf
  %v10568 = vrot.slane %v10567, 4
  %v10569 = vmax.f32 %v10567, %v10568
  %v10570 = vrot.slane %v10569, 2
  %v10571 = vmax.f32 %v10569, %v10570
  %v10572 = vrot.slane %v10571, 1
  %v10573 = vmax.f32 %v10571, %v10572
  %v10574 = vsel %vm4020, %v8733, -inf
  %v10575 = vrot.slane %v10574, 4
  %v10576 = vmax.f32 %v10574, %v10575
  %v10577 = vrot.slane %v10576, 2
  %v10578 = vmax.f32 %v10576, %v10577
  %v10579 = vrot.slane %v10578, 1
  %v10580 = vmax.f32 %v10578, %v10579
  %v10581 = vsel %vm4020, %v8734, -inf
  %v10582 = vrot.slane %v10581, 4
  %v10583 = vmax.f32 %v10581, %v10582
  %v10584 = vrot.slane %v10583, 2
  %v10585 = vmax.f32 %v10583, %v10584
  %v10586 = vrot.slane %v10585, 1
  %v10587 = vmax.f32 %v10585, %v10586
  %v10588 = vsel %vm4020, %v8735, -inf
  %v10589 = vrot.slane %v10588, 4
  %v10590 = vmax.f32 %v10588, %v10589
  %v10591 = vrot.slane %v10590, 2
  %v10592 = vmax.f32 %v10590, %v10591
  %v10593 = vrot.slane %v10592, 1
  %v10594 = vmax.f32 %v10592, %v10593
  %v10595 = vsel %vm4020, %v8490, -inf
  %v10596 = vrot.slane %v10595, 4
  %v10597 = vmax.f32 %v10595, %v10596
  %v10598 = vrot.slane %v10597, 2
  %v10599 = vmax.f32 %v10597, %v10598
  %v10600 = vrot.slane %v10599, 1
  %v10601 = vmax.f32 %v10599, %v10600
  %v10602 = vsel %vm4020, %v8736, -inf
  %v10603 = vrot.slane %v10602, 4
  %v10604 = vmax.f32 %v10602, %v10603
  %v10605 = vrot.slane %v10604, 2
  %v10606 = vmax.f32 %v10604, %v10605
  %v10607 = vrot.slane %v10606, 1
  %v10608 = vmax.f32 %v10606, %v10607
  %v10609 = vsel %vm4020, %v8737, -inf
  %v10610 = vrot.slane %v10609, 4
  %v10611 = vmax.f32 %v10609, %v10610
  %v10612 = vrot.slane %v10611, 2
  %v10613 = vmax.f32 %v10611, %v10612
  %v10614 = vrot.slane %v10613, 1
  %v10615 = vmax.f32 %v10613, %v10614
  %v10616 = vsel %vm4020, %v8738, -inf
  %v10617 = vrot.slane %v10616, 4
  %v10618 = vmax.f32 %v10616, %v10617
  %v10619 = vrot.slane %v10618, 2
  %v10620 = vmax.f32 %v10618, %v10619
  %v10621 = vrot.slane %v10620, 1
  %v10622 = vmax.f32 %v10620, %v10621
  %v10623 = vsel %vm4020, %v8491, -inf
  %v10624 = vrot.slane %v10623, 4
  %v10625 = vmax.f32 %v10623, %v10624
  %v10626 = vrot.slane %v10625, 2
  %v10627 = vmax.f32 %v10625, %v10626
  %v10628 = vrot.slane %v10627, 1
  %v10629 = vmax.f32 %v10627, %v10628
  %v10630 = vsel %vm4020, %v8739, -inf
  %v10631 = vrot.slane %v10630, 4
  %v10632 = vmax.f32 %v10630, %v10631
  %v10633 = vrot.slane %v10632, 2
  %v10634 = vmax.f32 %v10632, %v10633
  %v10635 = vrot.slane %v10634, 1
  %v10636 = vmax.f32 %v10634, %v10635
  %v10637 = vsel %vm4020, %v8740, -inf
  %v10638 = vrot.slane %v10637, 4
  %v10639 = vmax.f32 %v10637, %v10638
  %v10640 = vrot.slane %v10639, 2
  %v10641 = vmax.f32 %v10639, %v10640
  %v10642 = vrot.slane %v10641, 1
  %v10643 = vmax.f32 %v10641, %v10642
  %v10644 = vsel %vm4020, %v8741, -inf
  %v10645 = vrot.slane %v10644, 4
  %v10646 = vmax.f32 %v10644, %v10645
  %v10647 = vrot.slane %v10646, 2
  %v10648 = vmax.f32 %v10646, %v10647
  %v10649 = vrot.slane %v10648, 1
  %v10650 = vmax.f32 %v10648, %v10649
  %v10651 = vsel %vm4020, %v8492, -inf
  %v10652 = vrot.slane %v10651, 4
  %v10653 = vmax.f32 %v10651, %v10652
  %v10654 = vrot.slane %v10653, 2
  %v10655 = vmax.f32 %v10653, %v10654
  %v10656 = vrot.slane %v10655, 1
  %v10657 = vmax.f32 %v10655, %v10656
  %v10658 = vsel %vm4020, %v8742, -inf
  %v10659 = vrot.slane %v10658, 4
  %v10660 = vmax.f32 %v10658, %v10659
  %v10661 = vrot.slane %v10660, 2
  %v10662 = vmax.f32 %v10660, %v10661
  %v10663 = vrot.slane %v10662, 1
  %v10664 = vmax.f32 %v10662, %v10663
  %v10665 = vsel %vm4020, %v8743, -inf
  %v10666 = vrot.slane %v10665, 4
  %v10667 = vmax.f32 %v10665, %v10666
  %v10668 = vrot.slane %v10667, 2
  %v10669 = vmax.f32 %v10667, %v10668
  %v10670 = vrot.slane %v10669, 1
  %v10671 = vmax.f32 %v10669, %v10670
  %v10672 = vsel %vm4020, %v8744, -inf
  %v10673 = vrot.slane %v10672, 4
  %v10674 = vmax.f32 %v10672, %v10673
  %v10675 = vrot.slane %v10674, 2
  %v10676 = vmax.f32 %v10674, %v10675
  %v10677 = vrot.slane %v10676, 1
  %v10678 = vmax.f32 %v10676, %v10677
  %v10679 = vsel %vm4020, %v8493, -inf
  %v10680 = vrot.slane %v10679, 4
  %v10681 = vmax.f32 %v10679, %v10680
  %v10682 = vrot.slane %v10681, 2
  %v10683 = vmax.f32 %v10681, %v10682
  %v10684 = vrot.slane %v10683, 1
  %v10685 = vmax.f32 %v10683, %v10684
  %v10686 = vsel %vm4020, %v8745, -inf
  %v10687 = vrot.slane %v10686, 4
  %v10688 = vmax.f32 %v10686, %v10687
  %v10689 = vrot.slane %v10688, 2
  %v10690 = vmax.f32 %v10688, %v10689
  %v10691 = vrot.slane %v10690, 1
  %v10692 = vmax.f32 %v10690, %v10691
  %v10693 = vsel %vm4020, %v8746, -inf
  %v10694 = vrot.slane %v10693, 4
  %v10695 = vmax.f32 %v10693, %v10694
  %v10696 = vrot.slane %v10695, 2
  %v10697 = vmax.f32 %v10695, %v10696
  %v10698 = vrot.slane %v10697, 1
  %v10699 = vmax.f32 %v10697, %v10698
  %v10700 = vsel %vm4020, %v8747, -inf
  %v10701 = vrot.slane %v10700, 4
  %v10702 = vmax.f32 %v10700, %v10701
  %v10703 = vrot.slane %v10702, 2
  %v10704 = vmax.f32 %v10702, %v10703
  %v10705 = vrot.slane %v10704, 1
  %v10706 = vmax.f32 %v10704, %v10705
  %v10707 = vsel %vm4020, %v8494, -inf
  %v10708 = vrot.slane %v10707, 4
  %v10709 = vmax.f32 %v10707, %v10708
  %v10710 = vrot.slane %v10709, 2
  %v10711 = vmax.f32 %v10709, %v10710
  %v10712 = vrot.slane %v10711, 1
  %v10713 = vmax.f32 %v10711, %v10712
  %v10714 = vsel %vm4020, %v8748, -inf
  %v10715 = vrot.slane %v10714, 4
  %v10716 = vmax.f32 %v10714, %v10715
  %v10717 = vrot.slane %v10716, 2
  %v10718 = vmax.f32 %v10716, %v10717
  %v10719 = vrot.slane %v10718, 1
  %v10720 = vmax.f32 %v10718, %v10719
  %v10721 = vsel %vm4020, %v8749, -inf
  %v10722 = vrot.slane %v10721, 4
  %v10723 = vmax.f32 %v10721, %v10722
  %v10724 = vrot.slane %v10723, 2
  %v10725 = vmax.f32 %v10723, %v10724
  %v10726 = vrot.slane %v10725, 1
  %v10727 = vmax.f32 %v10725, %v10726
  %v10728 = vsel %vm4020, %v8750, -inf
  %v10729 = vrot.slane %v10728, 4
  %v10730 = vmax.f32 %v10728, %v10729
  %v10731 = vrot.slane %v10730, 2
  %v10732 = vmax.f32 %v10730, %v10731
  %v10733 = vrot.slane %v10732, 1
  %v10734 = vmax.f32 %v10732, %v10733
  %v10735 = vsel %vm4017, %v8949, -inf
  %v10736 = vsel %vm4017, %v9005, -inf
  %v10737 = vmax.f32 %v10735, %v10736
  %v10738 = vsel %vm4017, %v8956, -inf
  %v10739 = vsel %vm4017, %v9012, -inf
  %v10740 = vmax.f32 %v10738, %v10739
  %v10741 = vsel %vm4017, %v8963, -inf
  %v10742 = vsel %vm4017, %v9019, -inf
  %v10743 = vmax.f32 %v10741, %v10742
  %v10744 = vsel %vm4017, %v8970, -inf
  %v10745 = vsel %vm4017, %v9026, -inf
  %v10746 = vmax.f32 %v10744, %v10745
  %v10747 = vsel %vm4017, %v8977, -inf
  %v10748 = vsel %vm4017, %v9033, -inf
  %v10749 = vmax.f32 %v10747, %v10748
  %v10750 = vsel %vm4017, %v8984, -inf
  %v10751 = vsel %vm4017, %v9040, -inf
  %v10752 = vmax.f32 %v10750, %v10751
  %v10753 = vsel %vm4017, %v8991, -inf
  %v10754 = vsel %vm4017, %v9047, -inf
  %v10755 = vmax.f32 %v10753, %v10754
  %v10756 = vsel %vm4017, %v8998, -inf
  %v10757 = vsel %vm4017, %v9054, -inf
  %v10758 = vmax.f32 %v10756, %v10757
  %v10759 = vsel %vm4017, %v9061, -inf
  %v10760 = vsel %vm4017, %v9117, -inf
  %v10761 = vmax.f32 %v10759, %v10760
  %v10762 = vsel %vm4017, %v9068, -inf
  %v10763 = vsel %vm4017, %v9124, -inf
  %v10764 = vmax.f32 %v10762, %v10763
  %v10765 = vsel %vm4017, %v9075, -inf
  %v10766 = vsel %vm4017, %v9131, -inf
  %v10767 = vmax.f32 %v10765, %v10766
  %v10768 = vsel %vm4017, %v9082, -inf
  %v10769 = vsel %vm4017, %v9138, -inf
  %v10770 = vmax.f32 %v10768, %v10769
  %v10771 = vsel %vm4017, %v9089, -inf
  %v10772 = vsel %vm4017, %v9145, -inf
  %v10773 = vmax.f32 %v10771, %v10772
  %v10774 = vsel %vm4017, %v9096, -inf
  %v10775 = vsel %vm4017, %v9152, -inf
  %v10776 = vmax.f32 %v10774, %v10775
  %v10777 = vsel %vm4017, %v9103, -inf
  %v10778 = vsel %vm4017, %v9159, -inf
  %v10779 = vmax.f32 %v10777, %v10778
  %v10780 = vsel %vm4017, %v9110, -inf
  %v10781 = vsel %vm4017, %v9166, -inf
  %v10782 = vmax.f32 %v10780, %v10781
  %v10783 = vsel %vm4017, %v9173, -inf
  %v10784 = vsel %vm4017, %v9229, -inf
  %v10785 = vmax.f32 %v10783, %v10784
  %v10786 = vsel %vm4017, %v9180, -inf
  %v10787 = vsel %vm4017, %v9236, -inf
  %v10788 = vmax.f32 %v10786, %v10787
  %v10789 = vsel %vm4017, %v9187, -inf
  %v10790 = vsel %vm4017, %v9243, -inf
  %v10791 = vmax.f32 %v10789, %v10790
  %v10792 = vsel %vm4017, %v9194, -inf
  %v10793 = vsel %vm4017, %v9250, -inf
  %v10794 = vmax.f32 %v10792, %v10793
  %v10795 = vsel %vm4017, %v9201, -inf
  %v10796 = vsel %vm4017, %v9257, -inf
  %v10797 = vmax.f32 %v10795, %v10796
  %v10798 = vsel %vm4017, %v9208, -inf
  %v10799 = vsel %vm4017, %v9264, -inf
  %v10800 = vmax.f32 %v10798, %v10799
  %v10801 = vsel %vm4017, %v9215, -inf
  %v10802 = vsel %vm4017, %v9271, -inf
  %v10803 = vmax.f32 %v10801, %v10802
  %v10804 = vsel %vm4017, %v9222, -inf
  %v10805 = vsel %vm4017, %v9278, -inf
  %v10806 = vmax.f32 %v10804, %v10805
  %v10807 = vsel %vm4017, %v9285, -inf
  %v10808 = vsel %vm4017, %v9341, -inf
  %v10809 = vmax.f32 %v10807, %v10808
  %v10810 = vsel %vm4017, %v9292, -inf
  %v10811 = vsel %vm4017, %v9348, -inf
  %v10812 = vmax.f32 %v10810, %v10811
  %v10813 = vsel %vm4017, %v9299, -inf
  %v10814 = vsel %vm4017, %v9355, -inf
  %v10815 = vmax.f32 %v10813, %v10814
  %v10816 = vsel %vm4017, %v9306, -inf
  %v10817 = vsel %vm4017, %v9362, -inf
  %v10818 = vmax.f32 %v10816, %v10817
  %v10819 = vsel %vm4017, %v9313, -inf
  %v10820 = vsel %vm4017, %v9369, -inf
  %v10821 = vmax.f32 %v10819, %v10820
  %v10822 = vsel %vm4017, %v9320, -inf
  %v10823 = vsel %vm4017, %v9376, -inf
  %v10824 = vmax.f32 %v10822, %v10823
  %v10825 = vsel %vm4017, %v9327, -inf
  %v10826 = vsel %vm4017, %v9383, -inf
  %v10827 = vmax.f32 %v10825, %v10826
  %v10828 = vsel %vm4017, %v9334, -inf
  %v10829 = vsel %vm4017, %v9390, -inf
  %v10830 = vmax.f32 %v10828, %v10829
  %v10831 = vsel %vm4017, %v9397, -inf
  %v10832 = vsel %vm4017, %v9453, -inf
  %v10833 = vmax.f32 %v10831, %v10832
  %v10834 = vsel %vm4017, %v9404, -inf
  %v10835 = vsel %vm4017, %v9460, -inf
  %v10836 = vmax.f32 %v10834, %v10835
  %v10837 = vsel %vm4017, %v9411, -inf
  %v10838 = vsel %vm4017, %v9467, -inf
  %v10839 = vmax.f32 %v10837, %v10838
  %v10840 = vsel %vm4017, %v9418, -inf
  %v10841 = vsel %vm4017, %v9474, -inf
  %v10842 = vmax.f32 %v10840, %v10841
  %v10843 = vsel %vm4017, %v9425, -inf
  %v10844 = vsel %vm4017, %v9481, -inf
  %v10845 = vmax.f32 %v10843, %v10844
  %v10846 = vsel %vm4017, %v9432, -inf
  %v10847 = vsel %vm4017, %v9488, -inf
  %v10848 = vmax.f32 %v10846, %v10847
  %v10849 = vsel %vm4017, %v9439, -inf
  %v10850 = vsel %vm4017, %v9495, -inf
  %v10851 = vmax.f32 %v10849, %v10850
  %v10852 = vsel %vm4017, %v9446, -inf
  %v10853 = vsel %vm4017, %v9502, -inf
  %v10854 = vmax.f32 %v10852, %v10853
  %v10855 = vsel %vm4017, %v9509, -inf
  %v10856 = vsel %vm4017, %v9565, -inf
  %v10857 = vmax.f32 %v10855, %v10856
  %v10858 = vsel %vm4017, %v9516, -inf
  %v10859 = vsel %vm4017, %v9572, -inf
  %v10860 = vmax.f32 %v10858, %v10859
  %v10861 = vsel %vm4017, %v9523, -inf
  %v10862 = vsel %vm4017, %v9579, -inf
  %v10863 = vmax.f32 %v10861, %v10862
  %v10864 = vsel %vm4017, %v9530, -inf
  %v10865 = vsel %vm4017, %v9586, -inf
  %v10866 = vmax.f32 %v10864, %v10865
  %v10867 = vsel %vm4017, %v9537, -inf
  %v10868 = vsel %vm4017, %v9593, -inf
  %v10869 = vmax.f32 %v10867, %v10868
  %v10870 = vsel %vm4017, %v9544, -inf
  %v10871 = vsel %vm4017, %v9600, -inf
  %v10872 = vmax.f32 %v10870, %v10871
  %v10873 = vsel %vm4017, %v9551, -inf
  %v10874 = vsel %vm4017, %v9607, -inf
  %v10875 = vmax.f32 %v10873, %v10874
  %v10876 = vsel %vm4017, %v9558, -inf
  %v10877 = vsel %vm4017, %v9614, -inf
  %v10878 = vmax.f32 %v10876, %v10877
  %v10879 = vsel %vm4017, %v9621, -inf
  %v10880 = vsel %vm4017, %v9677, -inf
  %v10881 = vmax.f32 %v10879, %v10880
  %v10882 = vsel %vm4017, %v9628, -inf
  %v10883 = vsel %vm4017, %v9684, -inf
  %v10884 = vmax.f32 %v10882, %v10883
  %v10885 = vsel %vm4017, %v9635, -inf
  %v10886 = vsel %vm4017, %v9691, -inf
  %v10887 = vmax.f32 %v10885, %v10886
  %v10888 = vsel %vm4017, %v9642, -inf
  %v10889 = vsel %vm4017, %v9698, -inf
  %v10890 = vmax.f32 %v10888, %v10889
  %v10891 = vsel %vm4017, %v9649, -inf
  %v10892 = vsel %vm4017, %v9705, -inf
  %v10893 = vmax.f32 %v10891, %v10892
  %v10894 = vsel %vm4017, %v9656, -inf
  %v10895 = vsel %vm4017, %v9712, -inf
  %v10896 = vmax.f32 %v10894, %v10895
  %v10897 = vsel %vm4017, %v9663, -inf
  %v10898 = vsel %vm4017, %v9719, -inf
  %v10899 = vmax.f32 %v10897, %v10898
  %v10900 = vsel %vm4017, %v9670, -inf
  %v10901 = vsel %vm4017, %v9726, -inf
  %v10902 = vmax.f32 %v10900, %v10901
  %v10903 = vsel %vm4017, %v9733, -inf
  %v10904 = vsel %vm4017, %v9789, -inf
  %v10905 = vmax.f32 %v10903, %v10904
  %v10906 = vsel %vm4017, %v9740, -inf
  %v10907 = vsel %vm4017, %v9796, -inf
  %v10908 = vmax.f32 %v10906, %v10907
  %v10909 = vsel %vm4017, %v9747, -inf
  %v10910 = vsel %vm4017, %v9803, -inf
  %v10911 = vmax.f32 %v10909, %v10910
  %v10912 = vsel %vm4017, %v9754, -inf
  %v10913 = vsel %vm4017, %v9810, -inf
  %v10914 = vmax.f32 %v10912, %v10913
  %v10915 = vsel %vm4017, %v9761, -inf
  %v10916 = vsel %vm4017, %v9817, -inf
  %v10917 = vmax.f32 %v10915, %v10916
  %v10918 = vsel %vm4017, %v9768, -inf
  %v10919 = vsel %vm4017, %v9824, -inf
  %v10920 = vmax.f32 %v10918, %v10919
  %v10921 = vsel %vm4017, %v9775, -inf
  %v10922 = vsel %vm4017, %v9831, -inf
  %v10923 = vmax.f32 %v10921, %v10922
  %v10924 = vsel %vm4017, %v9782, -inf
  %v10925 = vsel %vm4017, %v9838, -inf
  %v10926 = vmax.f32 %v10924, %v10925
  %v10927 = vsel %vm4017, %v9845, -inf
  %v10928 = vsel %vm4017, %v9901, -inf
  %v10929 = vmax.f32 %v10927, %v10928
  %v10930 = vsel %vm4017, %v9852, -inf
  %v10931 = vsel %vm4017, %v9908, -inf
  %v10932 = vmax.f32 %v10930, %v10931
  %v10933 = vsel %vm4017, %v9859, -inf
  %v10934 = vsel %vm4017, %v9915, -inf
  %v10935 = vmax.f32 %v10933, %v10934
  %v10936 = vsel %vm4017, %v9866, -inf
  %v10937 = vsel %vm4017, %v9922, -inf
  %v10938 = vmax.f32 %v10936, %v10937
  %v10939 = vsel %vm4017, %v9873, -inf
  %v10940 = vsel %vm4017, %v9929, -inf
  %v10941 = vmax.f32 %v10939, %v10940
  %v10942 = vsel %vm4017, %v9880, -inf
  %v10943 = vsel %vm4017, %v9936, -inf
  %v10944 = vmax.f32 %v10942, %v10943
  %v10945 = vsel %vm4017, %v9887, -inf
  %v10946 = vsel %vm4017, %v9943, -inf
  %v10947 = vmax.f32 %v10945, %v10946
  %v10948 = vsel %vm4017, %v9894, -inf
  %v10949 = vsel %vm4017, %v9950, -inf
  %v10950 = vmax.f32 %v10948, %v10949
  %v10951 = vsel %vm4017, %v9957, -inf
  %v10952 = vsel %vm4017, %v10013, -inf
  %v10953 = vmax.f32 %v10951, %v10952
  %v10954 = vsel %vm4017, %v9964, -inf
  %v10955 = vsel %vm4017, %v10020, -inf
  %v10956 = vmax.f32 %v10954, %v10955
  %v10957 = vsel %vm4017, %v9971, -inf
  %v10958 = vsel %vm4017, %v10027, -inf
  %v10959 = vmax.f32 %v10957, %v10958
  %v10960 = vsel %vm4017, %v9978, -inf
  %v10961 = vsel %vm4017, %v10034, -inf
  %v10962 = vmax.f32 %v10960, %v10961
  %v10963 = vsel %vm4017, %v9985, -inf
  %v10964 = vsel %vm4017, %v10041, -inf
  %v10965 = vmax.f32 %v10963, %v10964
  %v10966 = vsel %vm4017, %v9992, -inf
  %v10967 = vsel %vm4017, %v10048, -inf
  %v10968 = vmax.f32 %v10966, %v10967
  %v10969 = vsel %vm4017, %v9999, -inf
  %v10970 = vsel %vm4017, %v10055, -inf
  %v10971 = vmax.f32 %v10969, %v10970
  %v10972 = vsel %vm4017, %v10006, -inf
  %v10973 = vsel %vm4017, %v10062, -inf
  %v10974 = vmax.f32 %v10972, %v10973
  %v10975 = vsel %vm4017, %v10069, -inf
  %v10976 = vsel %vm4017, %v10125, -inf
  %v10977 = vmax.f32 %v10975, %v10976
  %v10978 = vsel %vm4017, %v10076, -inf
  %v10979 = vsel %vm4017, %v10132, -inf
  %v10980 = vmax.f32 %v10978, %v10979
  %v10981 = vsel %vm4017, %v10083, -inf
  %v10982 = vsel %vm4017, %v10139, -inf
  %v10983 = vmax.f32 %v10981, %v10982
  %v10984 = vsel %vm4017, %v10090, -inf
  %v10985 = vsel %vm4017, %v10146, -inf
  %v10986 = vmax.f32 %v10984, %v10985
  %v10987 = vsel %vm4017, %v10097, -inf
  %v10988 = vsel %vm4017, %v10153, -inf
  %v10989 = vmax.f32 %v10987, %v10988
  %v10990 = vsel %vm4017, %v10104, -inf
  %v10991 = vsel %vm4017, %v10160, -inf
  %v10992 = vmax.f32 %v10990, %v10991
  %v10993 = vsel %vm4017, %v10111, -inf
  %v10994 = vsel %vm4017, %v10167, -inf
  %v10995 = vmax.f32 %v10993, %v10994
  %v10996 = vsel %vm4017, %v10118, -inf
  %v10997 = vsel %vm4017, %v10174, -inf
  %v10998 = vmax.f32 %v10996, %v10997
  %v10999 = vsel %vm4017, %v10181, -inf
  %v11000 = vsel %vm4017, %v10237, -inf
  %v11001 = vmax.f32 %v10999, %v11000
  %v11002 = vsel %vm4017, %v10188, -inf
  %v11003 = vsel %vm4017, %v10244, -inf
  %v11004 = vmax.f32 %v11002, %v11003
  %v11005 = vsel %vm4017, %v10195, -inf
  %v11006 = vsel %vm4017, %v10251, -inf
  %v11007 = vmax.f32 %v11005, %v11006
  %v11008 = vsel %vm4017, %v10202, -inf
  %v11009 = vsel %vm4017, %v10258, -inf
  %v11010 = vmax.f32 %v11008, %v11009
  %v11011 = vsel %vm4017, %v10209, -inf
  %v11012 = vsel %vm4017, %v10265, -inf
  %v11013 = vmax.f32 %v11011, %v11012
  %v11014 = vsel %vm4017, %v10216, -inf
  %v11015 = vsel %vm4017, %v10272, -inf
  %v11016 = vmax.f32 %v11014, %v11015
  %v11017 = vsel %vm4017, %v10223, -inf
  %v11018 = vsel %vm4017, %v10279, -inf
  %v11019 = vmax.f32 %v11017, %v11018
  %v11020 = vsel %vm4017, %v10230, -inf
  %v11021 = vsel %vm4017, %v10286, -inf
  %v11022 = vmax.f32 %v11020, %v11021
  %v11023 = vsel %vm4017, %v10293, -inf
  %v11024 = vsel %vm4017, %v10349, -inf
  %v11025 = vmax.f32 %v11023, %v11024
  %v11026 = vsel %vm4017, %v10300, -inf
  %v11027 = vsel %vm4017, %v10356, -inf
  %v11028 = vmax.f32 %v11026, %v11027
  %v11029 = vsel %vm4017, %v10307, -inf
  %v11030 = vsel %vm4017, %v10363, -inf
  %v11031 = vmax.f32 %v11029, %v11030
  %v11032 = vsel %vm4017, %v10314, -inf
  %v11033 = vsel %vm4017, %v10370, -inf
  %v11034 = vmax.f32 %v11032, %v11033
  %v11035 = vsel %vm4017, %v10321, -inf
  %v11036 = vsel %vm4017, %v10377, -inf
  %v11037 = vmax.f32 %v11035, %v11036
  %v11038 = vsel %vm4017, %v10328, -inf
  %v11039 = vsel %vm4017, %v10384, -inf
  %v11040 = vmax.f32 %v11038, %v11039
  %v11041 = vsel %vm4017, %v10335, -inf
  %v11042 = vsel %vm4017, %v10391, -inf
  %v11043 = vmax.f32 %v11041, %v11042
  %v11044 = vsel %vm4017, %v10342, -inf
  %v11045 = vsel %vm4017, %v10398, -inf
  %v11046 = vmax.f32 %v11044, %v11045
  %v11047 = vsel %vm4017, %v10405, -inf
  %v11048 = vsel %vm4017, %v10461, -inf
  %v11049 = vmax.f32 %v11047, %v11048
  %v11050 = vsel %vm4017, %v10412, -inf
  %v11051 = vsel %vm4017, %v10468, -inf
  %v11052 = vmax.f32 %v11050, %v11051
  %v11053 = vsel %vm4017, %v10419, -inf
  %v11054 = vsel %vm4017, %v10475, -inf
  %v11055 = vmax.f32 %v11053, %v11054
  %v11056 = vsel %vm4017, %v10426, -inf
  %v11057 = vsel %vm4017, %v10482, -inf
  %v11058 = vmax.f32 %v11056, %v11057
  %v11059 = vsel %vm4017, %v10433, -inf
  %v11060 = vsel %vm4017, %v10489, -inf
  %v11061 = vmax.f32 %v11059, %v11060
  %v11062 = vsel %vm4017, %v10440, -inf
  %v11063 = vsel %vm4017, %v10496, -inf
  %v11064 = vmax.f32 %v11062, %v11063
  %v11065 = vsel %vm4017, %v10447, -inf
  %v11066 = vsel %vm4017, %v10503, -inf
  %v11067 = vmax.f32 %v11065, %v11066
  %v11068 = vsel %vm4017, %v10454, -inf
  %v11069 = vsel %vm4017, %v10510, -inf
  %v11070 = vmax.f32 %v11068, %v11069
  %v11071 = vsel %vm4017, %v10517, -inf
  %v11072 = vsel %vm4017, %v10573, -inf
  %v11073 = vmax.f32 %v11071, %v11072
  %v11074 = vsel %vm4017, %v10524, -inf
  %v11075 = vsel %vm4017, %v10580, -inf
  %v11076 = vmax.f32 %v11074, %v11075
  %v11077 = vsel %vm4017, %v10531, -inf
  %v11078 = vsel %vm4017, %v10587, -inf
  %v11079 = vmax.f32 %v11077, %v11078
  %v11080 = vsel %vm4017, %v10538, -inf
  %v11081 = vsel %vm4017, %v10594, -inf
  %v11082 = vmax.f32 %v11080, %v11081
  %v11083 = vsel %vm4017, %v10545, -inf
  %v11084 = vsel %vm4017, %v10601, -inf
  %v11085 = vmax.f32 %v11083, %v11084
  %v11086 = vsel %vm4017, %v10552, -inf
  %v11087 = vsel %vm4017, %v10608, -inf
  %v11088 = vmax.f32 %v11086, %v11087
  %v11089 = vsel %vm4017, %v10559, -inf
  %v11090 = vsel %vm4017, %v10615, -inf
  %v11091 = vmax.f32 %v11089, %v11090
  %v11092 = vsel %vm4017, %v10566, -inf
  %v11093 = vsel %vm4017, %v10622, -inf
  %v11094 = vmax.f32 %v11092, %v11093
  %v11095 = vsel %vm4017, %v10629, -inf
  %v11096 = vsel %vm4017, %v10685, -inf
  %v11097 = vmax.f32 %v11095, %v11096
  %v11098 = vsel %vm4017, %v10636, -inf
  %v11099 = vsel %vm4017, %v10692, -inf
  %v11100 = vmax.f32 %v11098, %v11099
  %v11101 = vsel %vm4017, %v10643, -inf
  %v11102 = vsel %vm4017, %v10699, -inf
  %v11103 = vmax.f32 %v11101, %v11102
  %v11104 = vsel %vm4017, %v10650, -inf
  %v11105 = vsel %vm4017, %v10706, -inf
  %v11106 = vmax.f32 %v11104, %v11105
  %v11107 = vsel %vm4017, %v10657, -inf
  %v11108 = vsel %vm4017, %v10713, -inf
  %v11109 = vmax.f32 %v11107, %v11108
  %v11110 = vsel %vm4017, %v10664, -inf
  %v11111 = vsel %vm4017, %v10720, -inf
  %v11112 = vmax.f32 %v11110, %v11111
  %v11113 = vsel %vm4017, %v10671, -inf
  %v11114 = vsel %vm4017, %v10727, -inf
  %v11115 = vmax.f32 %v11113, %v11114
  %v11116 = vsel %vm4017, %v10678, -inf
  %v11117 = vsel %vm4017, %v10734, -inf
  %v11118 = vmax.f32 %v11116, %v11117
  %vm11247 = vcmask 1041409
  %v11248 = vsel %vm11247, %v10740, %v10737
  %vm11249 = vcmask 1042434
  %v11250 = vsel %vm11249, %v10743, %v11248
  %vm11251 = vcmask 1043459
  %v11252 = vsel %vm11251, %v10746, %v11250
  %vm11253 = vcmask 1044484
  %v11254 = vsel %vm11253, %v10749, %v11252
  %vm11255 = vcmask 1045509
  %v11256 = vsel %vm11255, %v10752, %v11254
  %vm11257 = vcmask 1046534
  %v11258 = vsel %vm11257, %v10755, %v11256
  %vm11259 = vcmask 1047559
  %v11260 = vsel %vm11259, %v10758, %v11258
  %v11261 = vsel %vm11247, %v10764, %v10761
  %v11262 = vsel %vm11249, %v10767, %v11261
  %v11263 = vsel %vm11251, %v10770, %v11262
  %v11264 = vsel %vm11253, %v10773, %v11263
  %v11265 = vsel %vm11255, %v10776, %v11264
  %v11266 = vsel %vm11257, %v10779, %v11265
  %v11267 = vsel %vm11259, %v10782, %v11266
  %v11268 = vsel %vm11247, %v10788, %v10785
  %v11269 = vsel %vm11249, %v10791, %v11268
  %v11270 = vsel %vm11251, %v10794, %v11269
  %v11271 = vsel %vm11253, %v10797, %v11270
  %v11272 = vsel %vm11255, %v10800, %v11271
  %v11273 = vsel %vm11257, %v10803, %v11272
  %v11274 = vsel %vm11259, %v10806, %v11273
  %v11275 = vsel %vm11247, %v10812, %v10809
  %v11276 = vsel %vm11249, %v10815, %v11275
  %v11277 = vsel %vm11251, %v10818, %v11276
  %v11278 = vsel %vm11253, %v10821, %v11277
  %v11279 = vsel %vm11255, %v10824, %v11278
  %v11280 = vsel %vm11257, %v10827, %v11279
  %v11281 = vsel %vm11259, %v10830, %v11280
  %v11282 = vsel %vm11247, %v10836, %v10833
  %v11283 = vsel %vm11249, %v10839, %v11282
  %v11284 = vsel %vm11251, %v10842, %v11283
  %v11285 = vsel %vm11253, %v10845, %v11284
  %v11286 = vsel %vm11255, %v10848, %v11285
  %v11287 = vsel %vm11257, %v10851, %v11286
  %v11288 = vsel %vm11259, %v10854, %v11287
  %v11289 = vsel %vm11247, %v10860, %v10857
  %v11290 = vsel %vm11249, %v10863, %v11289
  %v11291 = vsel %vm11251, %v10866, %v11290
  %v11292 = vsel %vm11253, %v10869, %v11291
  %v11293 = vsel %vm11255, %v10872, %v11292
  %v11294 = vsel %vm11257, %v10875, %v11293
  %v11295 = vsel %vm11259, %v10878, %v11294
  %v11296 = vsel %vm11247, %v10884, %v10881
  %v11297 = vsel %vm11249, %v10887, %v11296
  %v11298 = vsel %vm11251, %v10890, %v11297
  %v11299 = vsel %vm11253, %v10893, %v11298
  %v11300 = vsel %vm11255, %v10896, %v11299
  %v11301 = vsel %vm11257, %v10899, %v11300
  %v11302 = vsel %vm11259, %v10902, %v11301
  %v11303 = vsel %vm11247, %v10908, %v10905
  %v11304 = vsel %vm11249, %v10911, %v11303
  %v11305 = vsel %vm11251, %v10914, %v11304
  %v11306 = vsel %vm11253, %v10917, %v11305
  %v11307 = vsel %vm11255, %v10920, %v11306
  %v11308 = vsel %vm11257, %v10923, %v11307
  %v11309 = vsel %vm11259, %v10926, %v11308
  %v11310 = vsel %vm11247, %v10932, %v10929
  %v11311 = vsel %vm11249, %v10935, %v11310
  %v11312 = vsel %vm11251, %v10938, %v11311
  %v11313 = vsel %vm11253, %v10941, %v11312
  %v11314 = vsel %vm11255, %v10944, %v11313
  %v11315 = vsel %vm11257, %v10947, %v11314
  %v11316 = vsel %vm11259, %v10950, %v11315
  %v11317 = vsel %vm11247, %v10956, %v10953
  %v11318 = vsel %vm11249, %v10959, %v11317
  %v11319 = vsel %vm11251, %v10962, %v11318
  %v11320 = vsel %vm11253, %v10965, %v11319
  %v11321 = vsel %vm11255, %v10968, %v11320
  %v11322 = vsel %vm11257, %v10971, %v11321
  %v11323 = vsel %vm11259, %v10974, %v11322
  %v11324 = vsel %vm11247, %v10980, %v10977
  %v11325 = vsel %vm11249, %v10983, %v11324
  %v11326 = vsel %vm11251, %v10986, %v11325
  %v11327 = vsel %vm11253, %v10989, %v11326
  %v11328 = vsel %vm11255, %v10992, %v11327
  %v11329 = vsel %vm11257, %v10995, %v11328
  %v11330 = vsel %vm11259, %v10998, %v11329
  %v11331 = vsel %vm11247, %v11004, %v11001
  %v11332 = vsel %vm11249, %v11007, %v11331
  %v11333 = vsel %vm11251, %v11010, %v11332
  %v11334 = vsel %vm11253, %v11013, %v11333
  %v11335 = vsel %vm11255, %v11016, %v11334
  %v11336 = vsel %vm11257, %v11019, %v11335
  %v11337 = vsel %vm11259, %v11022, %v11336
  %v11338 = vsel %vm11247, %v11028, %v11025
  %v11339 = vsel %vm11249, %v11031, %v11338
  %v11340 = vsel %vm11251, %v11034, %v11339
  %v11341 = vsel %vm11253, %v11037, %v11340
  %v11342 = vsel %vm11255, %v11040, %v11341
  %v11343 = vsel %vm11257, %v11043, %v11342
  %v11344 = vsel %vm11259, %v11046, %v11343
  %v11345 = vsel %vm11247, %v11052, %v11049
  %v11346 = vsel %vm11249, %v11055, %v11345
  %v11347 = vsel %vm11251, %v11058, %v11346
  %v11348 = vsel %vm11253, %v11061, %v11347
  %v11349 = vsel %vm11255, %v11064, %v11348
  %v11350 = vsel %vm11257, %v11067, %v11349
  %v11351 = vsel %vm11259, %v11070, %v11350
  %v11352 = vsel %vm11247, %v11076, %v11073
  %v11353 = vsel %vm11249, %v11079, %v11352
  %v11354 = vsel %vm11251, %v11082, %v11353
  %v11355 = vsel %vm11253, %v11085, %v11354
  %v11356 = vsel %vm11255, %v11088, %v11355
  %v11357 = vsel %vm11257, %v11091, %v11356
  %v11358 = vsel %vm11259, %v11094, %v11357
  %v11359 = vsel %vm11247, %v11100, %v11097
  %v11360 = vsel %vm11249, %v11103, %v11359
  %v11361 = vsel %vm11251, %v11106, %v11360
  %v11362 = vsel %vm11253, %v11109, %v11361
  %v11363 = vsel %vm11255, %v11112, %v11362
  %v11364 = vsel %vm11257, %v11115, %v11363
  %v11365 = vsel %vm11259, %v11118, %v11364
  %11382 = vst.msk [vmem:[%s7] sm:$0xff] %vm4017, %v11260
  %11383 = vst.msk [vmem:[%s7 + $0x8] sm:$0xff] %vm4017, %v11267
  %11384 = vst.msk [vmem:[%s7 + $0x10] sm:$0xff] %vm4017, %v11274
  %11385 = vst.msk [vmem:[%s7 + $0x18] sm:$0xff] %vm4017, %v11281
  %11386 = vst.msk [vmem:[%s7 + $0x20] sm:$0xff] %vm4017, %v11288
  %11387 = vst.msk [vmem:[%s7 + $0x28] sm:$0xff] %vm4017, %v11295
  %11388 = vst.msk [vmem:[%s7 + $0x30] sm:$0xff] %vm4017, %v11302
  %11389 = vst.msk [vmem:[%s7 + $0x38] sm:$0xff] %vm4017, %v11309
  %11390 = vst.msk [vmem:[%s7 + $0x40] sm:$0xff] %vm4017, %v11316
  %11391 = vst.msk [vmem:[%s7 + $0x48] sm:$0xff] %vm4017, %v11323
  %11392 = vst.msk [vmem:[%s7 + $0x50] sm:$0xff] %vm4017, %v11330
  %11393 = vst.msk [vmem:[%s7 + $0x58] sm:$0xff] %vm4017, %v11337
  %11394 = vst.msk [vmem:[%s7 + $0x60] sm:$0xff] %vm4017, %v11344
  %11395 = vst.msk [vmem:[%s7 + $0x68] sm:$0xff] %vm4017, %v11351
  %11396 = vst.msk [vmem:[%s7 + $0x70] sm:$0xff] %vm4017, %v11358
  %11397 = vst.msk [vmem:[%s7 + $0x78] sm:$0xff] %vm4017, %v11365
  // Predicated region
  $region30: #{conv_block_forward.1} parent=0 // pred_check
    _
  $region31: #{conv_block_forward.1} parent=0 // pred_check_branch
    %11399 = sbr.rel (0) target = $region33
  $region32: #{conv_block_forward.1} parent=0 // pred_region
    _
  $region33: #{conv_block_forward.1} parent=0 // pred_fallthru
    _
  // Predicated region
  $region34: #{conv_block_forward.1} parent=0 // pred_check
    _
  $region35: #{conv_block_forward.1} parent=0 // pred_check_branch
    %11401 = sbr.rel (0) target = $region37
  $region36: #{conv_block_forward.1} parent=0 // pred_region
    _
  $region37: #{conv_block_forward.1} parent=0 // pred_fallthru
    _

</llo_original>
